<compile_context>
chip_gen: v7x
topology: tpu7x:2x2x1
jax: 0.10.0
libtpu: 0.0.40
codegen_flags: <defaults>
</compile_context>

<pallas_src>
import functools
import math

import jax
import jax.numpy as jnp
from jax.experimental import pallas as pl
from jax.experimental.pallas import tpu as pltpu

_BN_EPS = 1e-5
_CPAD = 128                       # lane-dense channel width carried through the conv stack
_VMEM_LIMIT = 32 * 1024 * 1024    # explicit scoped-VMEM budget (safe on v5e/v6e/v7x)


def _rup(x, m):
    return -(-x // m) * m


# ------------------- fused conv (im2col-matmul) + BN(train) + ReLU -------------------

def _conv_bn_relu_kernel(p_ref, w_ref, g_ref, b_ref, o_ref):
    # bf16 operands, f32 MXU accumulation; output lanes padded to 128 (lane-dense).
    acc = jnp.dot(p_ref[...], w_ref[...], preferred_element_type=jnp.float32)  # (M, 128)
    # Training-mode BatchNorm over all N*Ho*Wo rows, on the VMEM-resident accumulator
    # (biased variance, like the PyTorch forward).
    mean = jnp.mean(acc, axis=0, keepdims=True)
    var = jnp.mean(jnp.square(acc - mean), axis=0, keepdims=True)
    inv = jax.lax.rsqrt(var + _BN_EPS)
    y = (acc - mean) * inv * g_ref[...] + b_ref[...]
    o_ref[...] = jnp.maximum(y, 0.0).astype(o_ref.dtype)


def _im2col_nhwc(x_nhwc, k, stride, pad):
    """Patches straight from the NHWC slab; K ordered (kh, kw, c) -- no transposes."""
    N, H, W, C = x_nhwc.shape
    Ho = (H + 2 * pad - k) // stride + 1
    Wo = (W + 2 * pad - k) // stride + 1
    xp = jnp.pad(x_nhwc, ((0, 0), (pad, pad), (pad, pad), (0, 0)))
    cols = []
    for kh in range(k):
        for kw in range(k):
            cols.append(xp[:, kh:kh + stride * (Ho - 1) + 1:stride,
                           kw:kw + stride * (Wo - 1) + 1:stride, :])
    patches = jnp.stack(cols, axis=3)                            # (N, Ho, Wo, k*k, C)
    return patches.reshape(N * Ho * Wo, k * k * C), Ho, Wo


def _prep_conv_w(w, cin_slab, cout_pad):
    """(O, Cin, 5, 5) -> (25*cin_slab, cout_pad); rows ordered (kh, kw, c), zero-padded."""
    O, C, KH, KW = w.shape
    w = jnp.transpose(w, (2, 3, 1, 0))                           # (KH, KW, Cin, O)
    w = jnp.pad(w, ((0, 0), (0, 0), (0, cin_slab - C), (0, cout_pad - O)))
    return w.reshape(KH * KW * cin_slab, cout_pad)


def conv_bn_relu(x_nhwc, w, gamma, beta):
    """5x5 / stride-2 / pad-2 conv + BN(train) + ReLU as ONE pallas_call.

    Input: NHWC (channels possibly already zero-padded to 128).
    Output: NHWC with 128 zero-padded channels, bf16.
    Conv bias intentionally dropped (exactly cancelled by training-mode BN).
    """
    N, H, W, Cin = x_nhwc.shape
    O = w.shape[0]
    patches, Ho, Wo = _im2col_nhwc(x_nhwc, 5, 2, 2)              # (M, 25*Cin) bf16
    M, K = patches.shape
    Kp = _rup(K, 128)
    if Kp != K:                                                  # lane-pad the K dim
        patches = jnp.pad(patches, ((0, 0), (0, Kp - K)))
    wk = _prep_conv_w(w, Cin, _CPAD)
    if Kp != K:
        wk = jnp.pad(wk, ((0, Kp - K), (0, 0)))
    g = jnp.pad(gamma, (0, _CPAD - O), constant_values=1.0).reshape(1, _CPAD)
    b = jnp.pad(beta, (0, _CPAD - O)).reshape(1, _CPAD)

    cost = pl.CostEstimate(
        flops=2 * M * Kp * _CPAD + 8 * M * _CPAD,
        transcendentals=_CPAD,
        bytes_accessed=2 * (M * Kp + Kp * _CPAD + M * _CPAD) + 8 * _CPAD)

    out = pl.pallas_call(
        _conv_bn_relu_kernel,
        out_shape=jax.ShapeDtypeStruct((M, _CPAD), jnp.bfloat16),
        grid=(1,),
        in_specs=[
            pl.BlockSpec((M, Kp), lambda i: (0, 0)),
            pl.BlockSpec((Kp, _CPAD), lambda i: (0, 0)),
            pl.BlockSpec((1, _CPAD), lambda i: (0, 0)),
            pl.BlockSpec((1, _CPAD), lambda i: (0, 0)),
        ],
        out_specs=pl.BlockSpec((M, _CPAD), lambda i: (0, 0)),
        compiler_params=pltpu.CompilerParams(
            dimension_semantics=("arbitrary",),
            vmem_limit_bytes=_VMEM_LIMIT),
        cost_estimate=cost,
    )(patches.astype(jnp.bfloat16), wk.astype(jnp.bfloat16),
      g.astype(jnp.float32), b.astype(jnp.float32))
    return out.reshape(N, Ho, Wo, _CPAD)


# ----------------------- fused MLP (fc1/fc2/fc3) + 3-layer LSTM -----------------------

def _mlp_lstm_kernel(x_ref, w1_ref, b1_ref, w2_ref, b2_ref, w3_ref, b3_ref,
                     wih0_ref, whh0_ref, bg0_ref,
                     wih1_ref, whh1_ref, bg1_ref,
                     wih2_ref, whh2_ref, bg2_ref,
                     o_ref, *, T, B, H):
    # ---------------- MLP: fc1/fc2/fc3 + ReLU (rows ordered (b, t)) ----------------
    h = jnp.dot(x_ref[...], w1_ref[...], preferred_element_type=jnp.float32) + b1_ref[...]
    h = jnp.maximum(h, 0.0)
    h = jnp.dot(h.astype(w2_ref.dtype), w2_ref[...],
                preferred_element_type=jnp.float32) + b2_ref[...]
    h = jnp.maximum(h, 0.0)
    h = jnp.dot(h.astype(w3_ref.dtype), w3_ref[...],
                preferred_element_type=jnp.float32) + b3_ref[...]
    feats = jnp.maximum(h, 0.0)                    # (B*T, 128) f32; lanes >= dim_out are 0

    # -------- LSTM layer-0 input projection, hoisted to ONE (T*B, .) matmul --------
    # All recurrent math stays f32 (avoids bf16 error accumulation over T and 3 layers).
    xp = jnp.dot(feats, wih0_ref[...], preferred_element_type=jnp.float32) + bg0_ref[...]

    def cell(xp_t, h_st, c_st, whh_ref):
        g = xp_t + jnp.dot(h_st, whh_ref[...], preferred_element_type=jnp.float32)  # (B,4H)
        sig = jax.nn.sigmoid(g)                    # ONE full-vreg EUP op (gates i, f, o)
        th = jnp.tanh(g)                           # ONE full-vreg EUP op (gate g)
        i_g, f_g, o_g = sig[:, 0:H], sig[:, H:2 * H], sig[:, 3 * H:4 * H]
        g_g = th[:, 2 * H:3 * H]
        c_new = f_g * c_st + i_g * g_g
        h_new = o_g * jnp.tanh(c_new)
        return h_new, c_new

    layers = ((whh0_ref, wih1_ref, bg1_ref),
              (whh1_ref, wih2_ref, bg2_ref),
              (whh2_ref, None, None))
    batch_major = True                             # layer-0 projected rows are (b, t) ordered
    outs = None
    # TODO(synk): for T beyond ~16 replace this static unroll with lax.fori_loop over
    #             VMEM scratch (h/c/outs) to bound live ranges and compile time.
    for whh_ref, wih_next, bg_next in layers:
        hs = jnp.zeros((B, H), jnp.float32)
        cs = jnp.zeros((B, H), jnp.float32)
        outs = []
        for t in range(T):
            if batch_major:
                xp_t = jnp.concatenate(
                    [xp[b * T + t:b * T + t + 1, :] for b in range(B)], axis=0)
            else:
                xp_t = xp[t * B:(t + 1) * B, :]
            hs, cs = cell(xp_t, hs, cs, whh_ref)
            outs.append(hs)
        if wih_next is not None:
            # hoisted layer-(l+1) input projection: ONE (T*B, H) @ (H, 4H) matmul
            stacked = jnp.concatenate(outs, axis=0)            # (T*B, H), time-major
            xp = jnp.dot(stacked, wih_next[...],
                         preferred_element_type=jnp.float32) + bg_next[...]
            batch_major = False
    o_ref[...] = outs[-1]                          # top layer, last timestep  (B, H)


def _prep_fc(w, b, in_pad, out_pad):
    o, i = w.shape
    wk = jnp.pad(w.T, ((0, in_pad - i), (0, out_pad - o)))
    bk = jnp.pad(b, (0, out_pad - o)).reshape(1, out_pad)
    return wk, bk


def mlp_lstm(x_flat, params, *, T, B, H, conv_hw, c3_real):
    """Fused fc1/fc2/fc3(+ReLU) + full 3-layer LSTM recurrence.  Returns (B, H) f32.

    x_flat: (B*T, Hc*Wc*_CPAD) bf16 NHWC flatten of the channel-padded conv3 slab,
            rows ordered (b, t).
    """
    M, F = x_flat.shape
    Hc, Wc = conv_hw
    OP = 128                                       # padded fc / LSTM-input feature width
    G = 4 * H

    # fc1: PyTorch flattens NCHW as (c, h, w); our slab flattens NHWC-padded (h, w, c_pad).
    # Permute + zero-pad the weight columns once at trace time to match (free).
    fw1 = params["fc1_w"]                          # (dim2, c3*Hc*Wc), columns ordered (c,h,w)
    d2 = fw1.shape[0]
    w1 = fw1.reshape(d2, c3_real, Hc, Wc)
    w1 = jnp.transpose(w1, (2, 3, 1, 0))           # (Hc, Wc, c3, d2)
    w1 = jnp.pad(w1, ((0, 0), (0, 0), (0, _CPAD - c3_real), (0, OP - d2)))
    w1 = w1.reshape(F, OP)
    b1 = jnp.pad(params["fc1_b"], (0, OP - d2)).reshape(1, OP)
    w2, b2 = _prep_fc(params["fc2_w"], params["fc2_b"], OP, OP)
    w3, b3 = _prep_fc(params["fc3_w"], params["fc3_b"], OP, OP)

    # LSTM weights (PyTorch layout, gate order i,f,g,o) -> (in, 4H); kept f32.
    (Wih0, Whh0, bi0, bh0) = params["lstm"][0]
    lstm_args = [jnp.pad(Wih0.T, ((0, OP - H), (0, 0))).astype(jnp.float32),
                 Whh0.T.astype(jnp.float32),
                 (bi0 + bh0).reshape(1, G).astype(jnp.float32)]
    for (Wih, Whh, bi, bh) in params["lstm"][1:]:
        lstm_args += [Wih.T.astype(jnp.float32), Whh.T.astype(jnp.float32),
                      (bi + bh).reshape(1, G).astype(jnp.float32)]

    args = [x_flat.astype(jnp.bfloat16),
            w1.astype(jnp.bfloat16), b1.astype(jnp.float32),
            w2.astype(jnp.bfloat16), b2.astype(jnp.float32),
            w3.astype(jnp.bfloat16), b3.astype(jnp.float32)] + lstm_args

    in_specs = [pl.BlockSpec(a.shape, lambda i: (0, 0)) for a in args]

    mlp_flops = 2 * M * (F * OP + OP * OP + OP * OP)
    lstm_flops = 2 * M * OP * G + 2 * 2 * M * H * G + 3 * T * (2 * B * H * G + 12 * B * G)
    cost = pl.CostEstimate(
        flops=mlp_flops + lstm_flops,
        transcendentals=3 * T * (2 * B * G + B * H),
        bytes_accessed=sum(a.size * a.dtype.itemsize for a in args) + B * H * 4)

    return pl.pallas_call(
        functools.partial(_mlp_lstm_kernel, T=T, B=B, H=H),
        out_shape=jax.ShapeDtypeStruct((B, H), jnp.float32),
        grid=(1,),
        in_specs=in_specs,
        out_specs=pl.BlockSpec((B, H), lambda i: (0, 0)),
        compiler_params=pltpu.CompilerParams(
            dimension_semantics=("arbitrary",),
            vmem_limit_bytes=_VMEM_LIMIT),
        cost_estimate=cost,
    )(*args)


# ------------------------------------ forward ---------------------------------------

def encoder_forward(x, params, dim_out):
    B, V, C, H, W = x.shape
    xb = x.reshape(B * V, C, H, W)
    # Single NCHW -> NHWC conversion of the raw input; everything downstream stays NHWC.
    xb = jnp.transpose(xb, (0, 2, 3, 1)).astype(jnp.bfloat16)

    h = conv_bn_relu(xb, params["w1"], params["g1"], params["be1"])
    h = conv_bn_relu(h, params["w2"], params["g2"], params["be2"])
    h = conv_bn_relu(h, params["w3"], params["g3"], params["be3"])

    N, Hc, Wc, CP = h.shape
    x_flat = h.reshape(N, Hc * Wc * CP)              # NHWC flatten, no transpose
    c3 = params["w3"].shape[0]                       # real conv3 channel count
    return mlp_lstm(x_flat, params, T=V, B=B, H=dim_out,
                    conv_hw=(Hc, Wc), c3_real=c3)    # (B, dim_out)


# ---------------------------------- params init --------------------------------------

def make_params(key, dim_in, dim1, dim2, dim_out, im_size):
    dh = [dim1, dim1 * 2, dim1 * 4, dim2, dim2]
    ks = list(jax.random.split(key, 32))
    nk = iter(ks)

    def rnd(shape, scale):
        return jax.random.normal(next(nk), shape, jnp.float32) * scale

    p = {}
    # convs (O, C, 5, 5).  Conv biases exist in the PyTorch module but are dropped in
    # this forward: training-mode BN cancels a per-channel pre-bias exactly.
    p["w1"] = rnd((dh[0], dim_in, 5, 5), 0.1);  _ = rnd((dh[0],), 0.1)
    p["w2"] = rnd((dh[1], dh[0], 5, 5), 0.05);  _ = rnd((dh[1],), 0.1)
    p["w3"] = rnd((dh[2], dh[1], 5, 5), 0.05);  _ = rnd((dh[2],), 0.1)
    # batchnorm affine
    for i, c in zip((1, 2, 3), (dh[0], dh[1], dh[2])):
        p[f"g{i}"] = 1.0 + rnd((c,), 0.05)
        p[f"be{i}"] = rnd((c,), 0.05)
    # fc layers (out, in) like nn.Linear
    flat = dh[2] * math.ceil(im_size / 8) ** 2
    p["fc1_w"] = rnd((dh[3], flat), 0.05);    p["fc1_b"] = rnd((dh[3],), 0.05)
    p["fc2_w"] = rnd((dh[4], dh[3]), 0.05);   p["fc2_b"] = rnd((dh[4],), 0.05)
    p["fc3_w"] = rnd((dim_out, dh[4]), 0.05); p["fc3_b"] = rnd((dim_out,), 0.05)
    # 3-layer LSTM, PyTorch param shapes, gate order (i, f, g, o)
    lstm = []
    for _layer in range(3):
        lstm.append((rnd((4 * dim_out, dim_out), 0.05),
                     rnd((4 * dim_out, dim_out), 0.05),
                     rnd((4 * dim_out,), 0.05),
                     rnd((4 * dim_out,), 0.05)))
    p["lstm"] = lstm
    return p


# -------------------------------------- main -----------------------------------------

if __name__ == "__main__":
    # small shapes consistent with the module: dim_in=4, dim1=8, dim2=32,
    # dim_out=32, im_size=16; batch=2, num_views=4
    dim_in, dim1, dim2, dim_out, im_size = 4, 8, 32, 32, 16
    batch, num_views = 2, 4

    key = jax.random.PRNGKey(0)
    kx, kp = jax.random.split(key)
    x = jax.random.normal(kx, (batch, num_views, dim_in, im_size, im_size), jnp.float32)
    params = make_params(kp, dim_in, dim1, dim2, dim_out, im_size)

    fwd = jax.jit(functools.partial(encoder_forward, dim_out=dim_out))
    out = fwd(x, params)
    out = jax.block_until_ready(out)

    assert out.shape == (batch, dim_out), out.shape
    assert bool(jnp.all(jnp.isfinite(out)))
    print("KERNEL_OK")
</pallas_src>

<mosaic_0001>
module attributes {stable_mosaic.version = 11 : i64} {
  func.func @_conv_bn_relu_kernel(%arg0: i32, %arg1: memref<512x128xbf16, #tpu.memory_space<vmem>>, %arg2: memref<128x128xbf16, #tpu.memory_space<vmem>>, %arg3: memref<1x128xf32, #tpu.memory_space<vmem>>, %arg4: memref<1x128xf32, #tpu.memory_space<vmem>>, %arg5: memref<512x128xbf16, #tpu.memory_space<vmem>>) attributes {dimension_semantics = [#tpu.dimension_semantics<arbitrary>], iteration_bounds = array<i64: 1>, scalar_prefetch = 0 : i64, scratch_operands = 0 : i64, tpu.core_type = #tpu.core_type<tc>, window_params = [{pipeline_mode = #tpu.pipeline_mode<synchronous>, transform_indices = @transform_0, window_bounds = array<i64: 512, 128>}, {pipeline_mode = #tpu.pipeline_mode<synchronous>, transform_indices = @transform_1, window_bounds = array<i64: 128, 128>}, {pipeline_mode = #tpu.pipeline_mode<synchronous>, transform_indices = @transform_2, window_bounds = array<i64: 1, 128>}, {pipeline_mode = #tpu.pipeline_mode<synchronous>, transform_indices = @transform_3, window_bounds = array<i64: 1, 128>}, {pipeline_mode = #tpu.pipeline_mode<synchronous>, transform_indices = @transform_4, window_bounds = array<i64: 512, 128>}]} {
    %c0 = arith.constant 0 : index
    %c0_0 = arith.constant 0 : index
    %0 = vector.load %arg1[%c0, %c0_0] : memref<512x128xbf16, #tpu.memory_space<vmem>>, vector<512x128xbf16>
    %c0_1 = arith.constant 0 : index
    %c0_2 = arith.constant 0 : index
    %1 = vector.load %arg2[%c0_1, %c0_2] : memref<128x128xbf16, #tpu.memory_space<vmem>>, vector<128x128xbf16>
    %cst = arith.constant dense<0.000000e+00> : vector<512x128xf32>
    %2 = tpu.matmul %0, %1, %cst {dimension_numbers = #tpu.dot_dimension_numbers<[1], [0], [0], [1], [0, 0, 1, 1], [], []>} : vector<512x128xbf16>, vector<128x128xbf16>, vector<512x128xf32> -> vector<512x128xf32>
    %cst_3 = arith.constant dense<0.000000e+00> : vector<128xf32>
    %3 = vector.multi_reduction <add>, %2, %cst_3 [0] : vector<512x128xf32> to vector<128xf32>
    %4 = vector.shape_cast %3 : vector<128xf32> to vector<1x128xf32>
    %cst_4 = arith.constant 5.120000e+02 : f32
    %5 = vector.broadcast %cst_4 : f32 to vector<1x128xf32>
    %6 = arith.divf %4, %5 : vector<1x128xf32>
    %7 = vector.broadcast %6 : vector<1x128xf32> to vector<512x128xf32>
    %8 = arith.subf %2, %7 : vector<512x128xf32>
    %9 = arith.mulf %8, %8 : vector<512x128xf32>
    %cst_5 = arith.constant dense<0.000000e+00> : vector<128xf32>
    %10 = vector.multi_reduction <add>, %9, %cst_5 [0] : vector<512x128xf32> to vector<128xf32>
    %11 = vector.shape_cast %10 : vector<128xf32> to vector<1x128xf32>
    %cst_6 = arith.constant 5.120000e+02 : f32
    %12 = vector.broadcast %cst_6 : f32 to vector<1x128xf32>
    %13 = arith.divf %11, %12 : vector<1x128xf32>
    %cst_7 = arith.constant 9.99999974E-6 : f32
    %14 = vector.broadcast %cst_7 : f32 to vector<1x128xf32>
    %15 = arith.addf %13, %14 : vector<1x128xf32>
    %16 = math.rsqrt %15 : vector<1x128xf32>
    %17 = vector.broadcast %6 : vector<1x128xf32> to vector<512x128xf32>
    %18 = arith.subf %2, %17 : vector<512x128xf32>
    %19 = vector.broadcast %16 : vector<1x128xf32> to vector<512x128xf32>
    %20 = arith.mulf %18, %19 : vector<512x128xf32>
    %c0_8 = arith.constant 0 : index
    %c0_9 = arith.constant 0 : index
    %21 = vector.load %arg3[%c0_8, %c0_9] : memref<1x128xf32, #tpu.memory_space<vmem>>, vector<1x128xf32>
    %22 = vector.broadcast %21 : vector<1x128xf32> to vector<512x128xf32>
    %23 = arith.mulf %20, %22 : vector<512x128xf32>
    %c0_10 = arith.constant 0 : index
    %c0_11 = arith.constant 0 : index
    %24 = vector.load %arg4[%c0_10, %c0_11] : memref<1x128xf32, #tpu.memory_space<vmem>>, vector<1x128xf32>
    %25 = vector.broadcast %24 : vector<1x128xf32> to vector<512x128xf32>
    %26 = arith.addf %23, %25 : vector<512x128xf32>
    %cst_12 = arith.constant 0.000000e+00 : f32
    %27 = vector.broadcast %cst_12 : f32 to vector<512x128xf32>
    %28 = arith.maximumf %26, %27 : vector<512x128xf32>
    %29 = arith.truncf %28 : vector<512x128xf32> to vector<512x128xbf16>
    %c0_13 = arith.constant 0 : index
    %c0_14 = arith.constant 0 : index
    %30 = vector.load %arg5[%c0_13, %c0_14] : memref<512x128xbf16, #tpu.memory_space<vmem>>, vector<512x128xbf16>
    tpu.vector_store %arg5[%c0_13, %c0_14], %29 {strides = array<i32>} : memref<512x128xbf16, #tpu.memory_space<vmem>>, vector<512x128xbf16>,
    return
  }
  func.func @transform_0(%arg0: i32) -> (i32, i32) {
    %c0_i32 = arith.constant 0 : i32
    %c0_i32_0 = arith.constant 0 : i32
    %c0_i32_1 = arith.constant 0 : i32
    return %c0_i32, %c0_i32_0 : i32, i32
  }
  func.func @transform_1(%arg0: i32) -> (i32, i32) {
    %c0_i32 = arith.constant 0 : i32
    %c0_i32_0 = arith.constant 0 : i32
    %c0_i32_1 = arith.constant 0 : i32
    return %c0_i32, %c0_i32_0 : i32, i32
  }
  func.func @transform_2(%arg0: i32) -> (i32, i32) {
    %c0_i32 = arith.constant 0 : i32
    %c0_i32_0 = arith.constant 0 : i32
    %c0_i32_1 = arith.constant 0 : i32
    return %c0_i32, %c0_i32_0 : i32, i32
  }
  func.func @transform_3(%arg0: i32) -> (i32, i32) {
    %c0_i32 = arith.constant 0 : i32
    %c0_i32_0 = arith.constant 0 : i32
    %c0_i32_1 = arith.constant 0 : i32
    return %c0_i32, %c0_i32_0 : i32, i32
  }
  func.func @transform_4(%arg0: i32) -> (i32, i32) {
    %c0_i32 = arith.constant 0 : i32
    %c0_i32_0 = arith.constant 0 : i32
    %c0_i32_1 = arith.constant 0 : i32
    return %c0_i32, %c0_i32_0 : i32, i32
  }
}

module attributes {stable_mosaic.version = 11 : i64} {
  func.func @_conv_bn_relu_kernel(%arg0: i32, %arg1: memref<128x3200xbf16, #tpu.memory_space<vmem>>, %arg2: memref<3200x128xbf16, #tpu.memory_space<vmem>>, %arg3: memref<1x128xf32, #tpu.memory_space<vmem>>, %arg4: memref<1x128xf32, #tpu.memory_space<vmem>>, %arg5: memref<128x128xbf16, #tpu.memory_space<vmem>>) attributes {dimension_semantics = [#tpu.dimension_semantics<arbitrary>], iteration_bounds = array<i64: 1>, scalar_prefetch = 0 : i64, scratch_operands = 0 : i64, tpu.core_type = #tpu.core_type<tc>, window_params = [{pipeline_mode = #tpu.pipeline_mode<synchronous>, transform_indices = @transform_0, window_bounds = array<i64: 128, 3200>}, {pipeline_mode = #tpu.pipeline_mode<synchronous>, transform_indices = @transform_1, window_bounds = array<i64: 3200, 128>}, {pipeline_mode = #tpu.pipeline_mode<synchronous>, transform_indices = @transform_2, window_bounds = array<i64: 1, 128>}, {pipeline_mode = #tpu.pipeline_mode<synchronous>, transform_indices = @transform_3, window_bounds = array<i64: 1, 128>}, {pipeline_mode = #tpu.pipeline_mode<synchronous>, transform_indices = @transform_4, window_bounds = array<i64: 128, 128>}]} {
    %c0 = arith.constant 0 : index
    %c0_0 = arith.constant 0 : index
    %0 = vector.load %arg1[%c0, %c0_0] : memref<128x3200xbf16, #tpu.memory_space<vmem>>, vector<128x3200xbf16>
    %c0_1 = arith.constant 0 : index
    %c0_2 = arith.constant 0 : index
    %1 = vector.load %arg2[%c0_1, %c0_2] : memref<3200x128xbf16, #tpu.memory_space<vmem>>, vector<3200x128xbf16>
    %cst = arith.constant dense<0.000000e+00> : vector<128x128xf32>
    %2 = tpu.matmul %0, %1, %cst {dimension_numbers = #tpu.dot_dimension_numbers<[1], [0], [0], [1], [0, 0, 1, 1], [], []>} : vector<128x3200xbf16>, vector<3200x128xbf16>, vector<128x128xf32> -> vector<128x128xf32>
    %cst_3 = arith.constant dense<0.000000e+00> : vector<128xf32>
    %3 = vector.multi_reduction <add>, %2, %cst_3 [0] : vector<128x128xf32> to vector<128xf32>
    %4 = vector.shape_cast %3 : vector<128xf32> to vector<1x128xf32>
    %cst_4 = arith.constant 1.280000e+02 : f32
    %5 = vector.broadcast %cst_4 : f32 to vector<1x128xf32>
    %6 = arith.divf %4, %5 : vector<1x128xf32>
    %7 = vector.broadcast %6 : vector<1x128xf32> to vector<128x128xf32>
    %8 = arith.subf %2, %7 : vector<128x128xf32>
    %9 = arith.mulf %8, %8 : vector<128x128xf32>
    %cst_5 = arith.constant dense<0.000000e+00> : vector<128xf32>
    %10 = vector.multi_reduction <add>, %9, %cst_5 [0] : vector<128x128xf32> to vector<128xf32>
    %11 = vector.shape_cast %10 : vector<128xf32> to vector<1x128xf32>
    %cst_6 = arith.constant 1.280000e+02 : f32
    %12 = vector.broadcast %cst_6 : f32 to vector<1x128xf32>
    %13 = arith.divf %11, %12 : vector<1x128xf32>
    %cst_7 = arith.constant 9.99999974E-6 : f32
    %14 = vector.broadcast %cst_7 : f32 to vector<1x128xf32>
    %15 = arith.addf %13, %14 : vector<1x128xf32>
    %16 = math.rsqrt %15 : vector<1x128xf32>
    %17 = vector.broadcast %6 : vector<1x128xf32> to vector<128x128xf32>
    %18 = arith.subf %2, %17 : vector<128x128xf32>
    %19 = vector.broadcast %16 : vector<1x128xf32> to vector<128x128xf32>
    %20 = arith.mulf %18, %19 : vector<128x128xf32>
    %c0_8 = arith.constant 0 : index
    %c0_9 = arith.constant 0 : index
    %21 = vector.load %arg3[%c0_8, %c0_9] : memref<1x128xf32, #tpu.memory_space<vmem>>, vector<1x128xf32>
    %22 = vector.broadcast %21 : vector<1x128xf32> to vector<128x128xf32>
    %23 = arith.mulf %20, %22 : vector<128x128xf32>
    %c0_10 = arith.constant 0 : index
    %c0_11 = arith.constant 0 : index
    %24 = vector.load %arg4[%c0_10, %c0_11] : memref<1x128xf32, #tpu.memory_space<vmem>>, vector<1x128xf32>
    %25 = vector.broadcast %24 : vector<1x128xf32> to vector<128x128xf32>
    %26 = arith.addf %23, %25 : vector<128x128xf32>
    %cst_12 = arith.constant 0.000000e+00 : f32
    %27 = vector.broadcast %cst_12 : f32 to vector<128x128xf32>
    %28 = arith.maximumf %26, %27 : vector<128x128xf32>
    %29 = arith.truncf %28 : vector<128x128xf32> to vector<128x128xbf16>
    %c0_13 = arith.constant 0 : index
    %c0_14 = arith.constant 0 : index
    %30 = vector.load %arg5[%c0_13, %c0_14] : memref<128x128xbf16, #tpu.memory_space<vmem>>, vector<128x128xbf16>
    tpu.vector_store %arg5[%c0_13, %c0_14], %29 {strides = array<i32>} : memref<128x128xbf16, #tpu.memory_space<vmem>>, vector<128x128xbf16>,
    return
  }
  func.func @transform_0(%arg0: i32) -> (i32, i32) {
    %c0_i32 = arith.constant 0 : i32
    %c0_i32_0 = arith.constant 0 : i32
    %c0_i32_1 = arith.constant 0 : i32
    return %c0_i32, %c0_i32_0 : i32, i32
  }
  func.func @transform_1(%arg0: i32) -> (i32, i32) {
    %c0_i32 = arith.constant 0 : i32
    %c0_i32_0 = arith.constant 0 : i32
    %c0_i32_1 = arith.constant 0 : i32
    return %c0_i32, %c0_i32_0 : i32, i32
  }
  func.func @transform_2(%arg0: i32) -> (i32, i32) {
    %c0_i32 = arith.constant 0 : i32
    %c0_i32_0 = arith.constant 0 : i32
    %c0_i32_1 = arith.constant 0 : i32
    return %c0_i32, %c0_i32_0 : i32, i32
  }
  func.func @transform_3(%arg0: i32) -> (i32, i32) {
    %c0_i32 = arith.constant 0 : i32
    %c0_i32_0 = arith.constant 0 : i32
    %c0_i32_1 = arith.constant 0 : i32
    return %c0_i32, %c0_i32_0 : i32, i32
  }
  func.func @transform_4(%arg0: i32) -> (i32, i32) {
    %c0_i32 = arith.constant 0 : i32
    %c0_i32_0 = arith.constant 0 : i32
    %c0_i32_1 = arith.constant 0 : i32
    return %c0_i32, %c0_i32_0 : i32, i32
  }
}

module attributes {stable_mosaic.version = 11 : i64} {
  func.func @_conv_bn_relu_kernel(%arg0: i32, %arg1: memref<32x3200xbf16, #tpu.memory_space<vmem>>, %arg2: memref<3200x128xbf16, #tpu.memory_space<vmem>>, %arg3: memref<1x128xf32, #tpu.memory_space<vmem>>, %arg4: memref<1x128xf32, #tpu.memory_space<vmem>>, %arg5: memref<32x128xbf16, #tpu.memory_space<vmem>>) attributes {dimension_semantics = [#tpu.dimension_semantics<arbitrary>], iteration_bounds = array<i64: 1>, scalar_prefetch = 0 : i64, scratch_operands = 0 : i64, tpu.core_type = #tpu.core_type<tc>, window_params = [{pipeline_mode = #tpu.pipeline_mode<synchronous>, transform_indices = @transform_0, window_bounds = array<i64: 32, 3200>}, {pipeline_mode = #tpu.pipeline_mode<synchronous>, transform_indices = @transform_1, window_bounds = array<i64: 3200, 128>}, {pipeline_mode = #tpu.pipeline_mode<synchronous>, transform_indices = @transform_2, window_bounds = array<i64: 1, 128>}, {pipeline_mode = #tpu.pipeline_mode<synchronous>, transform_indices = @transform_3, window_bounds = array<i64: 1, 128>}, {pipeline_mode = #tpu.pipeline_mode<synchronous>, transform_indices = @transform_4, window_bounds = array<i64: 32, 128>}]} {
    %c0 = arith.constant 0 : index
    %c0_0 = arith.constant 0 : index
    %0 = vector.load %arg1[%c0, %c0_0] : memref<32x3200xbf16, #tpu.memory_space<vmem>>, vector<32x3200xbf16>
    %c0_1 = arith.constant 0 : index
    %c0_2 = arith.constant 0 : index
    %1 = vector.load %arg2[%c0_1, %c0_2] : memref<3200x128xbf16, #tpu.memory_space<vmem>>, vector<3200x128xbf16>
    %cst = arith.constant dense<0.000000e+00> : vector<32x128xf32>
    %2 = tpu.matmul %0, %1, %cst {dimension_numbers = #tpu.dot_dimension_numbers<[1], [0], [0], [1], [0, 0, 1, 1], [], []>} : vector<32x3200xbf16>, vector<3200x128xbf16>, vector<32x128xf32> -> vector<32x128xf32>
    %cst_3 = arith.constant dense<0.000000e+00> : vector<128xf32>
    %3 = vector.multi_reduction <add>, %2, %cst_3 [0] : vector<32x128xf32> to vector<128xf32>
    %4 = vector.shape_cast %3 : vector<128xf32> to vector<1x128xf32>
    %cst_4 = arith.constant 3.200000e+01 : f32
    %5 = vector.broadcast %cst_4 : f32 to vector<1x128xf32>
    %6 = arith.divf %4, %5 : vector<1x128xf32>
    %7 = vector.broadcast %6 : vector<1x128xf32> to vector<32x128xf32>
    %8 = arith.subf %2, %7 : vector<32x128xf32>
    %9 = arith.mulf %8, %8 : vector<32x128xf32>
    %cst_5 = arith.constant dense<0.000000e+00> : vector<128xf32>
    %10 = vector.multi_reduction <add>, %9, %cst_5 [0] : vector<32x128xf32> to vector<128xf32>
    %11 = vector.shape_cast %10 : vector<128xf32> to vector<1x128xf32>
    %cst_6 = arith.constant 3.200000e+01 : f32
    %12 = vector.broadcast %cst_6 : f32 to vector<1x128xf32>
    %13 = arith.divf %11, %12 : vector<1x128xf32>
    %cst_7 = arith.constant 9.99999974E-6 : f32
    %14 = vector.broadcast %cst_7 : f32 to vector<1x128xf32>
    %15 = arith.addf %13, %14 : vector<1x128xf32>
    %16 = math.rsqrt %15 : vector<1x128xf32>
    %17 = vector.broadcast %6 : vector<1x128xf32> to vector<32x128xf32>
    %18 = arith.subf %2, %17 : vector<32x128xf32>
    %19 = vector.broadcast %16 : vector<1x128xf32> to vector<32x128xf32>
    %20 = arith.mulf %18, %19 : vector<32x128xf32>
    %c0_8 = arith.constant 0 : index
    %c0_9 = arith.constant 0 : index
    %21 = vector.load %arg3[%c0_8, %c0_9] : memref<1x128xf32, #tpu.memory_space<vmem>>, vector<1x128xf32>
    %22 = vector.broadcast %21 : vector<1x128xf32> to vector<32x128xf32>
    %23 = arith.mulf %20, %22 : vector<32x128xf32>
    %c0_10 = arith.constant 0 : index
    %c0_11 = arith.constant 0 : index
    %24 = vector.load %arg4[%c0_10, %c0_11] : memref<1x128xf32, #tpu.memory_space<vmem>>, vector<1x128xf32>
    %25 = vector.broadcast %24 : vector<1x128xf32> to vector<32x128xf32>
    %26 = arith.addf %23, %25 : vector<32x128xf32>
    %cst_12 = arith.constant 0.000000e+00 : f32
    %27 = vector.broadcast %cst_12 : f32 to vector<32x128xf32>
    %28 = arith.maximumf %26, %27 : vector<32x128xf32>
    %29 = arith.truncf %28 : vector<32x128xf32> to vector<32x128xbf16>
    %c0_13 = arith.constant 0 : index
    %c0_14 = arith.constant 0 : index
    %30 = vector.load %arg5[%c0_13, %c0_14] : memref<32x128xbf16, #tpu.memory_space<vmem>>, vector<32x128xbf16>
    tpu.vector_store %arg5[%c0_13, %c0_14], %29 {strides = array<i32>} : memref<32x128xbf16, #tpu.memory_space<vmem>>, vector<32x128xbf16>,
    return
  }
  func.func @transform_0(%arg0: i32) -> (i32, i32) {
    %c0_i32 = arith.constant 0 : i32
    %c0_i32_0 = arith.constant 0 : i32
    %c0_i32_1 = arith.constant 0 : i32
    return %c0_i32, %c0_i32_0 : i32, i32
  }
  func.func @transform_1(%arg0: i32) -> (i32, i32) {
    %c0_i32 = arith.constant 0 : i32
    %c0_i32_0 = arith.constant 0 : i32
    %c0_i32_1 = arith.constant 0 : i32
    return %c0_i32, %c0_i32_0 : i32, i32
  }
  func.func @transform_2(%arg0: i32) -> (i32, i32) {
    %c0_i32 = arith.constant 0 : i32
    %c0_i32_0 = arith.constant 0 : i32
    %c0_i32_1 = arith.constant 0 : i32
    return %c0_i32, %c0_i32_0 : i32, i32
  }
  func.func @transform_3(%arg0: i32) -> (i32, i32) {
    %c0_i32 = arith.constant 0 : i32
    %c0_i32_0 = arith.constant 0 : i32
    %c0_i32_1 = arith.constant 0 : i32
    return %c0_i32, %c0_i32_0 : i32, i32
  }
  func.func @transform_4(%arg0: i32) -> (i32, i32) {
    %c0_i32 = arith.constant 0 : i32
    %c0_i32_0 = arith.constant 0 : i32
    %c0_i32_1 = arith.constant 0 : i32
    return %c0_i32, %c0_i32_0 : i32, i32
  }
}

module attributes {stable_mosaic.version = 11 : i64} {
  func.func @_mlp_lstm_kernel(%arg0: i32, %arg1: memref<8x512xbf16, #tpu.memory_space<vmem>>, %arg2: memref<512x128xbf16, #tpu.memory_space<vmem>>, %arg3: memref<1x128xf32, #tpu.memory_space<vmem>>, %arg4: memref<128x128xbf16, #tpu.memory_space<vmem>>, %arg5: memref<1x128xf32, #tpu.memory_space<vmem>>, %arg6: memref<128x128xbf16, #tpu.memory_space<vmem>>, %arg7: memref<1x128xf32, #tpu.memory_space<vmem>>, %arg8: memref<128x128xf32, #tpu.memory_space<vmem>>, %arg9: memref<32x128xf32, #tpu.memory_space<vmem>>, %arg10: memref<1x128xf32, #tpu.memory_space<vmem>>, %arg11: memref<32x128xf32, #tpu.memory_space<vmem>>, %arg12: memref<32x128xf32, #tpu.memory_space<vmem>>, %arg13: memref<1x128xf32, #tpu.memory_space<vmem>>, %arg14: memref<32x128xf32, #tpu.memory_space<vmem>>, %arg15: memref<32x128xf32, #tpu.memory_space<vmem>>, %arg16: memref<1x128xf32, #tpu.memory_space<vmem>>, %arg17: memref<2x32xf32, #tpu.memory_space<vmem>>) attributes {dimension_semantics = [#tpu.dimension_semantics<arbitrary>], iteration_bounds = array<i64: 1>, scalar_prefetch = 0 : i64, scratch_operands = 0 : i64, tpu.core_type = #tpu.core_type<tc>, window_params = [{pipeline_mode = #tpu.pipeline_mode<synchronous>, transform_indices = @transform_0, window_bounds = array<i64: 8, 512>}, {pipeline_mode = #tpu.pipeline_mode<synchronous>, transform_indices = @transform_1, window_bounds = array<i64: 512, 128>}, {pipeline_mode = #tpu.pipeline_mode<synchronous>, transform_indices = @transform_2, window_bounds = array<i64: 1, 128>}, {pipeline_mode = #tpu.pipeline_mode<synchronous>, transform_indices = @transform_3, window_bounds = array<i64: 128, 128>}, {pipeline_mode = #tpu.pipeline_mode<synchronous>, transform_indices = @transform_4, window_bounds = array<i64: 1, 128>}, {pipeline_mode = #tpu.pipeline_mode<synchronous>, transform_indices = @transform_5, window_bounds = array<i64: 128, 128>}, {pipeline_mode = #tpu.pipeline_mode<synchronous>, transform_indices = @transform_6, window_bounds = array<i64: 1, 128>}, {pipeline_mode = #tpu.pipeline_mode<synchronous>, transform_indices = @transform_7, window_bounds = array<i64: 128, 128>}, {pipeline_mode = #tpu.pipeline_mode<synchronous>, transform_indices = @transform_8, window_bounds = array<i64: 32, 128>}, {pipeline_mode = #tpu.pipeline_mode<synchronous>, transform_indices = @transform_9, window_bounds = array<i64: 1, 128>}, {pipeline_mode = #tpu.pipeline_mode<synchronous>, transform_indices = @transform_10, window_bounds = array<i64: 32, 128>}, {pipeline_mode = #tpu.pipeline_mode<synchronous>, transform_indices = @transform_11, window_bounds = array<i64: 32, 128>}, {pipeline_mode = #tpu.pipeline_mode<synchronous>, transform_indices = @transform_12, window_bounds = array<i64: 1, 128>}, {pipeline_mode = #tpu.pipeline_mode<synchronous>, transform_indices = @transform_13, window_bounds = array<i64: 32, 128>}, {pipeline_mode = #tpu.pipeline_mode<synchronous>, transform_indices = @transform_14, window_bounds = array<i64: 32, 128>}, {pipeline_mode = #tpu.pipeline_mode<synchronous>, transform_indices = @transform_15, window_bounds = array<i64: 1, 128>}, {pipeline_mode = #tpu.pipeline_mode<synchronous>, transform_indices = @transform_16, window_bounds = array<i64: 2, 32>}]} {
    %c0 = arith.constant 0 : index
    %c0_0 = arith.constant 0 : index
    %0 = vector.load %arg1[%c0, %c0_0] : memref<8x512xbf16, #tpu.memory_space<vmem>>, vector<8x512xbf16>
    %c0_1 = arith.constant 0 : index
    %c0_2 = arith.constant 0 : index
    %1 = vector.load %arg2[%c0_1, %c0_2] : memref<512x128xbf16, #tpu.memory_space<vmem>>, vector<512x128xbf16>
    %cst = arith.constant dense<0.000000e+00> : vector<8x128xf32>
    %2 = tpu.matmul %0, %1, %cst {dimension_numbers = #tpu.dot_dimension_numbers<[1], [0], [0], [1], [0, 0, 1, 1], [], []>} : vector<8x512xbf16>, vector<512x128xbf16>, vector<8x128xf32> -> vector<8x128xf32>
    %c0_3 = arith.constant 0 : index
    %c0_4 = arith.constant 0 : index
    %3 = vector.load %arg3[%c0_3, %c0_4] : memref<1x128xf32, #tpu.memory_space<vmem>>, vector<1x128xf32>
    %4 = vector.broadcast %3 : vector<1x128xf32> to vector<8x128xf32>
    %5 = arith.addf %2, %4 : vector<8x128xf32>
    %cst_5 = arith.constant 0.000000e+00 : f32
    %6 = vector.broadcast %cst_5 : f32 to vector<8x128xf32>
    %7 = arith.maximumf %5, %6 : vector<8x128xf32>
    %8 = arith.truncf %7 : vector<8x128xf32> to vector<8x128xbf16>
    %c0_6 = arith.constant 0 : index
    %c0_7 = arith.constant 0 : index
    %9 = vector.load %arg4[%c0_6, %c0_7] : memref<128x128xbf16, #tpu.memory_space<vmem>>, vector<128x128xbf16>
    %cst_8 = arith.constant dense<0.000000e+00> : vector<8x128xf32>
    %10 = tpu.matmul %8, %9, %cst_8 {dimension_numbers = #tpu.dot_dimension_numbers<[1], [0], [0], [1], [0, 0, 1, 1], [], []>} : vector<8x128xbf16>, vector<128x128xbf16>, vector<8x128xf32> -> vector<8x128xf32>
    %c0_9 = arith.constant 0 : index
    %c0_10 = arith.constant 0 : index
    %11 = vector.load %arg5[%c0_9, %c0_10] : memref<1x128xf32, #tpu.memory_space<vmem>>, vector<1x128xf32>
    %12 = vector.broadcast %11 : vector<1x128xf32> to vector<8x128xf32>
    %13 = arith.addf %10, %12 : vector<8x128xf32>
    %cst_11 = arith.constant 0.000000e+00 : f32
    %14 = vector.broadcast %cst_11 : f32 to vector<8x128xf32>
    %15 = arith.maximumf %13, %14 : vector<8x128xf32>
    %16 = arith.truncf %15 : vector<8x128xf32> to vector<8x128xbf16>
    %c0_12 = arith.constant 0 : index
    %c0_13 = arith.constant 0 : index
    %17 = vector.load %arg6[%c0_12, %c0_13] : memref<128x128xbf16, #tpu.memory_space<vmem>>, vector<128x128xbf16>
    %cst_14 = arith.constant dense<0.000000e+00> : vector<8x128xf32>
    %18 = tpu.matmul %16, %17, %cst_14 {dimension_numbers = #tpu.dot_dimension_numbers<[1], [0], [0], [1], [0, 0, 1, 1], [], []>} : vector<8x128xbf16>, vector<128x128xbf16>, vector<8x128xf32> -> vector<8x128xf32>
    %c0_15 = arith.constant 0 : index
    %c0_16 = arith.constant 0 : index
    %19 = vector.load %arg7[%c0_15, %c0_16] : memref<1x128xf32, #tpu.memory_space<vmem>>, vector<1x128xf32>
    %20 = vector.broadcast %19 : vector<1x128xf32> to vector<8x128xf32>
    %21 = arith.addf %18, %20 : vector<8x128xf32>
    %cst_17 = arith.constant 0.000000e+00 : f32
    %22 = vector.broadcast %cst_17 : f32 to vector<8x128xf32>
    %23 = arith.maximumf %21, %22 : vector<8x128xf32>
    %c0_18 = arith.constant 0 : index
    %c0_19 = arith.constant 0 : index
    %24 = vector.load %arg8[%c0_18, %c0_19] : memref<128x128xf32, #tpu.memory_space<vmem>>, vector<128x128xf32>
    %cst_20 = arith.constant dense<0.000000e+00> : vector<8x128xf32>
    %25 = tpu.matmul %23, %24, %cst_20 {dimension_numbers = #tpu.dot_dimension_numbers<[1], [0], [0], [1], [0, 0, 1, 1], [], []>} : vector<8x128xf32>, vector<128x128xf32>, vector<8x128xf32> -> vector<8x128xf32>
    %c0_21 = arith.constant 0 : index
    %c0_22 = arith.constant 0 : index
    %26 = vector.load %arg10[%c0_21, %c0_22] : memref<1x128xf32, #tpu.memory_space<vmem>>, vector<1x128xf32>
    %27 = vector.broadcast %26 : vector<1x128xf32> to vector<8x128xf32>
    %28 = arith.addf %25, %27 : vector<8x128xf32>
    %cst_23 = arith.constant 0.000000e+00 : f32
    %29 = vector.broadcast %cst_23 : f32 to vector<2x32xf32>
    %cst_24 = arith.constant 0.000000e+00 : f32
    %30 = vector.broadcast %cst_24 : f32 to vector<2x32xf32>
    %31 = vector.extract_strided_slice %28 {offsets = [0, 0], sizes = [1, 128], strides = [1, 1]} : vector<8x128xf32> to vector<1x128xf32>
    %32 = vector.extract_strided_slice %28 {offsets = [4, 0], sizes = [1, 128], strides = [1, 1]} : vector<8x128xf32> to vector<1x128xf32>
    %33 = tpu.concatenate %31, %32 in 0 : vector<1x128xf32>, vector<1x128xf32> -> vector<2x128xf32>
    %c0_25 = arith.constant 0 : index
    %c0_26 = arith.constant 0 : index
    %34 = vector.load %arg9[%c0_25, %c0_26] : memref<32x128xf32, #tpu.memory_space<vmem>>, vector<32x128xf32>
    %cst_27 = arith.constant dense<0.000000e+00> : vector<2x128xf32>
    %35 = tpu.matmul %29, %34, %cst_27 {dimension_numbers = #tpu.dot_dimension_numbers<[1], [0], [0], [1], [0, 0, 1, 1], [], []>} : vector<2x32xf32>, vector<32x128xf32>, vector<2x128xf32> -> vector<2x128xf32>
    %36 = arith.addf %33, %35 : vector<2x128xf32>
    %37 = arith.negf %36 : vector<2x128xf32>
    %38 = math.exp %37 : vector<2x128xf32>
    %cst_28 = arith.constant 1.000000e+00 : f32
    %39 = vector.broadcast %cst_28 : f32 to vector<2x128xf32>
    %40 = arith.addf %39, %38 : vector<2x128xf32>
    %41 = arith.divf %39, %40 : vector<2x128xf32>
    %42 = math.tanh %36 : vector<2x128xf32>
    %43 = vector.extract_strided_slice %41 {offsets = [0, 0], sizes = [2, 32], strides = [1, 1]} : vector<2x128xf32> to vector<2x32xf32>
    %44 = vector.extract_strided_slice %41 {offsets = [0, 32], sizes = [2, 32], strides = [1, 1]} : vector<2x128xf32> to vector<2x32xf32>
    %45 = vector.extract_strided_slice %41 {offsets = [0, 96], sizes = [2, 32], strides = [1, 1]} : vector<2x128xf32> to vector<2x32xf32>
    %46 = vector.extract_strided_slice %42 {offsets = [0, 64], sizes = [2, 32], strides = [1, 1]} : vector<2x128xf32> to vector<2x32xf32>
    %47 = arith.mulf %44, %30 : vector<2x32xf32>
    %48 = arith.mulf %43, %46 : vector<2x32xf32>
    %49 = arith.addf %47, %48 : vector<2x32xf32>
    %50 = math.tanh %49 : vector<2x32xf32>
    %51 = arith.mulf %45, %50 : vector<2x32xf32>
    %52 = vector.extract_strided_slice %28 {offsets = [1, 0], sizes = [1, 128], strides = [1, 1]} : vector<8x128xf32> to vector<1x128xf32>
    %53 = vector.extract_strided_slice %28 {offsets = [5, 0], sizes = [1, 128], strides = [1, 1]} : vector<8x128xf32> to vector<1x128xf32>
    %54 = tpu.concatenate %52, %53 in 0 : vector<1x128xf32>, vector<1x128xf32> -> vector<2x128xf32>
    %c0_29 = arith.constant 0 : index
    %c0_30 = arith.constant 0 : index
    %55 = vector.load %arg9[%c0_29, %c0_30] : memref<32x128xf32, #tpu.memory_space<vmem>>, vector<32x128xf32>
    %cst_31 = arith.constant dense<0.000000e+00> : vector<2x128xf32>
    %56 = tpu.matmul %51, %55, %cst_31 {dimension_numbers = #tpu.dot_dimension_numbers<[1], [0], [0], [1], [0, 0, 1, 1], [], []>} : vector<2x32xf32>, vector<32x128xf32>, vector<2x128xf32> -> vector<2x128xf32>
    %57 = arith.addf %54, %56 : vector<2x128xf32>
    %58 = arith.negf %57 : vector<2x128xf32>
    %59 = math.exp %58 : vector<2x128xf32>
    %cst_32 = arith.constant 1.000000e+00 : f32
    %60 = vector.broadcast %cst_32 : f32 to vector<2x128xf32>
    %61 = arith.addf %60, %59 : vector<2x128xf32>
    %62 = arith.divf %60, %61 : vector<2x128xf32>
    %63 = math.tanh %57 : vector<2x128xf32>
    %64 = vector.extract_strided_slice %62 {offsets = [0, 0], sizes = [2, 32], strides = [1, 1]} : vector<2x128xf32> to vector<2x32xf32>
    %65 = vector.extract_strided_slice %62 {offsets = [0, 32], sizes = [2, 32], strides = [1, 1]} : vector<2x128xf32> to vector<2x32xf32>
    %66 = vector.extract_strided_slice %62 {offsets = [0, 96], sizes = [2, 32], strides = [1, 1]} : vector<2x128xf32> to vector<2x32xf32>
    %67 = vector.extract_strided_slice %63 {offsets = [0, 64], sizes = [2, 32], strides = [1, 1]} : vector<2x128xf32> to vector<2x32xf32>
    %68 = arith.mulf %65, %49 : vector<2x32xf32>
    %69 = arith.mulf %64, %67 : vector<2x32xf32>
    %70 = arith.addf %68, %69 : vector<2x32xf32>
    %71 = math.tanh %70 : vector<2x32xf32>
    %72 = arith.mulf %66, %71 : vector<2x32xf32>
    %73 = vector.extract_strided_slice %28 {offsets = [2, 0], sizes = [1, 128], strides = [1, 1]} : vector<8x128xf32> to vector<1x128xf32>
    %74 = vector.extract_strided_slice %28 {offsets = [6, 0], sizes = [1, 128], strides = [1, 1]} : vector<8x128xf32> to vector<1x128xf32>
    %75 = tpu.concatenate %73, %74 in 0 : vector<1x128xf32>, vector<1x128xf32> -> vector<2x128xf32>
    %c0_33 = arith.constant 0 : index
    %c0_34 = arith.constant 0 : index
    %76 = vector.load %arg9[%c0_33, %c0_34] : memref<32x128xf32, #tpu.memory_space<vmem>>, vector<32x128xf32>
    %cst_35 = arith.constant dense<0.000000e+00> : vector<2x128xf32>
    %77 = tpu.matmul %72, %76, %cst_35 {dimension_numbers = #tpu.dot_dimension_numbers<[1], [0], [0], [1], [0, 0, 1, 1], [], []>} : vector<2x32xf32>, vector<32x128xf32>, vector<2x128xf32> -> vector<2x128xf32>
    %78 = arith.addf %75, %77 : vector<2x128xf32>
    %79 = arith.negf %78 : vector<2x128xf32>
    %80 = math.exp %79 : vector<2x128xf32>
    %cst_36 = arith.constant 1.000000e+00 : f32
    %81 = vector.broadcast %cst_36 : f32 to vector<2x128xf32>
    %82 = arith.addf %81, %80 : vector<2x128xf32>
    %83 = arith.divf %81, %82 : vector<2x128xf32>
    %84 = math.tanh %78 : vector<2x128xf32>
    %85 = vector.extract_strided_slice %83 {offsets = [0, 0], sizes = [2, 32], strides = [1, 1]} : vector<2x128xf32> to vector<2x32xf32>
    %86 = vector.extract_strided_slice %83 {offsets = [0, 32], sizes = [2, 32], strides = [1, 1]} : vector<2x128xf32> to vector<2x32xf32>
    %87 = vector.extract_strided_slice %83 {offsets = [0, 96], sizes = [2, 32], strides = [1, 1]} : vector<2x128xf32> to vector<2x32xf32>
    %88 = vector.extract_strided_slice %84 {offsets = [0, 64], sizes = [2, 32], strides = [1, 1]} : vector<2x128xf32> to vector<2x32xf32>
    %89 = arith.mulf %86, %70 : vector<2x32xf32>
    %90 = arith.mulf %85, %88 : vector<2x32xf32>
    %91 = arith.addf %89, %90 : vector<2x32xf32>
    %92 = math.tanh %91 : vector<2x32xf32>
    %93 = arith.mulf %87, %92 : vector<2x32xf32>
    %94 = vector.extract_strided_slice %28 {offsets = [3, 0], sizes = [1, 128], strides = [1, 1]} : vector<8x128xf32> to vector<1x128xf32>
    %95 = vector.extract_strided_slice %28 {offsets = [7, 0], sizes = [1, 128], strides = [1, 1]} : vector<8x128xf32> to vector<1x128xf32>
    %96 = tpu.concatenate %94, %95 in 0 : vector<1x128xf32>, vector<1x128xf32> -> vector<2x128xf32>
    %c0_37 = arith.constant 0 : index
    %c0_38 = arith.constant 0 : index
    %97 = vector.load %arg9[%c0_37, %c0_38] : memref<32x128xf32, #tpu.memory_space<vmem>>, vector<32x128xf32>
    %cst_39 = arith.constant dense<0.000000e+00> : vector<2x128xf32>
    %98 = tpu.matmul %93, %97, %cst_39 {dimension_numbers = #tpu.dot_dimension_numbers<[1], [0], [0], [1], [0, 0, 1, 1], [], []>} : vector<2x32xf32>, vector<32x128xf32>, vector<2x128xf32> -> vector<2x128xf32>
    %99 = arith.addf %96, %98 : vector<2x128xf32>
    %100 = arith.negf %99 : vector<2x128xf32>
    %101 = math.exp %100 : vector<2x128xf32>
    %cst_40 = arith.constant 1.000000e+00 : f32
    %102 = vector.broadcast %cst_40 : f32 to vector<2x128xf32>
    %103 = arith.addf %102, %101 : vector<2x128xf32>
    %104 = arith.divf %102, %103 : vector<2x128xf32>
    %105 = math.tanh %99 : vector<2x128xf32>
    %106 = vector.extract_strided_slice %104 {offsets = [0, 0], sizes = [2, 32], strides = [1, 1]} : vector<2x128xf32> to vector<2x32xf32>
    %107 = vector.extract_strided_slice %104 {offsets = [0, 32], sizes = [2, 32], strides = [1, 1]} : vector<2x128xf32> to vector<2x32xf32>
    %108 = vector.extract_strided_slice %104 {offsets = [0, 96], sizes = [2, 32], strides = [1, 1]} : vector<2x128xf32> to vector<2x32xf32>
    %109 = vector.extract_strided_slice %105 {offsets = [0, 64], sizes = [2, 32], strides = [1, 1]} : vector<2x128xf32> to vector<2x32xf32>
    %110 = arith.mulf %107, %91 : vector<2x32xf32>
    %111 = arith.mulf %106, %109 : vector<2x32xf32>
    %112 = arith.addf %110, %111 : vector<2x32xf32>
    %113 = math.tanh %112 : vector<2x32xf32>
    %114 = arith.mulf %108, %113 : vector<2x32xf32>
    %115 = tpu.concatenate %51, %72, %93, %114 in 0 : vector<2x32xf32>, vector<2x32xf32>, vector<2x32xf32>, vector<2x32xf32> -> vector<8x32xf32>
    %c0_41 = arith.constant 0 : index
    %c0_42 = arith.constant 0 : index
    %116 = vector.load %arg11[%c0_41, %c0_42] : memref<32x128xf32, #tpu.memory_space<vmem>>, vector<32x128xf32>
    %cst_43 = arith.constant dense<0.000000e+00> : vector<8x128xf32>
    %117 = tpu.matmul %115, %116, %cst_43 {dimension_numbers = #tpu.dot_dimension_numbers<[1], [0], [0], [1], [0, 0, 1, 1], [], []>} : vector<8x32xf32>, vector<32x128xf32>, vector<8x128xf32> -> vector<8x128xf32>
    %c0_44 = arith.constant 0 : index
    %c0_45 = arith.constant 0 : index
    %118 = vector.load %arg13[%c0_44, %c0_45] : memref<1x128xf32, #tpu.memory_space<vmem>>, vector<1x128xf32>
    %119 = vector.broadcast %118 : vector<1x128xf32> to vector<8x128xf32>
    %120 = arith.addf %117, %119 : vector<8x128xf32>
    %cst_46 = arith.constant 0.000000e+00 : f32
    %121 = vector.broadcast %cst_46 : f32 to vector<2x32xf32>
    %cst_47 = arith.constant 0.000000e+00 : f32
    %122 = vector.broadcast %cst_47 : f32 to vector<2x32xf32>
    %123 = vector.extract_strided_slice %120 {offsets = [0, 0], sizes = [2, 128], strides = [1, 1]} : vector<8x128xf32> to vector<2x128xf32>
    %c0_48 = arith.constant 0 : index
    %c0_49 = arith.constant 0 : index
    %124 = vector.load %arg12[%c0_48, %c0_49] : memref<32x128xf32, #tpu.memory_space<vmem>>, vector<32x128xf32>
    %cst_50 = arith.constant dense<0.000000e+00> : vector<2x128xf32>
    %125 = tpu.matmul %121, %124, %cst_50 {dimension_numbers = #tpu.dot_dimension_numbers<[1], [0], [0], [1], [0, 0, 1, 1], [], []>} : vector<2x32xf32>, vector<32x128xf32>, vector<2x128xf32> -> vector<2x128xf32>
    %126 = arith.addf %123, %125 : vector<2x128xf32>
    %127 = arith.negf %126 : vector<2x128xf32>
    %128 = math.exp %127 : vector<2x128xf32>
    %cst_51 = arith.constant 1.000000e+00 : f32
    %129 = vector.broadcast %cst_51 : f32 to vector<2x128xf32>
    %130 = arith.addf %129, %128 : vector<2x128xf32>
    %131 = arith.divf %129, %130 : vector<2x128xf32>
    %132 = math.tanh %126 : vector<2x128xf32>
    %133 = vector.extract_strided_slice %131 {offsets = [0, 0], sizes = [2, 32], strides = [1, 1]} : vector<2x128xf32> to vector<2x32xf32>
    %134 = vector.extract_strided_slice %131 {offsets = [0, 32], sizes = [2, 32], strides = [1, 1]} : vector<2x128xf32> to vector<2x32xf32>
    %135 = vector.extract_strided_slice %131 {offsets = [0, 96], sizes = [2, 32], strides = [1, 1]} : vector<2x128xf32> to vector<2x32xf32>
    %136 = vector.extract_strided_slice %132 {offsets = [0, 64], sizes = [2, 32], strides = [1, 1]} : vector<2x128xf32> to vector<2x32xf32>
    %137 = arith.mulf %134, %122 : vector<2x32xf32>
    %138 = arith.mulf %133, %136 : vector<2x32xf32>
    %139 = arith.addf %137, %138 : vector<2x32xf32>
    %140 = math.tanh %139 : vector<2x32xf32>
    %141 = arith.mulf %135, %140 : vector<2x32xf32>
    %142 = vector.extract_strided_slice %120 {offsets = [2, 0], sizes = [2, 128], strides = [1, 1]} : vector<8x128xf32> to vector<2x128xf32>
    %c0_52 = arith.constant 0 : index
    %c0_53 = arith.constant 0 : index
    %143 = vector.load %arg12[%c0_52, %c0_53] : memref<32x128xf32, #tpu.memory_space<vmem>>, vector<32x128xf32>
    %cst_54 = arith.constant dense<0.000000e+00> : vector<2x128xf32>
    %144 = tpu.matmul %141, %143, %cst_54 {dimension_numbers = #tpu.dot_dimension_numbers<[1], [0], [0], [1], [0, 0, 1, 1], [], []>} : vector<2x32xf32>, vector<32x128xf32>, vector<2x128xf32> -> vector<2x128xf32>
    %145 = arith.addf %142, %144 : vector<2x128xf32>
    %146 = arith.negf %145 : vector<2x128xf32>
    %147 = math.exp %146 : vector<2x128xf32>
    %cst_55 = arith.constant 1.000000e+00 : f32
    %148 = vector.broadcast %cst_55 : f32 to vector<2x128xf32>
    %149 = arith.addf %148, %147 : vector<2x128xf32>
    %150 = arith.divf %148, %149 : vector<2x128xf32>
    %151 = math.tanh %145 : vector<2x128xf32>
    %152 = vector.extract_strided_slice %150 {offsets = [0, 0], sizes = [2, 32], strides = [1, 1]} : vector<2x128xf32> to vector<2x32xf32>
    %153 = vector.extract_strided_slice %150 {offsets = [0, 32], sizes = [2, 32], strides = [1, 1]} : vector<2x128xf32> to vector<2x32xf32>
    %154 = vector.extract_strided_slice %150 {offsets = [0, 96], sizes = [2, 32], strides = [1, 1]} : vector<2x128xf32> to vector<2x32xf32>
    %155 = vector.extract_strided_slice %151 {offsets = [0, 64], sizes = [2, 32], strides = [1, 1]} : vector<2x128xf32> to vector<2x32xf32>
    %156 = arith.mulf %153, %139 : vector<2x32xf32>
    %157 = arith.mulf %152, %155 : vector<2x32xf32>
    %158 = arith.addf %156, %157 : vector<2x32xf32>
    %159 = math.tanh %158 : vector<2x32xf32>
    %160 = arith.mulf %154, %159 : vector<2x32xf32>
    %161 = vector.extract_strided_slice %120 {offsets = [4, 0], sizes = [2, 128], strides = [1, 1]} : vector<8x128xf32> to vector<2x128xf32>
    %c0_56 = arith.constant 0 : index
    %c0_57 = arith.constant 0 : index
    %162 = vector.load %arg12[%c0_56, %c0_57] : memref<32x128xf32, #tpu.memory_space<vmem>>, vector<32x128xf32>
    %cst_58 = arith.constant dense<0.000000e+00> : vector<2x128xf32>
    %163 = tpu.matmul %160, %162, %cst_58 {dimension_numbers = #tpu.dot_dimension_numbers<[1], [0], [0], [1], [0, 0, 1, 1], [], []>} : vector<2x32xf32>, vector<32x128xf32>, vector<2x128xf32> -> vector<2x128xf32>
    %164 = arith.addf %161, %163 : vector<2x128xf32>
    %165 = arith.negf %164 : vector<2x128xf32>
    %166 = math.exp %165 : vector<2x128xf32>
    %cst_59 = arith.constant 1.000000e+00 : f32
    %167 = vector.broadcast %cst_59 : f32 to vector<2x128xf32>
    %168 = arith.addf %167, %166 : vector<2x128xf32>
    %169 = arith.divf %167, %168 : vector<2x128xf32>
    %170 = math.tanh %164 : vector<2x128xf32>
    %171 = vector.extract_strided_slice %169 {offsets = [0, 0], sizes = [2, 32], strides = [1, 1]} : vector<2x128xf32> to vector<2x32xf32>
    %172 = vector.extract_strided_slice %169 {offsets = [0, 32], sizes = [2, 32], strides = [1, 1]} : vector<2x128xf32> to vector<2x32xf32>
    %173 = vector.extract_strided_slice %169 {offsets = [0, 96], sizes = [2, 32], strides = [1, 1]} : vector<2x128xf32> to vector<2x32xf32>
    %174 = vector.extract_strided_slice %170 {offsets = [0, 64], sizes = [2, 32], strides = [1, 1]} : vector<2x128xf32> to vector<2x32xf32>
    %175 = arith.mulf %172, %158 : vector<2x32xf32>
    %176 = arith.mulf %171, %174 : vector<2x32xf32>
    %177 = arith.addf %175, %176 : vector<2x32xf32>
    %178 = math.tanh %177 : vector<2x32xf32>
    %179 = arith.mulf %173, %178 : vector<2x32xf32>
    %180 = vector.extract_strided_slice %120 {offsets = [6, 0], sizes = [2, 128], strides = [1, 1]} : vector<8x128xf32> to vector<2x128xf32>
    %c0_60 = arith.constant 0 : index
    %c0_61 = arith.constant 0 : index
    %181 = vector.load %arg12[%c0_60, %c0_61] : memref<32x128xf32, #tpu.memory_space<vmem>>, vector<32x128xf32>
    %cst_62 = arith.constant dense<0.000000e+00> : vector<2x128xf32>
    %182 = tpu.matmul %179, %181, %cst_62 {dimension_numbers = #tpu.dot_dimension_numbers<[1], [0], [0], [1], [0, 0, 1, 1], [], []>} : vector<2x32xf32>, vector<32x128xf32>, vector<2x128xf32> -> vector<2x128xf32>
    %183 = arith.addf %180, %182 : vector<2x128xf32>
    %184 = arith.negf %183 : vector<2x128xf32>
    %185 = math.exp %184 : vector<2x128xf32>
    %cst_63 = arith.constant 1.000000e+00 : f32
    %186 = vector.broadcast %cst_63 : f32 to vector<2x128xf32>
    %187 = arith.addf %186, %185 : vector<2x128xf32>
    %188 = arith.divf %186, %187 : vector<2x128xf32>
    %189 = math.tanh %183 : vector<2x128xf32>
    %190 = vector.extract_strided_slice %188 {offsets = [0, 0], sizes = [2, 32], strides = [1, 1]} : vector<2x128xf32> to vector<2x32xf32>
    %191 = vector.extract_strided_slice %188 {offsets = [0, 32], sizes = [2, 32], strides = [1, 1]} : vector<2x128xf32> to vector<2x32xf32>
    %192 = vector.extract_strided_slice %188 {offsets = [0, 96], sizes = [2, 32], strides = [1, 1]} : vector<2x128xf32> to vector<2x32xf32>
    %193 = vector.extract_strided_slice %189 {offsets = [0, 64], sizes = [2, 32], strides = [1, 1]} : vector<2x128xf32> to vector<2x32xf32>
    %194 = arith.mulf %191, %177 : vector<2x32xf32>
    %195 = arith.mulf %190, %193 : vector<2x32xf32>
    %196 = arith.addf %194, %195 : vector<2x32xf32>
    %197 = math.tanh %196 : vector<2x32xf32>
    %198 = arith.mulf %192, %197 : vector<2x32xf32>
    %199 = tpu.concatenate %141, %160, %179, %198 in 0 : vector<2x32xf32>, vector<2x32xf32>, vector<2x32xf32>, vector<2x32xf32> -> vector<8x32xf32>
    %c0_64 = arith.constant 0 : index
    %c0_65 = arith.constant 0 : index
    %200 = vector.load %arg14[%c0_64, %c0_65] : memref<32x128xf32, #tpu.memory_space<vmem>>, vector<32x128xf32>
    %cst_66 = arith.constant dense<0.000000e+00> : vector<8x128xf32>
    %201 = tpu.matmul %199, %200, %cst_66 {dimension_numbers = #tpu.dot_dimension_numbers<[1], [0], [0], [1], [0, 0, 1, 1], [], []>} : vector<8x32xf32>, vector<32x128xf32>, vector<8x128xf32> -> vector<8x128xf32>
    %c0_67 = arith.constant 0 : index
    %c0_68 = arith.constant 0 : index
    %202 = vector.load %arg16[%c0_67, %c0_68] : memref<1x128xf32, #tpu.memory_space<vmem>>, vector<1x128xf32>
    %203 = vector.broadcast %202 : vector<1x128xf32> to vector<8x128xf32>
    %204 = arith.addf %201, %203 : vector<8x128xf32>
    %cst_69 = arith.constant 0.000000e+00 : f32
    %205 = vector.broadcast %cst_69 : f32 to vector<2x32xf32>
    %cst_70 = arith.constant 0.000000e+00 : f32
    %206 = vector.broadcast %cst_70 : f32 to vector<2x32xf32>
    %207 = vector.extract_strided_slice %204 {offsets = [0, 0], sizes = [2, 128], strides = [1, 1]} : vector<8x128xf32> to vector<2x128xf32>
    %c0_71 = arith.constant 0 : index
    %c0_72 = arith.constant 0 : index
    %208 = vector.load %arg15[%c0_71, %c0_72] : memref<32x128xf32, #tpu.memory_space<vmem>>, vector<32x128xf32>
    %cst_73 = arith.constant dense<0.000000e+00> : vector<2x128xf32>
    %209 = tpu.matmul %205, %208, %cst_73 {dimension_numbers = #tpu.dot_dimension_numbers<[1], [0], [0], [1], [0, 0, 1, 1], [], []>} : vector<2x32xf32>, vector<32x128xf32>, vector<2x128xf32> -> vector<2x128xf32>
    %210 = arith.addf %207, %209 : vector<2x128xf32>
    %211 = arith.negf %210 : vector<2x128xf32>
    %212 = math.exp %211 : vector<2x128xf32>
    %cst_74 = arith.constant 1.000000e+00 : f32
    %213 = vector.broadcast %cst_74 : f32 to vector<2x128xf32>
    %214 = arith.addf %213, %212 : vector<2x128xf32>
    %215 = arith.divf %213, %214 : vector<2x128xf32>
    %216 = math.tanh %210 : vector<2x128xf32>
    %217 = vector.extract_strided_slice %215 {offsets = [0, 0], sizes = [2, 32], strides = [1, 1]} : vector<2x128xf32> to vector<2x32xf32>
    %218 = vector.extract_strided_slice %215 {offsets = [0, 32], sizes = [2, 32], strides = [1, 1]} : vector<2x128xf32> to vector<2x32xf32>
    %219 = vector.extract_strided_slice %215 {offsets = [0, 96], sizes = [2, 32], strides = [1, 1]} : vector<2x128xf32> to vector<2x32xf32>
    %220 = vector.extract_strided_slice %216 {offsets = [0, 64], sizes = [2, 32], strides = [1, 1]} : vector<2x128xf32> to vector<2x32xf32>
    %221 = arith.mulf %218, %206 : vector<2x32xf32>
    %222 = arith.mulf %217, %220 : vector<2x32xf32>
    %223 = arith.addf %221, %222 : vector<2x32xf32>
    %224 = math.tanh %223 : vector<2x32xf32>
    %225 = arith.mulf %219, %224 : vector<2x32xf32>
    %226 = vector.extract_strided_slice %204 {offsets = [2, 0], sizes = [2, 128], strides = [1, 1]} : vector<8x128xf32> to vector<2x128xf32>
    %c0_75 = arith.constant 0 : index
    %c0_76 = arith.constant 0 : index
    %227 = vector.load %arg15[%c0_75, %c0_76] : memref<32x128xf32, #tpu.memory_space<vmem>>, vector<32x128xf32>
    %cst_77 = arith.constant dense<0.000000e+00> : vector<2x128xf32>
    %228 = tpu.matmul %225, %227, %cst_77 {dimension_numbers = #tpu.dot_dimension_numbers<[1], [0], [0], [1], [0, 0, 1, 1], [], []>} : vector<2x32xf32>, vector<32x128xf32>, vector<2x128xf32> -> vector<2x128xf32>
    %229 = arith.addf %226, %228 : vector<2x128xf32>
    %230 = arith.negf %229 : vector<2x128xf32>
    %231 = math.exp %230 : vector<2x128xf32>
    %cst_78 = arith.constant 1.000000e+00 : f32
    %232 = vector.broadcast %cst_78 : f32 to vector<2x128xf32>
    %233 = arith.addf %232, %231 : vector<2x128xf32>
    %234 = arith.divf %232, %233 : vector<2x128xf32>
    %235 = math.tanh %229 : vector<2x128xf32>
    %236 = vector.extract_strided_slice %234 {offsets = [0, 0], sizes = [2, 32], strides = [1, 1]} : vector<2x128xf32> to vector<2x32xf32>
    %237 = vector.extract_strided_slice %234 {offsets = [0, 32], sizes = [2, 32], strides = [1, 1]} : vector<2x128xf32> to vector<2x32xf32>
    %238 = vector.extract_strided_slice %234 {offsets = [0, 96], sizes = [2, 32], strides = [1, 1]} : vector<2x128xf32> to vector<2x32xf32>
    %239 = vector.extract_strided_slice %235 {offsets = [0, 64], sizes = [2, 32], strides = [1, 1]} : vector<2x128xf32> to vector<2x32xf32>
    %240 = arith.mulf %237, %223 : vector<2x32xf32>
    %241 = arith.mulf %236, %239 : vector<2x32xf32>
    %242 = arith.addf %240, %241 : vector<2x32xf32>
    %243 = math.tanh %242 : vector<2x32xf32>
    %244 = arith.mulf %238, %243 : vector<2x32xf32>
    %245 = vector.extract_strided_slice %204 {offsets = [4, 0], sizes = [2, 128], strides = [1, 1]} : vector<8x128xf32> to vector<2x128xf32>
    %c0_79 = arith.constant 0 : index
    %c0_80 = arith.constant 0 : index
    %246 = vector.load %arg15[%c0_79, %c0_80] : memref<32x128xf32, #tpu.memory_space<vmem>>, vector<32x128xf32>
    %cst_81 = arith.constant dense<0.000000e+00> : vector<2x128xf32>
    %247 = tpu.matmul %244, %246, %cst_81 {dimension_numbers = #tpu.dot_dimension_numbers<[1], [0], [0], [1], [0, 0, 1, 1], [], []>} : vector<2x32xf32>, vector<32x128xf32>, vector<2x128xf32> -> vector<2x128xf32>
    %248 = arith.addf %245, %247 : vector<2x128xf32>
    %249 = arith.negf %248 : vector<2x128xf32>
    %250 = math.exp %249 : vector<2x128xf32>
    %cst_82 = arith.constant 1.000000e+00 : f32
    %251 = vector.broadcast %cst_82 : f32 to vector<2x128xf32>
    %252 = arith.addf %251, %250 : vector<2x128xf32>
    %253 = arith.divf %251, %252 : vector<2x128xf32>
    %254 = math.tanh %248 : vector<2x128xf32>
    %255 = vector.extract_strided_slice %253 {offsets = [0, 0], sizes = [2, 32], strides = [1, 1]} : vector<2x128xf32> to vector<2x32xf32>
    %256 = vector.extract_strided_slice %253 {offsets = [0, 32], sizes = [2, 32], strides = [1, 1]} : vector<2x128xf32> to vector<2x32xf32>
    %257 = vector.extract_strided_slice %253 {offsets = [0, 96], sizes = [2, 32], strides = [1, 1]} : vector<2x128xf32> to vector<2x32xf32>
    %258 = vector.extract_strided_slice %254 {offsets = [0, 64], sizes = [2, 32], strides = [1, 1]} : vector<2x128xf32> to vector<2x32xf32>
    %259 = arith.mulf %256, %242 : vector<2x32xf32>
    %260 = arith.mulf %255, %258 : vector<2x32xf32>
    %261 = arith.addf %259, %260 : vector<2x32xf32>
    %262 = math.tanh %261 : vector<2x32xf32>
    %263 = arith.mulf %257, %262 : vector<2x32xf32>
    %264 = vector.extract_strided_slice %204 {offsets = [6, 0], sizes = [2, 128], strides = [1, 1]} : vector<8x128xf32> to vector<2x128xf32>
    %c0_83 = arith.constant 0 : index
    %c0_84 = arith.constant 0 : index
    %265 = vector.load %arg15[%c0_83, %c0_84] : memref<32x128xf32, #tpu.memory_space<vmem>>, vector<32x128xf32>
    %cst_85 = arith.constant dense<0.000000e+00> : vector<2x128xf32>
    %266 = tpu.matmul %263, %265, %cst_85 {dimension_numbers = #tpu.dot_dimension_numbers<[1], [0], [0], [1], [0, 0, 1, 1], [], []>} : vector<2x32xf32>, vector<32x128xf32>, vector<2x128xf32> -> vector<2x128xf32>
    %267 = arith.addf %264, %266 : vector<2x128xf32>
    %268 = arith.negf %267 : vector<2x128xf32>
    %269 = math.exp %268 : vector<2x128xf32>
    %cst_86 = arith.constant 1.000000e+00 : f32
    %270 = vector.broadcast %cst_86 : f32 to vector<2x128xf32>
    %271 = arith.addf %270, %269 : vector<2x128xf32>
    %272 = arith.divf %270, %271 : vector<2x128xf32>
    %273 = math.tanh %267 : vector<2x128xf32>
    %274 = vector.extract_strided_slice %272 {offsets = [0, 0], sizes = [2, 32], strides = [1, 1]} : vector<2x128xf32> to vector<2x32xf32>
    %275 = vector.extract_strided_slice %272 {offsets = [0, 32], sizes = [2, 32], strides = [1, 1]} : vector<2x128xf32> to vector<2x32xf32>
    %276 = vector.extract_strided_slice %272 {offsets = [0, 96], sizes = [2, 32], strides = [1, 1]} : vector<2x128xf32> to vector<2x32xf32>
    %277 = vector.extract_strided_slice %273 {offsets = [0, 64], sizes = [2, 32], strides = [1, 1]} : vector<2x128xf32> to vector<2x32xf32>
    %278 = arith.mulf %275, %261 : vector<2x32xf32>
    %279 = arith.mulf %274, %277 : vector<2x32xf32>
    %280 = arith.addf %278, %279 : vector<2x32xf32>
    %281 = math.tanh %280 : vector<2x32xf32>
    %282 = arith.mulf %276, %281 : vector<2x32xf32>
    %c0_87 = arith.constant 0 : index
    %c0_88 = arith.constant 0 : index
    %283 = vector.load %arg17[%c0_87, %c0_88] : memref<2x32xf32, #tpu.memory_space<vmem>>, vector<2x32xf32>
    tpu.vector_store %arg17[%c0_87, %c0_88], %282 {strides = array<i32>} : memref<2x32xf32, #tpu.memory_space<vmem>>, vector<2x32xf32>,
    return
  }
  func.func @transform_0(%arg0: i32) -> (i32, i32) {
    %c0_i32 = arith.constant 0 : i32
    %c0_i32_0 = arith.constant 0 : i32
    %c0_i32_1 = arith.constant 0 : i32
    return %c0_i32, %c0_i32_0 : i32, i32
  }
  func.func @transform_1(%arg0: i32) -> (i32, i32) {
    %c0_i32 = arith.constant 0 : i32
    %c0_i32_0 = arith.constant 0 : i32
    %c0_i32_1 = arith.constant 0 : i32
    return %c0_i32, %c0_i32_0 : i32, i32
  }
  func.func @transform_2(%arg0: i32) -> (i32, i32) {
    %c0_i32 = arith.constant 0 : i32
    %c0_i32_0 = arith.constant 0 : i32
    %c0_i32_1 = arith.constant 0 : i32
    return %c0_i32, %c0_i32_0 : i32, i32
  }
  func.func @transform_3(%arg0: i32) -> (i32, i32) {
    %c0_i32 = arith.constant 0 : i32
    %c0_i32_0 = arith.constant 0 : i32
    %c0_i32_1 = arith.constant 0 : i32
    return %c0_i32, %c0_i32_0 : i32, i32
  }
  func.func @transform_4(%arg0: i32) -> (i32, i32) {
    %c0_i32 = arith.constant 0 : i32
    %c0_i32_0 = arith.constant 0 : i32
    %c0_i32_1 = arith.constant 0 : i32
    return %c0_i32, %c0_i32_0 : i32, i32
  }
  func.func @transform_5(%arg0: i32) -> (i32, i32) {
    %c0_i32 = arith.constant 0 : i32
    %c0_i32_0 = arith.constant 0 : i32
    %c0_i32_1 = arith.constant 0 : i32
    return %c0_i32, %c0_i32_0 : i32, i32
  }
  func.func @transform_6(%arg0: i32) -> (i32, i32) {
    %c0_i32 = arith.constant 0 : i32
    %c0_i32_0 = arith.constant 0 : i32
    %c0_i32_1 = arith.constant 0 : i32
    return %c0_i32, %c0_i32_0 : i32, i32
  }
  func.func @transform_7(%arg0: i32) -> (i32, i32) {
    %c0_i32 = arith.constant 0 : i32
    %c0_i32_0 = arith.constant 0 : i32
    %c0_i32_1 = arith.constant 0 : i32
    return %c0_i32, %c0_i32_0 : i32, i32
  }
  func.func @transform_8(%arg0: i32) -> (i32, i32) {
    %c0_i32 = arith.constant 0 : i32
    %c0_i32_0 = arith.constant 0 : i32
    %c0_i32_1 = arith.constant 0 : i32
    return %c0_i32, %c0_i32_0 : i32, i32
  }
  func.func @transform_9(%arg0: i32) -> (i32, i32) {
    %c0_i32 = arith.constant 0 : i32
    %c0_i32_0 = arith.constant 0 : i32
    %c0_i32_1 = arith.constant 0 : i32
    return %c0_i32, %c0_i32_0 : i32, i32
  }
  func.func @transform_10(%arg0: i32) -> (i32, i32) {
    %c0_i32 = arith.constant 0 : i32
    %c0_i32_0 = arith.constant 0 : i32
    %c0_i32_1 = arith.constant 0 : i32
    return %c0_i32, %c0_i32_0 : i32, i32
  }
  func.func @transform_11(%arg0: i32) -> (i32, i32) {
    %c0_i32 = arith.constant 0 : i32
    %c0_i32_0 = arith.constant 0 : i32
    %c0_i32_1 = arith.constant 0 : i32
    return %c0_i32, %c0_i32_0 : i32, i32
  }
  func.func @transform_12(%arg0: i32) -> (i32, i32) {
    %c0_i32 = arith.constant 0 : i32
    %c0_i32_0 = arith.constant 0 : i32
    %c0_i32_1 = arith.constant 0 : i32
    return %c0_i32, %c0_i32_0 : i32, i32
  }
  func.func @transform_13(%arg0: i32) -> (i32, i32) {
    %c0_i32 = arith.constant 0 : i32
    %c0_i32_0 = arith.constant 0 : i32
    %c0_i32_1 = arith.constant 0 : i32
    return %c0_i32, %c0_i32_0 : i32, i32
  }
  func.func @transform_14(%arg0: i32) -> (i32, i32) {
    %c0_i32 = arith.constant 0 : i32
    %c0_i32_0 = arith.constant 0 : i32
    %c0_i32_1 = arith.constant 0 : i32
    return %c0_i32, %c0_i32_0 : i32, i32
  }
  func.func @transform_15(%arg0: i32) -> (i32, i32) {
    %c0_i32 = arith.constant 0 : i32
    %c0_i32_0 = arith.constant 0 : i32
    %c0_i32_1 = arith.constant 0 : i32
    return %c0_i32, %c0_i32_0 : i32, i32
  }
  func.func @transform_16(%arg0: i32) -> (i32, i32) {
    %c0_i32 = arith.constant 0 : i32
    %c0_i32_0 = arith.constant 0 : i32
    %c0_i32_1 = arith.constant 0 : i32
    return %c0_i32, %c0_i32_0 : i32, i32
  }
}

</mosaic_0001>

<llo_original>
// kernel: encoder_forward.4
$region0: #{encoder_forward.4}
  #allocation0 [shape = 'u32[]', space=smem, size = 0x4, offset = 0x4, fixed_abs, tag = 'smem constant byte address 0x4 - core index']
  #allocation1 [shape = 'u32[144,128]{1,0:T(1,128)}', space=vmem, size = 0x12000, scoped, tag = 'internal scratch']
  %s0 = inlined_call_operand.vmem [shape: bf16[512,128], index: 0, kind: input, shape index: {}]
  %s1 = inlined_call_operand.vmem [shape: bf16[128,128], index: 1, kind: input, shape index: {}]
  %s2 = inlined_call_operand.vmem [shape: f32[1,128], index: 2, kind: input, shape index: {}]
  %s3 = inlined_call_operand.vmem [shape: f32[1,128], index: 3, kind: input, shape index: {}]
  %s4 = inlined_call_operand.vmem [shape: bf16[512,128], index: 4, kind: output, shape index: {}]
  %s5 = sld [smem:[#allocation0]]
  $region26: #{encoder_forward.4} parent=0
    _
  %s7 = ssub.s32 1, %s5
  %s8 = scalar_select 0, %s7, %s5
  // Predicated region
  $region2: #{encoder_forward.4} parent=0 // pred_check
    _
  $region3: #{encoder_forward.4} parent=0 // pred_check_branch
    %10 = sbr.rel (0) target = $region5
  $region4: #{encoder_forward.4} parent=0 // pred_region
    _
  $region5: #{encoder_forward.4} parent=0 // pred_fallthru
    _
  // Predicated region
  $region6: #{encoder_forward.4} parent=0 // pred_check
    _
  $region7: #{encoder_forward.4} parent=0 // pred_check_branch
    %12 = sbr.rel (0) target = $region9
  $region8: #{encoder_forward.4} parent=0 // pred_region
    _
  $region9: #{encoder_forward.4} parent=0 // pred_fallthru
    _
  // Predicated region
  $region10: #{encoder_forward.4} parent=0 // pred_check
    _
  $region11: #{encoder_forward.4} parent=0 // pred_check_branch
    %14 = sbr.rel (0) target = $region13
  $region12: #{encoder_forward.4} parent=0 // pred_region
    _
  $region13: #{encoder_forward.4} parent=0 // pred_fallthru
    _
  // Predicated region
  $region14: #{encoder_forward.4} parent=0 // pred_check
    _
  $region15: #{encoder_forward.4} parent=0 // pred_check_branch
    %16 = sbr.rel (0) target = $region17
  $region16: #{encoder_forward.4} parent=0 // pred_region
    _
  $region17: #{encoder_forward.4} parent=0 // pred_fallthru
    _
  %v18 = vld [vmem:[%s0] sm:$0xf]
  %v19 = vld [vmem:[%s0 + $0x4] sm:$0xf]
  %v20 = vld [vmem:[%s0 + $0x8] sm:$0xf]
  %v21 = vld [vmem:[%s0 + $0xc] sm:$0xf]
  %v22 = vld [vmem:[%s0 + $0x10] sm:$0xf]
  %v23 = vld [vmem:[%s0 + $0x14] sm:$0xf]
  %v24 = vld [vmem:[%s0 + $0x18] sm:$0xf]
  %v25 = vld [vmem:[%s0 + $0x1c] sm:$0xf]
  %v26 = vld [vmem:[%s0 + $0x20] sm:$0xf]
  %v27 = vld [vmem:[%s0 + $0x24] sm:$0xf]
  %v28 = vld [vmem:[%s0 + $0x28] sm:$0xf]
  %v29 = vld [vmem:[%s0 + $0x2c] sm:$0xf]
  %v30 = vld [vmem:[%s0 + $0x30] sm:$0xf]
  %v31 = vld [vmem:[%s0 + $0x34] sm:$0xf]
  %v32 = vld [vmem:[%s0 + $0x38] sm:$0xf]
  %v33 = vld [vmem:[%s0 + $0x3c] sm:$0xf]
  %v34 = vld [vmem:[%s0 + $0x40] sm:$0xf]
  %v35 = vld [vmem:[%s0 + $0x44] sm:$0xf]
  %v36 = vld [vmem:[%s0 + $0x48] sm:$0xf]
  %v37 = vld [vmem:[%s0 + $0x4c] sm:$0xf]
  %v38 = vld [vmem:[%s0 + $0x50] sm:$0xf]
  %v39 = vld [vmem:[%s0 + $0x54] sm:$0xf]
  %v40 = vld [vmem:[%s0 + $0x58] sm:$0xf]
  %v41 = vld [vmem:[%s0 + $0x5c] sm:$0xf]
  %v42 = vld [vmem:[%s0 + $0x60] sm:$0xf]
  %v43 = vld [vmem:[%s0 + $0x64] sm:$0xf]
  %v44 = vld [vmem:[%s0 + $0x68] sm:$0xf]
  %v45 = vld [vmem:[%s0 + $0x6c] sm:$0xf]
  %v46 = vld [vmem:[%s0 + $0x70] sm:$0xf]
  %v47 = vld [vmem:[%s0 + $0x74] sm:$0xf]
  %v48 = vld [vmem:[%s0 + $0x78] sm:$0xf]
  %v49 = vld [vmem:[%s0 + $0x7c] sm:$0xf]
  %v50 = vld [vmem:[%s0 + $0x80] sm:$0xf]
  %v51 = vld [vmem:[%s0 + $0x84] sm:$0xf]
  %v52 = vld [vmem:[%s0 + $0x88] sm:$0xf]
  %v53 = vld [vmem:[%s0 + $0x8c] sm:$0xf]
  %v54 = vld [vmem:[%s0 + $0x90] sm:$0xf]
  %v55 = vld [vmem:[%s0 + $0x94] sm:$0xf]
  %v56 = vld [vmem:[%s0 + $0x98] sm:$0xf]
  %v57 = vld [vmem:[%s0 + $0x9c] sm:$0xf]
  %v58 = vld [vmem:[%s0 + $0xa0] sm:$0xf]
  %v59 = vld [vmem:[%s0 + $0xa4] sm:$0xf]
  %v60 = vld [vmem:[%s0 + $0xa8] sm:$0xf]
  %v61 = vld [vmem:[%s0 + $0xac] sm:$0xf]
  %v62 = vld [vmem:[%s0 + $0xb0] sm:$0xf]
  %v63 = vld [vmem:[%s0 + $0xb4] sm:$0xf]
  %v64 = vld [vmem:[%s0 + $0xb8] sm:$0xf]
  %v65 = vld [vmem:[%s0 + $0xbc] sm:$0xf]
  %v66 = vld [vmem:[%s0 + $0xc0] sm:$0xf]
  %v67 = vld [vmem:[%s0 + $0xc4] sm:$0xf]
  %v68 = vld [vmem:[%s0 + $0xc8] sm:$0xf]
  %v69 = vld [vmem:[%s0 + $0xcc] sm:$0xf]
  %v70 = vld [vmem:[%s0 + $0xd0] sm:$0xf]
  %v71 = vld [vmem:[%s0 + $0xd4] sm:$0xf]
  %v72 = vld [vmem:[%s0 + $0xd8] sm:$0xf]
  %v73 = vld [vmem:[%s0 + $0xdc] sm:$0xf]
  %v74 = vld [vmem:[%s0 + $0xe0] sm:$0xf]
  %v75 = vld [vmem:[%s0 + $0xe4] sm:$0xf]
  %v76 = vld [vmem:[%s0 + $0xe8] sm:$0xf]
  %v77 = vld [vmem:[%s0 + $0xec] sm:$0xf]
  %v78 = vld [vmem:[%s0 + $0xf0] sm:$0xf]
  %v79 = vld [vmem:[%s0 + $0xf4] sm:$0xf]
  %v80 = vld [vmem:[%s0 + $0xf8] sm:$0xf]
  %v81 = vld [vmem:[%s0 + $0xfc] sm:$0xf]
  %v82 = vld [vmem:[%s1] sm:$0xf]
  %v83 = vld [vmem:[%s1 + $0x4] sm:$0xf]
  %v84 = vld [vmem:[%s1 + $0x8] sm:$0xf]
  %v85 = vld [vmem:[%s1 + $0xc] sm:$0xf]
  %v86 = vld [vmem:[%s1 + $0x10] sm:$0xf]
  %v87 = vld [vmem:[%s1 + $0x14] sm:$0xf]
  %v88 = vld [vmem:[%s1 + $0x18] sm:$0xf]
  %v89 = vld [vmem:[%s1 + $0x1c] sm:$0xf]
  %v90 = vld [vmem:[%s1 + $0x20] sm:$0xf]
  %v91 = vld [vmem:[%s1 + $0x24] sm:$0xf]
  %v92 = vld [vmem:[%s1 + $0x28] sm:$0xf]
  %v93 = vld [vmem:[%s1 + $0x2c] sm:$0xf]
  %v94 = vld [vmem:[%s1 + $0x30] sm:$0xf]
  %v95 = vld [vmem:[%s1 + $0x34] sm:$0xf]
  %v96 = vld [vmem:[%s1 + $0x38] sm:$0xf]
  %v97 = vld [vmem:[%s1 + $0x3c] sm:$0xf]
  %v162 = vunpack.c.l.b16 %v18
  %v163 = vunpack.c.l.b16 %v19
  %v164 = vunpack.c.l.b16 %v20
  %v165 = vunpack.c.l.b16 %v21
  %v166 = vunpack.c.l.b16 %v22
  %v167 = vunpack.c.l.b16 %v23
  %v168 = vunpack.c.l.b16 %v24
  %v169 = vunpack.c.l.b16 %v25
  %v170 = vunpack.c.l.b16 %v26
  %v171 = vunpack.c.l.b16 %v27
  %v172 = vunpack.c.l.b16 %v28
  %v173 = vunpack.c.l.b16 %v29
  %v174 = vunpack.c.l.b16 %v30
  %v175 = vunpack.c.l.b16 %v31
  %v176 = vunpack.c.l.b16 %v32
  %v177 = vunpack.c.l.b16 %v33
  %v178 = vunpack.c.l.b16 %v34
  %v179 = vunpack.c.l.b16 %v35
  %v180 = vunpack.c.l.b16 %v36
  %v181 = vunpack.c.l.b16 %v37
  %v182 = vunpack.c.l.b16 %v38
  %v183 = vunpack.c.l.b16 %v39
  %v184 = vunpack.c.l.b16 %v40
  %v185 = vunpack.c.l.b16 %v41
  %v186 = vunpack.c.l.b16 %v42
  %v187 = vunpack.c.l.b16 %v43
  %v188 = vunpack.c.l.b16 %v44
  %v189 = vunpack.c.l.b16 %v45
  %v190 = vunpack.c.l.b16 %v46
  %v191 = vunpack.c.l.b16 %v47
  %v192 = vunpack.c.l.b16 %v48
  %v193 = vunpack.c.l.b16 %v49
  %v194 = vunpack.c.l.b16 %v50
  %v195 = vunpack.c.l.b16 %v51
  %v196 = vunpack.c.l.b16 %v52
  %v197 = vunpack.c.l.b16 %v53
  %v198 = vunpack.c.l.b16 %v54
  %v199 = vunpack.c.l.b16 %v55
  %v200 = vunpack.c.l.b16 %v56
  %v201 = vunpack.c.l.b16 %v57
  %v202 = vunpack.c.l.b16 %v58
  %v203 = vunpack.c.l.b16 %v59
  %v204 = vunpack.c.l.b16 %v60
  %v205 = vunpack.c.l.b16 %v61
  %v206 = vunpack.c.l.b16 %v62
  %v207 = vunpack.c.l.b16 %v63
  %v208 = vunpack.c.l.b16 %v64
  %v209 = vunpack.c.l.b16 %v65
  %v210 = vunpack.c.l.b16 %v66
  %v211 = vunpack.c.l.b16 %v67
  %v212 = vunpack.c.l.b16 %v68
  %v213 = vunpack.c.l.b16 %v69
  %v214 = vunpack.c.l.b16 %v70
  %v215 = vunpack.c.l.b16 %v71
  %v216 = vunpack.c.l.b16 %v72
  %v217 = vunpack.c.l.b16 %v73
  %v218 = vunpack.c.l.b16 %v74
  %v219 = vunpack.c.l.b16 %v75
  %v220 = vunpack.c.l.b16 %v76
  %v221 = vunpack.c.l.b16 %v77
  %v222 = vunpack.c.l.b16 %v78
  %v223 = vunpack.c.l.b16 %v79
  %v224 = vunpack.c.l.b16 %v80
  %v225 = vunpack.c.l.b16 %v81
  %v226 = vpack.c.b16 %v163, %v162
  %v227 = vpack.c.b16 %v165, %v164
  %v228 = vpack.c.b16 %v167, %v166
  %v229 = vpack.c.b16 %v169, %v168
  %v230 = vpack.c.b16 %v171, %v170
  %v231 = vpack.c.b16 %v173, %v172
  %v232 = vpack.c.b16 %v175, %v174
  %v233 = vpack.c.b16 %v177, %v176
  %v234 = vpack.c.b16 %v179, %v178
  %v235 = vpack.c.b16 %v181, %v180
  %v236 = vpack.c.b16 %v183, %v182
  %v237 = vpack.c.b16 %v185, %v184
  %v238 = vpack.c.b16 %v187, %v186
  %v239 = vpack.c.b16 %v189, %v188
  %v240 = vpack.c.b16 %v191, %v190
  %v241 = vpack.c.b16 %v193, %v192
  %v242 = vpack.c.b16 %v195, %v194
  %v243 = vpack.c.b16 %v197, %v196
  %v244 = vpack.c.b16 %v199, %v198
  %v245 = vpack.c.b16 %v201, %v200
  %v246 = vpack.c.b16 %v203, %v202
  %v247 = vpack.c.b16 %v205, %v204
  %v248 = vpack.c.b16 %v207, %v206
  %v249 = vpack.c.b16 %v209, %v208
  %v250 = vpack.c.b16 %v211, %v210
  %v251 = vpack.c.b16 %v213, %v212
  %v252 = vpack.c.b16 %v215, %v214
  %v253 = vpack.c.b16 %v217, %v216
  %v254 = vpack.c.b16 %v219, %v218
  %v255 = vpack.c.b16 %v221, %v220
  %v256 = vpack.c.b16 %v223, %v222
  %v257 = vpack.c.b16 %v225, %v224
  %v306 = vunpack.c.l.b16 %v82
  %v307 = vunpack.c.l.b16 %v83
  %v308 = vunpack.c.l.b16 %v84
  %v309 = vunpack.c.l.b16 %v85
  %v310 = vunpack.c.l.b16 %v86
  %v311 = vunpack.c.l.b16 %v87
  %v312 = vunpack.c.l.b16 %v88
  %v313 = vunpack.c.l.b16 %v89
  %v314 = vunpack.c.l.b16 %v90
  %v315 = vunpack.c.l.b16 %v91
  %v316 = vunpack.c.l.b16 %v92
  %v317 = vunpack.c.l.b16 %v93
  %v318 = vunpack.c.l.b16 %v94
  %v319 = vunpack.c.l.b16 %v95
  %v320 = vunpack.c.l.b16 %v96
  %v321 = vunpack.c.l.b16 %v97
  %v322 = vpack.c.b16 %v307, %v306
  %v323 = vpack.c.b16 %v309, %v308
  %v324 = vpack.c.b16 %v311, %v310
  %v325 = vpack.c.b16 %v313, %v312
  %v326 = vpack.c.b16 %v315, %v314
  %v327 = vpack.c.b16 %v317, %v316
  %v328 = vpack.c.b16 %v319, %v318
  %v329 = vpack.c.b16 %v321, %v320
  %338 = vmatprep.subr.bf16.mxu0 0
  %339 = vmatpush1.bf16.msra.mxu0 %v322
  %340 = vmatprep.subr.bf16.mxu0 0
  %341 = vmatpush1.bf16.msra.mxu0 %v323
  %342 = vmatprep.subr.bf16.mxu0 0
  %343 = vmatpush1.bf16.msra.mxu0 %v324
  %344 = vmatprep.subr.bf16.mxu0 0
  %345 = vmatpush1.bf16.msra.mxu0 %v325
  %346 = vmatprep.subr.bf16.mxu0 0
  %347 = vmatpush1.bf16.msra.mxu0 %v326
  %348 = vmatprep.subr.bf16.mxu0 0
  %349 = vmatpush1.bf16.msra.mxu0 %v327
  %350 = vmatprep.subr.bf16.mxu0 0
  %351 = vmatpush1.bf16.msra.mxu0 %v328
  %352 = vmatprep.subr.bf16.mxu0 0
  %353 = vmatpush1.bf16.msra.mxu0 %v329
  %354 = vmatprep.subr.bf16.mxu0 0
  %355 = vmatpush1.bf16.msra.mxu0 0
  %356 = vmatprep.subr.bf16.mxu0 0
  %357 = vmatpush1.bf16.msra.mxu0 0
  %358 = vmatprep.subr.bf16.mxu0 0
  %359 = vmatpush1.bf16.msra.mxu0 0
  %360 = vmatprep.subr.bf16.mxu0 0
  %361 = vmatpush1.bf16.msra.mxu0 0
  %362 = vmatprep.subr.bf16.mxu0 0
  %363 = vmatpush1.bf16.msra.mxu0 0
  %364 = vmatprep.subr.bf16.mxu0 0
  %365 = vmatpush1.bf16.msra.mxu0 0
  %366 = vmatprep.subr.bf16.mxu0 0
  %367 = vmatpush1.bf16.msra.mxu0 0
  %368 = vmatprep.subr.bf16.mxu0 0
  %369 = vmatpush1.bf16.msra.mxu0 0
  %370 = vmatprep.mubr.bf16.mxu0 0
  %371 = vmatmul.mubr.bf16.gmra.mrb[0].mxu0 %v226
  %v372 = vpop.f32.mrb[0].mxu0
  %v373 = vadd.f32 0.0, %v372
  %v374 = vpop.f32.mrb[0].mxu0
  %v375 = vpop.f32.mrb[0].mxu0
  %v376 = vadd.f32 0.0, %v375
  %v377 = vpop.f32.mrb[0].mxu0
  %378 = vmatprep.mubr.bf16.mxu0 0
  %379 = vmatmul.mubr.bf16.gmra.mrb[0].mxu0 %v227
  %v380 = vpop.f32.mrb[0].mxu0
  %v381 = vadd.f32 0.0, %v380
  %v382 = vpop.f32.mrb[0].mxu0
  %v383 = vpop.f32.mrb[0].mxu0
  %v384 = vadd.f32 0.0, %v383
  %v385 = vpop.f32.mrb[0].mxu0
  %386 = vmatprep.mubr.bf16.mxu0 0
  %387 = vmatmul.mubr.bf16.gmra.mrb[0].mxu0 %v228
  %v388 = vpop.f32.mrb[0].mxu0
  %v389 = vadd.f32 0.0, %v388
  %v390 = vpop.f32.mrb[0].mxu0
  %v391 = vpop.f32.mrb[0].mxu0
  %v392 = vadd.f32 0.0, %v391
  %v393 = vpop.f32.mrb[0].mxu0
  %394 = vmatprep.mubr.bf16.mxu0 0
  %395 = vmatmul.mubr.bf16.gmra.mrb[0].mxu0 %v229
  %v396 = vpop.f32.mrb[0].mxu0
  %v397 = vadd.f32 0.0, %v396
  %v398 = vpop.f32.mrb[0].mxu0
  %v399 = vpop.f32.mrb[0].mxu0
  %v400 = vadd.f32 0.0, %v399
  %v401 = vpop.f32.mrb[0].mxu0
  %402 = vmatprep.mubr.bf16.mxu0 0
  %403 = vmatmul.mubr.bf16.gmra.mrb[0].mxu0 %v230
  %v404 = vpop.f32.mrb[0].mxu0
  %v405 = vadd.f32 0.0, %v404
  %v406 = vpop.f32.mrb[0].mxu0
  %v407 = vpop.f32.mrb[0].mxu0
  %v408 = vadd.f32 0.0, %v407
  %v409 = vpop.f32.mrb[0].mxu0
  %410 = vmatprep.mubr.bf16.mxu0 0
  %411 = vmatmul.mubr.bf16.gmra.mrb[0].mxu0 %v231
  %v412 = vpop.f32.mrb[0].mxu0
  %v413 = vadd.f32 0.0, %v412
  %v414 = vpop.f32.mrb[0].mxu0
  %v415 = vpop.f32.mrb[0].mxu0
  %v416 = vadd.f32 0.0, %v415
  %v417 = vpop.f32.mrb[0].mxu0
  %418 = vmatprep.mubr.bf16.mxu0 0
  %419 = vmatmul.mubr.bf16.gmra.mrb[0].mxu0 %v232
  %v420 = vpop.f32.mrb[0].mxu0
  %v421 = vadd.f32 0.0, %v420
  %v422 = vpop.f32.mrb[0].mxu0
  %v423 = vpop.f32.mrb[0].mxu0
  %v424 = vadd.f32 0.0, %v423
  %v425 = vpop.f32.mrb[0].mxu0
  %426 = vmatprep.mubr.bf16.mxu0 0
  %427 = vmatmul.mubr.bf16.gmra.mrb[0].mxu0 %v233
  %v428 = vpop.f32.mrb[0].mxu0
  %v429 = vadd.f32 0.0, %v428
  %v430 = vpop.f32.mrb[0].mxu0
  %v431 = vpop.f32.mrb[0].mxu0
  %v432 = vadd.f32 0.0, %v431
  %v433 = vpop.f32.mrb[0].mxu0
  %434 = vmatprep.mubr.bf16.mxu0 0
  %435 = vmatmul.mubr.bf16.gmra.mrb[0].mxu0 %v234
  %v436 = vpop.f32.mrb[0].mxu0
  %v437 = vadd.f32 0.0, %v436
  %v438 = vpop.f32.mrb[0].mxu0
  %v439 = vpop.f32.mrb[0].mxu0
  %v440 = vadd.f32 0.0, %v439
  %v441 = vpop.f32.mrb[0].mxu0
  %442 = vmatprep.mubr.bf16.mxu0 0
  %443 = vmatmul.mubr.bf16.gmra.mrb[0].mxu0 %v235
  %v444 = vpop.f32.mrb[0].mxu0
  %v445 = vadd.f32 0.0, %v444
  %v446 = vpop.f32.mrb[0].mxu0
  %v447 = vpop.f32.mrb[0].mxu0
  %v448 = vadd.f32 0.0, %v447
  %v449 = vpop.f32.mrb[0].mxu0
  %450 = vmatprep.mubr.bf16.mxu0 0
  %451 = vmatmul.mubr.bf16.gmra.mrb[0].mxu0 %v236
  %v452 = vpop.f32.mrb[0].mxu0
  %v453 = vadd.f32 0.0, %v452
  %v454 = vpop.f32.mrb[0].mxu0
  %v455 = vpop.f32.mrb[0].mxu0
  %v456 = vadd.f32 0.0, %v455
  %v457 = vpop.f32.mrb[0].mxu0
  %458 = vmatprep.mubr.bf16.mxu0 0
  %459 = vmatmul.mubr.bf16.gmra.mrb[0].mxu0 %v237
  %v460 = vpop.f32.mrb[0].mxu0
  %v461 = vadd.f32 0.0, %v460
  %v462 = vpop.f32.mrb[0].mxu0
  %v463 = vpop.f32.mrb[0].mxu0
  %v464 = vadd.f32 0.0, %v463
  %v465 = vpop.f32.mrb[0].mxu0
  %466 = vmatprep.mubr.bf16.mxu0 0
  %467 = vmatmul.mubr.bf16.gmra.mrb[0].mxu0 %v238
  %v468 = vpop.f32.mrb[0].mxu0
  %v469 = vadd.f32 0.0, %v468
  %v470 = vpop.f32.mrb[0].mxu0
  %v471 = vpop.f32.mrb[0].mxu0
  %v472 = vadd.f32 0.0, %v471
  %v473 = vpop.f32.mrb[0].mxu0
  %474 = vmatprep.mubr.bf16.mxu0 0
  %475 = vmatmul.mubr.bf16.gmra.mrb[0].mxu0 %v239
  %v476 = vpop.f32.mrb[0].mxu0
  %v477 = vadd.f32 0.0, %v476
  %v478 = vpop.f32.mrb[0].mxu0
  %v479 = vpop.f32.mrb[0].mxu0
  %v480 = vadd.f32 0.0, %v479
  %v481 = vpop.f32.mrb[0].mxu0
  %482 = vmatprep.mubr.bf16.mxu0 0
  %483 = vmatmul.mubr.bf16.gmra.mrb[0].mxu0 %v240
  %v484 = vpop.f32.mrb[0].mxu0
  %v485 = vadd.f32 0.0, %v484
  %v486 = vpop.f32.mrb[0].mxu0
  %v487 = vpop.f32.mrb[0].mxu0
  %v488 = vadd.f32 0.0, %v487
  %v489 = vpop.f32.mrb[0].mxu0
  %490 = vmatprep.mubr.bf16.mxu0 0
  %491 = vmatmul.mubr.bf16.gmra.mrb[0].mxu0 %v241
  %v492 = vpop.f32.mrb[0].mxu0
  %v493 = vadd.f32 0.0, %v492
  %v494 = vpop.f32.mrb[0].mxu0
  %v495 = vpop.f32.mrb[0].mxu0
  %v496 = vadd.f32 0.0, %v495
  %v497 = vpop.f32.mrb[0].mxu0
  %498 = vmatprep.mubr.bf16.mxu0 0
  %499 = vmatmul.mubr.bf16.gmra.mrb[0].mxu0 %v242
  %v500 = vpop.f32.mrb[0].mxu0
  %v501 = vadd.f32 0.0, %v500
  %v502 = vpop.f32.mrb[0].mxu0
  %v503 = vpop.f32.mrb[0].mxu0
  %v504 = vadd.f32 0.0, %v503
  %v505 = vpop.f32.mrb[0].mxu0
  %506 = vmatprep.mubr.bf16.mxu0 0
  %507 = vmatmul.mubr.bf16.gmra.mrb[0].mxu0 %v243
  %v508 = vpop.f32.mrb[0].mxu0
  %v509 = vadd.f32 0.0, %v508
  %v510 = vpop.f32.mrb[0].mxu0
  %v511 = vpop.f32.mrb[0].mxu0
  %v512 = vadd.f32 0.0, %v511
  %v513 = vpop.f32.mrb[0].mxu0
  %514 = vmatprep.mubr.bf16.mxu0 0
  %515 = vmatmul.mubr.bf16.gmra.mrb[0].mxu0 %v244
  %v516 = vpop.f32.mrb[0].mxu0
  %v517 = vadd.f32 0.0, %v516
  %v518 = vpop.f32.mrb[0].mxu0
  %v519 = vpop.f32.mrb[0].mxu0
  %v520 = vadd.f32 0.0, %v519
  %v521 = vpop.f32.mrb[0].mxu0
  %522 = vmatprep.mubr.bf16.mxu0 0
  %523 = vmatmul.mubr.bf16.gmra.mrb[0].mxu0 %v245
  %v524 = vpop.f32.mrb[0].mxu0
  %v525 = vadd.f32 0.0, %v524
  %v526 = vpop.f32.mrb[0].mxu0
  %v527 = vpop.f32.mrb[0].mxu0
  %v528 = vadd.f32 0.0, %v527
  %v529 = vpop.f32.mrb[0].mxu0
  %530 = vmatprep.mubr.bf16.mxu0 0
  %531 = vmatmul.mubr.bf16.gmra.mrb[0].mxu0 %v246
  %v532 = vpop.f32.mrb[0].mxu0
  %v533 = vadd.f32 0.0, %v532
  %v534 = vpop.f32.mrb[0].mxu0
  %v535 = vpop.f32.mrb[0].mxu0
  %v536 = vadd.f32 0.0, %v535
  %v537 = vpop.f32.mrb[0].mxu0
  %538 = vmatprep.mubr.bf16.mxu0 0
  %539 = vmatmul.mubr.bf16.gmra.mrb[0].mxu0 %v247
  %v540 = vpop.f32.mrb[0].mxu0
  %v541 = vadd.f32 0.0, %v540
  %v542 = vpop.f32.mrb[0].mxu0
  %v543 = vpop.f32.mrb[0].mxu0
  %v544 = vadd.f32 0.0, %v543
  %v545 = vpop.f32.mrb[0].mxu0
  %546 = vmatprep.mubr.bf16.mxu0 0
  %547 = vmatmul.mubr.bf16.gmra.mrb[0].mxu0 %v248
  %v548 = vpop.f32.mrb[0].mxu0
  %v549 = vadd.f32 0.0, %v548
  %v550 = vpop.f32.mrb[0].mxu0
  %v551 = vpop.f32.mrb[0].mxu0
  %v552 = vadd.f32 0.0, %v551
  %v553 = vpop.f32.mrb[0].mxu0
  %554 = vmatprep.mubr.bf16.mxu0 0
  %555 = vmatmul.mubr.bf16.gmra.mrb[0].mxu0 %v249
  %v556 = vpop.f32.mrb[0].mxu0
  %v557 = vadd.f32 0.0, %v556
  %v558 = vpop.f32.mrb[0].mxu0
  %v559 = vpop.f32.mrb[0].mxu0
  %v560 = vadd.f32 0.0, %v559
  %v561 = vpop.f32.mrb[0].mxu0
  %562 = vmatprep.mubr.bf16.mxu0 0
  %563 = vmatmul.mubr.bf16.gmra.mrb[0].mxu0 %v250
  %v564 = vpop.f32.mrb[0].mxu0
  %v565 = vadd.f32 0.0, %v564
  %v566 = vpop.f32.mrb[0].mxu0
  %v567 = vpop.f32.mrb[0].mxu0
  %v568 = vadd.f32 0.0, %v567
  %v569 = vpop.f32.mrb[0].mxu0
  %570 = vmatprep.mubr.bf16.mxu0 0
  %571 = vmatmul.mubr.bf16.gmra.mrb[0].mxu0 %v251
  %v572 = vpop.f32.mrb[0].mxu0
  %v573 = vadd.f32 0.0, %v572
  %v574 = vpop.f32.mrb[0].mxu0
  %v575 = vpop.f32.mrb[0].mxu0
  %v576 = vadd.f32 0.0, %v575
  %v577 = vpop.f32.mrb[0].mxu0
  %578 = vmatprep.mubr.bf16.mxu0 0
  %579 = vmatmul.mubr.bf16.gmra.mrb[0].mxu0 %v252
  %v580 = vpop.f32.mrb[0].mxu0
  %v581 = vadd.f32 0.0, %v580
  %v582 = vpop.f32.mrb[0].mxu0
  %v583 = vpop.f32.mrb[0].mxu0
  %v584 = vadd.f32 0.0, %v583
  %v585 = vpop.f32.mrb[0].mxu0
  %586 = vmatprep.mubr.bf16.mxu0 0
  %587 = vmatmul.mubr.bf16.gmra.mrb[0].mxu0 %v253
  %v588 = vpop.f32.mrb[0].mxu0
  %v589 = vadd.f32 0.0, %v588
  %v590 = vpop.f32.mrb[0].mxu0
  %v591 = vpop.f32.mrb[0].mxu0
  %v592 = vadd.f32 0.0, %v591
  %v593 = vpop.f32.mrb[0].mxu0
  %594 = vmatprep.mubr.bf16.mxu0 0
  %595 = vmatmul.mubr.bf16.gmra.mrb[0].mxu0 %v254
  %v596 = vpop.f32.mrb[0].mxu0
  %v597 = vadd.f32 0.0, %v596
  %v598 = vpop.f32.mrb[0].mxu0
  %v599 = vpop.f32.mrb[0].mxu0
  %v600 = vadd.f32 0.0, %v599
  %v601 = vpop.f32.mrb[0].mxu0
  %602 = vmatprep.mubr.bf16.mxu0 0
  %603 = vmatmul.mubr.bf16.gmra.mrb[0].mxu0 %v255
  %v604 = vpop.f32.mrb[0].mxu0
  %v605 = vadd.f32 0.0, %v604
  %v606 = vpop.f32.mrb[0].mxu0
  %v607 = vpop.f32.mrb[0].mxu0
  %v608 = vadd.f32 0.0, %v607
  %v609 = vpop.f32.mrb[0].mxu0
  %610 = vmatprep.mubr.bf16.mxu0 0
  %611 = vmatmul.mubr.bf16.gmra.mrb[0].mxu0 %v256
  %v612 = vpop.f32.mrb[0].mxu0
  %v613 = vadd.f32 0.0, %v612
  %v614 = vpop.f32.mrb[0].mxu0
  %v615 = vpop.f32.mrb[0].mxu0
  %v616 = vadd.f32 0.0, %v615
  %v617 = vpop.f32.mrb[0].mxu0
  %618 = vmatprep.mubr.bf16.mxu0 0
  %619 = vmatmul.mubr.bf16.gmra.mrb[0].mxu0 %v257
  %v620 = vpop.f32.mrb[0].mxu0
  %v621 = vadd.f32 0.0, %v620
  %v622 = vpop.f32.mrb[0].mxu0
  %v623 = vpop.f32.mrb[0].mxu0
  %v624 = vadd.f32 0.0, %v623
  %v625 = vpop.f32.mrb[0].mxu0
  %626 = vdwg.mxu0
  %v627 = vadd.f32 %v373, %v376
  %v628 = vadd.f32 %v627, %v381
  %v629 = vadd.f32 %v628, %v384
  %v630 = vadd.f32 %v629, %v389
  %v631 = vadd.f32 %v630, %v392
  %v632 = vadd.f32 %v631, %v397
  %v633 = vadd.f32 %v632, %v400
  %v634 = vadd.f32 %v633, %v405
  %v635 = vadd.f32 %v634, %v408
  %v636 = vadd.f32 %v635, %v413
  %v637 = vadd.f32 %v636, %v416
  %v638 = vadd.f32 %v637, %v421
  %v639 = vadd.f32 %v638, %v424
  %v640 = vadd.f32 %v639, %v429
  %v641 = vadd.f32 %v640, %v432
  %v642 = vadd.f32 %v641, %v437
  %v643 = vadd.f32 %v642, %v440
  %v644 = vadd.f32 %v643, %v445
  %v645 = vadd.f32 %v644, %v448
  %v646 = vadd.f32 %v645, %v453
  %v647 = vadd.f32 %v646, %v456
  %v648 = vadd.f32 %v647, %v461
  %v649 = vadd.f32 %v648, %v464
  %v650 = vadd.f32 %v649, %v469
  %v651 = vadd.f32 %v650, %v472
  %v652 = vadd.f32 %v651, %v477
  %v653 = vadd.f32 %v652, %v480
  %v654 = vadd.f32 %v653, %v485
  %v655 = vadd.f32 %v654, %v488
  %v656 = vadd.f32 %v655, %v493
  %v657 = vadd.f32 %v656, %v496
  %v658 = vadd.f32 %v657, %v501
  %v659 = vadd.f32 %v658, %v504
  %v660 = vadd.f32 %v659, %v509
  %v661 = vadd.f32 %v660, %v512
  %v662 = vadd.f32 %v661, %v517
  %v663 = vadd.f32 %v662, %v520
  %v664 = vadd.f32 %v663, %v525
  %v665 = vadd.f32 %v664, %v528
  %v666 = vadd.f32 %v665, %v533
  %v667 = vadd.f32 %v666, %v536
  %v668 = vadd.f32 %v667, %v541
  %v669 = vadd.f32 %v668, %v544
  %v670 = vadd.f32 %v669, %v549
  %v671 = vadd.f32 %v670, %v552
  %v672 = vadd.f32 %v671, %v557
  %v673 = vadd.f32 %v672, %v560
  %v674 = vadd.f32 %v673, %v565
  %v675 = vadd.f32 %v674, %v568
  %v676 = vadd.f32 %v675, %v573
  %v677 = vadd.f32 %v676, %v576
  %v678 = vadd.f32 %v677, %v581
  %v679 = vadd.f32 %v678, %v584
  %v680 = vadd.f32 %v679, %v589
  %v681 = vadd.f32 %v680, %v592
  %v682 = vadd.f32 %v681, %v597
  %v683 = vadd.f32 %v682, %v600
  %v684 = vadd.f32 %v683, %v605
  %v685 = vadd.f32 %v684, %v608
  %v686 = vadd.f32 %v685, %v613
  %v687 = vadd.f32 %v686, %v616
  %v688 = vadd.f32 %v687, %v621
  %v689 = vadd.f32 %v688, %v624
  %v690 = vrot.slane %v689, 4
  %v691 = vadd.f32 %v689, %v690
  %v692 = vrot.slane %v691, 2
  %v693 = vadd.f32 %v691, %v692
  %v694 = vrot.slane %v693, 1
  %v695 = vadd.f32 %v693, %v694
  %v696 = vrcp.pop 512.0
  %v697 = vmul.f32 %v695, %v696
  %v698 = vsub.f32 %v373, %v697
  %v699 = vsub.f32 %v376, %v697
  %v700 = vsub.f32 %v381, %v697
  %v701 = vsub.f32 %v384, %v697
  %v702 = vsub.f32 %v389, %v697
  %v703 = vsub.f32 %v392, %v697
  %v704 = vsub.f32 %v397, %v697
  %v705 = vsub.f32 %v400, %v697
  %v706 = vsub.f32 %v405, %v697
  %v707 = vsub.f32 %v408, %v697
  %v708 = vsub.f32 %v413, %v697
  %v709 = vsub.f32 %v416, %v697
  %v710 = vsub.f32 %v421, %v697
  %v711 = vsub.f32 %v424, %v697
  %v712 = vsub.f32 %v429, %v697
  %v713 = vsub.f32 %v432, %v697
  %v714 = vsub.f32 %v437, %v697
  %v715 = vsub.f32 %v440, %v697
  %v716 = vsub.f32 %v445, %v697
  %v717 = vsub.f32 %v448, %v697
  %v718 = vsub.f32 %v453, %v697
  %v719 = vsub.f32 %v456, %v697
  %v720 = vsub.f32 %v461, %v697
  %v721 = vsub.f32 %v464, %v697
  %v722 = vsub.f32 %v469, %v697
  %v723 = vsub.f32 %v472, %v697
  %v724 = vsub.f32 %v477, %v697
  %v725 = vsub.f32 %v480, %v697
  %v726 = vsub.f32 %v485, %v697
  %v727 = vsub.f32 %v488, %v697
  %v728 = vsub.f32 %v493, %v697
  %v729 = vsub.f32 %v496, %v697
  %v730 = vsub.f32 %v501, %v697
  %v731 = vsub.f32 %v504, %v697
  %v732 = vsub.f32 %v509, %v697
  %v733 = vsub.f32 %v512, %v697
  %v734 = vsub.f32 %v517, %v697
  %v735 = vsub.f32 %v520, %v697
  %v736 = vsub.f32 %v525, %v697
  %v737 = vsub.f32 %v528, %v697
  %v738 = vsub.f32 %v533, %v697
  %v739 = vsub.f32 %v536, %v697
  %v740 = vsub.f32 %v541, %v697
  %v741 = vsub.f32 %v544, %v697
  %v742 = vsub.f32 %v549, %v697
  %v743 = vsub.f32 %v552, %v697
  %v744 = vsub.f32 %v557, %v697
  %v745 = vsub.f32 %v560, %v697
  %v746 = vsub.f32 %v565, %v697
  %v747 = vsub.f32 %v568, %v697
  %v748 = vsub.f32 %v573, %v697
  %v749 = vsub.f32 %v576, %v697
  %v750 = vsub.f32 %v581, %v697
  %v751 = vsub.f32 %v584, %v697
  %v752 = vsub.f32 %v589, %v697
  %v753 = vsub.f32 %v592, %v697
  %v754 = vsub.f32 %v597, %v697
  %v755 = vsub.f32 %v600, %v697
  %v756 = vsub.f32 %v605, %v697
  %v757 = vsub.f32 %v608, %v697
  %v758 = vsub.f32 %v613, %v697
  %v759 = vsub.f32 %v616, %v697
  %v760 = vsub.f32 %v621, %v697
  %v761 = vsub.f32 %v624, %v697
  %v762 = vmul.f32 %v698, %v698
  %v763 = vmul.f32 %v699, %v699
  %v764 = vmul.f32 %v700, %v700
  %v765 = vmul.f32 %v701, %v701
  %v766 = vmul.f32 %v702, %v702
  %v767 = vmul.f32 %v703, %v703
  %v768 = vmul.f32 %v704, %v704
  %v769 = vmul.f32 %v705, %v705
  %v770 = vmul.f32 %v706, %v706
  %v771 = vmul.f32 %v707, %v707
  %v772 = vmul.f32 %v708, %v708
  %v773 = vmul.f32 %v709, %v709
  %v774 = vmul.f32 %v710, %v710
  %v775 = vmul.f32 %v711, %v711
  %v776 = vmul.f32 %v712, %v712
  %v777 = vmul.f32 %v713, %v713
  %v778 = vmul.f32 %v714, %v714
  %v779 = vmul.f32 %v715, %v715
  %v780 = vmul.f32 %v716, %v716
  %v781 = vmul.f32 %v717, %v717
  %v782 = vmul.f32 %v718, %v718
  %v783 = vmul.f32 %v719, %v719
  %v784 = vmul.f32 %v720, %v720
  %v785 = vmul.f32 %v721, %v721
  %v786 = vmul.f32 %v722, %v722
  %v787 = vmul.f32 %v723, %v723
  %v788 = vmul.f32 %v724, %v724
  %v789 = vmul.f32 %v725, %v725
  %v790 = vmul.f32 %v726, %v726
  %v791 = vmul.f32 %v727, %v727
  %v792 = vmul.f32 %v728, %v728
  %v793 = vmul.f32 %v729, %v729
  %v794 = vmul.f32 %v730, %v730
  %v795 = vmul.f32 %v731, %v731
  %v796 = vmul.f32 %v732, %v732
  %v797 = vmul.f32 %v733, %v733
  %v798 = vmul.f32 %v734, %v734
  %v799 = vmul.f32 %v735, %v735
  %v800 = vmul.f32 %v736, %v736
  %v801 = vmul.f32 %v737, %v737
  %v802 = vmul.f32 %v738, %v738
  %v803 = vmul.f32 %v739, %v739
  %v804 = vmul.f32 %v740, %v740
  %v805 = vmul.f32 %v741, %v741
  %v806 = vmul.f32 %v742, %v742
  %v807 = vmul.f32 %v743, %v743
  %v808 = vmul.f32 %v744, %v744
  %v809 = vmul.f32 %v745, %v745
  %v810 = vmul.f32 %v746, %v746
  %v811 = vmul.f32 %v747, %v747
  %v812 = vmul.f32 %v748, %v748
  %v813 = vmul.f32 %v749, %v749
  %v814 = vmul.f32 %v750, %v750
  %v815 = vmul.f32 %v751, %v751
  %v816 = vmul.f32 %v752, %v752
  %v817 = vmul.f32 %v753, %v753
  %v818 = vmul.f32 %v754, %v754
  %v819 = vmul.f32 %v755, %v755
  %v820 = vmul.f32 %v756, %v756
  %v821 = vmul.f32 %v757, %v757
  %v822 = vmul.f32 %v758, %v758
  %v823 = vmul.f32 %v759, %v759
  %v824 = vmul.f32 %v760, %v760
  %v825 = vmul.f32 %v761, %v761
  %v826 = vadd.f32 %v762, %v763
  %v827 = vadd.f32 %v826, %v764
  %v828 = vadd.f32 %v827, %v765
  %v829 = vadd.f32 %v828, %v766
  %v830 = vadd.f32 %v829, %v767
  %v831 = vadd.f32 %v830, %v768
  %v832 = vadd.f32 %v831, %v769
  %v833 = vadd.f32 %v832, %v770
  %v834 = vadd.f32 %v833, %v771
  %v835 = vadd.f32 %v834, %v772
  %v836 = vadd.f32 %v835, %v773
  %v837 = vadd.f32 %v836, %v774
  %v838 = vadd.f32 %v837, %v775
  %v839 = vadd.f32 %v838, %v776
  %v840 = vadd.f32 %v839, %v777
  %v841 = vadd.f32 %v840, %v778
  %v842 = vadd.f32 %v841, %v779
  %v843 = vadd.f32 %v842, %v780
  %v844 = vadd.f32 %v843, %v781
  %v845 = vadd.f32 %v844, %v782
  %v846 = vadd.f32 %v845, %v783
  %v847 = vadd.f32 %v846, %v784
  %v848 = vadd.f32 %v847, %v785
  %v849 = vadd.f32 %v848, %v786
  %v850 = vadd.f32 %v849, %v787
  %v851 = vadd.f32 %v850, %v788
  %v852 = vadd.f32 %v851, %v789
  %v853 = vadd.f32 %v852, %v790
  %v854 = vadd.f32 %v853, %v791
  %v855 = vadd.f32 %v854, %v792
  %v856 = vadd.f32 %v855, %v793
  %v857 = vadd.f32 %v856, %v794
  %v858 = vadd.f32 %v857, %v795
  %v859 = vadd.f32 %v858, %v796
  %v860 = vadd.f32 %v859, %v797
  %v861 = vadd.f32 %v860, %v798
  %v862 = vadd.f32 %v861, %v799
  %v863 = vadd.f32 %v862, %v800
  %v864 = vadd.f32 %v863, %v801
  %v865 = vadd.f32 %v864, %v802
  %v866 = vadd.f32 %v865, %v803
  %v867 = vadd.f32 %v866, %v804
  %v868 = vadd.f32 %v867, %v805
  %v869 = vadd.f32 %v868, %v806
  %v870 = vadd.f32 %v869, %v807
  %v871 = vadd.f32 %v870, %v808
  %v872 = vadd.f32 %v871, %v809
  %v873 = vadd.f32 %v872, %v810
  %v874 = vadd.f32 %v873, %v811
  %v875 = vadd.f32 %v874, %v812
  %v876 = vadd.f32 %v875, %v813
  %v877 = vadd.f32 %v876, %v814
  %v878 = vadd.f32 %v877, %v815
  %v879 = vadd.f32 %v878, %v816
  %v880 = vadd.f32 %v879, %v817
  %v881 = vadd.f32 %v880, %v818
  %v882 = vadd.f32 %v881, %v819
  %v883 = vadd.f32 %v882, %v820
  %v884 = vadd.f32 %v883, %v821
  %v885 = vadd.f32 %v884, %v822
  %v886 = vadd.f32 %v885, %v823
  %v887 = vadd.f32 %v886, %v824
  %v888 = vadd.f32 %v887, %v825
  %v889 = vrot.slane %v888, 4
  %v890 = vadd.f32 %v888, %v889
  %v891 = vrot.slane %v890, 2
  %v892 = vadd.f32 %v890, %v891
  %v893 = vrot.slane %v892, 1
  %v894 = vadd.f32 %v892, %v893
  %v895 = vmul.f32 %v894, %v696
  %v896 = vadd.f32 %v895, 1e-05
  %v897 = vrsqrt.pop %v896
  %v898 = vmul.f32 %v698, %v897
  %v899 = vmul.f32 %v699, %v897
  %v900 = vmul.f32 %v700, %v897
  %v901 = vmul.f32 %v701, %v897
  %v902 = vmul.f32 %v702, %v897
  %v903 = vmul.f32 %v703, %v897
  %v904 = vmul.f32 %v704, %v897
  %v905 = vmul.f32 %v705, %v897
  %v906 = vmul.f32 %v706, %v897
  %v907 = vmul.f32 %v707, %v897
  %v908 = vmul.f32 %v708, %v897
  %v909 = vmul.f32 %v709, %v897
  %v910 = vmul.f32 %v710, %v897
  %v911 = vmul.f32 %v711, %v897
  %v912 = vmul.f32 %v712, %v897
  %v913 = vmul.f32 %v713, %v897
  %v914 = vmul.f32 %v714, %v897
  %v915 = vmul.f32 %v715, %v897
  %v916 = vmul.f32 %v716, %v897
  %v917 = vmul.f32 %v717, %v897
  %v918 = vmul.f32 %v718, %v897
  %v919 = vmul.f32 %v719, %v897
  %v920 = vmul.f32 %v720, %v897
  %v921 = vmul.f32 %v721, %v897
  %v922 = vmul.f32 %v722, %v897
  %v923 = vmul.f32 %v723, %v897
  %v924 = vmul.f32 %v724, %v897
  %v925 = vmul.f32 %v725, %v897
  %v926 = vmul.f32 %v726, %v897
  %v927 = vmul.f32 %v727, %v897
  %v928 = vmul.f32 %v728, %v897
  %v929 = vmul.f32 %v729, %v897
  %v930 = vmul.f32 %v730, %v897
  %v931 = vmul.f32 %v731, %v897
  %v932 = vmul.f32 %v732, %v897
  %v933 = vmul.f32 %v733, %v897
  %v934 = vmul.f32 %v734, %v897
  %v935 = vmul.f32 %v735, %v897
  %v936 = vmul.f32 %v736, %v897
  %v937 = vmul.f32 %v737, %v897
  %v938 = vmul.f32 %v738, %v897
  %v939 = vmul.f32 %v739, %v897
  %v940 = vmul.f32 %v740, %v897
  %v941 = vmul.f32 %v741, %v897
  %v942 = vmul.f32 %v742, %v897
  %v943 = vmul.f32 %v743, %v897
  %v944 = vmul.f32 %v744, %v897
  %v945 = vmul.f32 %v745, %v897
  %v946 = vmul.f32 %v746, %v897
  %v947 = vmul.f32 %v747, %v897
  %v948 = vmul.f32 %v748, %v897
  %v949 = vmul.f32 %v749, %v897
  %v950 = vmul.f32 %v750, %v897
  %v951 = vmul.f32 %v751, %v897
  %v952 = vmul.f32 %v752, %v897
  %v953 = vmul.f32 %v753, %v897
  %v954 = vmul.f32 %v754, %v897
  %v955 = vmul.f32 %v755, %v897
  %v956 = vmul.f32 %v756, %v897
  %v957 = vmul.f32 %v757, %v897
  %v958 = vmul.f32 %v758, %v897
  %v959 = vmul.f32 %v759, %v897
  %v960 = vmul.f32 %v760, %v897
  %v961 = vmul.f32 %v761, %v897
  %v962 = vld [vmem:[%s2] sm:$0x1]
  %v964 = vlaneseq
  %v965 = vshrl.u32 %v964, 7
  %v966 = vsub.s32 0, %v965
  %v967 = vrot.slane %v962, %v966
  %v969 = vmul.f32 %v898, %v967
  %v970 = vmul.f32 %v899, %v967
  %v971 = vmul.f32 %v900, %v967
  %v972 = vmul.f32 %v901, %v967
  %v973 = vmul.f32 %v902, %v967
  %v974 = vmul.f32 %v903, %v967
  %v975 = vmul.f32 %v904, %v967
  %v976 = vmul.f32 %v905, %v967
  %v977 = vmul.f32 %v906, %v967
  %v978 = vmul.f32 %v907, %v967
  %v979 = vmul.f32 %v908, %v967
  %v980 = vmul.f32 %v909, %v967
  %v981 = vmul.f32 %v910, %v967
  %v982 = vmul.f32 %v911, %v967
  %v983 = vmul.f32 %v912, %v967
  %v984 = vmul.f32 %v913, %v967
  %v985 = vmul.f32 %v914, %v967
  %v986 = vmul.f32 %v915, %v967
  %v987 = vmul.f32 %v916, %v967
  %v988 = vmul.f32 %v917, %v967
  %v989 = vmul.f32 %v918, %v967
  %v990 = vmul.f32 %v919, %v967
  %v991 = vmul.f32 %v920, %v967
  %v992 = vmul.f32 %v921, %v967
  %v993 = vmul.f32 %v922, %v967
  %v994 = vmul.f32 %v923, %v967
  %v995 = vmul.f32 %v924, %v967
  %v996 = vmul.f32 %v925, %v967
  %v997 = vmul.f32 %v926, %v967
  %v998 = vmul.f32 %v927, %v967
  %v999 = vmul.f32 %v928, %v967
  %v1000 = vmul.f32 %v929, %v967
  %v1001 = vmul.f32 %v930, %v967
  %v1002 = vmul.f32 %v931, %v967
  %v1003 = vmul.f32 %v932, %v967
  %v1004 = vmul.f32 %v933, %v967
  %v1005 = vmul.f32 %v934, %v967
  %v1006 = vmul.f32 %v935, %v967
  %v1007 = vmul.f32 %v936, %v967
  %v1008 = vmul.f32 %v937, %v967
  %v1009 = vmul.f32 %v938, %v967
  %v1010 = vmul.f32 %v939, %v967
  %v1011 = vmul.f32 %v940, %v967
  %v1012 = vmul.f32 %v941, %v967
  %v1013 = vmul.f32 %v942, %v967
  %v1014 = vmul.f32 %v943, %v967
  %v1015 = vmul.f32 %v944, %v967
  %v1016 = vmul.f32 %v945, %v967
  %v1017 = vmul.f32 %v946, %v967
  %v1018 = vmul.f32 %v947, %v967
  %v1019 = vmul.f32 %v948, %v967
  %v1020 = vmul.f32 %v949, %v967
  %v1021 = vmul.f32 %v950, %v967
  %v1022 = vmul.f32 %v951, %v967
  %v1023 = vmul.f32 %v952, %v967
  %v1024 = vmul.f32 %v953, %v967
  %v1025 = vmul.f32 %v954, %v967
  %v1026 = vmul.f32 %v955, %v967
  %v1027 = vmul.f32 %v956, %v967
  %v1028 = vmul.f32 %v957, %v967
  %v1029 = vmul.f32 %v958, %v967
  %v1030 = vmul.f32 %v959, %v967
  %v1031 = vmul.f32 %v960, %v967
  %v1032 = vmul.f32 %v961, %v967
  %v1033 = vld [vmem:[%s3] sm:$0x1]
  %v1035 = vlaneseq
  %v1036 = vshrl.u32 %v1035, 7
  %v1037 = vsub.s32 0, %v1036
  %v1038 = vrot.slane %v1033, %v1037
  %v1040 = vadd.f32 %v969, %v1038
  %v1041 = vadd.f32 %v970, %v1038
  %v1042 = vadd.f32 %v971, %v1038
  %v1043 = vadd.f32 %v972, %v1038
  %v1044 = vadd.f32 %v973, %v1038
  %v1045 = vadd.f32 %v974, %v1038
  %v1046 = vadd.f32 %v975, %v1038
  %v1047 = vadd.f32 %v976, %v1038
  %v1048 = vadd.f32 %v977, %v1038
  %v1049 = vadd.f32 %v978, %v1038
  %v1050 = vadd.f32 %v979, %v1038
  %v1051 = vadd.f32 %v980, %v1038
  %v1052 = vadd.f32 %v981, %v1038
  %v1053 = vadd.f32 %v982, %v1038
  %v1054 = vadd.f32 %v983, %v1038
  %v1055 = vadd.f32 %v984, %v1038
  %v1056 = vadd.f32 %v985, %v1038
  %v1057 = vadd.f32 %v986, %v1038
  %v1058 = vadd.f32 %v987, %v1038
  %v1059 = vadd.f32 %v988, %v1038
  %v1060 = vadd.f32 %v989, %v1038
  %v1061 = vadd.f32 %v990, %v1038
  %v1062 = vadd.f32 %v991, %v1038
  %v1063 = vadd.f32 %v992, %v1038
  %v1064 = vadd.f32 %v993, %v1038
  %v1065 = vadd.f32 %v994, %v1038
  %v1066 = vadd.f32 %v995, %v1038
  %v1067 = vadd.f32 %v996, %v1038
  %v1068 = vadd.f32 %v997, %v1038
  %v1069 = vadd.f32 %v998, %v1038
  %v1070 = vadd.f32 %v999, %v1038
  %v1071 = vadd.f32 %v1000, %v1038
  %v1072 = vadd.f32 %v1001, %v1038
  %v1073 = vadd.f32 %v1002, %v1038
  %v1074 = vadd.f32 %v1003, %v1038
  %v1075 = vadd.f32 %v1004, %v1038
  %v1076 = vadd.f32 %v1005, %v1038
  %v1077 = vadd.f32 %v1006, %v1038
  %v1078 = vadd.f32 %v1007, %v1038
  %v1079 = vadd.f32 %v1008, %v1038
  %v1080 = vadd.f32 %v1009, %v1038
  %v1081 = vadd.f32 %v1010, %v1038
  %v1082 = vadd.f32 %v1011, %v1038
  %v1083 = vadd.f32 %v1012, %v1038
  %v1084 = vadd.f32 %v1013, %v1038
  %v1085 = vadd.f32 %v1014, %v1038
  %v1086 = vadd.f32 %v1015, %v1038
  %v1087 = vadd.f32 %v1016, %v1038
  %v1088 = vadd.f32 %v1017, %v1038
  %v1089 = vadd.f32 %v1018, %v1038
  %v1090 = vadd.f32 %v1019, %v1038
  %v1091 = vadd.f32 %v1020, %v1038
  %v1092 = vadd.f32 %v1021, %v1038
  %v1093 = vadd.f32 %v1022, %v1038
  %v1094 = vadd.f32 %v1023, %v1038
  %v1095 = vadd.f32 %v1024, %v1038
  %v1096 = vadd.f32 %v1025, %v1038
  %v1097 = vadd.f32 %v1026, %v1038
  %v1098 = vadd.f32 %v1027, %v1038
  %v1099 = vadd.f32 %v1028, %v1038
  %v1100 = vadd.f32 %v1029, %v1038
  %v1101 = vadd.f32 %v1030, %v1038
  %v1102 = vadd.f32 %v1031, %v1038
  %v1103 = vadd.f32 %v1032, %v1038
  %v1104 = vmax.f32 %v1040, 0.0
  %v1105 = vmax.f32 %v1041, 0.0
  %v1106 = vmax.f32 %v1042, 0.0
  %v1107 = vmax.f32 %v1043, 0.0
  %v1108 = vmax.f32 %v1044, 0.0
  %v1109 = vmax.f32 %v1045, 0.0
  %v1110 = vmax.f32 %v1046, 0.0
  %v1111 = vmax.f32 %v1047, 0.0
  %v1112 = vmax.f32 %v1048, 0.0
  %v1113 = vmax.f32 %v1049, 0.0
  %v1114 = vmax.f32 %v1050, 0.0
  %v1115 = vmax.f32 %v1051, 0.0
  %v1116 = vmax.f32 %v1052, 0.0
  %v1117 = vmax.f32 %v1053, 0.0
  %v1118 = vmax.f32 %v1054, 0.0
  %v1119 = vmax.f32 %v1055, 0.0
  %v1120 = vmax.f32 %v1056, 0.0
  %v1121 = vmax.f32 %v1057, 0.0
  %v1122 = vmax.f32 %v1058, 0.0
  %v1123 = vmax.f32 %v1059, 0.0
  %v1124 = vmax.f32 %v1060, 0.0
  %v1125 = vmax.f32 %v1061, 0.0
  %v1126 = vmax.f32 %v1062, 0.0
  %v1127 = vmax.f32 %v1063, 0.0
  %v1128 = vmax.f32 %v1064, 0.0
  %v1129 = vmax.f32 %v1065, 0.0
  %v1130 = vmax.f32 %v1066, 0.0
  %v1131 = vmax.f32 %v1067, 0.0
  %v1132 = vmax.f32 %v1068, 0.0
  %v1133 = vmax.f32 %v1069, 0.0
  %v1134 = vmax.f32 %v1070, 0.0
  %v1135 = vmax.f32 %v1071, 0.0
  %v1136 = vmax.f32 %v1072, 0.0
  %v1137 = vmax.f32 %v1073, 0.0
  %v1138 = vmax.f32 %v1074, 0.0
  %v1139 = vmax.f32 %v1075, 0.0
  %v1140 = vmax.f32 %v1076, 0.0
  %v1141 = vmax.f32 %v1077, 0.0
  %v1142 = vmax.f32 %v1078, 0.0
  %v1143 = vmax.f32 %v1079, 0.0
  %v1144 = vmax.f32 %v1080, 0.0
  %v1145 = vmax.f32 %v1081, 0.0
  %v1146 = vmax.f32 %v1082, 0.0
  %v1147 = vmax.f32 %v1083, 0.0
  %v1148 = vmax.f32 %v1084, 0.0
  %v1149 = vmax.f32 %v1085, 0.0
  %v1150 = vmax.f32 %v1086, 0.0
  %v1151 = vmax.f32 %v1087, 0.0
  %v1152 = vmax.f32 %v1088, 0.0
  %v1153 = vmax.f32 %v1089, 0.0
  %v1154 = vmax.f32 %v1090, 0.0
  %v1155 = vmax.f32 %v1091, 0.0
  %v1156 = vmax.f32 %v1092, 0.0
  %v1157 = vmax.f32 %v1093, 0.0
  %v1158 = vmax.f32 %v1094, 0.0
  %v1159 = vmax.f32 %v1095, 0.0
  %v1160 = vmax.f32 %v1096, 0.0
  %v1161 = vmax.f32 %v1097, 0.0
  %v1162 = vmax.f32 %v1098, 0.0
  %v1163 = vmax.f32 %v1099, 0.0
  %v1164 = vmax.f32 %v1100, 0.0
  %v1165 = vmax.f32 %v1101, 0.0
  %v1166 = vmax.f32 %v1102, 0.0
  %v1167 = vmax.f32 %v1103, 0.0
  %v1168 = vpack.c.bf16 %v1105, %v1104
  %v1169 = vpack.c.bf16 %v1107, %v1106
  %v1170 = vpack.c.bf16 %v1109, %v1108
  %v1171 = vpack.c.bf16 %v1111, %v1110
  %v1172 = vpack.c.bf16 %v1113, %v1112
  %v1173 = vpack.c.bf16 %v1115, %v1114
  %v1174 = vpack.c.bf16 %v1117, %v1116
  %v1175 = vpack.c.bf16 %v1119, %v1118
  %v1176 = vpack.c.bf16 %v1121, %v1120
  %v1177 = vpack.c.bf16 %v1123, %v1122
  %v1178 = vpack.c.bf16 %v1125, %v1124
  %v1179 = vpack.c.bf16 %v1127, %v1126
  %v1180 = vpack.c.bf16 %v1129, %v1128
  %v1181 = vpack.c.bf16 %v1131, %v1130
  %v1182 = vpack.c.bf16 %v1133, %v1132
  %v1183 = vpack.c.bf16 %v1135, %v1134
  %v1184 = vpack.c.bf16 %v1137, %v1136
  %v1185 = vpack.c.bf16 %v1139, %v1138
  %v1186 = vpack.c.bf16 %v1141, %v1140
  %v1187 = vpack.c.bf16 %v1143, %v1142
  %v1188 = vpack.c.bf16 %v1145, %v1144
  %v1189 = vpack.c.bf16 %v1147, %v1146
  %v1190 = vpack.c.bf16 %v1149, %v1148
  %v1191 = vpack.c.bf16 %v1151, %v1150
  %v1192 = vpack.c.bf16 %v1153, %v1152
  %v1193 = vpack.c.bf16 %v1155, %v1154
  %v1194 = vpack.c.bf16 %v1157, %v1156
  %v1195 = vpack.c.bf16 %v1159, %v1158
  %v1196 = vpack.c.bf16 %v1161, %v1160
  %v1197 = vpack.c.bf16 %v1163, %v1162
  %v1198 = vpack.c.bf16 %v1165, %v1164
  %v1199 = vpack.c.bf16 %v1167, %v1166
  %v1232 = vunpack.c.l.b16 %v1168
  %v1233 = vunpack.c.h.b16 %v1168
  %v1234 = vunpack.c.l.b16 %v1169
  %v1235 = vunpack.c.h.b16 %v1169
  %v1236 = vunpack.c.l.b16 %v1170
  %v1237 = vunpack.c.h.b16 %v1170
  %v1238 = vunpack.c.l.b16 %v1171
  %v1239 = vunpack.c.h.b16 %v1171
  %v1240 = vunpack.c.l.b16 %v1172
  %v1241 = vunpack.c.h.b16 %v1172
  %v1242 = vunpack.c.l.b16 %v1173
  %v1243 = vunpack.c.h.b16 %v1173
  %v1244 = vunpack.c.l.b16 %v1174
  %v1245 = vunpack.c.h.b16 %v1174
  %v1246 = vunpack.c.l.b16 %v1175
  %v1247 = vunpack.c.h.b16 %v1175
  %v1248 = vunpack.c.l.b16 %v1176
  %v1249 = vunpack.c.h.b16 %v1176
  %v1250 = vunpack.c.l.b16 %v1177
  %v1251 = vunpack.c.h.b16 %v1177
  %v1252 = vunpack.c.l.b16 %v1178
  %v1253 = vunpack.c.h.b16 %v1178
  %v1254 = vunpack.c.l.b16 %v1179
  %v1255 = vunpack.c.h.b16 %v1179
  %v1256 = vunpack.c.l.b16 %v1180
  %v1257 = vunpack.c.h.b16 %v1180
  %v1258 = vunpack.c.l.b16 %v1181
  %v1259 = vunpack.c.h.b16 %v1181
  %v1260 = vunpack.c.l.b16 %v1182
  %v1261 = vunpack.c.h.b16 %v1182
  %v1262 = vunpack.c.l.b16 %v1183
  %v1263 = vunpack.c.h.b16 %v1183
  %v1264 = vunpack.c.l.b16 %v1184
  %v1265 = vunpack.c.h.b16 %v1184
  %v1266 = vunpack.c.l.b16 %v1185
  %v1267 = vunpack.c.h.b16 %v1185
  %v1268 = vunpack.c.l.b16 %v1186
  %v1269 = vunpack.c.h.b16 %v1186
  %v1270 = vunpack.c.l.b16 %v1187
  %v1271 = vunpack.c.h.b16 %v1187
  %v1272 = vunpack.c.l.b16 %v1188
  %v1273 = vunpack.c.h.b16 %v1188
  %v1274 = vunpack.c.l.b16 %v1189
  %v1275 = vunpack.c.h.b16 %v1189
  %v1276 = vunpack.c.l.b16 %v1190
  %v1277 = vunpack.c.h.b16 %v1190
  %v1278 = vunpack.c.l.b16 %v1191
  %v1279 = vunpack.c.h.b16 %v1191
  %v1280 = vunpack.c.l.b16 %v1192
  %v1281 = vunpack.c.h.b16 %v1192
  %v1282 = vunpack.c.l.b16 %v1193
  %v1283 = vunpack.c.h.b16 %v1193
  %v1284 = vunpack.c.l.b16 %v1194
  %v1285 = vunpack.c.h.b16 %v1194
  %v1286 = vunpack.c.l.b16 %v1195
  %v1287 = vunpack.c.h.b16 %v1195
  %v1288 = vunpack.c.l.b16 %v1196
  %v1289 = vunpack.c.h.b16 %v1196
  %v1290 = vunpack.c.l.b16 %v1197
  %v1291 = vunpack.c.h.b16 %v1197
  %v1292 = vunpack.c.l.b16 %v1198
  %v1293 = vunpack.c.h.b16 %v1198
  %v1294 = vunpack.c.l.b16 %v1199
  %v1295 = vunpack.c.h.b16 %v1199
  %v1296 = vpack.c.b16 %v1232, %v1232
  %v1297 = vpack.c.b16 %v1233, %v1233
  %v1298 = vpack.c.b16 %v1234, %v1234
  %v1299 = vpack.c.b16 %v1235, %v1235
  %v1300 = vpack.c.b16 %v1236, %v1236
  %v1301 = vpack.c.b16 %v1237, %v1237
  %v1302 = vpack.c.b16 %v1238, %v1238
  %v1303 = vpack.c.b16 %v1239, %v1239
  %v1304 = vpack.c.b16 %v1240, %v1240
  %v1305 = vpack.c.b16 %v1241, %v1241
  %v1306 = vpack.c.b16 %v1242, %v1242
  %v1307 = vpack.c.b16 %v1243, %v1243
  %v1308 = vpack.c.b16 %v1244, %v1244
  %v1309 = vpack.c.b16 %v1245, %v1245
  %v1310 = vpack.c.b16 %v1246, %v1246
  %v1311 = vpack.c.b16 %v1247, %v1247
  %v1312 = vpack.c.b16 %v1248, %v1248
  %v1313 = vpack.c.b16 %v1249, %v1249
  %v1314 = vpack.c.b16 %v1250, %v1250
  %v1315 = vpack.c.b16 %v1251, %v1251
  %v1316 = vpack.c.b16 %v1252, %v1252
  %v1317 = vpack.c.b16 %v1253, %v1253
  %v1318 = vpack.c.b16 %v1254, %v1254
  %v1319 = vpack.c.b16 %v1255, %v1255
  %v1320 = vpack.c.b16 %v1256, %v1256
  %v1321 = vpack.c.b16 %v1257, %v1257
  %v1322 = vpack.c.b16 %v1258, %v1258
  %v1323 = vpack.c.b16 %v1259, %v1259
  %v1324 = vpack.c.b16 %v1260, %v1260
  %v1325 = vpack.c.b16 %v1261, %v1261
  %v1326 = vpack.c.b16 %v1262, %v1262
  %v1327 = vpack.c.b16 %v1263, %v1263
  %v1328 = vpack.c.b16 %v1264, %v1264
  %v1329 = vpack.c.b16 %v1265, %v1265
  %v1330 = vpack.c.b16 %v1266, %v1266
  %v1331 = vpack.c.b16 %v1267, %v1267
  %v1332 = vpack.c.b16 %v1268, %v1268
  %v1333 = vpack.c.b16 %v1269, %v1269
  %v1334 = vpack.c.b16 %v1270, %v1270
  %v1335 = vpack.c.b16 %v1271, %v1271
  %v1336 = vpack.c.b16 %v1272, %v1272
  %v1337 = vpack.c.b16 %v1273, %v1273
  %v1338 = vpack.c.b16 %v1274, %v1274
  %v1339 = vpack.c.b16 %v1275, %v1275
  %v1340 = vpack.c.b16 %v1276, %v1276
  %v1341 = vpack.c.b16 %v1277, %v1277
  %v1342 = vpack.c.b16 %v1278, %v1278
  %v1343 = vpack.c.b16 %v1279, %v1279
  %v1344 = vpack.c.b16 %v1280, %v1280
  %v1345 = vpack.c.b16 %v1281, %v1281
  %v1346 = vpack.c.b16 %v1282, %v1282
  %v1347 = vpack.c.b16 %v1283, %v1283
  %v1348 = vpack.c.b16 %v1284, %v1284
  %v1349 = vpack.c.b16 %v1285, %v1285
  %v1350 = vpack.c.b16 %v1286, %v1286
  %v1351 = vpack.c.b16 %v1287, %v1287
  %v1352 = vpack.c.b16 %v1288, %v1288
  %v1353 = vpack.c.b16 %v1289, %v1289
  %v1354 = vpack.c.b16 %v1290, %v1290
  %v1355 = vpack.c.b16 %v1291, %v1291
  %v1356 = vpack.c.b16 %v1292, %v1292
  %v1357 = vpack.c.b16 %v1293, %v1293
  %v1358 = vpack.c.b16 %v1294, %v1294
  %v1359 = vpack.c.b16 %v1295, %v1295
  %1424 = vst [vmem:[%s4] sm:$0xf] %v1296
  %1425 = vst [vmem:[%s4 + $0x4] sm:$0xf] %v1297
  %1426 = vst [vmem:[%s4 + $0x8] sm:$0xf] %v1298
  %1427 = vst [vmem:[%s4 + $0xc] sm:$0xf] %v1299
  %1428 = vst [vmem:[%s4 + $0x10] sm:$0xf] %v1300
  %1429 = vst [vmem:[%s4 + $0x14] sm:$0xf] %v1301
  %1430 = vst [vmem:[%s4 + $0x18] sm:$0xf] %v1302
  %1431 = vst [vmem:[%s4 + $0x1c] sm:$0xf] %v1303
  %1432 = vst [vmem:[%s4 + $0x20] sm:$0xf] %v1304
  %1433 = vst [vmem:[%s4 + $0x24] sm:$0xf] %v1305
  %1434 = vst [vmem:[%s4 + $0x28] sm:$0xf] %v1306
  %1435 = vst [vmem:[%s4 + $0x2c] sm:$0xf] %v1307
  %1436 = vst [vmem:[%s4 + $0x30] sm:$0xf] %v1308
  %1437 = vst [vmem:[%s4 + $0x34] sm:$0xf] %v1309
  %1438 = vst [vmem:[%s4 + $0x38] sm:$0xf] %v1310
  %1439 = vst [vmem:[%s4 + $0x3c] sm:$0xf] %v1311
  %1440 = vst [vmem:[%s4 + $0x40] sm:$0xf] %v1312
  %1441 = vst [vmem:[%s4 + $0x44] sm:$0xf] %v1313
  %1442 = vst [vmem:[%s4 + $0x48] sm:$0xf] %v1314
  %1443 = vst [vmem:[%s4 + $0x4c] sm:$0xf] %v1315
  %1444 = vst [vmem:[%s4 + $0x50] sm:$0xf] %v1316
  %1445 = vst [vmem:[%s4 + $0x54] sm:$0xf] %v1317
  %1446 = vst [vmem:[%s4 + $0x58] sm:$0xf] %v1318
  %1447 = vst [vmem:[%s4 + $0x5c] sm:$0xf] %v1319
  %1448 = vst [vmem:[%s4 + $0x60] sm:$0xf] %v1320
  %1449 = vst [vmem:[%s4 + $0x64] sm:$0xf] %v1321
  %1450 = vst [vmem:[%s4 + $0x68] sm:$0xf] %v1322
  %1451 = vst [vmem:[%s4 + $0x6c] sm:$0xf] %v1323
  %1452 = vst [vmem:[%s4 + $0x70] sm:$0xf] %v1324
  %1453 = vst [vmem:[%s4 + $0x74] sm:$0xf] %v1325
  %1454 = vst [vmem:[%s4 + $0x78] sm:$0xf] %v1326
  %1455 = vst [vmem:[%s4 + $0x7c] sm:$0xf] %v1327
  %1456 = vst [vmem:[%s4 + $0x80] sm:$0xf] %v1328
  %1457 = vst [vmem:[%s4 + $0x84] sm:$0xf] %v1329
  %1458 = vst [vmem:[%s4 + $0x88] sm:$0xf] %v1330
  %1459 = vst [vmem:[%s4 + $0x8c] sm:$0xf] %v1331
  %1460 = vst [vmem:[%s4 + $0x90] sm:$0xf] %v1332
  %1461 = vst [vmem:[%s4 + $0x94] sm:$0xf] %v1333
  %1462 = vst [vmem:[%s4 + $0x98] sm:$0xf] %v1334
  %1463 = vst [vmem:[%s4 + $0x9c] sm:$0xf] %v1335
  %1464 = vst [vmem:[%s4 + $0xa0] sm:$0xf] %v1336
  %1465 = vst [vmem:[%s4 + $0xa4] sm:$0xf] %v1337
  %1466 = vst [vmem:[%s4 + $0xa8] sm:$0xf] %v1338
  %1467 = vst [vmem:[%s4 + $0xac] sm:$0xf] %v1339
  %1468 = vst [vmem:[%s4 + $0xb0] sm:$0xf] %v1340
  %1469 = vst [vmem:[%s4 + $0xb4] sm:$0xf] %v1341
  %1470 = vst [vmem:[%s4 + $0xb8] sm:$0xf] %v1342
  %1471 = vst [vmem:[%s4 + $0xbc] sm:$0xf] %v1343
  %1472 = vst [vmem:[%s4 + $0xc0] sm:$0xf] %v1344
  %1473 = vst [vmem:[%s4 + $0xc4] sm:$0xf] %v1345
  %1474 = vst [vmem:[%s4 + $0xc8] sm:$0xf] %v1346
  %1475 = vst [vmem:[%s4 + $0xcc] sm:$0xf] %v1347
  %1476 = vst [vmem:[%s4 + $0xd0] sm:$0xf] %v1348
  %1477 = vst [vmem:[%s4 + $0xd4] sm:$0xf] %v1349
  %1478 = vst [vmem:[%s4 + $0xd8] sm:$0xf] %v1350
  %1479 = vst [vmem:[%s4 + $0xdc] sm:$0xf] %v1351
  %1480 = vst [vmem:[%s4 + $0xe0] sm:$0xf] %v1352
  %1481 = vst [vmem:[%s4 + $0xe4] sm:$0xf] %v1353
  %1482 = vst [vmem:[%s4 + $0xe8] sm:$0xf] %v1354
  %1483 = vst [vmem:[%s4 + $0xec] sm:$0xf] %v1355
  %1484 = vst [vmem:[%s4 + $0xf0] sm:$0xf] %v1356
  %1485 = vst [vmem:[%s4 + $0xf4] sm:$0xf] %v1357
  %1486 = vst [vmem:[%s4 + $0xf8] sm:$0xf] %v1358
  %1487 = vst [vmem:[%s4 + $0xfc] sm:$0xf] %v1359
  // Predicated region
  $region18: #{encoder_forward.4} parent=0 // pred_check
    _
  $region19: #{encoder_forward.4} parent=0 // pred_check_branch
    %1489 = sbr.rel (0) target = $region21
  $region20: #{encoder_forward.4} parent=0 // pred_region
    _
  $region21: #{encoder_forward.4} parent=0 // pred_fallthru
    _
  // Predicated region
  $region22: #{encoder_forward.4} parent=0 // pred_check
    _
  $region23: #{encoder_forward.4} parent=0 // pred_check_branch
    %1491 = sbr.rel (0) target = $region25
  $region24: #{encoder_forward.4} parent=0 // pred_region
    _
  $region25: #{encoder_forward.4} parent=0 // pred_fallthru
    _

// kernel: encoder_forward.5
$region0: #{encoder_forward.5}
  #allocation0 [shape = 'u32[]', space=smem, size = 0x4, offset = 0x4, fixed_abs, tag = 'smem constant byte address 0x4 - core index']
  #allocation1 [shape = 'u32[144,128]{1,0:T(1,128)}', space=vmem, size = 0x12000, scoped, tag = 'internal scratch']
  %s0 = inlined_call_operand.vmem [shape: bf16[128,3200], index: 0, kind: input, shape index: {}]
  %s1 = inlined_call_operand.vmem [shape: bf16[3200,128], index: 1, kind: input, shape index: {}]
  %s2 = inlined_call_operand.vmem [shape: f32[1,128], index: 2, kind: input, shape index: {}]
  %s3 = inlined_call_operand.vmem [shape: f32[1,128], index: 3, kind: input, shape index: {}]
  %s4 = inlined_call_operand.vmem [shape: bf16[128,128], index: 4, kind: output, shape index: {}]
  %s5 = sld [smem:[#allocation0]]
  $region26: #{encoder_forward.5} parent=0
    _
  %s7 = ssub.s32 1, %s5
  %s8 = scalar_select 0, %s7, %s5
  // Predicated region
  $region2: #{encoder_forward.5} parent=0 // pred_check
    _
  $region3: #{encoder_forward.5} parent=0 // pred_check_branch
    %10 = sbr.rel (0) target = $region5
  $region4: #{encoder_forward.5} parent=0 // pred_region
    _
  $region5: #{encoder_forward.5} parent=0 // pred_fallthru
    _
  // Predicated region
  $region6: #{encoder_forward.5} parent=0 // pred_check
    _
  $region7: #{encoder_forward.5} parent=0 // pred_check_branch
    %12 = sbr.rel (0) target = $region9
  $region8: #{encoder_forward.5} parent=0 // pred_region
    _
  $region9: #{encoder_forward.5} parent=0 // pred_fallthru
    _
  // Predicated region
  $region10: #{encoder_forward.5} parent=0 // pred_check
    _
  $region11: #{encoder_forward.5} parent=0 // pred_check_branch
    %14 = sbr.rel (0) target = $region13
  $region12: #{encoder_forward.5} parent=0 // pred_region
    _
  $region13: #{encoder_forward.5} parent=0 // pred_fallthru
    _
  // Predicated region
  $region14: #{encoder_forward.5} parent=0 // pred_check
    _
  $region15: #{encoder_forward.5} parent=0 // pred_check_branch
    %16 = sbr.rel (0) target = $region17
  $region16: #{encoder_forward.5} parent=0 // pred_region
    _
  $region17: #{encoder_forward.5} parent=0 // pred_fallthru
    _
  %v18 = vld [vmem:[%s0] sm:$0xff]
  %v19 = vld [vmem:[%s0 + $0x8] sm:$0xff]
  %v20 = vld [vmem:[%s0 + $0x10] sm:$0xff]
  %v21 = vld [vmem:[%s0 + $0x18] sm:$0xff]
  %v22 = vld [vmem:[%s0 + $0x20] sm:$0xff]
  %v23 = vld [vmem:[%s0 + $0x28] sm:$0xff]
  %v24 = vld [vmem:[%s0 + $0x30] sm:$0xff]
  %v25 = vld [vmem:[%s0 + $0x38] sm:$0xff]
  %v26 = vld [vmem:[%s0 + $0x40] sm:$0xff]
  %v27 = vld [vmem:[%s0 + $0x48] sm:$0xff]
  %v28 = vld [vmem:[%s0 + $0x50] sm:$0xff]
  %v29 = vld [vmem:[%s0 + $0x58] sm:$0xff]
  %v30 = vld [vmem:[%s0 + $0x60] sm:$0xf]
  %v31 = vld [vmem:[%s0 + $0x64] sm:$0xff]
  %v32 = vld [vmem:[%s0 + $0x6c] sm:$0xff]
  %v33 = vld [vmem:[%s0 + $0x74] sm:$0xff]
  %v34 = vld [vmem:[%s0 + $0x7c] sm:$0xff]
  %v35 = vld [vmem:[%s0 + $0x84] sm:$0xff]
  %v36 = vld [vmem:[%s0 + $0x8c] sm:$0xff]
  %v37 = vld [vmem:[%s0 + $0x94] sm:$0xff]
  %v38 = vld [vmem:[%s0 + $0x9c] sm:$0xff]
  %v39 = vld [vmem:[%s0 + $0xa4] sm:$0xff]
  %v40 = vld [vmem:[%s0 + $0xac] sm:$0xff]
  %v41 = vld [vmem:[%s0 + $0xb4] sm:$0xff]
  %v42 = vld [vmem:[%s0 + $0xbc] sm:$0xff]
  %v43 = vld [vmem:[%s0 + $0xc4] sm:$0xf]
  %v44 = vld [vmem:[%s0 + $0xc8] sm:$0xff]
  %v45 = vld [vmem:[%s0 + $0xd0] sm:$0xff]
  %v46 = vld [vmem:[%s0 + $0xd8] sm:$0xff]
  %v47 = vld [vmem:[%s0 + $0xe0] sm:$0xff]
  %v48 = vld [vmem:[%s0 + $0xe8] sm:$0xff]
  %v49 = vld [vmem:[%s0 + $0xf0] sm:$0xff]
  %v50 = vld [vmem:[%s0 + $0xf8] sm:$0xff]
  %v51 = vld [vmem:[%s0 + $0x100] sm:$0xff]
  %v52 = vld [vmem:[%s0 + $0x108] sm:$0xff]
  %v53 = vld [vmem:[%s0 + $0x110] sm:$0xff]
  %v54 = vld [vmem:[%s0 + $0x118] sm:$0xff]
  %v55 = vld [vmem:[%s0 + $0x120] sm:$0xff]
  %v56 = vld [vmem:[%s0 + $0x128] sm:$0xf]
  %v57 = vld [vmem:[%s0 + $0x12c] sm:$0xff]
  %v58 = vld [vmem:[%s0 + $0x134] sm:$0xff]
  %v59 = vld [vmem:[%s0 + $0x13c] sm:$0xff]
  %v60 = vld [vmem:[%s0 + $0x144] sm:$0xff]
  %v61 = vld [vmem:[%s0 + $0x14c] sm:$0xff]
  %v62 = vld [vmem:[%s0 + $0x154] sm:$0xff]
  %v63 = vld [vmem:[%s0 + $0x15c] sm:$0xff]
  %v64 = vld [vmem:[%s0 + $0x164] sm:$0xff]
  %v65 = vld [vmem:[%s0 + $0x16c] sm:$0xff]
  %v66 = vld [vmem:[%s0 + $0x174] sm:$0xff]
  %v67 = vld [vmem:[%s0 + $0x17c] sm:$0xff]
  %v68 = vld [vmem:[%s0 + $0x184] sm:$0xff]
  %v69 = vld [vmem:[%s0 + $0x18c] sm:$0xf]
  %v70 = vld [vmem:[%s0 + $0x190] sm:$0xff]
  %v71 = vld [vmem:[%s0 + $0x198] sm:$0xff]
  %v72 = vld [vmem:[%s0 + $0x1a0] sm:$0xff]
  %v73 = vld [vmem:[%s0 + $0x1a8] sm:$0xff]
  %v74 = vld [vmem:[%s0 + $0x1b0] sm:$0xff]
  %v75 = vld [vmem:[%s0 + $0x1b8] sm:$0xff]
  %v76 = vld [vmem:[%s0 + $0x1c0] sm:$0xff]
  %v77 = vld [vmem:[%s0 + $0x1c8] sm:$0xff]
  %v78 = vld [vmem:[%s0 + $0x1d0] sm:$0xff]
  %v79 = vld [vmem:[%s0 + $0x1d8] sm:$0xff]
  %v80 = vld [vmem:[%s0 + $0x1e0] sm:$0xff]
  %v81 = vld [vmem:[%s0 + $0x1e8] sm:$0xff]
  %v82 = vld [vmem:[%s0 + $0x1f0] sm:$0xf]
  %v83 = vld [vmem:[%s0 + $0x1f4] sm:$0xff]
  %v84 = vld [vmem:[%s0 + $0x1fc] sm:$0xff]
  %v85 = vld [vmem:[%s0 + $0x204] sm:$0xff]
  %v86 = vld [vmem:[%s0 + $0x20c] sm:$0xff]
  %v87 = vld [vmem:[%s0 + $0x214] sm:$0xff]
  %v88 = vld [vmem:[%s0 + $0x21c] sm:$0xff]
  %v89 = vld [vmem:[%s0 + $0x224] sm:$0xff]
  %v90 = vld [vmem:[%s0 + $0x22c] sm:$0xff]
  %v91 = vld [vmem:[%s0 + $0x234] sm:$0xff]
  %v92 = vld [vmem:[%s0 + $0x23c] sm:$0xff]
  %v93 = vld [vmem:[%s0 + $0x244] sm:$0xff]
  %v94 = vld [vmem:[%s0 + $0x24c] sm:$0xff]
  %v95 = vld [vmem:[%s0 + $0x254] sm:$0xf]
  %v96 = vld [vmem:[%s0 + $0x258] sm:$0xff]
  %v97 = vld [vmem:[%s0 + $0x260] sm:$0xff]
  %v98 = vld [vmem:[%s0 + $0x268] sm:$0xff]
  %v99 = vld [vmem:[%s0 + $0x270] sm:$0xff]
  %v100 = vld [vmem:[%s0 + $0x278] sm:$0xff]
  %v101 = vld [vmem:[%s0 + $0x280] sm:$0xff]
  %v102 = vld [vmem:[%s0 + $0x288] sm:$0xff]
  %v103 = vld [vmem:[%s0 + $0x290] sm:$0xff]
  %v104 = vld [vmem:[%s0 + $0x298] sm:$0xff]
  %v105 = vld [vmem:[%s0 + $0x2a0] sm:$0xff]
  %v106 = vld [vmem:[%s0 + $0x2a8] sm:$0xff]
  %v107 = vld [vmem:[%s0 + $0x2b0] sm:$0xff]
  %v108 = vld [vmem:[%s0 + $0x2b8] sm:$0xf]
  %v109 = vld [vmem:[%s0 + $0x2bc] sm:$0xff]
  %v110 = vld [vmem:[%s0 + $0x2c4] sm:$0xff]
  %v111 = vld [vmem:[%s0 + $0x2cc] sm:$0xff]
  %v112 = vld [vmem:[%s0 + $0x2d4] sm:$0xff]
  %v113 = vld [vmem:[%s0 + $0x2dc] sm:$0xff]
  %v114 = vld [vmem:[%s0 + $0x2e4] sm:$0xff]
  %v115 = vld [vmem:[%s0 + $0x2ec] sm:$0xff]
  %v116 = vld [vmem:[%s0 + $0x2f4] sm:$0xff]
  %v117 = vld [vmem:[%s0 + $0x2fc] sm:$0xff]
  %v118 = vld [vmem:[%s0 + $0x304] sm:$0xff]
  %v119 = vld [vmem:[%s0 + $0x30c] sm:$0xff]
  %v120 = vld [vmem:[%s0 + $0x314] sm:$0xff]
  %v121 = vld [vmem:[%s0 + $0x31c] sm:$0xf]
  %v122 = vld [vmem:[%s0 + $0x320] sm:$0xff]
  %v123 = vld [vmem:[%s0 + $0x328] sm:$0xff]
  %v124 = vld [vmem:[%s0 + $0x330] sm:$0xff]
  %v125 = vld [vmem:[%s0 + $0x338] sm:$0xff]
  %v126 = vld [vmem:[%s0 + $0x340] sm:$0xff]
  %v127 = vld [vmem:[%s0 + $0x348] sm:$0xff]
  %v128 = vld [vmem:[%s0 + $0x350] sm:$0xff]
  %v129 = vld [vmem:[%s0 + $0x358] sm:$0xff]
  %v130 = vld [vmem:[%s0 + $0x360] sm:$0xff]
  %v131 = vld [vmem:[%s0 + $0x368] sm:$0xff]
  %v132 = vld [vmem:[%s0 + $0x370] sm:$0xff]
  %v133 = vld [vmem:[%s0 + $0x378] sm:$0xff]
  %v134 = vld [vmem:[%s0 + $0x380] sm:$0xf]
  %v135 = vld [vmem:[%s0 + $0x384] sm:$0xff]
  %v136 = vld [vmem:[%s0 + $0x38c] sm:$0xff]
  %v137 = vld [vmem:[%s0 + $0x394] sm:$0xff]
  %v138 = vld [vmem:[%s0 + $0x39c] sm:$0xff]
  %v139 = vld [vmem:[%s0 + $0x3a4] sm:$0xff]
  %v140 = vld [vmem:[%s0 + $0x3ac] sm:$0xff]
  %v141 = vld [vmem:[%s0 + $0x3b4] sm:$0xff]
  %v142 = vld [vmem:[%s0 + $0x3bc] sm:$0xff]
  %v143 = vld [vmem:[%s0 + $0x3c4] sm:$0xff]
  %v144 = vld [vmem:[%s0 + $0x3cc] sm:$0xff]
  %v145 = vld [vmem:[%s0 + $0x3d4] sm:$0xff]
  %v146 = vld [vmem:[%s0 + $0x3dc] sm:$0xff]
  %v147 = vld [vmem:[%s0 + $0x3e4] sm:$0xf]
  %v148 = vld [vmem:[%s0 + $0x3e8] sm:$0xff]
  %v149 = vld [vmem:[%s0 + $0x3f0] sm:$0xff]
  %v150 = vld [vmem:[%s0 + $0x3f8] sm:$0xff]
  %v151 = vld [vmem:[%s0 + $0x400] sm:$0xff]
  %v152 = vld [vmem:[%s0 + $0x408] sm:$0xff]
  %v153 = vld [vmem:[%s0 + $0x410] sm:$0xff]
  %v154 = vld [vmem:[%s0 + $0x418] sm:$0xff]
  %v155 = vld [vmem:[%s0 + $0x420] sm:$0xff]
  %v156 = vld [vmem:[%s0 + $0x428] sm:$0xff]
  %v157 = vld [vmem:[%s0 + $0x430] sm:$0xff]
  %v158 = vld [vmem:[%s0 + $0x438] sm:$0xff]
  %v159 = vld [vmem:[%s0 + $0x440] sm:$0xff]
  %v160 = vld [vmem:[%s0 + $0x448] sm:$0xf]
  %v161 = vld [vmem:[%s0 + $0x44c] sm:$0xff]
  %v162 = vld [vmem:[%s0 + $0x454] sm:$0xff]
  %v163 = vld [vmem:[%s0 + $0x45c] sm:$0xff]
  %v164 = vld [vmem:[%s0 + $0x464] sm:$0xff]
  %v165 = vld [vmem:[%s0 + $0x46c] sm:$0xff]
  %v166 = vld [vmem:[%s0 + $0x474] sm:$0xff]
  %v167 = vld [vmem:[%s0 + $0x47c] sm:$0xff]
  %v168 = vld [vmem:[%s0 + $0x484] sm:$0xff]
  %v169 = vld [vmem:[%s0 + $0x48c] sm:$0xff]
  %v170 = vld [vmem:[%s0 + $0x494] sm:$0xff]
  %v171 = vld [vmem:[%s0 + $0x49c] sm:$0xff]
  %v172 = vld [vmem:[%s0 + $0x4a4] sm:$0xff]
  %v173 = vld [vmem:[%s0 + $0x4ac] sm:$0xf]
  %v174 = vld [vmem:[%s0 + $0x4b0] sm:$0xff]
  %v175 = vld [vmem:[%s0 + $0x4b8] sm:$0xff]
  %v176 = vld [vmem:[%s0 + $0x4c0] sm:$0xff]
  %v177 = vld [vmem:[%s0 + $0x4c8] sm:$0xff]
  %v178 = vld [vmem:[%s0 + $0x4d0] sm:$0xff]
  %v179 = vld [vmem:[%s0 + $0x4d8] sm:$0xff]
  %v180 = vld [vmem:[%s0 + $0x4e0] sm:$0xff]
  %v181 = vld [vmem:[%s0 + $0x4e8] sm:$0xff]
  %v182 = vld [vmem:[%s0 + $0x4f0] sm:$0xff]
  %v183 = vld [vmem:[%s0 + $0x4f8] sm:$0xff]
  %v184 = vld [vmem:[%s0 + $0x500] sm:$0xff]
  %v185 = vld [vmem:[%s0 + $0x508] sm:$0xff]
  %v186 = vld [vmem:[%s0 + $0x510] sm:$0xf]
  %v187 = vld [vmem:[%s0 + $0x514] sm:$0xff]
  %v188 = vld [vmem:[%s0 + $0x51c] sm:$0xff]
  %v189 = vld [vmem:[%s0 + $0x524] sm:$0xff]
  %v190 = vld [vmem:[%s0 + $0x52c] sm:$0xff]
  %v191 = vld [vmem:[%s0 + $0x534] sm:$0xff]
  %v192 = vld [vmem:[%s0 + $0x53c] sm:$0xff]
  %v193 = vld [vmem:[%s0 + $0x544] sm:$0xff]
  %v194 = vld [vmem:[%s0 + $0x54c] sm:$0xff]
  %v195 = vld [vmem:[%s0 + $0x554] sm:$0xff]
  %v196 = vld [vmem:[%s0 + $0x55c] sm:$0xff]
  %v197 = vld [vmem:[%s0 + $0x564] sm:$0xff]
  %v198 = vld [vmem:[%s0 + $0x56c] sm:$0xff]
  %v199 = vld [vmem:[%s0 + $0x574] sm:$0xf]
  %v200 = vld [vmem:[%s0 + $0x578] sm:$0xff]
  %v201 = vld [vmem:[%s0 + $0x580] sm:$0xff]
  %v202 = vld [vmem:[%s0 + $0x588] sm:$0xff]
  %v203 = vld [vmem:[%s0 + $0x590] sm:$0xff]
  %v204 = vld [vmem:[%s0 + $0x598] sm:$0xff]
  %v205 = vld [vmem:[%s0 + $0x5a0] sm:$0xff]
  %v206 = vld [vmem:[%s0 + $0x5a8] sm:$0xff]
  %v207 = vld [vmem:[%s0 + $0x5b0] sm:$0xff]
  %v208 = vld [vmem:[%s0 + $0x5b8] sm:$0xff]
  %v209 = vld [vmem:[%s0 + $0x5c0] sm:$0xff]
  %v210 = vld [vmem:[%s0 + $0x5c8] sm:$0xff]
  %v211 = vld [vmem:[%s0 + $0x5d0] sm:$0xff]
  %v212 = vld [vmem:[%s0 + $0x5d8] sm:$0xf]
  %v213 = vld [vmem:[%s0 + $0x5dc] sm:$0xff]
  %v214 = vld [vmem:[%s0 + $0x5e4] sm:$0xff]
  %v215 = vld [vmem:[%s0 + $0x5ec] sm:$0xff]
  %v216 = vld [vmem:[%s0 + $0x5f4] sm:$0xff]
  %v217 = vld [vmem:[%s0 + $0x5fc] sm:$0xff]
  %v218 = vld [vmem:[%s0 + $0x604] sm:$0xff]
  %v219 = vld [vmem:[%s0 + $0x60c] sm:$0xff]
  %v220 = vld [vmem:[%s0 + $0x614] sm:$0xff]
  %v221 = vld [vmem:[%s0 + $0x61c] sm:$0xff]
  %v222 = vld [vmem:[%s0 + $0x624] sm:$0xff]
  %v223 = vld [vmem:[%s0 + $0x62c] sm:$0xff]
  %v224 = vld [vmem:[%s0 + $0x634] sm:$0xff]
  %v225 = vld [vmem:[%s0 + $0x63c] sm:$0xf]
  %v226 = vld [vmem:[%s1] sm:$0xf]
  %v227 = vld [vmem:[%s1 + $0x4] sm:$0xf]
  %v228 = vld [vmem:[%s1 + $0x8] sm:$0xf]
  %v229 = vld [vmem:[%s1 + $0xc] sm:$0xf]
  %v230 = vld [vmem:[%s1 + $0x10] sm:$0xf]
  %v231 = vld [vmem:[%s1 + $0x14] sm:$0xf]
  %v232 = vld [vmem:[%s1 + $0x18] sm:$0xf]
  %v233 = vld [vmem:[%s1 + $0x1c] sm:$0xf]
  %v234 = vld [vmem:[%s1 + $0x20] sm:$0xf]
  %v235 = vld [vmem:[%s1 + $0x24] sm:$0xf]
  %v236 = vld [vmem:[%s1 + $0x28] sm:$0xf]
  %v237 = vld [vmem:[%s1 + $0x2c] sm:$0xf]
  %v238 = vld [vmem:[%s1 + $0x30] sm:$0xf]
  %v239 = vld [vmem:[%s1 + $0x34] sm:$0xf]
  %v240 = vld [vmem:[%s1 + $0x38] sm:$0xf]
  %v241 = vld [vmem:[%s1 + $0x3c] sm:$0xf]
  %v242 = vld [vmem:[%s1 + $0x40] sm:$0xf]
  %v243 = vld [vmem:[%s1 + $0x44] sm:$0xf]
  %v244 = vld [vmem:[%s1 + $0x48] sm:$0xf]
  %v245 = vld [vmem:[%s1 + $0x4c] sm:$0xf]
  %v246 = vld [vmem:[%s1 + $0x50] sm:$0xf]
  %v247 = vld [vmem:[%s1 + $0x54] sm:$0xf]
  %v248 = vld [vmem:[%s1 + $0x58] sm:$0xf]
  %v249 = vld [vmem:[%s1 + $0x5c] sm:$0xf]
  %v250 = vld [vmem:[%s1 + $0x60] sm:$0xf]
  %v251 = vld [vmem:[%s1 + $0x64] sm:$0xf]
  %v252 = vld [vmem:[%s1 + $0x68] sm:$0xf]
  %v253 = vld [vmem:[%s1 + $0x6c] sm:$0xf]
  %v254 = vld [vmem:[%s1 + $0x70] sm:$0xf]
  %v255 = vld [vmem:[%s1 + $0x74] sm:$0xf]
  %v256 = vld [vmem:[%s1 + $0x78] sm:$0xf]
  %v257 = vld [vmem:[%s1 + $0x7c] sm:$0xf]
  %v258 = vld [vmem:[%s1 + $0x80] sm:$0xf]
  %v259 = vld [vmem:[%s1 + $0x84] sm:$0xf]
  %v260 = vld [vmem:[%s1 + $0x88] sm:$0xf]
  %v261 = vld [vmem:[%s1 + $0x8c] sm:$0xf]
  %v262 = vld [vmem:[%s1 + $0x90] sm:$0xf]
  %v263 = vld [vmem:[%s1 + $0x94] sm:$0xf]
  %v264 = vld [vmem:[%s1 + $0x98] sm:$0xf]
  %v265 = vld [vmem:[%s1 + $0x9c] sm:$0xf]
  %v266 = vld [vmem:[%s1 + $0xa0] sm:$0xf]
  %v267 = vld [vmem:[%s1 + $0xa4] sm:$0xf]
  %v268 = vld [vmem:[%s1 + $0xa8] sm:$0xf]
  %v269 = vld [vmem:[%s1 + $0xac] sm:$0xf]
  %v270 = vld [vmem:[%s1 + $0xb0] sm:$0xf]
  %v271 = vld [vmem:[%s1 + $0xb4] sm:$0xf]
  %v272 = vld [vmem:[%s1 + $0xb8] sm:$0xf]
  %v273 = vld [vmem:[%s1 + $0xbc] sm:$0xf]
  %v274 = vld [vmem:[%s1 + $0xc0] sm:$0xf]
  %v275 = vld [vmem:[%s1 + $0xc4] sm:$0xf]
  %v276 = vld [vmem:[%s1 + $0xc8] sm:$0xf]
  %v277 = vld [vmem:[%s1 + $0xcc] sm:$0xf]
  %v278 = vld [vmem:[%s1 + $0xd0] sm:$0xf]
  %v279 = vld [vmem:[%s1 + $0xd4] sm:$0xf]
  %v280 = vld [vmem:[%s1 + $0xd8] sm:$0xf]
  %v281 = vld [vmem:[%s1 + $0xdc] sm:$0xf]
  %v282 = vld [vmem:[%s1 + $0xe0] sm:$0xf]
  %v283 = vld [vmem:[%s1 + $0xe4] sm:$0xf]
  %v284 = vld [vmem:[%s1 + $0xe8] sm:$0xf]
  %v285 = vld [vmem:[%s1 + $0xec] sm:$0xf]
  %v286 = vld [vmem:[%s1 + $0xf0] sm:$0xf]
  %v287 = vld [vmem:[%s1 + $0xf4] sm:$0xf]
  %v288 = vld [vmem:[%s1 + $0xf8] sm:$0xf]
  %v289 = vld [vmem:[%s1 + $0xfc] sm:$0xf]
  %v290 = vld [vmem:[%s1 + $0x100] sm:$0xf]
  %v291 = vld [vmem:[%s1 + $0x104] sm:$0xf]
  %v292 = vld [vmem:[%s1 + $0x108] sm:$0xf]
  %v293 = vld [vmem:[%s1 + $0x10c] sm:$0xf]
  %v294 = vld [vmem:[%s1 + $0x110] sm:$0xf]
  %v295 = vld [vmem:[%s1 + $0x114] sm:$0xf]
  %v296 = vld [vmem:[%s1 + $0x118] sm:$0xf]
  %v297 = vld [vmem:[%s1 + $0x11c] sm:$0xf]
  %v298 = vld [vmem:[%s1 + $0x120] sm:$0xf]
  %v299 = vld [vmem:[%s1 + $0x124] sm:$0xf]
  %v300 = vld [vmem:[%s1 + $0x128] sm:$0xf]
  %v301 = vld [vmem:[%s1 + $0x12c] sm:$0xf]
  %v302 = vld [vmem:[%s1 + $0x130] sm:$0xf]
  %v303 = vld [vmem:[%s1 + $0x134] sm:$0xf]
  %v304 = vld [vmem:[%s1 + $0x138] sm:$0xf]
  %v305 = vld [vmem:[%s1 + $0x13c] sm:$0xf]
  %v306 = vld [vmem:[%s1 + $0x140] sm:$0xf]
  %v307 = vld [vmem:[%s1 + $0x144] sm:$0xf]
  %v308 = vld [vmem:[%s1 + $0x148] sm:$0xf]
  %v309 = vld [vmem:[%s1 + $0x14c] sm:$0xf]
  %v310 = vld [vmem:[%s1 + $0x150] sm:$0xf]
  %v311 = vld [vmem:[%s1 + $0x154] sm:$0xf]
  %v312 = vld [vmem:[%s1 + $0x158] sm:$0xf]
  %v313 = vld [vmem:[%s1 + $0x15c] sm:$0xf]
  %v314 = vld [vmem:[%s1 + $0x160] sm:$0xf]
  %v315 = vld [vmem:[%s1 + $0x164] sm:$0xf]
  %v316 = vld [vmem:[%s1 + $0x168] sm:$0xf]
  %v317 = vld [vmem:[%s1 + $0x16c] sm:$0xf]
  %v318 = vld [vmem:[%s1 + $0x170] sm:$0xf]
  %v319 = vld [vmem:[%s1 + $0x174] sm:$0xf]
  %v320 = vld [vmem:[%s1 + $0x178] sm:$0xf]
  %v321 = vld [vmem:[%s1 + $0x17c] sm:$0xf]
  %v322 = vld [vmem:[%s1 + $0x180] sm:$0xf]
  %v323 = vld [vmem:[%s1 + $0x184] sm:$0xf]
  %v324 = vld [vmem:[%s1 + $0x188] sm:$0xf]
  %v325 = vld [vmem:[%s1 + $0x18c] sm:$0xf]
  %v326 = vld [vmem:[%s1 + $0x190] sm:$0xf]
  %v327 = vld [vmem:[%s1 + $0x194] sm:$0xf]
  %v328 = vld [vmem:[%s1 + $0x198] sm:$0xf]
  %v329 = vld [vmem:[%s1 + $0x19c] sm:$0xf]
  %v330 = vld [vmem:[%s1 + $0x1a0] sm:$0xf]
  %v331 = vld [vmem:[%s1 + $0x1a4] sm:$0xf]
  %v332 = vld [vmem:[%s1 + $0x1a8] sm:$0xf]
  %v333 = vld [vmem:[%s1 + $0x1ac] sm:$0xf]
  %v334 = vld [vmem:[%s1 + $0x1b0] sm:$0xf]
  %v335 = vld [vmem:[%s1 + $0x1b4] sm:$0xf]
  %v336 = vld [vmem:[%s1 + $0x1b8] sm:$0xf]
  %v337 = vld [vmem:[%s1 + $0x1bc] sm:$0xf]
  %v338 = vld [vmem:[%s1 + $0x1c0] sm:$0xf]
  %v339 = vld [vmem:[%s1 + $0x1c4] sm:$0xf]
  %v340 = vld [vmem:[%s1 + $0x1c8] sm:$0xf]
  %v341 = vld [vmem:[%s1 + $0x1cc] sm:$0xf]
  %v342 = vld [vmem:[%s1 + $0x1d0] sm:$0xf]
  %v343 = vld [vmem:[%s1 + $0x1d4] sm:$0xf]
  %v344 = vld [vmem:[%s1 + $0x1d8] sm:$0xf]
  %v345 = vld [vmem:[%s1 + $0x1dc] sm:$0xf]
  %v346 = vld [vmem:[%s1 + $0x1e0] sm:$0xf]
  %v347 = vld [vmem:[%s1 + $0x1e4] sm:$0xf]
  %v348 = vld [vmem:[%s1 + $0x1e8] sm:$0xf]
  %v349 = vld [vmem:[%s1 + $0x1ec] sm:$0xf]
  %v350 = vld [vmem:[%s1 + $0x1f0] sm:$0xf]
  %v351 = vld [vmem:[%s1 + $0x1f4] sm:$0xf]
  %v352 = vld [vmem:[%s1 + $0x1f8] sm:$0xf]
  %v353 = vld [vmem:[%s1 + $0x1fc] sm:$0xf]
  %v354 = vld [vmem:[%s1 + $0x200] sm:$0xf]
  %v355 = vld [vmem:[%s1 + $0x204] sm:$0xf]
  %v356 = vld [vmem:[%s1 + $0x208] sm:$0xf]
  %v357 = vld [vmem:[%s1 + $0x20c] sm:$0xf]
  %v358 = vld [vmem:[%s1 + $0x210] sm:$0xf]
  %v359 = vld [vmem:[%s1 + $0x214] sm:$0xf]
  %v360 = vld [vmem:[%s1 + $0x218] sm:$0xf]
  %v361 = vld [vmem:[%s1 + $0x21c] sm:$0xf]
  %v362 = vld [vmem:[%s1 + $0x220] sm:$0xf]
  %v363 = vld [vmem:[%s1 + $0x224] sm:$0xf]
  %v364 = vld [vmem:[%s1 + $0x228] sm:$0xf]
  %v365 = vld [vmem:[%s1 + $0x22c] sm:$0xf]
  %v366 = vld [vmem:[%s1 + $0x230] sm:$0xf]
  %v367 = vld [vmem:[%s1 + $0x234] sm:$0xf]
  %v368 = vld [vmem:[%s1 + $0x238] sm:$0xf]
  %v369 = vld [vmem:[%s1 + $0x23c] sm:$0xf]
  %v370 = vld [vmem:[%s1 + $0x240] sm:$0xf]
  %v371 = vld [vmem:[%s1 + $0x244] sm:$0xf]
  %v372 = vld [vmem:[%s1 + $0x248] sm:$0xf]
  %v373 = vld [vmem:[%s1 + $0x24c] sm:$0xf]
  %v374 = vld [vmem:[%s1 + $0x250] sm:$0xf]
  %v375 = vld [vmem:[%s1 + $0x254] sm:$0xf]
  %v376 = vld [vmem:[%s1 + $0x258] sm:$0xf]
  %v377 = vld [vmem:[%s1 + $0x25c] sm:$0xf]
  %v378 = vld [vmem:[%s1 + $0x260] sm:$0xf]
  %v379 = vld [vmem:[%s1 + $0x264] sm:$0xf]
  %v380 = vld [vmem:[%s1 + $0x268] sm:$0xf]
  %v381 = vld [vmem:[%s1 + $0x26c] sm:$0xf]
  %v382 = vld [vmem:[%s1 + $0x270] sm:$0xf]
  %v383 = vld [vmem:[%s1 + $0x274] sm:$0xf]
  %v384 = vld [vmem:[%s1 + $0x278] sm:$0xf]
  %v385 = vld [vmem:[%s1 + $0x27c] sm:$0xf]
  %v386 = vld [vmem:[%s1 + $0x280] sm:$0xf]
  %v387 = vld [vmem:[%s1 + $0x284] sm:$0xf]
  %v388 = vld [vmem:[%s1 + $0x288] sm:$0xf]
  %v389 = vld [vmem:[%s1 + $0x28c] sm:$0xf]
  %v390 = vld [vmem:[%s1 + $0x290] sm:$0xf]
  %v391 = vld [vmem:[%s1 + $0x294] sm:$0xf]
  %v392 = vld [vmem:[%s1 + $0x298] sm:$0xf]
  %v393 = vld [vmem:[%s1 + $0x29c] sm:$0xf]
  %v394 = vld [vmem:[%s1 + $0x2a0] sm:$0xf]
  %v395 = vld [vmem:[%s1 + $0x2a4] sm:$0xf]
  %v396 = vld [vmem:[%s1 + $0x2a8] sm:$0xf]
  %v397 = vld [vmem:[%s1 + $0x2ac] sm:$0xf]
  %v398 = vld [vmem:[%s1 + $0x2b0] sm:$0xf]
  %v399 = vld [vmem:[%s1 + $0x2b4] sm:$0xf]
  %v400 = vld [vmem:[%s1 + $0x2b8] sm:$0xf]
  %v401 = vld [vmem:[%s1 + $0x2bc] sm:$0xf]
  %v402 = vld [vmem:[%s1 + $0x2c0] sm:$0xf]
  %v403 = vld [vmem:[%s1 + $0x2c4] sm:$0xf]
  %v404 = vld [vmem:[%s1 + $0x2c8] sm:$0xf]
  %v405 = vld [vmem:[%s1 + $0x2cc] sm:$0xf]
  %v406 = vld [vmem:[%s1 + $0x2d0] sm:$0xf]
  %v407 = vld [vmem:[%s1 + $0x2d4] sm:$0xf]
  %v408 = vld [vmem:[%s1 + $0x2d8] sm:$0xf]
  %v409 = vld [vmem:[%s1 + $0x2dc] sm:$0xf]
  %v410 = vld [vmem:[%s1 + $0x2e0] sm:$0xf]
  %v411 = vld [vmem:[%s1 + $0x2e4] sm:$0xf]
  %v412 = vld [vmem:[%s1 + $0x2e8] sm:$0xf]
  %v413 = vld [vmem:[%s1 + $0x2ec] sm:$0xf]
  %v414 = vld [vmem:[%s1 + $0x2f0] sm:$0xf]
  %v415 = vld [vmem:[%s1 + $0x2f4] sm:$0xf]
  %v416 = vld [vmem:[%s1 + $0x2f8] sm:$0xf]
  %v417 = vld [vmem:[%s1 + $0x2fc] sm:$0xf]
  %v418 = vld [vmem:[%s1 + $0x300] sm:$0xf]
  %v419 = vld [vmem:[%s1 + $0x304] sm:$0xf]
  %v420 = vld [vmem:[%s1 + $0x308] sm:$0xf]
  %v421 = vld [vmem:[%s1 + $0x30c] sm:$0xf]
  %v422 = vld [vmem:[%s1 + $0x310] sm:$0xf]
  %v423 = vld [vmem:[%s1 + $0x314] sm:$0xf]
  %v424 = vld [vmem:[%s1 + $0x318] sm:$0xf]
  %v425 = vld [vmem:[%s1 + $0x31c] sm:$0xf]
  %v426 = vld [vmem:[%s1 + $0x320] sm:$0xf]
  %v427 = vld [vmem:[%s1 + $0x324] sm:$0xf]
  %v428 = vld [vmem:[%s1 + $0x328] sm:$0xf]
  %v429 = vld [vmem:[%s1 + $0x32c] sm:$0xf]
  %v430 = vld [vmem:[%s1 + $0x330] sm:$0xf]
  %v431 = vld [vmem:[%s1 + $0x334] sm:$0xf]
  %v432 = vld [vmem:[%s1 + $0x338] sm:$0xf]
  %v433 = vld [vmem:[%s1 + $0x33c] sm:$0xf]
  %v434 = vld [vmem:[%s1 + $0x340] sm:$0xf]
  %v435 = vld [vmem:[%s1 + $0x344] sm:$0xf]
  %v436 = vld [vmem:[%s1 + $0x348] sm:$0xf]
  %v437 = vld [vmem:[%s1 + $0x34c] sm:$0xf]
  %v438 = vld [vmem:[%s1 + $0x350] sm:$0xf]
  %v439 = vld [vmem:[%s1 + $0x354] sm:$0xf]
  %v440 = vld [vmem:[%s1 + $0x358] sm:$0xf]
  %v441 = vld [vmem:[%s1 + $0x35c] sm:$0xf]
  %v442 = vld [vmem:[%s1 + $0x360] sm:$0xf]
  %v443 = vld [vmem:[%s1 + $0x364] sm:$0xf]
  %v444 = vld [vmem:[%s1 + $0x368] sm:$0xf]
  %v445 = vld [vmem:[%s1 + $0x36c] sm:$0xf]
  %v446 = vld [vmem:[%s1 + $0x370] sm:$0xf]
  %v447 = vld [vmem:[%s1 + $0x374] sm:$0xf]
  %v448 = vld [vmem:[%s1 + $0x378] sm:$0xf]
  %v449 = vld [vmem:[%s1 + $0x37c] sm:$0xf]
  %v450 = vld [vmem:[%s1 + $0x380] sm:$0xf]
  %v451 = vld [vmem:[%s1 + $0x384] sm:$0xf]
  %v452 = vld [vmem:[%s1 + $0x388] sm:$0xf]
  %v453 = vld [vmem:[%s1 + $0x38c] sm:$0xf]
  %v454 = vld [vmem:[%s1 + $0x390] sm:$0xf]
  %v455 = vld [vmem:[%s1 + $0x394] sm:$0xf]
  %v456 = vld [vmem:[%s1 + $0x398] sm:$0xf]
  %v457 = vld [vmem:[%s1 + $0x39c] sm:$0xf]
  %v458 = vld [vmem:[%s1 + $0x3a0] sm:$0xf]
  %v459 = vld [vmem:[%s1 + $0x3a4] sm:$0xf]
  %v460 = vld [vmem:[%s1 + $0x3a8] sm:$0xf]
  %v461 = vld [vmem:[%s1 + $0x3ac] sm:$0xf]
  %v462 = vld [vmem:[%s1 + $0x3b0] sm:$0xf]
  %v463 = vld [vmem:[%s1 + $0x3b4] sm:$0xf]
  %v464 = vld [vmem:[%s1 + $0x3b8] sm:$0xf]
  %v465 = vld [vmem:[%s1 + $0x3bc] sm:$0xf]
  %v466 = vld [vmem:[%s1 + $0x3c0] sm:$0xf]
  %v467 = vld [vmem:[%s1 + $0x3c4] sm:$0xf]
  %v468 = vld [vmem:[%s1 + $0x3c8] sm:$0xf]
  %v469 = vld [vmem:[%s1 + $0x3cc] sm:$0xf]
  %v470 = vld [vmem:[%s1 + $0x3d0] sm:$0xf]
  %v471 = vld [vmem:[%s1 + $0x3d4] sm:$0xf]
  %v472 = vld [vmem:[%s1 + $0x3d8] sm:$0xf]
  %v473 = vld [vmem:[%s1 + $0x3dc] sm:$0xf]
  %v474 = vld [vmem:[%s1 + $0x3e0] sm:$0xf]
  %v475 = vld [vmem:[%s1 + $0x3e4] sm:$0xf]
  %v476 = vld [vmem:[%s1 + $0x3e8] sm:$0xf]
  %v477 = vld [vmem:[%s1 + $0x3ec] sm:$0xf]
  %v478 = vld [vmem:[%s1 + $0x3f0] sm:$0xf]
  %v479 = vld [vmem:[%s1 + $0x3f4] sm:$0xf]
  %v480 = vld [vmem:[%s1 + $0x3f8] sm:$0xf]
  %v481 = vld [vmem:[%s1 + $0x3fc] sm:$0xf]
  %v482 = vld [vmem:[%s1 + $0x400] sm:$0xf]
  %v483 = vld [vmem:[%s1 + $0x404] sm:$0xf]
  %v484 = vld [vmem:[%s1 + $0x408] sm:$0xf]
  %v485 = vld [vmem:[%s1 + $0x40c] sm:$0xf]
  %v486 = vld [vmem:[%s1 + $0x410] sm:$0xf]
  %v487 = vld [vmem:[%s1 + $0x414] sm:$0xf]
  %v488 = vld [vmem:[%s1 + $0x418] sm:$0xf]
  %v489 = vld [vmem:[%s1 + $0x41c] sm:$0xf]
  %v490 = vld [vmem:[%s1 + $0x420] sm:$0xf]
  %v491 = vld [vmem:[%s1 + $0x424] sm:$0xf]
  %v492 = vld [vmem:[%s1 + $0x428] sm:$0xf]
  %v493 = vld [vmem:[%s1 + $0x42c] sm:$0xf]
  %v494 = vld [vmem:[%s1 + $0x430] sm:$0xf]
  %v495 = vld [vmem:[%s1 + $0x434] sm:$0xf]
  %v496 = vld [vmem:[%s1 + $0x438] sm:$0xf]
  %v497 = vld [vmem:[%s1 + $0x43c] sm:$0xf]
  %v498 = vld [vmem:[%s1 + $0x440] sm:$0xf]
  %v499 = vld [vmem:[%s1 + $0x444] sm:$0xf]
  %v500 = vld [vmem:[%s1 + $0x448] sm:$0xf]
  %v501 = vld [vmem:[%s1 + $0x44c] sm:$0xf]
  %v502 = vld [vmem:[%s1 + $0x450] sm:$0xf]
  %v503 = vld [vmem:[%s1 + $0x454] sm:$0xf]
  %v504 = vld [vmem:[%s1 + $0x458] sm:$0xf]
  %v505 = vld [vmem:[%s1 + $0x45c] sm:$0xf]
  %v506 = vld [vmem:[%s1 + $0x460] sm:$0xf]
  %v507 = vld [vmem:[%s1 + $0x464] sm:$0xf]
  %v508 = vld [vmem:[%s1 + $0x468] sm:$0xf]
  %v509 = vld [vmem:[%s1 + $0x46c] sm:$0xf]
  %v510 = vld [vmem:[%s1 + $0x470] sm:$0xf]
  %v511 = vld [vmem:[%s1 + $0x474] sm:$0xf]
  %v512 = vld [vmem:[%s1 + $0x478] sm:$0xf]
  %v513 = vld [vmem:[%s1 + $0x47c] sm:$0xf]
  %v514 = vld [vmem:[%s1 + $0x480] sm:$0xf]
  %v515 = vld [vmem:[%s1 + $0x484] sm:$0xf]
  %v516 = vld [vmem:[%s1 + $0x488] sm:$0xf]
  %v517 = vld [vmem:[%s1 + $0x48c] sm:$0xf]
  %v518 = vld [vmem:[%s1 + $0x490] sm:$0xf]
  %v519 = vld [vmem:[%s1 + $0x494] sm:$0xf]
  %v520 = vld [vmem:[%s1 + $0x498] sm:$0xf]
  %v521 = vld [vmem:[%s1 + $0x49c] sm:$0xf]
  %v522 = vld [vmem:[%s1 + $0x4a0] sm:$0xf]
  %v523 = vld [vmem:[%s1 + $0x4a4] sm:$0xf]
  %v524 = vld [vmem:[%s1 + $0x4a8] sm:$0xf]
  %v525 = vld [vmem:[%s1 + $0x4ac] sm:$0xf]
  %v526 = vld [vmem:[%s1 + $0x4b0] sm:$0xf]
  %v527 = vld [vmem:[%s1 + $0x4b4] sm:$0xf]
  %v528 = vld [vmem:[%s1 + $0x4b8] sm:$0xf]
  %v529 = vld [vmem:[%s1 + $0x4bc] sm:$0xf]
  %v530 = vld [vmem:[%s1 + $0x4c0] sm:$0xf]
  %v531 = vld [vmem:[%s1 + $0x4c4] sm:$0xf]
  %v532 = vld [vmem:[%s1 + $0x4c8] sm:$0xf]
  %v533 = vld [vmem:[%s1 + $0x4cc] sm:$0xf]
  %v534 = vld [vmem:[%s1 + $0x4d0] sm:$0xf]
  %v535 = vld [vmem:[%s1 + $0x4d4] sm:$0xf]
  %v536 = vld [vmem:[%s1 + $0x4d8] sm:$0xf]
  %v537 = vld [vmem:[%s1 + $0x4dc] sm:$0xf]
  %v538 = vld [vmem:[%s1 + $0x4e0] sm:$0xf]
  %v539 = vld [vmem:[%s1 + $0x4e4] sm:$0xf]
  %v540 = vld [vmem:[%s1 + $0x4e8] sm:$0xf]
  %v541 = vld [vmem:[%s1 + $0x4ec] sm:$0xf]
  %v542 = vld [vmem:[%s1 + $0x4f0] sm:$0xf]
  %v543 = vld [vmem:[%s1 + $0x4f4] sm:$0xf]
  %v544 = vld [vmem:[%s1 + $0x4f8] sm:$0xf]
  %v545 = vld [vmem:[%s1 + $0x4fc] sm:$0xf]
  %v546 = vld [vmem:[%s1 + $0x500] sm:$0xf]
  %v547 = vld [vmem:[%s1 + $0x504] sm:$0xf]
  %v548 = vld [vmem:[%s1 + $0x508] sm:$0xf]
  %v549 = vld [vmem:[%s1 + $0x50c] sm:$0xf]
  %v550 = vld [vmem:[%s1 + $0x510] sm:$0xf]
  %v551 = vld [vmem:[%s1 + $0x514] sm:$0xf]
  %v552 = vld [vmem:[%s1 + $0x518] sm:$0xf]
  %v553 = vld [vmem:[%s1 + $0x51c] sm:$0xf]
  %v554 = vld [vmem:[%s1 + $0x520] sm:$0xf]
  %v555 = vld [vmem:[%s1 + $0x524] sm:$0xf]
  %v556 = vld [vmem:[%s1 + $0x528] sm:$0xf]
  %v557 = vld [vmem:[%s1 + $0x52c] sm:$0xf]
  %v558 = vld [vmem:[%s1 + $0x530] sm:$0xf]
  %v559 = vld [vmem:[%s1 + $0x534] sm:$0xf]
  %v560 = vld [vmem:[%s1 + $0x538] sm:$0xf]
  %v561 = vld [vmem:[%s1 + $0x53c] sm:$0xf]
  %v562 = vld [vmem:[%s1 + $0x540] sm:$0xf]
  %v563 = vld [vmem:[%s1 + $0x544] sm:$0xf]
  %v564 = vld [vmem:[%s1 + $0x548] sm:$0xf]
  %v565 = vld [vmem:[%s1 + $0x54c] sm:$0xf]
  %v566 = vld [vmem:[%s1 + $0x550] sm:$0xf]
  %v567 = vld [vmem:[%s1 + $0x554] sm:$0xf]
  %v568 = vld [vmem:[%s1 + $0x558] sm:$0xf]
  %v569 = vld [vmem:[%s1 + $0x55c] sm:$0xf]
  %v570 = vld [vmem:[%s1 + $0x560] sm:$0xf]
  %v571 = vld [vmem:[%s1 + $0x564] sm:$0xf]
  %v572 = vld [vmem:[%s1 + $0x568] sm:$0xf]
  %v573 = vld [vmem:[%s1 + $0x56c] sm:$0xf]
  %v574 = vld [vmem:[%s1 + $0x570] sm:$0xf]
  %v575 = vld [vmem:[%s1 + $0x574] sm:$0xf]
  %v576 = vld [vmem:[%s1 + $0x578] sm:$0xf]
  %v577 = vld [vmem:[%s1 + $0x57c] sm:$0xf]
  %v578 = vld [vmem:[%s1 + $0x580] sm:$0xf]
  %v579 = vld [vmem:[%s1 + $0x584] sm:$0xf]
  %v580 = vld [vmem:[%s1 + $0x588] sm:$0xf]
  %v581 = vld [vmem:[%s1 + $0x58c] sm:$0xf]
  %v582 = vld [vmem:[%s1 + $0x590] sm:$0xf]
  %v583 = vld [vmem:[%s1 + $0x594] sm:$0xf]
  %v584 = vld [vmem:[%s1 + $0x598] sm:$0xf]
  %v585 = vld [vmem:[%s1 + $0x59c] sm:$0xf]
  %v586 = vld [vmem:[%s1 + $0x5a0] sm:$0xf]
  %v587 = vld [vmem:[%s1 + $0x5a4] sm:$0xf]
  %v588 = vld [vmem:[%s1 + $0x5a8] sm:$0xf]
  %v589 = vld [vmem:[%s1 + $0x5ac] sm:$0xf]
  %v590 = vld [vmem:[%s1 + $0x5b0] sm:$0xf]
  %v591 = vld [vmem:[%s1 + $0x5b4] sm:$0xf]
  %v592 = vld [vmem:[%s1 + $0x5b8] sm:$0xf]
  %v593 = vld [vmem:[%s1 + $0x5bc] sm:$0xf]
  %v594 = vld [vmem:[%s1 + $0x5c0] sm:$0xf]
  %v595 = vld [vmem:[%s1 + $0x5c4] sm:$0xf]
  %v596 = vld [vmem:[%s1 + $0x5c8] sm:$0xf]
  %v597 = vld [vmem:[%s1 + $0x5cc] sm:$0xf]
  %v598 = vld [vmem:[%s1 + $0x5d0] sm:$0xf]
  %v599 = vld [vmem:[%s1 + $0x5d4] sm:$0xf]
  %v600 = vld [vmem:[%s1 + $0x5d8] sm:$0xf]
  %v601 = vld [vmem:[%s1 + $0x5dc] sm:$0xf]
  %v602 = vld [vmem:[%s1 + $0x5e0] sm:$0xf]
  %v603 = vld [vmem:[%s1 + $0x5e4] sm:$0xf]
  %v604 = vld [vmem:[%s1 + $0x5e8] sm:$0xf]
  %v605 = vld [vmem:[%s1 + $0x5ec] sm:$0xf]
  %v606 = vld [vmem:[%s1 + $0x5f0] sm:$0xf]
  %v607 = vld [vmem:[%s1 + $0x5f4] sm:$0xf]
  %v608 = vld [vmem:[%s1 + $0x5f8] sm:$0xf]
  %v609 = vld [vmem:[%s1 + $0x5fc] sm:$0xf]
  %v610 = vld [vmem:[%s1 + $0x600] sm:$0xf]
  %v611 = vld [vmem:[%s1 + $0x604] sm:$0xf]
  %v612 = vld [vmem:[%s1 + $0x608] sm:$0xf]
  %v613 = vld [vmem:[%s1 + $0x60c] sm:$0xf]
  %v614 = vld [vmem:[%s1 + $0x610] sm:$0xf]
  %v615 = vld [vmem:[%s1 + $0x614] sm:$0xf]
  %v616 = vld [vmem:[%s1 + $0x618] sm:$0xf]
  %v617 = vld [vmem:[%s1 + $0x61c] sm:$0xf]
  %v618 = vld [vmem:[%s1 + $0x620] sm:$0xf]
  %v619 = vld [vmem:[%s1 + $0x624] sm:$0xf]
  %v620 = vld [vmem:[%s1 + $0x628] sm:$0xf]
  %v621 = vld [vmem:[%s1 + $0x62c] sm:$0xf]
  %v622 = vld [vmem:[%s1 + $0x630] sm:$0xf]
  %v623 = vld [vmem:[%s1 + $0x634] sm:$0xf]
  %v624 = vld [vmem:[%s1 + $0x638] sm:$0xf]
  %v625 = vld [vmem:[%s1 + $0x63c] sm:$0xf]
  %v834 = vunpack.c.l.b16 %v18
  %v835 = vunpack.c.h.b16 %v18
  %v836 = vunpack.c.l.b16 %v19
  %v837 = vunpack.c.h.b16 %v19
  %v838 = vunpack.c.l.b16 %v20
  %v839 = vunpack.c.h.b16 %v20
  %v840 = vunpack.c.l.b16 %v21
  %v841 = vunpack.c.h.b16 %v21
  %v842 = vunpack.c.l.b16 %v22
  %v843 = vunpack.c.h.b16 %v22
  %v844 = vunpack.c.l.b16 %v23
  %v845 = vunpack.c.h.b16 %v23
  %v846 = vunpack.c.l.b16 %v24
  %v847 = vunpack.c.h.b16 %v24
  %v848 = vunpack.c.l.b16 %v25
  %v849 = vunpack.c.h.b16 %v25
  %v850 = vunpack.c.l.b16 %v26
  %v851 = vunpack.c.h.b16 %v26
  %v852 = vunpack.c.l.b16 %v27
  %v853 = vunpack.c.h.b16 %v27
  %v854 = vunpack.c.l.b16 %v28
  %v855 = vunpack.c.h.b16 %v28
  %v856 = vunpack.c.l.b16 %v29
  %v857 = vunpack.c.h.b16 %v29
  %v858 = vunpack.c.l.b16 %v30
  %v859 = vunpack.c.l.b16 %v31
  %v860 = vunpack.c.h.b16 %v31
  %v861 = vunpack.c.l.b16 %v32
  %v862 = vunpack.c.h.b16 %v32
  %v863 = vunpack.c.l.b16 %v33
  %v864 = vunpack.c.h.b16 %v33
  %v865 = vunpack.c.l.b16 %v34
  %v866 = vunpack.c.h.b16 %v34
  %v867 = vunpack.c.l.b16 %v35
  %v868 = vunpack.c.h.b16 %v35
  %v869 = vunpack.c.l.b16 %v36
  %v870 = vunpack.c.h.b16 %v36
  %v871 = vunpack.c.l.b16 %v37
  %v872 = vunpack.c.h.b16 %v37
  %v873 = vunpack.c.l.b16 %v38
  %v874 = vunpack.c.h.b16 %v38
  %v875 = vunpack.c.l.b16 %v39
  %v876 = vunpack.c.h.b16 %v39
  %v877 = vunpack.c.l.b16 %v40
  %v878 = vunpack.c.h.b16 %v40
  %v879 = vunpack.c.l.b16 %v41
  %v880 = vunpack.c.h.b16 %v41
  %v881 = vunpack.c.l.b16 %v42
  %v882 = vunpack.c.h.b16 %v42
  %v883 = vunpack.c.l.b16 %v43
  %v884 = vunpack.c.l.b16 %v44
  %v885 = vunpack.c.h.b16 %v44
  %v886 = vunpack.c.l.b16 %v45
  %v887 = vunpack.c.h.b16 %v45
  %v888 = vunpack.c.l.b16 %v46
  %v889 = vunpack.c.h.b16 %v46
  %v890 = vunpack.c.l.b16 %v47
  %v891 = vunpack.c.h.b16 %v47
  %v892 = vunpack.c.l.b16 %v48
  %v893 = vunpack.c.h.b16 %v48
  %v894 = vunpack.c.l.b16 %v49
  %v895 = vunpack.c.h.b16 %v49
  %v896 = vunpack.c.l.b16 %v50
  %v897 = vunpack.c.h.b16 %v50
  %v898 = vunpack.c.l.b16 %v51
  %v899 = vunpack.c.h.b16 %v51
  %v900 = vunpack.c.l.b16 %v52
  %v901 = vunpack.c.h.b16 %v52
  %v902 = vunpack.c.l.b16 %v53
  %v903 = vunpack.c.h.b16 %v53
  %v904 = vunpack.c.l.b16 %v54
  %v905 = vunpack.c.h.b16 %v54
  %v906 = vunpack.c.l.b16 %v55
  %v907 = vunpack.c.h.b16 %v55
  %v908 = vunpack.c.l.b16 %v56
  %v909 = vunpack.c.l.b16 %v57
  %v910 = vunpack.c.h.b16 %v57
  %v911 = vunpack.c.l.b16 %v58
  %v912 = vunpack.c.h.b16 %v58
  %v913 = vunpack.c.l.b16 %v59
  %v914 = vunpack.c.h.b16 %v59
  %v915 = vunpack.c.l.b16 %v60
  %v916 = vunpack.c.h.b16 %v60
  %v917 = vunpack.c.l.b16 %v61
  %v918 = vunpack.c.h.b16 %v61
  %v919 = vunpack.c.l.b16 %v62
  %v920 = vunpack.c.h.b16 %v62
  %v921 = vunpack.c.l.b16 %v63
  %v922 = vunpack.c.h.b16 %v63
  %v923 = vunpack.c.l.b16 %v64
  %v924 = vunpack.c.h.b16 %v64
  %v925 = vunpack.c.l.b16 %v65
  %v926 = vunpack.c.h.b16 %v65
  %v927 = vunpack.c.l.b16 %v66
  %v928 = vunpack.c.h.b16 %v66
  %v929 = vunpack.c.l.b16 %v67
  %v930 = vunpack.c.h.b16 %v67
  %v931 = vunpack.c.l.b16 %v68
  %v932 = vunpack.c.h.b16 %v68
  %v933 = vunpack.c.l.b16 %v69
  %v934 = vunpack.c.l.b16 %v70
  %v935 = vunpack.c.h.b16 %v70
  %v936 = vunpack.c.l.b16 %v71
  %v937 = vunpack.c.h.b16 %v71
  %v938 = vunpack.c.l.b16 %v72
  %v939 = vunpack.c.h.b16 %v72
  %v940 = vunpack.c.l.b16 %v73
  %v941 = vunpack.c.h.b16 %v73
  %v942 = vunpack.c.l.b16 %v74
  %v943 = vunpack.c.h.b16 %v74
  %v944 = vunpack.c.l.b16 %v75
  %v945 = vunpack.c.h.b16 %v75
  %v946 = vunpack.c.l.b16 %v76
  %v947 = vunpack.c.h.b16 %v76
  %v948 = vunpack.c.l.b16 %v77
  %v949 = vunpack.c.h.b16 %v77
  %v950 = vunpack.c.l.b16 %v78
  %v951 = vunpack.c.h.b16 %v78
  %v952 = vunpack.c.l.b16 %v79
  %v953 = vunpack.c.h.b16 %v79
  %v954 = vunpack.c.l.b16 %v80
  %v955 = vunpack.c.h.b16 %v80
  %v956 = vunpack.c.l.b16 %v81
  %v957 = vunpack.c.h.b16 %v81
  %v958 = vunpack.c.l.b16 %v82
  %v959 = vunpack.c.l.b16 %v83
  %v960 = vunpack.c.h.b16 %v83
  %v961 = vunpack.c.l.b16 %v84
  %v962 = vunpack.c.h.b16 %v84
  %v963 = vunpack.c.l.b16 %v85
  %v964 = vunpack.c.h.b16 %v85
  %v965 = vunpack.c.l.b16 %v86
  %v966 = vunpack.c.h.b16 %v86
  %v967 = vunpack.c.l.b16 %v87
  %v968 = vunpack.c.h.b16 %v87
  %v969 = vunpack.c.l.b16 %v88
  %v970 = vunpack.c.h.b16 %v88
  %v971 = vunpack.c.l.b16 %v89
  %v972 = vunpack.c.h.b16 %v89
  %v973 = vunpack.c.l.b16 %v90
  %v974 = vunpack.c.h.b16 %v90
  %v975 = vunpack.c.l.b16 %v91
  %v976 = vunpack.c.h.b16 %v91
  %v977 = vunpack.c.l.b16 %v92
  %v978 = vunpack.c.h.b16 %v92
  %v979 = vunpack.c.l.b16 %v93
  %v980 = vunpack.c.h.b16 %v93
  %v981 = vunpack.c.l.b16 %v94
  %v982 = vunpack.c.h.b16 %v94
  %v983 = vunpack.c.l.b16 %v95
  %v984 = vunpack.c.l.b16 %v96
  %v985 = vunpack.c.h.b16 %v96
  %v986 = vunpack.c.l.b16 %v97
  %v987 = vunpack.c.h.b16 %v97
  %v988 = vunpack.c.l.b16 %v98
  %v989 = vunpack.c.h.b16 %v98
  %v990 = vunpack.c.l.b16 %v99
  %v991 = vunpack.c.h.b16 %v99
  %v992 = vunpack.c.l.b16 %v100
  %v993 = vunpack.c.h.b16 %v100
  %v994 = vunpack.c.l.b16 %v101
  %v995 = vunpack.c.h.b16 %v101
  %v996 = vunpack.c.l.b16 %v102
  %v997 = vunpack.c.h.b16 %v102
  %v998 = vunpack.c.l.b16 %v103
  %v999 = vunpack.c.h.b16 %v103
  %v1000 = vunpack.c.l.b16 %v104
  %v1001 = vunpack.c.h.b16 %v104
  %v1002 = vunpack.c.l.b16 %v105
  %v1003 = vunpack.c.h.b16 %v105
  %v1004 = vunpack.c.l.b16 %v106
  %v1005 = vunpack.c.h.b16 %v106
  %v1006 = vunpack.c.l.b16 %v107
  %v1007 = vunpack.c.h.b16 %v107
  %v1008 = vunpack.c.l.b16 %v108
  %v1009 = vunpack.c.l.b16 %v109
  %v1010 = vunpack.c.h.b16 %v109
  %v1011 = vunpack.c.l.b16 %v110
  %v1012 = vunpack.c.h.b16 %v110
  %v1013 = vunpack.c.l.b16 %v111
  %v1014 = vunpack.c.h.b16 %v111
  %v1015 = vunpack.c.l.b16 %v112
  %v1016 = vunpack.c.h.b16 %v112
  %v1017 = vunpack.c.l.b16 %v113
  %v1018 = vunpack.c.h.b16 %v113
  %v1019 = vunpack.c.l.b16 %v114
  %v1020 = vunpack.c.h.b16 %v114
  %v1021 = vunpack.c.l.b16 %v115
  %v1022 = vunpack.c.h.b16 %v115
  %v1023 = vunpack.c.l.b16 %v116
  %v1024 = vunpack.c.h.b16 %v116
  %v1025 = vunpack.c.l.b16 %v117
  %v1026 = vunpack.c.h.b16 %v117
  %v1027 = vunpack.c.l.b16 %v118
  %v1028 = vunpack.c.h.b16 %v118
  %v1029 = vunpack.c.l.b16 %v119
  %v1030 = vunpack.c.h.b16 %v119
  %v1031 = vunpack.c.l.b16 %v120
  %v1032 = vunpack.c.h.b16 %v120
  %v1033 = vunpack.c.l.b16 %v121
  %v1034 = vunpack.c.l.b16 %v122
  %v1035 = vunpack.c.h.b16 %v122
  %v1036 = vunpack.c.l.b16 %v123
  %v1037 = vunpack.c.h.b16 %v123
  %v1038 = vunpack.c.l.b16 %v124
  %v1039 = vunpack.c.h.b16 %v124
  %v1040 = vunpack.c.l.b16 %v125
  %v1041 = vunpack.c.h.b16 %v125
  %v1042 = vunpack.c.l.b16 %v126
  %v1043 = vunpack.c.h.b16 %v126
  %v1044 = vunpack.c.l.b16 %v127
  %v1045 = vunpack.c.h.b16 %v127
  %v1046 = vunpack.c.l.b16 %v128
  %v1047 = vunpack.c.h.b16 %v128
  %v1048 = vunpack.c.l.b16 %v129
  %v1049 = vunpack.c.h.b16 %v129
  %v1050 = vunpack.c.l.b16 %v130
  %v1051 = vunpack.c.h.b16 %v130
  %v1052 = vunpack.c.l.b16 %v131
  %v1053 = vunpack.c.h.b16 %v131
  %v1054 = vunpack.c.l.b16 %v132
  %v1055 = vunpack.c.h.b16 %v132
  %v1056 = vunpack.c.l.b16 %v133
  %v1057 = vunpack.c.h.b16 %v133
  %v1058 = vunpack.c.l.b16 %v134
  %v1059 = vunpack.c.l.b16 %v135
  %v1060 = vunpack.c.h.b16 %v135
  %v1061 = vunpack.c.l.b16 %v136
  %v1062 = vunpack.c.h.b16 %v136
  %v1063 = vunpack.c.l.b16 %v137
  %v1064 = vunpack.c.h.b16 %v137
  %v1065 = vunpack.c.l.b16 %v138
  %v1066 = vunpack.c.h.b16 %v138
  %v1067 = vunpack.c.l.b16 %v139
  %v1068 = vunpack.c.h.b16 %v139
  %v1069 = vunpack.c.l.b16 %v140
  %v1070 = vunpack.c.h.b16 %v140
  %v1071 = vunpack.c.l.b16 %v141
  %v1072 = vunpack.c.h.b16 %v141
  %v1073 = vunpack.c.l.b16 %v142
  %v1074 = vunpack.c.h.b16 %v142
  %v1075 = vunpack.c.l.b16 %v143
  %v1076 = vunpack.c.h.b16 %v143
  %v1077 = vunpack.c.l.b16 %v144
  %v1078 = vunpack.c.h.b16 %v144
  %v1079 = vunpack.c.l.b16 %v145
  %v1080 = vunpack.c.h.b16 %v145
  %v1081 = vunpack.c.l.b16 %v146
  %v1082 = vunpack.c.h.b16 %v146
  %v1083 = vunpack.c.l.b16 %v147
  %v1084 = vunpack.c.l.b16 %v148
  %v1085 = vunpack.c.h.b16 %v148
  %v1086 = vunpack.c.l.b16 %v149
  %v1087 = vunpack.c.h.b16 %v149
  %v1088 = vunpack.c.l.b16 %v150
  %v1089 = vunpack.c.h.b16 %v150
  %v1090 = vunpack.c.l.b16 %v151
  %v1091 = vunpack.c.h.b16 %v151
  %v1092 = vunpack.c.l.b16 %v152
  %v1093 = vunpack.c.h.b16 %v152
  %v1094 = vunpack.c.l.b16 %v153
  %v1095 = vunpack.c.h.b16 %v153
  %v1096 = vunpack.c.l.b16 %v154
  %v1097 = vunpack.c.h.b16 %v154
  %v1098 = vunpack.c.l.b16 %v155
  %v1099 = vunpack.c.h.b16 %v155
  %v1100 = vunpack.c.l.b16 %v156
  %v1101 = vunpack.c.h.b16 %v156
  %v1102 = vunpack.c.l.b16 %v157
  %v1103 = vunpack.c.h.b16 %v157
  %v1104 = vunpack.c.l.b16 %v158
  %v1105 = vunpack.c.h.b16 %v158
  %v1106 = vunpack.c.l.b16 %v159
  %v1107 = vunpack.c.h.b16 %v159
  %v1108 = vunpack.c.l.b16 %v160
  %v1109 = vunpack.c.l.b16 %v161
  %v1110 = vunpack.c.h.b16 %v161
  %v1111 = vunpack.c.l.b16 %v162
  %v1112 = vunpack.c.h.b16 %v162
  %v1113 = vunpack.c.l.b16 %v163
  %v1114 = vunpack.c.h.b16 %v163
  %v1115 = vunpack.c.l.b16 %v164
  %v1116 = vunpack.c.h.b16 %v164
  %v1117 = vunpack.c.l.b16 %v165
  %v1118 = vunpack.c.h.b16 %v165
  %v1119 = vunpack.c.l.b16 %v166
  %v1120 = vunpack.c.h.b16 %v166
  %v1121 = vunpack.c.l.b16 %v167
  %v1122 = vunpack.c.h.b16 %v167
  %v1123 = vunpack.c.l.b16 %v168
  %v1124 = vunpack.c.h.b16 %v168
  %v1125 = vunpack.c.l.b16 %v169
  %v1126 = vunpack.c.h.b16 %v169
  %v1127 = vunpack.c.l.b16 %v170
  %v1128 = vunpack.c.h.b16 %v170
  %v1129 = vunpack.c.l.b16 %v171
  %v1130 = vunpack.c.h.b16 %v171
  %v1131 = vunpack.c.l.b16 %v172
  %v1132 = vunpack.c.h.b16 %v172
  %v1133 = vunpack.c.l.b16 %v173
  %v1134 = vunpack.c.l.b16 %v174
  %v1135 = vunpack.c.h.b16 %v174
  %v1136 = vunpack.c.l.b16 %v175
  %v1137 = vunpack.c.h.b16 %v175
  %v1138 = vunpack.c.l.b16 %v176
  %v1139 = vunpack.c.h.b16 %v176
  %v1140 = vunpack.c.l.b16 %v177
  %v1141 = vunpack.c.h.b16 %v177
  %v1142 = vunpack.c.l.b16 %v178
  %v1143 = vunpack.c.h.b16 %v178
  %v1144 = vunpack.c.l.b16 %v179
  %v1145 = vunpack.c.h.b16 %v179
  %v1146 = vunpack.c.l.b16 %v180
  %v1147 = vunpack.c.h.b16 %v180
  %v1148 = vunpack.c.l.b16 %v181
  %v1149 = vunpack.c.h.b16 %v181
  %v1150 = vunpack.c.l.b16 %v182
  %v1151 = vunpack.c.h.b16 %v182
  %v1152 = vunpack.c.l.b16 %v183
  %v1153 = vunpack.c.h.b16 %v183
  %v1154 = vunpack.c.l.b16 %v184
  %v1155 = vunpack.c.h.b16 %v184
  %v1156 = vunpack.c.l.b16 %v185
  %v1157 = vunpack.c.h.b16 %v185
  %v1158 = vunpack.c.l.b16 %v186
  %v1159 = vunpack.c.l.b16 %v187
  %v1160 = vunpack.c.h.b16 %v187
  %v1161 = vunpack.c.l.b16 %v188
  %v1162 = vunpack.c.h.b16 %v188
  %v1163 = vunpack.c.l.b16 %v189
  %v1164 = vunpack.c.h.b16 %v189
  %v1165 = vunpack.c.l.b16 %v190
  %v1166 = vunpack.c.h.b16 %v190
  %v1167 = vunpack.c.l.b16 %v191
  %v1168 = vunpack.c.h.b16 %v191
  %v1169 = vunpack.c.l.b16 %v192
  %v1170 = vunpack.c.h.b16 %v192
  %v1171 = vunpack.c.l.b16 %v193
  %v1172 = vunpack.c.h.b16 %v193
  %v1173 = vunpack.c.l.b16 %v194
  %v1174 = vunpack.c.h.b16 %v194
  %v1175 = vunpack.c.l.b16 %v195
  %v1176 = vunpack.c.h.b16 %v195
  %v1177 = vunpack.c.l.b16 %v196
  %v1178 = vunpack.c.h.b16 %v196
  %v1179 = vunpack.c.l.b16 %v197
  %v1180 = vunpack.c.h.b16 %v197
  %v1181 = vunpack.c.l.b16 %v198
  %v1182 = vunpack.c.h.b16 %v198
  %v1183 = vunpack.c.l.b16 %v199
  %v1184 = vunpack.c.l.b16 %v200
  %v1185 = vunpack.c.h.b16 %v200
  %v1186 = vunpack.c.l.b16 %v201
  %v1187 = vunpack.c.h.b16 %v201
  %v1188 = vunpack.c.l.b16 %v202
  %v1189 = vunpack.c.h.b16 %v202
  %v1190 = vunpack.c.l.b16 %v203
  %v1191 = vunpack.c.h.b16 %v203
  %v1192 = vunpack.c.l.b16 %v204
  %v1193 = vunpack.c.h.b16 %v204
  %v1194 = vunpack.c.l.b16 %v205
  %v1195 = vunpack.c.h.b16 %v205
  %v1196 = vunpack.c.l.b16 %v206
  %v1197 = vunpack.c.h.b16 %v206
  %v1198 = vunpack.c.l.b16 %v207
  %v1199 = vunpack.c.h.b16 %v207
  %v1200 = vunpack.c.l.b16 %v208
  %v1201 = vunpack.c.h.b16 %v208
  %v1202 = vunpack.c.l.b16 %v209
  %v1203 = vunpack.c.h.b16 %v209
  %v1204 = vunpack.c.l.b16 %v210
  %v1205 = vunpack.c.h.b16 %v210
  %v1206 = vunpack.c.l.b16 %v211
  %v1207 = vunpack.c.h.b16 %v211
  %v1208 = vunpack.c.l.b16 %v212
  %v1209 = vunpack.c.l.b16 %v213
  %v1210 = vunpack.c.h.b16 %v213
  %v1211 = vunpack.c.l.b16 %v214
  %v1212 = vunpack.c.h.b16 %v214
  %v1213 = vunpack.c.l.b16 %v215
  %v1214 = vunpack.c.h.b16 %v215
  %v1215 = vunpack.c.l.b16 %v216
  %v1216 = vunpack.c.h.b16 %v216
  %v1217 = vunpack.c.l.b16 %v217
  %v1218 = vunpack.c.h.b16 %v217
  %v1219 = vunpack.c.l.b16 %v218
  %v1220 = vunpack.c.h.b16 %v218
  %v1221 = vunpack.c.l.b16 %v219
  %v1222 = vunpack.c.h.b16 %v219
  %v1223 = vunpack.c.l.b16 %v220
  %v1224 = vunpack.c.h.b16 %v220
  %v1225 = vunpack.c.l.b16 %v221
  %v1226 = vunpack.c.h.b16 %v221
  %v1227 = vunpack.c.l.b16 %v222
  %v1228 = vunpack.c.h.b16 %v222
  %v1229 = vunpack.c.l.b16 %v223
  %v1230 = vunpack.c.h.b16 %v223
  %v1231 = vunpack.c.l.b16 %v224
  %v1232 = vunpack.c.h.b16 %v224
  %v1233 = vunpack.c.l.b16 %v225
  %v1234 = vpack.c.b16 %v859, %v834
  %v1235 = vpack.c.b16 %v860, %v835
  %v1236 = vpack.c.b16 %v861, %v836
  %v1237 = vpack.c.b16 %v862, %v837
  %v1238 = vpack.c.b16 %v863, %v838
  %v1239 = vpack.c.b16 %v864, %v839
  %v1240 = vpack.c.b16 %v865, %v840
  %v1241 = vpack.c.b16 %v866, %v841
  %v1242 = vpack.c.b16 %v867, %v842
  %v1243 = vpack.c.b16 %v868, %v843
  %v1244 = vpack.c.b16 %v869, %v844
  %v1245 = vpack.c.b16 %v870, %v845
  %v1246 = vpack.c.b16 %v871, %v846
  %v1247 = vpack.c.b16 %v872, %v847
  %v1248 = vpack.c.b16 %v873, %v848
  %v1249 = vpack.c.b16 %v874, %v849
  %v1250 = vpack.c.b16 %v875, %v850
  %v1251 = vpack.c.b16 %v876, %v851
  %v1252 = vpack.c.b16 %v877, %v852
  %v1253 = vpack.c.b16 %v878, %v853
  %v1254 = vpack.c.b16 %v879, %v854
  %v1255 = vpack.c.b16 %v880, %v855
  %v1256 = vpack.c.b16 %v881, %v856
  %v1257 = vpack.c.b16 %v882, %v857
  %v1258 = vpack.c.b16 %v883, %v858
  %v1259 = vpack.c.b16 %v909, %v884
  %v1260 = vpack.c.b16 %v910, %v885
  %v1261 = vpack.c.b16 %v911, %v886
  %v1262 = vpack.c.b16 %v912, %v887
  %v1263 = vpack.c.b16 %v913, %v888
  %v1264 = vpack.c.b16 %v914, %v889
  %v1265 = vpack.c.b16 %v915, %v890
  %v1266 = vpack.c.b16 %v916, %v891
  %v1267 = vpack.c.b16 %v917, %v892
  %v1268 = vpack.c.b16 %v918, %v893
  %v1269 = vpack.c.b16 %v919, %v894
  %v1270 = vpack.c.b16 %v920, %v895
  %v1271 = vpack.c.b16 %v921, %v896
  %v1272 = vpack.c.b16 %v922, %v897
  %v1273 = vpack.c.b16 %v923, %v898
  %v1274 = vpack.c.b16 %v924, %v899
  %v1275 = vpack.c.b16 %v925, %v900
  %v1276 = vpack.c.b16 %v926, %v901
  %v1277 = vpack.c.b16 %v927, %v902
  %v1278 = vpack.c.b16 %v928, %v903
  %v1279 = vpack.c.b16 %v929, %v904
  %v1280 = vpack.c.b16 %v930, %v905
  %v1281 = vpack.c.b16 %v931, %v906
  %v1282 = vpack.c.b16 %v932, %v907
  %v1283 = vpack.c.b16 %v933, %v908
  %v1284 = vpack.c.b16 %v959, %v934
  %v1285 = vpack.c.b16 %v960, %v935
  %v1286 = vpack.c.b16 %v961, %v936
  %v1287 = vpack.c.b16 %v962, %v937
  %v1288 = vpack.c.b16 %v963, %v938
  %v1289 = vpack.c.b16 %v964, %v939
  %v1290 = vpack.c.b16 %v965, %v940
  %v1291 = vpack.c.b16 %v966, %v941
  %v1292 = vpack.c.b16 %v967, %v942
  %v1293 = vpack.c.b16 %v968, %v943
  %v1294 = vpack.c.b16 %v969, %v944
  %v1295 = vpack.c.b16 %v970, %v945
  %v1296 = vpack.c.b16 %v971, %v946
  %v1297 = vpack.c.b16 %v972, %v947
  %v1298 = vpack.c.b16 %v973, %v948
  %v1299 = vpack.c.b16 %v974, %v949
  %v1300 = vpack.c.b16 %v975, %v950
  %v1301 = vpack.c.b16 %v976, %v951
  %v1302 = vpack.c.b16 %v977, %v952
  %v1303 = vpack.c.b16 %v978, %v953
  %v1304 = vpack.c.b16 %v979, %v954
  %v1305 = vpack.c.b16 %v980, %v955
  %v1306 = vpack.c.b16 %v981, %v956
  %v1307 = vpack.c.b16 %v982, %v957
  %v1308 = vpack.c.b16 %v983, %v958
  %v1309 = vpack.c.b16 %v1009, %v984
  %v1310 = vpack.c.b16 %v1010, %v985
  %v1311 = vpack.c.b16 %v1011, %v986
  %v1312 = vpack.c.b16 %v1012, %v987
  %v1313 = vpack.c.b16 %v1013, %v988
  %v1314 = vpack.c.b16 %v1014, %v989
  %v1315 = vpack.c.b16 %v1015, %v990
  %v1316 = vpack.c.b16 %v1016, %v991
  %v1317 = vpack.c.b16 %v1017, %v992
  %v1318 = vpack.c.b16 %v1018, %v993
  %v1319 = vpack.c.b16 %v1019, %v994
  %v1320 = vpack.c.b16 %v1020, %v995
  %v1321 = vpack.c.b16 %v1021, %v996
  %v1322 = vpack.c.b16 %v1022, %v997
  %v1323 = vpack.c.b16 %v1023, %v998
  %v1324 = vpack.c.b16 %v1024, %v999
  %v1325 = vpack.c.b16 %v1025, %v1000
  %v1326 = vpack.c.b16 %v1026, %v1001
  %v1327 = vpack.c.b16 %v1027, %v1002
  %v1328 = vpack.c.b16 %v1028, %v1003
  %v1329 = vpack.c.b16 %v1029, %v1004
  %v1330 = vpack.c.b16 %v1030, %v1005
  %v1331 = vpack.c.b16 %v1031, %v1006
  %v1332 = vpack.c.b16 %v1032, %v1007
  %v1333 = vpack.c.b16 %v1033, %v1008
  %v1334 = vpack.c.b16 %v1059, %v1034
  %v1335 = vpack.c.b16 %v1060, %v1035
  %v1336 = vpack.c.b16 %v1061, %v1036
  %v1337 = vpack.c.b16 %v1062, %v1037
  %v1338 = vpack.c.b16 %v1063, %v1038
  %v1339 = vpack.c.b16 %v1064, %v1039
  %v1340 = vpack.c.b16 %v1065, %v1040
  %v1341 = vpack.c.b16 %v1066, %v1041
  %v1342 = vpack.c.b16 %v1067, %v1042
  %v1343 = vpack.c.b16 %v1068, %v1043
  %v1344 = vpack.c.b16 %v1069, %v1044
  %v1345 = vpack.c.b16 %v1070, %v1045
  %v1346 = vpack.c.b16 %v1071, %v1046
  %v1347 = vpack.c.b16 %v1072, %v1047
  %v1348 = vpack.c.b16 %v1073, %v1048
  %v1349 = vpack.c.b16 %v1074, %v1049
  %v1350 = vpack.c.b16 %v1075, %v1050
  %v1351 = vpack.c.b16 %v1076, %v1051
  %v1352 = vpack.c.b16 %v1077, %v1052
  %v1353 = vpack.c.b16 %v1078, %v1053
  %v1354 = vpack.c.b16 %v1079, %v1054
  %v1355 = vpack.c.b16 %v1080, %v1055
  %v1356 = vpack.c.b16 %v1081, %v1056
  %v1357 = vpack.c.b16 %v1082, %v1057
  %v1358 = vpack.c.b16 %v1083, %v1058
  %v1359 = vpack.c.b16 %v1109, %v1084
  %v1360 = vpack.c.b16 %v1110, %v1085
  %v1361 = vpack.c.b16 %v1111, %v1086
  %v1362 = vpack.c.b16 %v1112, %v1087
  %v1363 = vpack.c.b16 %v1113, %v1088
  %v1364 = vpack.c.b16 %v1114, %v1089
  %v1365 = vpack.c.b16 %v1115, %v1090
  %v1366 = vpack.c.b16 %v1116, %v1091
  %v1367 = vpack.c.b16 %v1117, %v1092
  %v1368 = vpack.c.b16 %v1118, %v1093
  %v1369 = vpack.c.b16 %v1119, %v1094
  %v1370 = vpack.c.b16 %v1120, %v1095
  %v1371 = vpack.c.b16 %v1121, %v1096
  %v1372 = vpack.c.b16 %v1122, %v1097
  %v1373 = vpack.c.b16 %v1123, %v1098
  %v1374 = vpack.c.b16 %v1124, %v1099
  %v1375 = vpack.c.b16 %v1125, %v1100
  %v1376 = vpack.c.b16 %v1126, %v1101
  %v1377 = vpack.c.b16 %v1127, %v1102
  %v1378 = vpack.c.b16 %v1128, %v1103
  %v1379 = vpack.c.b16 %v1129, %v1104
  %v1380 = vpack.c.b16 %v1130, %v1105
  %v1381 = vpack.c.b16 %v1131, %v1106
  %v1382 = vpack.c.b16 %v1132, %v1107
  %v1383 = vpack.c.b16 %v1133, %v1108
  %v1384 = vpack.c.b16 %v1159, %v1134
  %v1385 = vpack.c.b16 %v1160, %v1135
  %v1386 = vpack.c.b16 %v1161, %v1136
  %v1387 = vpack.c.b16 %v1162, %v1137
  %v1388 = vpack.c.b16 %v1163, %v1138
  %v1389 = vpack.c.b16 %v1164, %v1139
  %v1390 = vpack.c.b16 %v1165, %v1140
  %v1391 = vpack.c.b16 %v1166, %v1141
  %v1392 = vpack.c.b16 %v1167, %v1142
  %v1393 = vpack.c.b16 %v1168, %v1143
  %v1394 = vpack.c.b16 %v1169, %v1144
  %v1395 = vpack.c.b16 %v1170, %v1145
  %v1396 = vpack.c.b16 %v1171, %v1146
  %v1397 = vpack.c.b16 %v1172, %v1147
  %v1398 = vpack.c.b16 %v1173, %v1148
  %v1399 = vpack.c.b16 %v1174, %v1149
  %v1400 = vpack.c.b16 %v1175, %v1150
  %v1401 = vpack.c.b16 %v1176, %v1151
  %v1402 = vpack.c.b16 %v1177, %v1152
  %v1403 = vpack.c.b16 %v1178, %v1153
  %v1404 = vpack.c.b16 %v1179, %v1154
  %v1405 = vpack.c.b16 %v1180, %v1155
  %v1406 = vpack.c.b16 %v1181, %v1156
  %v1407 = vpack.c.b16 %v1182, %v1157
  %v1408 = vpack.c.b16 %v1183, %v1158
  %v1409 = vpack.c.b16 %v1209, %v1184
  %v1410 = vpack.c.b16 %v1210, %v1185
  %v1411 = vpack.c.b16 %v1211, %v1186
  %v1412 = vpack.c.b16 %v1212, %v1187
  %v1413 = vpack.c.b16 %v1213, %v1188
  %v1414 = vpack.c.b16 %v1214, %v1189
  %v1415 = vpack.c.b16 %v1215, %v1190
  %v1416 = vpack.c.b16 %v1216, %v1191
  %v1417 = vpack.c.b16 %v1217, %v1192
  %v1418 = vpack.c.b16 %v1218, %v1193
  %v1419 = vpack.c.b16 %v1219, %v1194
  %v1420 = vpack.c.b16 %v1220, %v1195
  %v1421 = vpack.c.b16 %v1221, %v1196
  %v1422 = vpack.c.b16 %v1222, %v1197
  %v1423 = vpack.c.b16 %v1223, %v1198
  %v1424 = vpack.c.b16 %v1224, %v1199
  %v1425 = vpack.c.b16 %v1225, %v1200
  %v1426 = vpack.c.b16 %v1226, %v1201
  %v1427 = vpack.c.b16 %v1227, %v1202
  %v1428 = vpack.c.b16 %v1228, %v1203
  %v1429 = vpack.c.b16 %v1229, %v1204
  %v1430 = vpack.c.b16 %v1230, %v1205
  %v1431 = vpack.c.b16 %v1231, %v1206
  %v1432 = vpack.c.b16 %v1232, %v1207
  %v1433 = vpack.c.b16 %v1233, %v1208
  %v2034 = vunpack.c.l.b16 %v226
  %v2035 = vunpack.c.l.b16 %v227
  %v2036 = vunpack.c.l.b16 %v228
  %v2037 = vunpack.c.l.b16 %v229
  %v2038 = vunpack.c.l.b16 %v230
  %v2039 = vunpack.c.l.b16 %v231
  %v2040 = vunpack.c.l.b16 %v232
  %v2041 = vunpack.c.l.b16 %v233
  %v2042 = vunpack.c.l.b16 %v234
  %v2043 = vunpack.c.l.b16 %v235
  %v2044 = vunpack.c.l.b16 %v236
  %v2045 = vunpack.c.l.b16 %v237
  %v2046 = vunpack.c.l.b16 %v238
  %v2047 = vunpack.c.l.b16 %v239
  %v2048 = vunpack.c.l.b16 %v240
  %v2049 = vunpack.c.l.b16 %v241
  %v2050 = vunpack.c.l.b16 %v242
  %v2051 = vunpack.c.l.b16 %v243
  %v2052 = vunpack.c.l.b16 %v244
  %v2053 = vunpack.c.l.b16 %v245
  %v2054 = vunpack.c.l.b16 %v246
  %v2055 = vunpack.c.l.b16 %v247
  %v2056 = vunpack.c.l.b16 %v248
  %v2057 = vunpack.c.l.b16 %v249
  %v2058 = vunpack.c.l.b16 %v250
  %v2059 = vunpack.c.l.b16 %v251
  %v2060 = vunpack.c.l.b16 %v252
  %v2061 = vunpack.c.l.b16 %v253
  %v2062 = vunpack.c.l.b16 %v254
  %v2063 = vunpack.c.l.b16 %v255
  %v2064 = vunpack.c.l.b16 %v256
  %v2065 = vunpack.c.l.b16 %v257
  %v2066 = vunpack.c.l.b16 %v258
  %v2067 = vunpack.c.l.b16 %v259
  %v2068 = vunpack.c.l.b16 %v260
  %v2069 = vunpack.c.l.b16 %v261
  %v2070 = vunpack.c.l.b16 %v262
  %v2071 = vunpack.c.l.b16 %v263
  %v2072 = vunpack.c.l.b16 %v264
  %v2073 = vunpack.c.l.b16 %v265
  %v2074 = vunpack.c.l.b16 %v266
  %v2075 = vunpack.c.l.b16 %v267
  %v2076 = vunpack.c.l.b16 %v268
  %v2077 = vunpack.c.l.b16 %v269
  %v2078 = vunpack.c.l.b16 %v270
  %v2079 = vunpack.c.l.b16 %v271
  %v2080 = vunpack.c.l.b16 %v272
  %v2081 = vunpack.c.l.b16 %v273
  %v2082 = vunpack.c.l.b16 %v274
  %v2083 = vunpack.c.l.b16 %v275
  %v2084 = vunpack.c.l.b16 %v276
  %v2085 = vunpack.c.l.b16 %v277
  %v2086 = vunpack.c.l.b16 %v278
  %v2087 = vunpack.c.l.b16 %v279
  %v2088 = vunpack.c.l.b16 %v280
  %v2089 = vunpack.c.l.b16 %v281
  %v2090 = vunpack.c.l.b16 %v282
  %v2091 = vunpack.c.l.b16 %v283
  %v2092 = vunpack.c.l.b16 %v284
  %v2093 = vunpack.c.l.b16 %v285
  %v2094 = vunpack.c.l.b16 %v286
  %v2095 = vunpack.c.l.b16 %v287
  %v2096 = vunpack.c.l.b16 %v288
  %v2097 = vunpack.c.l.b16 %v289
  %v2098 = vunpack.c.l.b16 %v290
  %v2099 = vunpack.c.l.b16 %v291
  %v2100 = vunpack.c.l.b16 %v292
  %v2101 = vunpack.c.l.b16 %v293
  %v2102 = vunpack.c.l.b16 %v294
  %v2103 = vunpack.c.l.b16 %v295
  %v2104 = vunpack.c.l.b16 %v296
  %v2105 = vunpack.c.l.b16 %v297
  %v2106 = vunpack.c.l.b16 %v298
  %v2107 = vunpack.c.l.b16 %v299
  %v2108 = vunpack.c.l.b16 %v300
  %v2109 = vunpack.c.l.b16 %v301
  %v2110 = vunpack.c.l.b16 %v302
  %v2111 = vunpack.c.l.b16 %v303
  %v2112 = vunpack.c.l.b16 %v304
  %v2113 = vunpack.c.l.b16 %v305
  %v2114 = vunpack.c.l.b16 %v306
  %v2115 = vunpack.c.l.b16 %v307
  %v2116 = vunpack.c.l.b16 %v308
  %v2117 = vunpack.c.l.b16 %v309
  %v2118 = vunpack.c.l.b16 %v310
  %v2119 = vunpack.c.l.b16 %v311
  %v2120 = vunpack.c.l.b16 %v312
  %v2121 = vunpack.c.l.b16 %v313
  %v2122 = vunpack.c.l.b16 %v314
  %v2123 = vunpack.c.l.b16 %v315
  %v2124 = vunpack.c.l.b16 %v316
  %v2125 = vunpack.c.l.b16 %v317
  %v2126 = vunpack.c.l.b16 %v318
  %v2127 = vunpack.c.l.b16 %v319
  %v2128 = vunpack.c.l.b16 %v320
  %v2129 = vunpack.c.l.b16 %v321
  %v2130 = vunpack.c.l.b16 %v322
  %v2131 = vunpack.c.l.b16 %v323
  %v2132 = vunpack.c.l.b16 %v324
  %v2133 = vunpack.c.l.b16 %v325
  %v2134 = vunpack.c.l.b16 %v326
  %v2135 = vunpack.c.l.b16 %v327
  %v2136 = vunpack.c.l.b16 %v328
  %v2137 = vunpack.c.l.b16 %v329
  %v2138 = vunpack.c.l.b16 %v330
  %v2139 = vunpack.c.l.b16 %v331
  %v2140 = vunpack.c.l.b16 %v332
  %v2141 = vunpack.c.l.b16 %v333
  %v2142 = vunpack.c.l.b16 %v334
  %v2143 = vunpack.c.l.b16 %v335
  %v2144 = vunpack.c.l.b16 %v336
  %v2145 = vunpack.c.l.b16 %v337
  %v2146 = vunpack.c.l.b16 %v338
  %v2147 = vunpack.c.l.b16 %v339
  %v2148 = vunpack.c.l.b16 %v340
  %v2149 = vunpack.c.l.b16 %v341
  %v2150 = vunpack.c.l.b16 %v342
  %v2151 = vunpack.c.l.b16 %v343
  %v2152 = vunpack.c.l.b16 %v344
  %v2153 = vunpack.c.l.b16 %v345
  %v2154 = vunpack.c.l.b16 %v346
  %v2155 = vunpack.c.l.b16 %v347
  %v2156 = vunpack.c.l.b16 %v348
  %v2157 = vunpack.c.l.b16 %v349
  %v2158 = vunpack.c.l.b16 %v350
  %v2159 = vunpack.c.l.b16 %v351
  %v2160 = vunpack.c.l.b16 %v352
  %v2161 = vunpack.c.l.b16 %v353
  %v2162 = vunpack.c.l.b16 %v354
  %v2163 = vunpack.c.l.b16 %v355
  %v2164 = vunpack.c.l.b16 %v356
  %v2165 = vunpack.c.l.b16 %v357
  %v2166 = vunpack.c.l.b16 %v358
  %v2167 = vunpack.c.l.b16 %v359
  %v2168 = vunpack.c.l.b16 %v360
  %v2169 = vunpack.c.l.b16 %v361
  %v2170 = vunpack.c.l.b16 %v362
  %v2171 = vunpack.c.l.b16 %v363
  %v2172 = vunpack.c.l.b16 %v364
  %v2173 = vunpack.c.l.b16 %v365
  %v2174 = vunpack.c.l.b16 %v366
  %v2175 = vunpack.c.l.b16 %v367
  %v2176 = vunpack.c.l.b16 %v368
  %v2177 = vunpack.c.l.b16 %v369
  %v2178 = vunpack.c.l.b16 %v370
  %v2179 = vunpack.c.l.b16 %v371
  %v2180 = vunpack.c.l.b16 %v372
  %v2181 = vunpack.c.l.b16 %v373
  %v2182 = vunpack.c.l.b16 %v374
  %v2183 = vunpack.c.l.b16 %v375
  %v2184 = vunpack.c.l.b16 %v376
  %v2185 = vunpack.c.l.b16 %v377
  %v2186 = vunpack.c.l.b16 %v378
  %v2187 = vunpack.c.l.b16 %v379
  %v2188 = vunpack.c.l.b16 %v380
  %v2189 = vunpack.c.l.b16 %v381
  %v2190 = vunpack.c.l.b16 %v382
  %v2191 = vunpack.c.l.b16 %v383
  %v2192 = vunpack.c.l.b16 %v384
  %v2193 = vunpack.c.l.b16 %v385
  %v2194 = vunpack.c.l.b16 %v386
  %v2195 = vunpack.c.l.b16 %v387
  %v2196 = vunpack.c.l.b16 %v388
  %v2197 = vunpack.c.l.b16 %v389
  %v2198 = vunpack.c.l.b16 %v390
  %v2199 = vunpack.c.l.b16 %v391
  %v2200 = vunpack.c.l.b16 %v392
  %v2201 = vunpack.c.l.b16 %v393
  %v2202 = vunpack.c.l.b16 %v394
  %v2203 = vunpack.c.l.b16 %v395
  %v2204 = vunpack.c.l.b16 %v396
  %v2205 = vunpack.c.l.b16 %v397
  %v2206 = vunpack.c.l.b16 %v398
  %v2207 = vunpack.c.l.b16 %v399
  %v2208 = vunpack.c.l.b16 %v400
  %v2209 = vunpack.c.l.b16 %v401
  %v2210 = vunpack.c.l.b16 %v402
  %v2211 = vunpack.c.l.b16 %v403
  %v2212 = vunpack.c.l.b16 %v404
  %v2213 = vunpack.c.l.b16 %v405
  %v2214 = vunpack.c.l.b16 %v406
  %v2215 = vunpack.c.l.b16 %v407
  %v2216 = vunpack.c.l.b16 %v408
  %v2217 = vunpack.c.l.b16 %v409
  %v2218 = vunpack.c.l.b16 %v410
  %v2219 = vunpack.c.l.b16 %v411
  %v2220 = vunpack.c.l.b16 %v412
  %v2221 = vunpack.c.l.b16 %v413
  %v2222 = vunpack.c.l.b16 %v414
  %v2223 = vunpack.c.l.b16 %v415
  %v2224 = vunpack.c.l.b16 %v416
  %v2225 = vunpack.c.l.b16 %v417
  %v2226 = vunpack.c.l.b16 %v418
  %v2227 = vunpack.c.l.b16 %v419
  %v2228 = vunpack.c.l.b16 %v420
  %v2229 = vunpack.c.l.b16 %v421
  %v2230 = vunpack.c.l.b16 %v422
  %v2231 = vunpack.c.l.b16 %v423
  %v2232 = vunpack.c.l.b16 %v424
  %v2233 = vunpack.c.l.b16 %v425
  %v2234 = vunpack.c.l.b16 %v426
  %v2235 = vunpack.c.l.b16 %v427
  %v2236 = vunpack.c.l.b16 %v428
  %v2237 = vunpack.c.l.b16 %v429
  %v2238 = vunpack.c.l.b16 %v430
  %v2239 = vunpack.c.l.b16 %v431
  %v2240 = vunpack.c.l.b16 %v432
  %v2241 = vunpack.c.l.b16 %v433
  %v2242 = vunpack.c.l.b16 %v434
  %v2243 = vunpack.c.l.b16 %v435
  %v2244 = vunpack.c.l.b16 %v436
  %v2245 = vunpack.c.l.b16 %v437
  %v2246 = vunpack.c.l.b16 %v438
  %v2247 = vunpack.c.l.b16 %v439
  %v2248 = vunpack.c.l.b16 %v440
  %v2249 = vunpack.c.l.b16 %v441
  %v2250 = vunpack.c.l.b16 %v442
  %v2251 = vunpack.c.l.b16 %v443
  %v2252 = vunpack.c.l.b16 %v444
  %v2253 = vunpack.c.l.b16 %v445
  %v2254 = vunpack.c.l.b16 %v446
  %v2255 = vunpack.c.l.b16 %v447
  %v2256 = vunpack.c.l.b16 %v448
  %v2257 = vunpack.c.l.b16 %v449
  %v2258 = vunpack.c.l.b16 %v450
  %v2259 = vunpack.c.l.b16 %v451
  %v2260 = vunpack.c.l.b16 %v452
  %v2261 = vunpack.c.l.b16 %v453
  %v2262 = vunpack.c.l.b16 %v454
  %v2263 = vunpack.c.l.b16 %v455
  %v2264 = vunpack.c.l.b16 %v456
  %v2265 = vunpack.c.l.b16 %v457
  %v2266 = vunpack.c.l.b16 %v458
  %v2267 = vunpack.c.l.b16 %v459
  %v2268 = vunpack.c.l.b16 %v460
  %v2269 = vunpack.c.l.b16 %v461
  %v2270 = vunpack.c.l.b16 %v462
  %v2271 = vunpack.c.l.b16 %v463
  %v2272 = vunpack.c.l.b16 %v464
  %v2273 = vunpack.c.l.b16 %v465
  %v2274 = vunpack.c.l.b16 %v466
  %v2275 = vunpack.c.l.b16 %v467
  %v2276 = vunpack.c.l.b16 %v468
  %v2277 = vunpack.c.l.b16 %v469
  %v2278 = vunpack.c.l.b16 %v470
  %v2279 = vunpack.c.l.b16 %v471
  %v2280 = vunpack.c.l.b16 %v472
  %v2281 = vunpack.c.l.b16 %v473
  %v2282 = vunpack.c.l.b16 %v474
  %v2283 = vunpack.c.l.b16 %v475
  %v2284 = vunpack.c.l.b16 %v476
  %v2285 = vunpack.c.l.b16 %v477
  %v2286 = vunpack.c.l.b16 %v478
  %v2287 = vunpack.c.l.b16 %v479
  %v2288 = vunpack.c.l.b16 %v480
  %v2289 = vunpack.c.l.b16 %v481
  %v2290 = vunpack.c.l.b16 %v482
  %v2291 = vunpack.c.l.b16 %v483
  %v2292 = vunpack.c.l.b16 %v484
  %v2293 = vunpack.c.l.b16 %v485
  %v2294 = vunpack.c.l.b16 %v486
  %v2295 = vunpack.c.l.b16 %v487
  %v2296 = vunpack.c.l.b16 %v488
  %v2297 = vunpack.c.l.b16 %v489
  %v2298 = vunpack.c.l.b16 %v490
  %v2299 = vunpack.c.l.b16 %v491
  %v2300 = vunpack.c.l.b16 %v492
  %v2301 = vunpack.c.l.b16 %v493
  %v2302 = vunpack.c.l.b16 %v494
  %v2303 = vunpack.c.l.b16 %v495
  %v2304 = vunpack.c.l.b16 %v496
  %v2305 = vunpack.c.l.b16 %v497
  %v2306 = vunpack.c.l.b16 %v498
  %v2307 = vunpack.c.l.b16 %v499
  %v2308 = vunpack.c.l.b16 %v500
  %v2309 = vunpack.c.l.b16 %v501
  %v2310 = vunpack.c.l.b16 %v502
  %v2311 = vunpack.c.l.b16 %v503
  %v2312 = vunpack.c.l.b16 %v504
  %v2313 = vunpack.c.l.b16 %v505
  %v2314 = vunpack.c.l.b16 %v506
  %v2315 = vunpack.c.l.b16 %v507
  %v2316 = vunpack.c.l.b16 %v508
  %v2317 = vunpack.c.l.b16 %v509
  %v2318 = vunpack.c.l.b16 %v510
  %v2319 = vunpack.c.l.b16 %v511
  %v2320 = vunpack.c.l.b16 %v512
  %v2321 = vunpack.c.l.b16 %v513
  %v2322 = vunpack.c.l.b16 %v514
  %v2323 = vunpack.c.l.b16 %v515
  %v2324 = vunpack.c.l.b16 %v516
  %v2325 = vunpack.c.l.b16 %v517
  %v2326 = vunpack.c.l.b16 %v518
  %v2327 = vunpack.c.l.b16 %v519
  %v2328 = vunpack.c.l.b16 %v520
  %v2329 = vunpack.c.l.b16 %v521
  %v2330 = vunpack.c.l.b16 %v522
  %v2331 = vunpack.c.l.b16 %v523
  %v2332 = vunpack.c.l.b16 %v524
  %v2333 = vunpack.c.l.b16 %v525
  %v2334 = vunpack.c.l.b16 %v526
  %v2335 = vunpack.c.l.b16 %v527
  %v2336 = vunpack.c.l.b16 %v528
  %v2337 = vunpack.c.l.b16 %v529
  %v2338 = vunpack.c.l.b16 %v530
  %v2339 = vunpack.c.l.b16 %v531
  %v2340 = vunpack.c.l.b16 %v532
  %v2341 = vunpack.c.l.b16 %v533
  %v2342 = vunpack.c.l.b16 %v534
  %v2343 = vunpack.c.l.b16 %v535
  %v2344 = vunpack.c.l.b16 %v536
  %v2345 = vunpack.c.l.b16 %v537
  %v2346 = vunpack.c.l.b16 %v538
  %v2347 = vunpack.c.l.b16 %v539
  %v2348 = vunpack.c.l.b16 %v540
  %v2349 = vunpack.c.l.b16 %v541
  %v2350 = vunpack.c.l.b16 %v542
  %v2351 = vunpack.c.l.b16 %v543
  %v2352 = vunpack.c.l.b16 %v544
  %v2353 = vunpack.c.l.b16 %v545
  %v2354 = vunpack.c.l.b16 %v546
  %v2355 = vunpack.c.l.b16 %v547
  %v2356 = vunpack.c.l.b16 %v548
  %v2357 = vunpack.c.l.b16 %v549
  %v2358 = vunpack.c.l.b16 %v550
  %v2359 = vunpack.c.l.b16 %v551
  %v2360 = vunpack.c.l.b16 %v552
  %v2361 = vunpack.c.l.b16 %v553
  %v2362 = vunpack.c.l.b16 %v554
  %v2363 = vunpack.c.l.b16 %v555
  %v2364 = vunpack.c.l.b16 %v556
  %v2365 = vunpack.c.l.b16 %v557
  %v2366 = vunpack.c.l.b16 %v558
  %v2367 = vunpack.c.l.b16 %v559
  %v2368 = vunpack.c.l.b16 %v560
  %v2369 = vunpack.c.l.b16 %v561
  %v2370 = vunpack.c.l.b16 %v562
  %v2371 = vunpack.c.l.b16 %v563
  %v2372 = vunpack.c.l.b16 %v564
  %v2373 = vunpack.c.l.b16 %v565
  %v2374 = vunpack.c.l.b16 %v566
  %v2375 = vunpack.c.l.b16 %v567
  %v2376 = vunpack.c.l.b16 %v568
  %v2377 = vunpack.c.l.b16 %v569
  %v2378 = vunpack.c.l.b16 %v570
  %v2379 = vunpack.c.l.b16 %v571
  %v2380 = vunpack.c.l.b16 %v572
  %v2381 = vunpack.c.l.b16 %v573
  %v2382 = vunpack.c.l.b16 %v574
  %v2383 = vunpack.c.l.b16 %v575
  %v2384 = vunpack.c.l.b16 %v576
  %v2385 = vunpack.c.l.b16 %v577
  %v2386 = vunpack.c.l.b16 %v578
  %v2387 = vunpack.c.l.b16 %v579
  %v2388 = vunpack.c.l.b16 %v580
  %v2389 = vunpack.c.l.b16 %v581
  %v2390 = vunpack.c.l.b16 %v582
  %v2391 = vunpack.c.l.b16 %v583
  %v2392 = vunpack.c.l.b16 %v584
  %v2393 = vunpack.c.l.b16 %v585
  %v2394 = vunpack.c.l.b16 %v586
  %v2395 = vunpack.c.l.b16 %v587
  %v2396 = vunpack.c.l.b16 %v588
  %v2397 = vunpack.c.l.b16 %v589
  %v2398 = vunpack.c.l.b16 %v590
  %v2399 = vunpack.c.l.b16 %v591
  %v2400 = vunpack.c.l.b16 %v592
  %v2401 = vunpack.c.l.b16 %v593
  %v2402 = vunpack.c.l.b16 %v594
  %v2403 = vunpack.c.l.b16 %v595
  %v2404 = vunpack.c.l.b16 %v596
  %v2405 = vunpack.c.l.b16 %v597
  %v2406 = vunpack.c.l.b16 %v598
  %v2407 = vunpack.c.l.b16 %v599
  %v2408 = vunpack.c.l.b16 %v600
  %v2409 = vunpack.c.l.b16 %v601
  %v2410 = vunpack.c.l.b16 %v602
  %v2411 = vunpack.c.l.b16 %v603
  %v2412 = vunpack.c.l.b16 %v604
  %v2413 = vunpack.c.l.b16 %v605
  %v2414 = vunpack.c.l.b16 %v606
  %v2415 = vunpack.c.l.b16 %v607
  %v2416 = vunpack.c.l.b16 %v608
  %v2417 = vunpack.c.l.b16 %v609
  %v2418 = vunpack.c.l.b16 %v610
  %v2419 = vunpack.c.l.b16 %v611
  %v2420 = vunpack.c.l.b16 %v612
  %v2421 = vunpack.c.l.b16 %v613
  %v2422 = vunpack.c.l.b16 %v614
  %v2423 = vunpack.c.l.b16 %v615
  %v2424 = vunpack.c.l.b16 %v616
  %v2425 = vunpack.c.l.b16 %v617
  %v2426 = vunpack.c.l.b16 %v618
  %v2427 = vunpack.c.l.b16 %v619
  %v2428 = vunpack.c.l.b16 %v620
  %v2429 = vunpack.c.l.b16 %v621
  %v2430 = vunpack.c.l.b16 %v622
  %v2431 = vunpack.c.l.b16 %v623
  %v2432 = vunpack.c.l.b16 %v624
  %v2433 = vunpack.c.l.b16 %v625
  %v2434 = vpack.c.b16 %v2035, %v2034
  %v2435 = vpack.c.b16 %v2037, %v2036
  %v2436 = vpack.c.b16 %v2039, %v2038
  %v2437 = vpack.c.b16 %v2041, %v2040
  %v2438 = vpack.c.b16 %v2043, %v2042
  %v2439 = vpack.c.b16 %v2045, %v2044
  %v2440 = vpack.c.b16 %v2047, %v2046
  %v2441 = vpack.c.b16 %v2049, %v2048
  %v2442 = vpack.c.b16 %v2051, %v2050
  %v2443 = vpack.c.b16 %v2053, %v2052
  %v2444 = vpack.c.b16 %v2055, %v2054
  %v2445 = vpack.c.b16 %v2057, %v2056
  %v2446 = vpack.c.b16 %v2059, %v2058
  %v2447 = vpack.c.b16 %v2061, %v2060
  %v2448 = vpack.c.b16 %v2063, %v2062
  %v2449 = vpack.c.b16 %v2065, %v2064
  %v2450 = vpack.c.b16 %v2067, %v2066
  %v2451 = vpack.c.b16 %v2069, %v2068
  %v2452 = vpack.c.b16 %v2071, %v2070
  %v2453 = vpack.c.b16 %v2073, %v2072
  %v2454 = vpack.c.b16 %v2075, %v2074
  %v2455 = vpack.c.b16 %v2077, %v2076
  %v2456 = vpack.c.b16 %v2079, %v2078
  %v2457 = vpack.c.b16 %v2081, %v2080
  %v2458 = vpack.c.b16 %v2083, %v2082
  %v2459 = vpack.c.b16 %v2085, %v2084
  %v2460 = vpack.c.b16 %v2087, %v2086
  %v2461 = vpack.c.b16 %v2089, %v2088
  %v2462 = vpack.c.b16 %v2091, %v2090
  %v2463 = vpack.c.b16 %v2093, %v2092
  %v2464 = vpack.c.b16 %v2095, %v2094
  %v2465 = vpack.c.b16 %v2097, %v2096
  %v2466 = vpack.c.b16 %v2099, %v2098
  %v2467 = vpack.c.b16 %v2101, %v2100
  %v2468 = vpack.c.b16 %v2103, %v2102
  %v2469 = vpack.c.b16 %v2105, %v2104
  %v2470 = vpack.c.b16 %v2107, %v2106
  %v2471 = vpack.c.b16 %v2109, %v2108
  %v2472 = vpack.c.b16 %v2111, %v2110
  %v2473 = vpack.c.b16 %v2113, %v2112
  %v2474 = vpack.c.b16 %v2115, %v2114
  %v2475 = vpack.c.b16 %v2117, %v2116
  %v2476 = vpack.c.b16 %v2119, %v2118
  %v2477 = vpack.c.b16 %v2121, %v2120
  %v2478 = vpack.c.b16 %v2123, %v2122
  %v2479 = vpack.c.b16 %v2125, %v2124
  %v2480 = vpack.c.b16 %v2127, %v2126
  %v2481 = vpack.c.b16 %v2129, %v2128
  %v2482 = vpack.c.b16 %v2131, %v2130
  %v2483 = vpack.c.b16 %v2133, %v2132
  %v2484 = vpack.c.b16 %v2135, %v2134
  %v2485 = vpack.c.b16 %v2137, %v2136
  %v2486 = vpack.c.b16 %v2139, %v2138
  %v2487 = vpack.c.b16 %v2141, %v2140
  %v2488 = vpack.c.b16 %v2143, %v2142
  %v2489 = vpack.c.b16 %v2145, %v2144
  %v2490 = vpack.c.b16 %v2147, %v2146
  %v2491 = vpack.c.b16 %v2149, %v2148
  %v2492 = vpack.c.b16 %v2151, %v2150
  %v2493 = vpack.c.b16 %v2153, %v2152
  %v2494 = vpack.c.b16 %v2155, %v2154
  %v2495 = vpack.c.b16 %v2157, %v2156
  %v2496 = vpack.c.b16 %v2159, %v2158
  %v2497 = vpack.c.b16 %v2161, %v2160
  %v2498 = vpack.c.b16 %v2163, %v2162
  %v2499 = vpack.c.b16 %v2165, %v2164
  %v2500 = vpack.c.b16 %v2167, %v2166
  %v2501 = vpack.c.b16 %v2169, %v2168
  %v2502 = vpack.c.b16 %v2171, %v2170
  %v2503 = vpack.c.b16 %v2173, %v2172
  %v2504 = vpack.c.b16 %v2175, %v2174
  %v2505 = vpack.c.b16 %v2177, %v2176
  %v2506 = vpack.c.b16 %v2179, %v2178
  %v2507 = vpack.c.b16 %v2181, %v2180
  %v2508 = vpack.c.b16 %v2183, %v2182
  %v2509 = vpack.c.b16 %v2185, %v2184
  %v2510 = vpack.c.b16 %v2187, %v2186
  %v2511 = vpack.c.b16 %v2189, %v2188
  %v2512 = vpack.c.b16 %v2191, %v2190
  %v2513 = vpack.c.b16 %v2193, %v2192
  %v2514 = vpack.c.b16 %v2195, %v2194
  %v2515 = vpack.c.b16 %v2197, %v2196
  %v2516 = vpack.c.b16 %v2199, %v2198
  %v2517 = vpack.c.b16 %v2201, %v2200
  %v2518 = vpack.c.b16 %v2203, %v2202
  %v2519 = vpack.c.b16 %v2205, %v2204
  %v2520 = vpack.c.b16 %v2207, %v2206
  %v2521 = vpack.c.b16 %v2209, %v2208
  %v2522 = vpack.c.b16 %v2211, %v2210
  %v2523 = vpack.c.b16 %v2213, %v2212
  %v2524 = vpack.c.b16 %v2215, %v2214
  %v2525 = vpack.c.b16 %v2217, %v2216
  %v2526 = vpack.c.b16 %v2219, %v2218
  %v2527 = vpack.c.b16 %v2221, %v2220
  %v2528 = vpack.c.b16 %v2223, %v2222
  %v2529 = vpack.c.b16 %v2225, %v2224
  %v2530 = vpack.c.b16 %v2227, %v2226
  %v2531 = vpack.c.b16 %v2229, %v2228
  %v2532 = vpack.c.b16 %v2231, %v2230
  %v2533 = vpack.c.b16 %v2233, %v2232
  %v2534 = vpack.c.b16 %v2235, %v2234
  %v2535 = vpack.c.b16 %v2237, %v2236
  %v2536 = vpack.c.b16 %v2239, %v2238
  %v2537 = vpack.c.b16 %v2241, %v2240
  %v2538 = vpack.c.b16 %v2243, %v2242
  %v2539 = vpack.c.b16 %v2245, %v2244
  %v2540 = vpack.c.b16 %v2247, %v2246
  %v2541 = vpack.c.b16 %v2249, %v2248
  %v2542 = vpack.c.b16 %v2251, %v2250
  %v2543 = vpack.c.b16 %v2253, %v2252
  %v2544 = vpack.c.b16 %v2255, %v2254
  %v2545 = vpack.c.b16 %v2257, %v2256
  %v2546 = vpack.c.b16 %v2259, %v2258
  %v2547 = vpack.c.b16 %v2261, %v2260
  %v2548 = vpack.c.b16 %v2263, %v2262
  %v2549 = vpack.c.b16 %v2265, %v2264
  %v2550 = vpack.c.b16 %v2267, %v2266
  %v2551 = vpack.c.b16 %v2269, %v2268
  %v2552 = vpack.c.b16 %v2271, %v2270
  %v2553 = vpack.c.b16 %v2273, %v2272
  %v2554 = vpack.c.b16 %v2275, %v2274
  %v2555 = vpack.c.b16 %v2277, %v2276
  %v2556 = vpack.c.b16 %v2279, %v2278
  %v2557 = vpack.c.b16 %v2281, %v2280
  %v2558 = vpack.c.b16 %v2283, %v2282
  %v2559 = vpack.c.b16 %v2285, %v2284
  %v2560 = vpack.c.b16 %v2287, %v2286
  %v2561 = vpack.c.b16 %v2289, %v2288
  %v2562 = vpack.c.b16 %v2291, %v2290
  %v2563 = vpack.c.b16 %v2293, %v2292
  %v2564 = vpack.c.b16 %v2295, %v2294
  %v2565 = vpack.c.b16 %v2297, %v2296
  %v2566 = vpack.c.b16 %v2299, %v2298
  %v2567 = vpack.c.b16 %v2301, %v2300
  %v2568 = vpack.c.b16 %v2303, %v2302
  %v2569 = vpack.c.b16 %v2305, %v2304
  %v2570 = vpack.c.b16 %v2307, %v2306
  %v2571 = vpack.c.b16 %v2309, %v2308
  %v2572 = vpack.c.b16 %v2311, %v2310
  %v2573 = vpack.c.b16 %v2313, %v2312
  %v2574 = vpack.c.b16 %v2315, %v2314
  %v2575 = vpack.c.b16 %v2317, %v2316
  %v2576 = vpack.c.b16 %v2319, %v2318
  %v2577 = vpack.c.b16 %v2321, %v2320
  %v2578 = vpack.c.b16 %v2323, %v2322
  %v2579 = vpack.c.b16 %v2325, %v2324
  %v2580 = vpack.c.b16 %v2327, %v2326
  %v2581 = vpack.c.b16 %v2329, %v2328
  %v2582 = vpack.c.b16 %v2331, %v2330
  %v2583 = vpack.c.b16 %v2333, %v2332
  %v2584 = vpack.c.b16 %v2335, %v2334
  %v2585 = vpack.c.b16 %v2337, %v2336
  %v2586 = vpack.c.b16 %v2339, %v2338
  %v2587 = vpack.c.b16 %v2341, %v2340
  %v2588 = vpack.c.b16 %v2343, %v2342
  %v2589 = vpack.c.b16 %v2345, %v2344
  %v2590 = vpack.c.b16 %v2347, %v2346
  %v2591 = vpack.c.b16 %v2349, %v2348
  %v2592 = vpack.c.b16 %v2351, %v2350
  %v2593 = vpack.c.b16 %v2353, %v2352
  %v2594 = vpack.c.b16 %v2355, %v2354
  %v2595 = vpack.c.b16 %v2357, %v2356
  %v2596 = vpack.c.b16 %v2359, %v2358
  %v2597 = vpack.c.b16 %v2361, %v2360
  %v2598 = vpack.c.b16 %v2363, %v2362
  %v2599 = vpack.c.b16 %v2365, %v2364
  %v2600 = vpack.c.b16 %v2367, %v2366
  %v2601 = vpack.c.b16 %v2369, %v2368
  %v2602 = vpack.c.b16 %v2371, %v2370
  %v2603 = vpack.c.b16 %v2373, %v2372
  %v2604 = vpack.c.b16 %v2375, %v2374
  %v2605 = vpack.c.b16 %v2377, %v2376
  %v2606 = vpack.c.b16 %v2379, %v2378
  %v2607 = vpack.c.b16 %v2381, %v2380
  %v2608 = vpack.c.b16 %v2383, %v2382
  %v2609 = vpack.c.b16 %v2385, %v2384
  %v2610 = vpack.c.b16 %v2387, %v2386
  %v2611 = vpack.c.b16 %v2389, %v2388
  %v2612 = vpack.c.b16 %v2391, %v2390
  %v2613 = vpack.c.b16 %v2393, %v2392
  %v2614 = vpack.c.b16 %v2395, %v2394
  %v2615 = vpack.c.b16 %v2397, %v2396
  %v2616 = vpack.c.b16 %v2399, %v2398
  %v2617 = vpack.c.b16 %v2401, %v2400
  %v2618 = vpack.c.b16 %v2403, %v2402
  %v2619 = vpack.c.b16 %v2405, %v2404
  %v2620 = vpack.c.b16 %v2407, %v2406
  %v2621 = vpack.c.b16 %v2409, %v2408
  %v2622 = vpack.c.b16 %v2411, %v2410
  %v2623 = vpack.c.b16 %v2413, %v2412
  %v2624 = vpack.c.b16 %v2415, %v2414
  %v2625 = vpack.c.b16 %v2417, %v2416
  %v2626 = vpack.c.b16 %v2419, %v2418
  %v2627 = vpack.c.b16 %v2421, %v2420
  %v2628 = vpack.c.b16 %v2423, %v2422
  %v2629 = vpack.c.b16 %v2425, %v2424
  %v2630 = vpack.c.b16 %v2427, %v2426
  %v2631 = vpack.c.b16 %v2429, %v2428
  %v2632 = vpack.c.b16 %v2431, %v2430
  %v2633 = vpack.c.b16 %v2433, %v2432
  %2834 = vmatprep.subr.bf16.mxu0 0
  %2835 = vmatpush1.bf16.msra.mxu0 %v2434
  %2836 = vmatprep.subr.bf16.mxu0 0
  %2837 = vmatpush1.bf16.msra.mxu0 %v2435
  %2838 = vmatprep.subr.bf16.mxu0 0
  %2839 = vmatpush1.bf16.msra.mxu0 %v2436
  %2840 = vmatprep.subr.bf16.mxu0 0
  %2841 = vmatpush1.bf16.msra.mxu0 %v2437
  %2842 = vmatprep.subr.bf16.mxu0 0
  %2843 = vmatpush1.bf16.msra.mxu0 %v2438
  %2844 = vmatprep.subr.bf16.mxu0 0
  %2845 = vmatpush1.bf16.msra.mxu0 %v2439
  %2846 = vmatprep.subr.bf16.mxu0 0
  %2847 = vmatpush1.bf16.msra.mxu0 %v2440
  %2848 = vmatprep.subr.bf16.mxu0 0
  %2849 = vmatpush1.bf16.msra.mxu0 %v2441
  %2850 = vmatprep.subr.bf16.mxu0 0
  %2851 = vmatpush1.bf16.msra.mxu0 %v2442
  %2852 = vmatprep.subr.bf16.mxu0 0
  %2853 = vmatpush1.bf16.msra.mxu0 %v2443
  %2854 = vmatprep.subr.bf16.mxu0 0
  %2855 = vmatpush1.bf16.msra.mxu0 %v2444
  %2856 = vmatprep.subr.bf16.mxu0 0
  %2857 = vmatpush1.bf16.msra.mxu0 %v2445
  %2858 = vmatprep.subr.bf16.mxu0 0
  %2859 = vmatpush1.bf16.msra.mxu0 %v2446
  %2860 = vmatprep.subr.bf16.mxu0 0
  %2861 = vmatpush1.bf16.msra.mxu0 %v2447
  %2862 = vmatprep.subr.bf16.mxu0 0
  %2863 = vmatpush1.bf16.msra.mxu0 %v2448
  %2864 = vmatprep.subr.bf16.mxu0 0
  %2865 = vmatpush1.bf16.msra.mxu0 %v2449
  %2866 = vmatprep.mubr.bf16.mxu0 %v1235
  %2867 = vmatmul.mubr.bf16.gmra.mrb[0].mxu0 %v1234
  %v2868 = vpop.f32.mrb[0].mxu0
  %v2869 = vadd.f32 0.0, %v2868
  %v2870 = vpop.f32.mrb[0].mxu0
  %v2871 = vpop.f32.mrb[0].mxu0
  %v2872 = vadd.f32 0.0, %v2871
  %v2873 = vpop.f32.mrb[0].mxu0
  %2874 = vmatprep.mubr.bf16.mxu0 %v1260
  %2875 = vmatmul.mubr.bf16.gmra.mrb[0].mxu0 %v1259
  %v2876 = vpop.f32.mrb[0].mxu0
  %v2877 = vadd.f32 0.0, %v2876
  %v2878 = vpop.f32.mrb[0].mxu0
  %v2879 = vpop.f32.mrb[0].mxu0
  %v2880 = vadd.f32 0.0, %v2879
  %v2881 = vpop.f32.mrb[0].mxu0
  %2882 = vmatprep.mubr.bf16.mxu0 %v1285
  %2883 = vmatmul.mubr.bf16.gmra.mrb[0].mxu0 %v1284
  %v2884 = vpop.f32.mrb[0].mxu0
  %v2885 = vadd.f32 0.0, %v2884
  %v2886 = vpop.f32.mrb[0].mxu0
  %v2887 = vpop.f32.mrb[0].mxu0
  %v2888 = vadd.f32 0.0, %v2887
  %v2889 = vpop.f32.mrb[0].mxu0
  %2890 = vmatprep.mubr.bf16.mxu0 %v1310
  %2891 = vmatmul.mubr.bf16.gmra.mrb[0].mxu0 %v1309
  %v2892 = vpop.f32.mrb[0].mxu0
  %v2893 = vadd.f32 0.0, %v2892
  %v2894 = vpop.f32.mrb[0].mxu0
  %v2895 = vpop.f32.mrb[0].mxu0
  %v2896 = vadd.f32 0.0, %v2895
  %v2897 = vpop.f32.mrb[0].mxu0
  %2898 = vmatprep.mubr.bf16.mxu0 %v1335
  %2899 = vmatmul.mubr.bf16.gmra.mrb[0].mxu0 %v1334
  %v2900 = vpop.f32.mrb[0].mxu0
  %v2901 = vadd.f32 0.0, %v2900
  %v2902 = vpop.f32.mrb[0].mxu0
  %v2903 = vpop.f32.mrb[0].mxu0
  %v2904 = vadd.f32 0.0, %v2903
  %v2905 = vpop.f32.mrb[0].mxu0
  %2906 = vmatprep.mubr.bf16.mxu0 %v1360
  %2907 = vmatmul.mubr.bf16.gmra.mrb[0].mxu0 %v1359
  %v2908 = vpop.f32.mrb[0].mxu0
  %v2909 = vadd.f32 0.0, %v2908
  %v2910 = vpop.f32.mrb[0].mxu0
  %v2911 = vpop.f32.mrb[0].mxu0
  %v2912 = vadd.f32 0.0, %v2911
  %v2913 = vpop.f32.mrb[0].mxu0
  %2914 = vmatprep.mubr.bf16.mxu0 %v1385
  %2915 = vmatmul.mubr.bf16.gmra.mrb[0].mxu0 %v1384
  %v2916 = vpop.f32.mrb[0].mxu0
  %v2917 = vadd.f32 0.0, %v2916
  %v2918 = vpop.f32.mrb[0].mxu0
  %v2919 = vpop.f32.mrb[0].mxu0
  %v2920 = vadd.f32 0.0, %v2919
  %v2921 = vpop.f32.mrb[0].mxu0
  %2922 = vmatprep.mubr.bf16.mxu0 %v1410
  %2923 = vmatmul.mubr.bf16.gmra.mrb[0].mxu0 %v1409
  %v2924 = vpop.f32.mrb[0].mxu0
  %v2925 = vadd.f32 0.0, %v2924
  %v2926 = vpop.f32.mrb[0].mxu0
  %v2927 = vpop.f32.mrb[0].mxu0
  %v2928 = vadd.f32 0.0, %v2927
  %v2929 = vpop.f32.mrb[0].mxu0
  %2930 = vdwg.mxu0
  %2931 = vmatprep.subr.bf16.mxu0 0
  %2932 = vmatpush1.bf16.msra.mxu0 %v2450
  %2933 = vmatprep.subr.bf16.mxu0 0
  %2934 = vmatpush1.bf16.msra.mxu0 %v2451
  %2935 = vmatprep.subr.bf16.mxu0 0
  %2936 = vmatpush1.bf16.msra.mxu0 %v2452
  %2937 = vmatprep.subr.bf16.mxu0 0
  %2938 = vmatpush1.bf16.msra.mxu0 %v2453
  %2939 = vmatprep.subr.bf16.mxu0 0
  %2940 = vmatpush1.bf16.msra.mxu0 %v2454
  %2941 = vmatprep.subr.bf16.mxu0 0
  %2942 = vmatpush1.bf16.msra.mxu0 %v2455
  %2943 = vmatprep.subr.bf16.mxu0 0
  %2944 = vmatpush1.bf16.msra.mxu0 %v2456
  %2945 = vmatprep.subr.bf16.mxu0 0
  %2946 = vmatpush1.bf16.msra.mxu0 %v2457
  %2947 = vmatprep.subr.bf16.mxu0 0
  %2948 = vmatpush1.bf16.msra.mxu0 %v2458
  %2949 = vmatprep.subr.bf16.mxu0 0
  %2950 = vmatpush1.bf16.msra.mxu0 %v2459
  %2951 = vmatprep.subr.bf16.mxu0 0
  %2952 = vmatpush1.bf16.msra.mxu0 %v2460
  %2953 = vmatprep.subr.bf16.mxu0 0
  %2954 = vmatpush1.bf16.msra.mxu0 %v2461
  %2955 = vmatprep.subr.bf16.mxu0 0
  %2956 = vmatpush1.bf16.msra.mxu0 %v2462
  %2957 = vmatprep.subr.bf16.mxu0 0
  %2958 = vmatpush1.bf16.msra.mxu0 %v2463
  %2959 = vmatprep.subr.bf16.mxu0 0
  %2960 = vmatpush1.bf16.msra.mxu0 %v2464
  %2961 = vmatprep.subr.bf16.mxu0 0
  %2962 = vmatpush1.bf16.msra.mxu0 %v2465
  %2963 = vmatprep.mubr.bf16.mxu0 %v1237
  %2964 = vmatmul.mubr.bf16.gmra.mrb[0].mxu0 %v1236
  %v2965 = vpop.f32.mrb[0].mxu0
  %v2966 = vadd.f32 %v2869, %v2965
  %v2967 = vpop.f32.mrb[0].mxu0
  %v2968 = vpop.f32.mrb[0].mxu0
  %v2969 = vadd.f32 %v2872, %v2968
  %v2970 = vpop.f32.mrb[0].mxu0
  %2971 = vmatprep.mubr.bf16.mxu0 %v1262
  %2972 = vmatmul.mubr.bf16.gmra.mrb[0].mxu0 %v1261
  %v2973 = vpop.f32.mrb[0].mxu0
  %v2974 = vadd.f32 %v2877, %v2973
  %v2975 = vpop.f32.mrb[0].mxu0
  %v2976 = vpop.f32.mrb[0].mxu0
  %v2977 = vadd.f32 %v2880, %v2976
  %v2978 = vpop.f32.mrb[0].mxu0
  %2979 = vmatprep.mubr.bf16.mxu0 %v1287
  %2980 = vmatmul.mubr.bf16.gmra.mrb[0].mxu0 %v1286
  %v2981 = vpop.f32.mrb[0].mxu0
  %v2982 = vadd.f32 %v2885, %v2981
  %v2983 = vpop.f32.mrb[0].mxu0
  %v2984 = vpop.f32.mrb[0].mxu0
  %v2985 = vadd.f32 %v2888, %v2984
  %v2986 = vpop.f32.mrb[0].mxu0
  %2987 = vmatprep.mubr.bf16.mxu0 %v1312
  %2988 = vmatmul.mubr.bf16.gmra.mrb[0].mxu0 %v1311
  %v2989 = vpop.f32.mrb[0].mxu0
  %v2990 = vadd.f32 %v2893, %v2989
  %v2991 = vpop.f32.mrb[0].mxu0
  %v2992 = vpop.f32.mrb[0].mxu0
  %v2993 = vadd.f32 %v2896, %v2992
  %v2994 = vpop.f32.mrb[0].mxu0
  %2995 = vmatprep.mubr.bf16.mxu0 %v1337
  %2996 = vmatmul.mubr.bf16.gmra.mrb[0].mxu0 %v1336
  %v2997 = vpop.f32.mrb[0].mxu0
  %v2998 = vadd.f32 %v2901, %v2997
  %v2999 = vpop.f32.mrb[0].mxu0
  %v3000 = vpop.f32.mrb[0].mxu0
  %v3001 = vadd.f32 %v2904, %v3000
  %v3002 = vpop.f32.mrb[0].mxu0
  %3003 = vmatprep.mubr.bf16.mxu0 %v1362
  %3004 = vmatmul.mubr.bf16.gmra.mrb[0].mxu0 %v1361
  %v3005 = vpop.f32.mrb[0].mxu0
  %v3006 = vadd.f32 %v2909, %v3005
  %v3007 = vpop.f32.mrb[0].mxu0
  %v3008 = vpop.f32.mrb[0].mxu0
  %v3009 = vadd.f32 %v2912, %v3008
  %v3010 = vpop.f32.mrb[0].mxu0
  %3011 = vmatprep.mubr.bf16.mxu0 %v1387
  %3012 = vmatmul.mubr.bf16.gmra.mrb[0].mxu0 %v1386
  %v3013 = vpop.f32.mrb[0].mxu0
  %v3014 = vadd.f32 %v2917, %v3013
  %v3015 = vpop.f32.mrb[0].mxu0
  %v3016 = vpop.f32.mrb[0].mxu0
  %v3017 = vadd.f32 %v2920, %v3016
  %v3018 = vpop.f32.mrb[0].mxu0
  %3019 = vmatprep.mubr.bf16.mxu0 %v1412
  %3020 = vmatmul.mubr.bf16.gmra.mrb[0].mxu0 %v1411
  %v3021 = vpop.f32.mrb[0].mxu0
  %v3022 = vadd.f32 %v2925, %v3021
  %v3023 = vpop.f32.mrb[0].mxu0
  %v3024 = vpop.f32.mrb[0].mxu0
  %v3025 = vadd.f32 %v2928, %v3024
  %v3026 = vpop.f32.mrb[0].mxu0
  %3027 = vdwg.mxu0
  %3028 = vmatprep.subr.bf16.mxu0 0
  %3029 = vmatpush1.bf16.msra.mxu0 %v2466
  %3030 = vmatprep.subr.bf16.mxu0 0
  %3031 = vmatpush1.bf16.msra.mxu0 %v2467
  %3032 = vmatprep.subr.bf16.mxu0 0
  %3033 = vmatpush1.bf16.msra.mxu0 %v2468
  %3034 = vmatprep.subr.bf16.mxu0 0
  %3035 = vmatpush1.bf16.msra.mxu0 %v2469
  %3036 = vmatprep.subr.bf16.mxu0 0
  %3037 = vmatpush1.bf16.msra.mxu0 %v2470
  %3038 = vmatprep.subr.bf16.mxu0 0
  %3039 = vmatpush1.bf16.msra.mxu0 %v2471
  %3040 = vmatprep.subr.bf16.mxu0 0
  %3041 = vmatpush1.bf16.msra.mxu0 %v2472
  %3042 = vmatprep.subr.bf16.mxu0 0
  %3043 = vmatpush1.bf16.msra.mxu0 %v2473
  %3044 = vmatprep.subr.bf16.mxu0 0
  %3045 = vmatpush1.bf16.msra.mxu0 %v2474
  %3046 = vmatprep.subr.bf16.mxu0 0
  %3047 = vmatpush1.bf16.msra.mxu0 %v2475
  %3048 = vmatprep.subr.bf16.mxu0 0
  %3049 = vmatpush1.bf16.msra.mxu0 %v2476
  %3050 = vmatprep.subr.bf16.mxu0 0
  %3051 = vmatpush1.bf16.msra.mxu0 %v2477
  %3052 = vmatprep.subr.bf16.mxu0 0
  %3053 = vmatpush1.bf16.msra.mxu0 %v2478
  %3054 = vmatprep.subr.bf16.mxu0 0
  %3055 = vmatpush1.bf16.msra.mxu0 %v2479
  %3056 = vmatprep.subr.bf16.mxu0 0
  %3057 = vmatpush1.bf16.msra.mxu0 %v2480
  %3058 = vmatprep.subr.bf16.mxu0 0
  %3059 = vmatpush1.bf16.msra.mxu0 %v2481
  %3060 = vmatprep.mubr.bf16.mxu0 %v1239
  %3061 = vmatmul.mubr.bf16.gmra.mrb[0].mxu0 %v1238
  %v3062 = vpop.f32.mrb[0].mxu0
  %v3063 = vadd.f32 %v2966, %v3062
  %v3064 = vpop.f32.mrb[0].mxu0
  %v3065 = vpop.f32.mrb[0].mxu0
  %v3066 = vadd.f32 %v2969, %v3065
  %v3067 = vpop.f32.mrb[0].mxu0
  %3068 = vmatprep.mubr.bf16.mxu0 %v1264
  %3069 = vmatmul.mubr.bf16.gmra.mrb[0].mxu0 %v1263
  %v3070 = vpop.f32.mrb[0].mxu0
  %v3071 = vadd.f32 %v2974, %v3070
  %v3072 = vpop.f32.mrb[0].mxu0
  %v3073 = vpop.f32.mrb[0].mxu0
  %v3074 = vadd.f32 %v2977, %v3073
  %v3075 = vpop.f32.mrb[0].mxu0
  %3076 = vmatprep.mubr.bf16.mxu0 %v1289
  %3077 = vmatmul.mubr.bf16.gmra.mrb[0].mxu0 %v1288
  %v3078 = vpop.f32.mrb[0].mxu0
  %v3079 = vadd.f32 %v2982, %v3078
  %v3080 = vpop.f32.mrb[0].mxu0
  %v3081 = vpop.f32.mrb[0].mxu0
  %v3082 = vadd.f32 %v2985, %v3081
  %v3083 = vpop.f32.mrb[0].mxu0
  %3084 = vmatprep.mubr.bf16.mxu0 %v1314
  %3085 = vmatmul.mubr.bf16.gmra.mrb[0].mxu0 %v1313
  %v3086 = vpop.f32.mrb[0].mxu0
  %v3087 = vadd.f32 %v2990, %v3086
  %v3088 = vpop.f32.mrb[0].mxu0
  %v3089 = vpop.f32.mrb[0].mxu0
  %v3090 = vadd.f32 %v2993, %v3089
  %v3091 = vpop.f32.mrb[0].mxu0
  %3092 = vmatprep.mubr.bf16.mxu0 %v1339
  %3093 = vmatmul.mubr.bf16.gmra.mrb[0].mxu0 %v1338
  %v3094 = vpop.f32.mrb[0].mxu0
  %v3095 = vadd.f32 %v2998, %v3094
  %v3096 = vpop.f32.mrb[0].mxu0
  %v3097 = vpop.f32.mrb[0].mxu0
  %v3098 = vadd.f32 %v3001, %v3097
  %v3099 = vpop.f32.mrb[0].mxu0
  %3100 = vmatprep.mubr.bf16.mxu0 %v1364
  %3101 = vmatmul.mubr.bf16.gmra.mrb[0].mxu0 %v1363
  %v3102 = vpop.f32.mrb[0].mxu0
  %v3103 = vadd.f32 %v3006, %v3102
  %v3104 = vpop.f32.mrb[0].mxu0
  %v3105 = vpop.f32.mrb[0].mxu0
  %v3106 = vadd.f32 %v3009, %v3105
  %v3107 = vpop.f32.mrb[0].mxu0
  %3108 = vmatprep.mubr.bf16.mxu0 %v1389
  %3109 = vmatmul.mubr.bf16.gmra.mrb[0].mxu0 %v1388
  %v3110 = vpop.f32.mrb[0].mxu0
  %v3111 = vadd.f32 %v3014, %v3110
  %v3112 = vpop.f32.mrb[0].mxu0
  %v3113 = vpop.f32.mrb[0].mxu0
  %v3114 = vadd.f32 %v3017, %v3113
  %v3115 = vpop.f32.mrb[0].mxu0
  %3116 = vmatprep.mubr.bf16.mxu0 %v1414
  %3117 = vmatmul.mubr.bf16.gmra.mrb[0].mxu0 %v1413
  %v3118 = vpop.f32.mrb[0].mxu0
  %v3119 = vadd.f32 %v3022, %v3118
  %v3120 = vpop.f32.mrb[0].mxu0
  %v3121 = vpop.f32.mrb[0].mxu0
  %v3122 = vadd.f32 %v3025, %v3121
  %v3123 = vpop.f32.mrb[0].mxu0
  %3124 = vdwg.mxu0
  %3125 = vmatprep.subr.bf16.mxu0 0
  %3126 = vmatpush1.bf16.msra.mxu0 %v2482
  %3127 = vmatprep.subr.bf16.mxu0 0
  %3128 = vmatpush1.bf16.msra.mxu0 %v2483
  %3129 = vmatprep.subr.bf16.mxu0 0
  %3130 = vmatpush1.bf16.msra.mxu0 %v2484
  %3131 = vmatprep.subr.bf16.mxu0 0
  %3132 = vmatpush1.bf16.msra.mxu0 %v2485
  %3133 = vmatprep.subr.bf16.mxu0 0
  %3134 = vmatpush1.bf16.msra.mxu0 %v2486
  %3135 = vmatprep.subr.bf16.mxu0 0
  %3136 = vmatpush1.bf16.msra.mxu0 %v2487
  %3137 = vmatprep.subr.bf16.mxu0 0
  %3138 = vmatpush1.bf16.msra.mxu0 %v2488
  %3139 = vmatprep.subr.bf16.mxu0 0
  %3140 = vmatpush1.bf16.msra.mxu0 %v2489
  %3141 = vmatprep.subr.bf16.mxu0 0
  %3142 = vmatpush1.bf16.msra.mxu0 %v2490
  %3143 = vmatprep.subr.bf16.mxu0 0
  %3144 = vmatpush1.bf16.msra.mxu0 %v2491
  %3145 = vmatprep.subr.bf16.mxu0 0
  %3146 = vmatpush1.bf16.msra.mxu0 %v2492
  %3147 = vmatprep.subr.bf16.mxu0 0
  %3148 = vmatpush1.bf16.msra.mxu0 %v2493
  %3149 = vmatprep.subr.bf16.mxu0 0
  %3150 = vmatpush1.bf16.msra.mxu0 %v2494
  %3151 = vmatprep.subr.bf16.mxu0 0
  %3152 = vmatpush1.bf16.msra.mxu0 %v2495
  %3153 = vmatprep.subr.bf16.mxu0 0
  %3154 = vmatpush1.bf16.msra.mxu0 %v2496
  %3155 = vmatprep.subr.bf16.mxu0 0
  %3156 = vmatpush1.bf16.msra.mxu0 %v2497
  %3157 = vmatprep.mubr.bf16.mxu0 %v1241
  %3158 = vmatmul.mubr.bf16.gmra.mrb[0].mxu0 %v1240
  %v3159 = vpop.f32.mrb[0].mxu0
  %v3160 = vadd.f32 %v3063, %v3159
  %v3161 = vpop.f32.mrb[0].mxu0
  %v3162 = vpop.f32.mrb[0].mxu0
  %v3163 = vadd.f32 %v3066, %v3162
  %v3164 = vpop.f32.mrb[0].mxu0
  %3165 = vmatprep.mubr.bf16.mxu0 %v1266
  %3166 = vmatmul.mubr.bf16.gmra.mrb[0].mxu0 %v1265
  %v3167 = vpop.f32.mrb[0].mxu0
  %v3168 = vadd.f32 %v3071, %v3167
  %v3169 = vpop.f32.mrb[0].mxu0
  %v3170 = vpop.f32.mrb[0].mxu0
  %v3171 = vadd.f32 %v3074, %v3170
  %v3172 = vpop.f32.mrb[0].mxu0
  %3173 = vmatprep.mubr.bf16.mxu0 %v1291
  %3174 = vmatmul.mubr.bf16.gmra.mrb[0].mxu0 %v1290
  %v3175 = vpop.f32.mrb[0].mxu0
  %v3176 = vadd.f32 %v3079, %v3175
  %v3177 = vpop.f32.mrb[0].mxu0
  %v3178 = vpop.f32.mrb[0].mxu0
  %v3179 = vadd.f32 %v3082, %v3178
  %v3180 = vpop.f32.mrb[0].mxu0
  %3181 = vmatprep.mubr.bf16.mxu0 %v1316
  %3182 = vmatmul.mubr.bf16.gmra.mrb[0].mxu0 %v1315
  %v3183 = vpop.f32.mrb[0].mxu0
  %v3184 = vadd.f32 %v3087, %v3183
  %v3185 = vpop.f32.mrb[0].mxu0
  %v3186 = vpop.f32.mrb[0].mxu0
  %v3187 = vadd.f32 %v3090, %v3186
  %v3188 = vpop.f32.mrb[0].mxu0
  %3189 = vmatprep.mubr.bf16.mxu0 %v1341
  %3190 = vmatmul.mubr.bf16.gmra.mrb[0].mxu0 %v1340
  %v3191 = vpop.f32.mrb[0].mxu0
  %v3192 = vadd.f32 %v3095, %v3191
  %v3193 = vpop.f32.mrb[0].mxu0
  %v3194 = vpop.f32.mrb[0].mxu0
  %v3195 = vadd.f32 %v3098, %v3194
  %v3196 = vpop.f32.mrb[0].mxu0
  %3197 = vmatprep.mubr.bf16.mxu0 %v1366
  %3198 = vmatmul.mubr.bf16.gmra.mrb[0].mxu0 %v1365
  %v3199 = vpop.f32.mrb[0].mxu0
  %v3200 = vadd.f32 %v3103, %v3199
  %v3201 = vpop.f32.mrb[0].mxu0
  %v3202 = vpop.f32.mrb[0].mxu0
  %v3203 = vadd.f32 %v3106, %v3202
  %v3204 = vpop.f32.mrb[0].mxu0
  %3205 = vmatprep.mubr.bf16.mxu0 %v1391
  %3206 = vmatmul.mubr.bf16.gmra.mrb[0].mxu0 %v1390
  %v3207 = vpop.f32.mrb[0].mxu0
  %v3208 = vadd.f32 %v3111, %v3207
  %v3209 = vpop.f32.mrb[0].mxu0
  %v3210 = vpop.f32.mrb[0].mxu0
  %v3211 = vadd.f32 %v3114, %v3210
  %v3212 = vpop.f32.mrb[0].mxu0
  %3213 = vmatprep.mubr.bf16.mxu0 %v1416
  %3214 = vmatmul.mubr.bf16.gmra.mrb[0].mxu0 %v1415
  %v3215 = vpop.f32.mrb[0].mxu0
  %v3216 = vadd.f32 %v3119, %v3215
  %v3217 = vpop.f32.mrb[0].mxu0
  %v3218 = vpop.f32.mrb[0].mxu0
  %v3219 = vadd.f32 %v3122, %v3218
  %v3220 = vpop.f32.mrb[0].mxu0
  %3221 = vdwg.mxu0
  %3222 = vmatprep.subr.bf16.mxu0 0
  %3223 = vmatpush1.bf16.msra.mxu0 %v2498
  %3224 = vmatprep.subr.bf16.mxu0 0
  %3225 = vmatpush1.bf16.msra.mxu0 %v2499
  %3226 = vmatprep.subr.bf16.mxu0 0
  %3227 = vmatpush1.bf16.msra.mxu0 %v2500
  %3228 = vmatprep.subr.bf16.mxu0 0
  %3229 = vmatpush1.bf16.msra.mxu0 %v2501
  %3230 = vmatprep.subr.bf16.mxu0 0
  %3231 = vmatpush1.bf16.msra.mxu0 %v2502
  %3232 = vmatprep.subr.bf16.mxu0 0
  %3233 = vmatpush1.bf16.msra.mxu0 %v2503
  %3234 = vmatprep.subr.bf16.mxu0 0
  %3235 = vmatpush1.bf16.msra.mxu0 %v2504
  %3236 = vmatprep.subr.bf16.mxu0 0
  %3237 = vmatpush1.bf16.msra.mxu0 %v2505
  %3238 = vmatprep.subr.bf16.mxu0 0
  %3239 = vmatpush1.bf16.msra.mxu0 %v2506
  %3240 = vmatprep.subr.bf16.mxu0 0
  %3241 = vmatpush1.bf16.msra.mxu0 %v2507
  %3242 = vmatprep.subr.bf16.mxu0 0
  %3243 = vmatpush1.bf16.msra.mxu0 %v2508
  %3244 = vmatprep.subr.bf16.mxu0 0
  %3245 = vmatpush1.bf16.msra.mxu0 %v2509
  %3246 = vmatprep.subr.bf16.mxu0 0
  %3247 = vmatpush1.bf16.msra.mxu0 %v2510
  %3248 = vmatprep.subr.bf16.mxu0 0
  %3249 = vmatpush1.bf16.msra.mxu0 %v2511
  %3250 = vmatprep.subr.bf16.mxu0 0
  %3251 = vmatpush1.bf16.msra.mxu0 %v2512
  %3252 = vmatprep.subr.bf16.mxu0 0
  %3253 = vmatpush1.bf16.msra.mxu0 %v2513
  %3254 = vmatprep.mubr.bf16.mxu0 %v1243
  %3255 = vmatmul.mubr.bf16.gmra.mrb[0].mxu0 %v1242
  %v3256 = vpop.f32.mrb[0].mxu0
  %v3257 = vadd.f32 %v3160, %v3256
  %v3258 = vpop.f32.mrb[0].mxu0
  %v3259 = vpop.f32.mrb[0].mxu0
  %v3260 = vadd.f32 %v3163, %v3259
  %v3261 = vpop.f32.mrb[0].mxu0
  %3262 = vmatprep.mubr.bf16.mxu0 %v1268
  %3263 = vmatmul.mubr.bf16.gmra.mrb[0].mxu0 %v1267
  %v3264 = vpop.f32.mrb[0].mxu0
  %v3265 = vadd.f32 %v3168, %v3264
  %v3266 = vpop.f32.mrb[0].mxu0
  %v3267 = vpop.f32.mrb[0].mxu0
  %v3268 = vadd.f32 %v3171, %v3267
  %v3269 = vpop.f32.mrb[0].mxu0
  %3270 = vmatprep.mubr.bf16.mxu0 %v1293
  %3271 = vmatmul.mubr.bf16.gmra.mrb[0].mxu0 %v1292
  %v3272 = vpop.f32.mrb[0].mxu0
  %v3273 = vadd.f32 %v3176, %v3272
  %v3274 = vpop.f32.mrb[0].mxu0
  %v3275 = vpop.f32.mrb[0].mxu0
  %v3276 = vadd.f32 %v3179, %v3275
  %v3277 = vpop.f32.mrb[0].mxu0
  %3278 = vmatprep.mubr.bf16.mxu0 %v1318
  %3279 = vmatmul.mubr.bf16.gmra.mrb[0].mxu0 %v1317
  %v3280 = vpop.f32.mrb[0].mxu0
  %v3281 = vadd.f32 %v3184, %v3280
  %v3282 = vpop.f32.mrb[0].mxu0
  %v3283 = vpop.f32.mrb[0].mxu0
  %v3284 = vadd.f32 %v3187, %v3283
  %v3285 = vpop.f32.mrb[0].mxu0
  %3286 = vmatprep.mubr.bf16.mxu0 %v1343
  %3287 = vmatmul.mubr.bf16.gmra.mrb[0].mxu0 %v1342
  %v3288 = vpop.f32.mrb[0].mxu0
  %v3289 = vadd.f32 %v3192, %v3288
  %v3290 = vpop.f32.mrb[0].mxu0
  %v3291 = vpop.f32.mrb[0].mxu0
  %v3292 = vadd.f32 %v3195, %v3291
  %v3293 = vpop.f32.mrb[0].mxu0
  %3294 = vmatprep.mubr.bf16.mxu0 %v1368
  %3295 = vmatmul.mubr.bf16.gmra.mrb[0].mxu0 %v1367
  %v3296 = vpop.f32.mrb[0].mxu0
  %v3297 = vadd.f32 %v3200, %v3296
  %v3298 = vpop.f32.mrb[0].mxu0
  %v3299 = vpop.f32.mrb[0].mxu0
  %v3300 = vadd.f32 %v3203, %v3299
  %v3301 = vpop.f32.mrb[0].mxu0
  %3302 = vmatprep.mubr.bf16.mxu0 %v1393
  %3303 = vmatmul.mubr.bf16.gmra.mrb[0].mxu0 %v1392
  %v3304 = vpop.f32.mrb[0].mxu0
  %v3305 = vadd.f32 %v3208, %v3304
  %v3306 = vpop.f32.mrb[0].mxu0
  %v3307 = vpop.f32.mrb[0].mxu0
  %v3308 = vadd.f32 %v3211, %v3307
  %v3309 = vpop.f32.mrb[0].mxu0
  %3310 = vmatprep.mubr.bf16.mxu0 %v1418
  %3311 = vmatmul.mubr.bf16.gmra.mrb[0].mxu0 %v1417
  %v3312 = vpop.f32.mrb[0].mxu0
  %v3313 = vadd.f32 %v3216, %v3312
  %v3314 = vpop.f32.mrb[0].mxu0
  %v3315 = vpop.f32.mrb[0].mxu0
  %v3316 = vadd.f32 %v3219, %v3315
  %v3317 = vpop.f32.mrb[0].mxu0
  %3318 = vdwg.mxu0
  %3319 = vmatprep.subr.bf16.mxu0 0
  %3320 = vmatpush1.bf16.msra.mxu0 %v2514
  %3321 = vmatprep.subr.bf16.mxu0 0
  %3322 = vmatpush1.bf16.msra.mxu0 %v2515
  %3323 = vmatprep.subr.bf16.mxu0 0
  %3324 = vmatpush1.bf16.msra.mxu0 %v2516
  %3325 = vmatprep.subr.bf16.mxu0 0
  %3326 = vmatpush1.bf16.msra.mxu0 %v2517
  %3327 = vmatprep.subr.bf16.mxu0 0
  %3328 = vmatpush1.bf16.msra.mxu0 %v2518
  %3329 = vmatprep.subr.bf16.mxu0 0
  %3330 = vmatpush1.bf16.msra.mxu0 %v2519
  %3331 = vmatprep.subr.bf16.mxu0 0
  %3332 = vmatpush1.bf16.msra.mxu0 %v2520
  %3333 = vmatprep.subr.bf16.mxu0 0
  %3334 = vmatpush1.bf16.msra.mxu0 %v2521
  %3335 = vmatprep.subr.bf16.mxu0 0
  %3336 = vmatpush1.bf16.msra.mxu0 %v2522
  %3337 = vmatprep.subr.bf16.mxu0 0
  %3338 = vmatpush1.bf16.msra.mxu0 %v2523
  %3339 = vmatprep.subr.bf16.mxu0 0
  %3340 = vmatpush1.bf16.msra.mxu0 %v2524
  %3341 = vmatprep.subr.bf16.mxu0 0
  %3342 = vmatpush1.bf16.msra.mxu0 %v2525
  %3343 = vmatprep.subr.bf16.mxu0 0
  %3344 = vmatpush1.bf16.msra.mxu0 %v2526
  %3345 = vmatprep.subr.bf16.mxu0 0
  %3346 = vmatpush1.bf16.msra.mxu0 %v2527
  %3347 = vmatprep.subr.bf16.mxu0 0
  %3348 = vmatpush1.bf16.msra.mxu0 %v2528
  %3349 = vmatprep.subr.bf16.mxu0 0
  %3350 = vmatpush1.bf16.msra.mxu0 %v2529
  %3351 = vmatprep.mubr.bf16.mxu0 %v1245
  %3352 = vmatmul.mubr.bf16.gmra.mrb[0].mxu0 %v1244
  %v3353 = vpop.f32.mrb[0].mxu0
  %v3354 = vadd.f32 %v3257, %v3353
  %v3355 = vpop.f32.mrb[0].mxu0
  %v3356 = vpop.f32.mrb[0].mxu0
  %v3357 = vadd.f32 %v3260, %v3356
  %v3358 = vpop.f32.mrb[0].mxu0
  %3359 = vmatprep.mubr.bf16.mxu0 %v1270
  %3360 = vmatmul.mubr.bf16.gmra.mrb[0].mxu0 %v1269
  %v3361 = vpop.f32.mrb[0].mxu0
  %v3362 = vadd.f32 %v3265, %v3361
  %v3363 = vpop.f32.mrb[0].mxu0
  %v3364 = vpop.f32.mrb[0].mxu0
  %v3365 = vadd.f32 %v3268, %v3364
  %v3366 = vpop.f32.mrb[0].mxu0
  %3367 = vmatprep.mubr.bf16.mxu0 %v1295
  %3368 = vmatmul.mubr.bf16.gmra.mrb[0].mxu0 %v1294
  %v3369 = vpop.f32.mrb[0].mxu0
  %v3370 = vadd.f32 %v3273, %v3369
  %v3371 = vpop.f32.mrb[0].mxu0
  %v3372 = vpop.f32.mrb[0].mxu0
  %v3373 = vadd.f32 %v3276, %v3372
  %v3374 = vpop.f32.mrb[0].mxu0
  %3375 = vmatprep.mubr.bf16.mxu0 %v1320
  %3376 = vmatmul.mubr.bf16.gmra.mrb[0].mxu0 %v1319
  %v3377 = vpop.f32.mrb[0].mxu0
  %v3378 = vadd.f32 %v3281, %v3377
  %v3379 = vpop.f32.mrb[0].mxu0
  %v3380 = vpop.f32.mrb[0].mxu0
  %v3381 = vadd.f32 %v3284, %v3380
  %v3382 = vpop.f32.mrb[0].mxu0
  %3383 = vmatprep.mubr.bf16.mxu0 %v1345
  %3384 = vmatmul.mubr.bf16.gmra.mrb[0].mxu0 %v1344
  %v3385 = vpop.f32.mrb[0].mxu0
  %v3386 = vadd.f32 %v3289, %v3385
  %v3387 = vpop.f32.mrb[0].mxu0
  %v3388 = vpop.f32.mrb[0].mxu0
  %v3389 = vadd.f32 %v3292, %v3388
  %v3390 = vpop.f32.mrb[0].mxu0
  %3391 = vmatprep.mubr.bf16.mxu0 %v1370
  %3392 = vmatmul.mubr.bf16.gmra.mrb[0].mxu0 %v1369
  %v3393 = vpop.f32.mrb[0].mxu0
  %v3394 = vadd.f32 %v3297, %v3393
  %v3395 = vpop.f32.mrb[0].mxu0
  %v3396 = vpop.f32.mrb[0].mxu0
  %v3397 = vadd.f32 %v3300, %v3396
  %v3398 = vpop.f32.mrb[0].mxu0
  %3399 = vmatprep.mubr.bf16.mxu0 %v1395
  %3400 = vmatmul.mubr.bf16.gmra.mrb[0].mxu0 %v1394
  %v3401 = vpop.f32.mrb[0].mxu0
  %v3402 = vadd.f32 %v3305, %v3401
  %v3403 = vpop.f32.mrb[0].mxu0
  %v3404 = vpop.f32.mrb[0].mxu0
  %v3405 = vadd.f32 %v3308, %v3404
  %v3406 = vpop.f32.mrb[0].mxu0
  %3407 = vmatprep.mubr.bf16.mxu0 %v1420
  %3408 = vmatmul.mubr.bf16.gmra.mrb[0].mxu0 %v1419
  %v3409 = vpop.f32.mrb[0].mxu0
  %v3410 = vadd.f32 %v3313, %v3409
  %v3411 = vpop.f32.mrb[0].mxu0
  %v3412 = vpop.f32.mrb[0].mxu0
  %v3413 = vadd.f32 %v3316, %v3412
  %v3414 = vpop.f32.mrb[0].mxu0
  %3415 = vdwg.mxu0
  %3416 = vmatprep.subr.bf16.mxu0 0
  %3417 = vmatpush1.bf16.msra.mxu0 %v2530
  %3418 = vmatprep.subr.bf16.mxu0 0
  %3419 = vmatpush1.bf16.msra.mxu0 %v2531
  %3420 = vmatprep.subr.bf16.mxu0 0
  %3421 = vmatpush1.bf16.msra.mxu0 %v2532
  %3422 = vmatprep.subr.bf16.mxu0 0
  %3423 = vmatpush1.bf16.msra.mxu0 %v2533
  %3424 = vmatprep.subr.bf16.mxu0 0
  %3425 = vmatpush1.bf16.msra.mxu0 %v2534
  %3426 = vmatprep.subr.bf16.mxu0 0
  %3427 = vmatpush1.bf16.msra.mxu0 %v2535
  %3428 = vmatprep.subr.bf16.mxu0 0
  %3429 = vmatpush1.bf16.msra.mxu0 %v2536
  %3430 = vmatprep.subr.bf16.mxu0 0
  %3431 = vmatpush1.bf16.msra.mxu0 %v2537
  %3432 = vmatprep.subr.bf16.mxu0 0
  %3433 = vmatpush1.bf16.msra.mxu0 %v2538
  %3434 = vmatprep.subr.bf16.mxu0 0
  %3435 = vmatpush1.bf16.msra.mxu0 %v2539
  %3436 = vmatprep.subr.bf16.mxu0 0
  %3437 = vmatpush1.bf16.msra.mxu0 %v2540
  %3438 = vmatprep.subr.bf16.mxu0 0
  %3439 = vmatpush1.bf16.msra.mxu0 %v2541
  %3440 = vmatprep.subr.bf16.mxu0 0
  %3441 = vmatpush1.bf16.msra.mxu0 %v2542
  %3442 = vmatprep.subr.bf16.mxu0 0
  %3443 = vmatpush1.bf16.msra.mxu0 %v2543
  %3444 = vmatprep.subr.bf16.mxu0 0
  %3445 = vmatpush1.bf16.msra.mxu0 %v2544
  %3446 = vmatprep.subr.bf16.mxu0 0
  %3447 = vmatpush1.bf16.msra.mxu0 %v2545
  %3448 = vmatprep.mubr.bf16.mxu0 %v1247
  %3449 = vmatmul.mubr.bf16.gmra.mrb[0].mxu0 %v1246
  %v3450 = vpop.f32.mrb[0].mxu0
  %v3451 = vadd.f32 %v3354, %v3450
  %v3452 = vpop.f32.mrb[0].mxu0
  %v3453 = vpop.f32.mrb[0].mxu0
  %v3454 = vadd.f32 %v3357, %v3453
  %v3455 = vpop.f32.mrb[0].mxu0
  %3456 = vmatprep.mubr.bf16.mxu0 %v1272
  %3457 = vmatmul.mubr.bf16.gmra.mrb[0].mxu0 %v1271
  %v3458 = vpop.f32.mrb[0].mxu0
  %v3459 = vadd.f32 %v3362, %v3458
  %v3460 = vpop.f32.mrb[0].mxu0
  %v3461 = vpop.f32.mrb[0].mxu0
  %v3462 = vadd.f32 %v3365, %v3461
  %v3463 = vpop.f32.mrb[0].mxu0
  %3464 = vmatprep.mubr.bf16.mxu0 %v1297
  %3465 = vmatmul.mubr.bf16.gmra.mrb[0].mxu0 %v1296
  %v3466 = vpop.f32.mrb[0].mxu0
  %v3467 = vadd.f32 %v3370, %v3466
  %v3468 = vpop.f32.mrb[0].mxu0
  %v3469 = vpop.f32.mrb[0].mxu0
  %v3470 = vadd.f32 %v3373, %v3469
  %v3471 = vpop.f32.mrb[0].mxu0
  %3472 = vmatprep.mubr.bf16.mxu0 %v1322
  %3473 = vmatmul.mubr.bf16.gmra.mrb[0].mxu0 %v1321
  %v3474 = vpop.f32.mrb[0].mxu0
  %v3475 = vadd.f32 %v3378, %v3474
  %v3476 = vpop.f32.mrb[0].mxu0
  %v3477 = vpop.f32.mrb[0].mxu0
  %v3478 = vadd.f32 %v3381, %v3477
  %v3479 = vpop.f32.mrb[0].mxu0
  %3480 = vmatprep.mubr.bf16.mxu0 %v1347
  %3481 = vmatmul.mubr.bf16.gmra.mrb[0].mxu0 %v1346
  %v3482 = vpop.f32.mrb[0].mxu0
  %v3483 = vadd.f32 %v3386, %v3482
  %v3484 = vpop.f32.mrb[0].mxu0
  %v3485 = vpop.f32.mrb[0].mxu0
  %v3486 = vadd.f32 %v3389, %v3485
  %v3487 = vpop.f32.mrb[0].mxu0
  %3488 = vmatprep.mubr.bf16.mxu0 %v1372
  %3489 = vmatmul.mubr.bf16.gmra.mrb[0].mxu0 %v1371
  %v3490 = vpop.f32.mrb[0].mxu0
  %v3491 = vadd.f32 %v3394, %v3490
  %v3492 = vpop.f32.mrb[0].mxu0
  %v3493 = vpop.f32.mrb[0].mxu0
  %v3494 = vadd.f32 %v3397, %v3493
  %v3495 = vpop.f32.mrb[0].mxu0
  %3496 = vmatprep.mubr.bf16.mxu0 %v1397
  %3497 = vmatmul.mubr.bf16.gmra.mrb[0].mxu0 %v1396
  %v3498 = vpop.f32.mrb[0].mxu0
  %v3499 = vadd.f32 %v3402, %v3498
  %v3500 = vpop.f32.mrb[0].mxu0
  %v3501 = vpop.f32.mrb[0].mxu0
  %v3502 = vadd.f32 %v3405, %v3501
  %v3503 = vpop.f32.mrb[0].mxu0
  %3504 = vmatprep.mubr.bf16.mxu0 %v1422
  %3505 = vmatmul.mubr.bf16.gmra.mrb[0].mxu0 %v1421
  %v3506 = vpop.f32.mrb[0].mxu0
  %v3507 = vadd.f32 %v3410, %v3506
  %v3508 = vpop.f32.mrb[0].mxu0
  %v3509 = vpop.f32.mrb[0].mxu0
  %v3510 = vadd.f32 %v3413, %v3509
  %v3511 = vpop.f32.mrb[0].mxu0
  %3512 = vdwg.mxu0
  %3513 = vmatprep.subr.bf16.mxu0 0
  %3514 = vmatpush1.bf16.msra.mxu0 %v2546
  %3515 = vmatprep.subr.bf16.mxu0 0
  %3516 = vmatpush1.bf16.msra.mxu0 %v2547
  %3517 = vmatprep.subr.bf16.mxu0 0
  %3518 = vmatpush1.bf16.msra.mxu0 %v2548
  %3519 = vmatprep.subr.bf16.mxu0 0
  %3520 = vmatpush1.bf16.msra.mxu0 %v2549
  %3521 = vmatprep.subr.bf16.mxu0 0
  %3522 = vmatpush1.bf16.msra.mxu0 %v2550
  %3523 = vmatprep.subr.bf16.mxu0 0
  %3524 = vmatpush1.bf16.msra.mxu0 %v2551
  %3525 = vmatprep.subr.bf16.mxu0 0
  %3526 = vmatpush1.bf16.msra.mxu0 %v2552
  %3527 = vmatprep.subr.bf16.mxu0 0
  %3528 = vmatpush1.bf16.msra.mxu0 %v2553
  %3529 = vmatprep.subr.bf16.mxu0 0
  %3530 = vmatpush1.bf16.msra.mxu0 %v2554
  %3531 = vmatprep.subr.bf16.mxu0 0
  %3532 = vmatpush1.bf16.msra.mxu0 %v2555
  %3533 = vmatprep.subr.bf16.mxu0 0
  %3534 = vmatpush1.bf16.msra.mxu0 %v2556
  %3535 = vmatprep.subr.bf16.mxu0 0
  %3536 = vmatpush1.bf16.msra.mxu0 %v2557
  %3537 = vmatprep.subr.bf16.mxu0 0
  %3538 = vmatpush1.bf16.msra.mxu0 %v2558
  %3539 = vmatprep.subr.bf16.mxu0 0
  %3540 = vmatpush1.bf16.msra.mxu0 %v2559
  %3541 = vmatprep.subr.bf16.mxu0 0
  %3542 = vmatpush1.bf16.msra.mxu0 %v2560
  %3543 = vmatprep.subr.bf16.mxu0 0
  %3544 = vmatpush1.bf16.msra.mxu0 %v2561
  %3545 = vmatprep.mubr.bf16.mxu0 %v1249
  %3546 = vmatmul.mubr.bf16.gmra.mrb[0].mxu0 %v1248
  %v3547 = vpop.f32.mrb[0].mxu0
  %v3548 = vadd.f32 %v3451, %v3547
  %v3549 = vpop.f32.mrb[0].mxu0
  %v3550 = vpop.f32.mrb[0].mxu0
  %v3551 = vadd.f32 %v3454, %v3550
  %v3552 = vpop.f32.mrb[0].mxu0
  %3553 = vmatprep.mubr.bf16.mxu0 %v1274
  %3554 = vmatmul.mubr.bf16.gmra.mrb[0].mxu0 %v1273
  %v3555 = vpop.f32.mrb[0].mxu0
  %v3556 = vadd.f32 %v3459, %v3555
  %v3557 = vpop.f32.mrb[0].mxu0
  %v3558 = vpop.f32.mrb[0].mxu0
  %v3559 = vadd.f32 %v3462, %v3558
  %v3560 = vpop.f32.mrb[0].mxu0
  %3561 = vmatprep.mubr.bf16.mxu0 %v1299
  %3562 = vmatmul.mubr.bf16.gmra.mrb[0].mxu0 %v1298
  %v3563 = vpop.f32.mrb[0].mxu0
  %v3564 = vadd.f32 %v3467, %v3563
  %v3565 = vpop.f32.mrb[0].mxu0
  %v3566 = vpop.f32.mrb[0].mxu0
  %v3567 = vadd.f32 %v3470, %v3566
  %v3568 = vpop.f32.mrb[0].mxu0
  %3569 = vmatprep.mubr.bf16.mxu0 %v1324
  %3570 = vmatmul.mubr.bf16.gmra.mrb[0].mxu0 %v1323
  %v3571 = vpop.f32.mrb[0].mxu0
  %v3572 = vadd.f32 %v3475, %v3571
  %v3573 = vpop.f32.mrb[0].mxu0
  %v3574 = vpop.f32.mrb[0].mxu0
  %v3575 = vadd.f32 %v3478, %v3574
  %v3576 = vpop.f32.mrb[0].mxu0
  %3577 = vmatprep.mubr.bf16.mxu0 %v1349
  %3578 = vmatmul.mubr.bf16.gmra.mrb[0].mxu0 %v1348
  %v3579 = vpop.f32.mrb[0].mxu0
  %v3580 = vadd.f32 %v3483, %v3579
  %v3581 = vpop.f32.mrb[0].mxu0
  %v3582 = vpop.f32.mrb[0].mxu0
  %v3583 = vadd.f32 %v3486, %v3582
  %v3584 = vpop.f32.mrb[0].mxu0
  %3585 = vmatprep.mubr.bf16.mxu0 %v1374
  %3586 = vmatmul.mubr.bf16.gmra.mrb[0].mxu0 %v1373
  %v3587 = vpop.f32.mrb[0].mxu0
  %v3588 = vadd.f32 %v3491, %v3587
  %v3589 = vpop.f32.mrb[0].mxu0
  %v3590 = vpop.f32.mrb[0].mxu0
  %v3591 = vadd.f32 %v3494, %v3590
  %v3592 = vpop.f32.mrb[0].mxu0
  %3593 = vmatprep.mubr.bf16.mxu0 %v1399
  %3594 = vmatmul.mubr.bf16.gmra.mrb[0].mxu0 %v1398
  %v3595 = vpop.f32.mrb[0].mxu0
  %v3596 = vadd.f32 %v3499, %v3595
  %v3597 = vpop.f32.mrb[0].mxu0
  %v3598 = vpop.f32.mrb[0].mxu0
  %v3599 = vadd.f32 %v3502, %v3598
  %v3600 = vpop.f32.mrb[0].mxu0
  %3601 = vmatprep.mubr.bf16.mxu0 %v1424
  %3602 = vmatmul.mubr.bf16.gmra.mrb[0].mxu0 %v1423
  %v3603 = vpop.f32.mrb[0].mxu0
  %v3604 = vadd.f32 %v3507, %v3603
  %v3605 = vpop.f32.mrb[0].mxu0
  %v3606 = vpop.f32.mrb[0].mxu0
  %v3607 = vadd.f32 %v3510, %v3606
  %v3608 = vpop.f32.mrb[0].mxu0
  %3609 = vdwg.mxu0
  %3610 = vmatprep.subr.bf16.mxu0 0
  %3611 = vmatpush1.bf16.msra.mxu0 %v2562
  %3612 = vmatprep.subr.bf16.mxu0 0
  %3613 = vmatpush1.bf16.msra.mxu0 %v2563
  %3614 = vmatprep.subr.bf16.mxu0 0
  %3615 = vmatpush1.bf16.msra.mxu0 %v2564
  %3616 = vmatprep.subr.bf16.mxu0 0
  %3617 = vmatpush1.bf16.msra.mxu0 %v2565
  %3618 = vmatprep.subr.bf16.mxu0 0
  %3619 = vmatpush1.bf16.msra.mxu0 %v2566
  %3620 = vmatprep.subr.bf16.mxu0 0
  %3621 = vmatpush1.bf16.msra.mxu0 %v2567
  %3622 = vmatprep.subr.bf16.mxu0 0
  %3623 = vmatpush1.bf16.msra.mxu0 %v2568
  %3624 = vmatprep.subr.bf16.mxu0 0
  %3625 = vmatpush1.bf16.msra.mxu0 %v2569
  %3626 = vmatprep.subr.bf16.mxu0 0
  %3627 = vmatpush1.bf16.msra.mxu0 %v2570
  %3628 = vmatprep.subr.bf16.mxu0 0
  %3629 = vmatpush1.bf16.msra.mxu0 %v2571
  %3630 = vmatprep.subr.bf16.mxu0 0
  %3631 = vmatpush1.bf16.msra.mxu0 %v2572
  %3632 = vmatprep.subr.bf16.mxu0 0
  %3633 = vmatpush1.bf16.msra.mxu0 %v2573
  %3634 = vmatprep.subr.bf16.mxu0 0
  %3635 = vmatpush1.bf16.msra.mxu0 %v2574
  %3636 = vmatprep.subr.bf16.mxu0 0
  %3637 = vmatpush1.bf16.msra.mxu0 %v2575
  %3638 = vmatprep.subr.bf16.mxu0 0
  %3639 = vmatpush1.bf16.msra.mxu0 %v2576
  %3640 = vmatprep.subr.bf16.mxu0 0
  %3641 = vmatpush1.bf16.msra.mxu0 %v2577
  %3642 = vmatprep.mubr.bf16.mxu0 %v1251
  %3643 = vmatmul.mubr.bf16.gmra.mrb[0].mxu0 %v1250
  %v3644 = vpop.f32.mrb[0].mxu0
  %v3645 = vadd.f32 %v3548, %v3644
  %v3646 = vpop.f32.mrb[0].mxu0
  %v3647 = vpop.f32.mrb[0].mxu0
  %v3648 = vadd.f32 %v3551, %v3647
  %v3649 = vpop.f32.mrb[0].mxu0
  %3650 = vmatprep.mubr.bf16.mxu0 %v1276
  %3651 = vmatmul.mubr.bf16.gmra.mrb[0].mxu0 %v1275
  %v3652 = vpop.f32.mrb[0].mxu0
  %v3653 = vadd.f32 %v3556, %v3652
  %v3654 = vpop.f32.mrb[0].mxu0
  %v3655 = vpop.f32.mrb[0].mxu0
  %v3656 = vadd.f32 %v3559, %v3655
  %v3657 = vpop.f32.mrb[0].mxu0
  %3658 = vmatprep.mubr.bf16.mxu0 %v1301
  %3659 = vmatmul.mubr.bf16.gmra.mrb[0].mxu0 %v1300
  %v3660 = vpop.f32.mrb[0].mxu0
  %v3661 = vadd.f32 %v3564, %v3660
  %v3662 = vpop.f32.mrb[0].mxu0
  %v3663 = vpop.f32.mrb[0].mxu0
  %v3664 = vadd.f32 %v3567, %v3663
  %v3665 = vpop.f32.mrb[0].mxu0
  %3666 = vmatprep.mubr.bf16.mxu0 %v1326
  %3667 = vmatmul.mubr.bf16.gmra.mrb[0].mxu0 %v1325
  %v3668 = vpop.f32.mrb[0].mxu0
  %v3669 = vadd.f32 %v3572, %v3668
  %v3670 = vpop.f32.mrb[0].mxu0
  %v3671 = vpop.f32.mrb[0].mxu0
  %v3672 = vadd.f32 %v3575, %v3671
  %v3673 = vpop.f32.mrb[0].mxu0
  %3674 = vmatprep.mubr.bf16.mxu0 %v1351
  %3675 = vmatmul.mubr.bf16.gmra.mrb[0].mxu0 %v1350
  %v3676 = vpop.f32.mrb[0].mxu0
  %v3677 = vadd.f32 %v3580, %v3676
  %v3678 = vpop.f32.mrb[0].mxu0
  %v3679 = vpop.f32.mrb[0].mxu0
  %v3680 = vadd.f32 %v3583, %v3679
  %v3681 = vpop.f32.mrb[0].mxu0
  %3682 = vmatprep.mubr.bf16.mxu0 %v1376
  %3683 = vmatmul.mubr.bf16.gmra.mrb[0].mxu0 %v1375
  %v3684 = vpop.f32.mrb[0].mxu0
  %v3685 = vadd.f32 %v3588, %v3684
  %v3686 = vpop.f32.mrb[0].mxu0
  %v3687 = vpop.f32.mrb[0].mxu0
  %v3688 = vadd.f32 %v3591, %v3687
  %v3689 = vpop.f32.mrb[0].mxu0
  %3690 = vmatprep.mubr.bf16.mxu0 %v1401
  %3691 = vmatmul.mubr.bf16.gmra.mrb[0].mxu0 %v1400
  %v3692 = vpop.f32.mrb[0].mxu0
  %v3693 = vadd.f32 %v3596, %v3692
  %v3694 = vpop.f32.mrb[0].mxu0
  %v3695 = vpop.f32.mrb[0].mxu0
  %v3696 = vadd.f32 %v3599, %v3695
  %v3697 = vpop.f32.mrb[0].mxu0
  %3698 = vmatprep.mubr.bf16.mxu0 %v1426
  %3699 = vmatmul.mubr.bf16.gmra.mrb[0].mxu0 %v1425
  %v3700 = vpop.f32.mrb[0].mxu0
  %v3701 = vadd.f32 %v3604, %v3700
  %v3702 = vpop.f32.mrb[0].mxu0
  %v3703 = vpop.f32.mrb[0].mxu0
  %v3704 = vadd.f32 %v3607, %v3703
  %v3705 = vpop.f32.mrb[0].mxu0
  %3706 = vdwg.mxu0
  %3707 = vmatprep.subr.bf16.mxu0 0
  %3708 = vmatpush1.bf16.msra.mxu0 %v2578
  %3709 = vmatprep.subr.bf16.mxu0 0
  %3710 = vmatpush1.bf16.msra.mxu0 %v2579
  %3711 = vmatprep.subr.bf16.mxu0 0
  %3712 = vmatpush1.bf16.msra.mxu0 %v2580
  %3713 = vmatprep.subr.bf16.mxu0 0
  %3714 = vmatpush1.bf16.msra.mxu0 %v2581
  %3715 = vmatprep.subr.bf16.mxu0 0
  %3716 = vmatpush1.bf16.msra.mxu0 %v2582
  %3717 = vmatprep.subr.bf16.mxu0 0
  %3718 = vmatpush1.bf16.msra.mxu0 %v2583
  %3719 = vmatprep.subr.bf16.mxu0 0
  %3720 = vmatpush1.bf16.msra.mxu0 %v2584
  %3721 = vmatprep.subr.bf16.mxu0 0
  %3722 = vmatpush1.bf16.msra.mxu0 %v2585
  %3723 = vmatprep.subr.bf16.mxu0 0
  %3724 = vmatpush1.bf16.msra.mxu0 %v2586
  %3725 = vmatprep.subr.bf16.mxu0 0
  %3726 = vmatpush1.bf16.msra.mxu0 %v2587
  %3727 = vmatprep.subr.bf16.mxu0 0
  %3728 = vmatpush1.bf16.msra.mxu0 %v2588
  %3729 = vmatprep.subr.bf16.mxu0 0
  %3730 = vmatpush1.bf16.msra.mxu0 %v2589
  %3731 = vmatprep.subr.bf16.mxu0 0
  %3732 = vmatpush1.bf16.msra.mxu0 %v2590
  %3733 = vmatprep.subr.bf16.mxu0 0
  %3734 = vmatpush1.bf16.msra.mxu0 %v2591
  %3735 = vmatprep.subr.bf16.mxu0 0
  %3736 = vmatpush1.bf16.msra.mxu0 %v2592
  %3737 = vmatprep.subr.bf16.mxu0 0
  %3738 = vmatpush1.bf16.msra.mxu0 %v2593
  %3739 = vmatprep.mubr.bf16.mxu0 %v1253
  %3740 = vmatmul.mubr.bf16.gmra.mrb[0].mxu0 %v1252
  %v3741 = vpop.f32.mrb[0].mxu0
  %v3742 = vadd.f32 %v3645, %v3741
  %v3743 = vpop.f32.mrb[0].mxu0
  %v3744 = vpop.f32.mrb[0].mxu0
  %v3745 = vadd.f32 %v3648, %v3744
  %v3746 = vpop.f32.mrb[0].mxu0
  %3747 = vmatprep.mubr.bf16.mxu0 %v1278
  %3748 = vmatmul.mubr.bf16.gmra.mrb[0].mxu0 %v1277
  %v3749 = vpop.f32.mrb[0].mxu0
  %v3750 = vadd.f32 %v3653, %v3749
  %v3751 = vpop.f32.mrb[0].mxu0
  %v3752 = vpop.f32.mrb[0].mxu0
  %v3753 = vadd.f32 %v3656, %v3752
  %v3754 = vpop.f32.mrb[0].mxu0
  %3755 = vmatprep.mubr.bf16.mxu0 %v1303
  %3756 = vmatmul.mubr.bf16.gmra.mrb[0].mxu0 %v1302
  %v3757 = vpop.f32.mrb[0].mxu0
  %v3758 = vadd.f32 %v3661, %v3757
  %v3759 = vpop.f32.mrb[0].mxu0
  %v3760 = vpop.f32.mrb[0].mxu0
  %v3761 = vadd.f32 %v3664, %v3760
  %v3762 = vpop.f32.mrb[0].mxu0
  %3763 = vmatprep.mubr.bf16.mxu0 %v1328
  %3764 = vmatmul.mubr.bf16.gmra.mrb[0].mxu0 %v1327
  %v3765 = vpop.f32.mrb[0].mxu0
  %v3766 = vadd.f32 %v3669, %v3765
  %v3767 = vpop.f32.mrb[0].mxu0
  %v3768 = vpop.f32.mrb[0].mxu0
  %v3769 = vadd.f32 %v3672, %v3768
  %v3770 = vpop.f32.mrb[0].mxu0
  %3771 = vmatprep.mubr.bf16.mxu0 %v1353
  %3772 = vmatmul.mubr.bf16.gmra.mrb[0].mxu0 %v1352
  %v3773 = vpop.f32.mrb[0].mxu0
  %v3774 = vadd.f32 %v3677, %v3773
  %v3775 = vpop.f32.mrb[0].mxu0
  %v3776 = vpop.f32.mrb[0].mxu0
  %v3777 = vadd.f32 %v3680, %v3776
  %v3778 = vpop.f32.mrb[0].mxu0
  %3779 = vmatprep.mubr.bf16.mxu0 %v1378
  %3780 = vmatmul.mubr.bf16.gmra.mrb[0].mxu0 %v1377
  %v3781 = vpop.f32.mrb[0].mxu0
  %v3782 = vadd.f32 %v3685, %v3781
  %v3783 = vpop.f32.mrb[0].mxu0
  %v3784 = vpop.f32.mrb[0].mxu0
  %v3785 = vadd.f32 %v3688, %v3784
  %v3786 = vpop.f32.mrb[0].mxu0
  %3787 = vmatprep.mubr.bf16.mxu0 %v1403
  %3788 = vmatmul.mubr.bf16.gmra.mrb[0].mxu0 %v1402
  %v3789 = vpop.f32.mrb[0].mxu0
  %v3790 = vadd.f32 %v3693, %v3789
  %v3791 = vpop.f32.mrb[0].mxu0
  %v3792 = vpop.f32.mrb[0].mxu0
  %v3793 = vadd.f32 %v3696, %v3792
  %v3794 = vpop.f32.mrb[0].mxu0
  %3795 = vmatprep.mubr.bf16.mxu0 %v1428
  %3796 = vmatmul.mubr.bf16.gmra.mrb[0].mxu0 %v1427
  %v3797 = vpop.f32.mrb[0].mxu0
  %v3798 = vadd.f32 %v3701, %v3797
  %v3799 = vpop.f32.mrb[0].mxu0
  %v3800 = vpop.f32.mrb[0].mxu0
  %v3801 = vadd.f32 %v3704, %v3800
  %v3802 = vpop.f32.mrb[0].mxu0
  %3803 = vdwg.mxu0
  %3804 = vmatprep.subr.bf16.mxu0 0
  %3805 = vmatpush1.bf16.msra.mxu0 %v2594
  %3806 = vmatprep.subr.bf16.mxu0 0
  %3807 = vmatpush1.bf16.msra.mxu0 %v2595
  %3808 = vmatprep.subr.bf16.mxu0 0
  %3809 = vmatpush1.bf16.msra.mxu0 %v2596
  %3810 = vmatprep.subr.bf16.mxu0 0
  %3811 = vmatpush1.bf16.msra.mxu0 %v2597
  %3812 = vmatprep.subr.bf16.mxu0 0
  %3813 = vmatpush1.bf16.msra.mxu0 %v2598
  %3814 = vmatprep.subr.bf16.mxu0 0
  %3815 = vmatpush1.bf16.msra.mxu0 %v2599
  %3816 = vmatprep.subr.bf16.mxu0 0
  %3817 = vmatpush1.bf16.msra.mxu0 %v2600
  %3818 = vmatprep.subr.bf16.mxu0 0
  %3819 = vmatpush1.bf16.msra.mxu0 %v2601
  %3820 = vmatprep.subr.bf16.mxu0 0
  %3821 = vmatpush1.bf16.msra.mxu0 %v2602
  %3822 = vmatprep.subr.bf16.mxu0 0
  %3823 = vmatpush1.bf16.msra.mxu0 %v2603
  %3824 = vmatprep.subr.bf16.mxu0 0
  %3825 = vmatpush1.bf16.msra.mxu0 %v2604
  %3826 = vmatprep.subr.bf16.mxu0 0
  %3827 = vmatpush1.bf16.msra.mxu0 %v2605
  %3828 = vmatprep.subr.bf16.mxu0 0
  %3829 = vmatpush1.bf16.msra.mxu0 %v2606
  %3830 = vmatprep.subr.bf16.mxu0 0
  %3831 = vmatpush1.bf16.msra.mxu0 %v2607
  %3832 = vmatprep.subr.bf16.mxu0 0
  %3833 = vmatpush1.bf16.msra.mxu0 %v2608
  %3834 = vmatprep.subr.bf16.mxu0 0
  %3835 = vmatpush1.bf16.msra.mxu0 %v2609
  %3836 = vmatprep.mubr.bf16.mxu0 %v1255
  %3837 = vmatmul.mubr.bf16.gmra.mrb[0].mxu0 %v1254
  %v3838 = vpop.f32.mrb[0].mxu0
  %v3839 = vadd.f32 %v3742, %v3838
  %v3840 = vpop.f32.mrb[0].mxu0
  %v3841 = vpop.f32.mrb[0].mxu0
  %v3842 = vadd.f32 %v3745, %v3841
  %v3843 = vpop.f32.mrb[0].mxu0
  %3844 = vmatprep.mubr.bf16.mxu0 %v1280
  %3845 = vmatmul.mubr.bf16.gmra.mrb[0].mxu0 %v1279
  %v3846 = vpop.f32.mrb[0].mxu0
  %v3847 = vadd.f32 %v3750, %v3846
  %v3848 = vpop.f32.mrb[0].mxu0
  %v3849 = vpop.f32.mrb[0].mxu0
  %v3850 = vadd.f32 %v3753, %v3849
  %v3851 = vpop.f32.mrb[0].mxu0
  %3852 = vmatprep.mubr.bf16.mxu0 %v1305
  %3853 = vmatmul.mubr.bf16.gmra.mrb[0].mxu0 %v1304
  %v3854 = vpop.f32.mrb[0].mxu0
  %v3855 = vadd.f32 %v3758, %v3854
  %v3856 = vpop.f32.mrb[0].mxu0
  %v3857 = vpop.f32.mrb[0].mxu0
  %v3858 = vadd.f32 %v3761, %v3857
  %v3859 = vpop.f32.mrb[0].mxu0
  %3860 = vmatprep.mubr.bf16.mxu0 %v1330
  %3861 = vmatmul.mubr.bf16.gmra.mrb[0].mxu0 %v1329
  %v3862 = vpop.f32.mrb[0].mxu0
  %v3863 = vadd.f32 %v3766, %v3862
  %v3864 = vpop.f32.mrb[0].mxu0
  %v3865 = vpop.f32.mrb[0].mxu0
  %v3866 = vadd.f32 %v3769, %v3865
  %v3867 = vpop.f32.mrb[0].mxu0
  %3868 = vmatprep.mubr.bf16.mxu0 %v1355
  %3869 = vmatmul.mubr.bf16.gmra.mrb[0].mxu0 %v1354
  %v3870 = vpop.f32.mrb[0].mxu0
  %v3871 = vadd.f32 %v3774, %v3870
  %v3872 = vpop.f32.mrb[0].mxu0
  %v3873 = vpop.f32.mrb[0].mxu0
  %v3874 = vadd.f32 %v3777, %v3873
  %v3875 = vpop.f32.mrb[0].mxu0
  %3876 = vmatprep.mubr.bf16.mxu0 %v1380
  %3877 = vmatmul.mubr.bf16.gmra.mrb[0].mxu0 %v1379
  %v3878 = vpop.f32.mrb[0].mxu0
  %v3879 = vadd.f32 %v3782, %v3878
  %v3880 = vpop.f32.mrb[0].mxu0
  %v3881 = vpop.f32.mrb[0].mxu0
  %v3882 = vadd.f32 %v3785, %v3881
  %v3883 = vpop.f32.mrb[0].mxu0
  %3884 = vmatprep.mubr.bf16.mxu0 %v1405
  %3885 = vmatmul.mubr.bf16.gmra.mrb[0].mxu0 %v1404
  %v3886 = vpop.f32.mrb[0].mxu0
  %v3887 = vadd.f32 %v3790, %v3886
  %v3888 = vpop.f32.mrb[0].mxu0
  %v3889 = vpop.f32.mrb[0].mxu0
  %v3890 = vadd.f32 %v3793, %v3889
  %v3891 = vpop.f32.mrb[0].mxu0
  %3892 = vmatprep.mubr.bf16.mxu0 %v1430
  %3893 = vmatmul.mubr.bf16.gmra.mrb[0].mxu0 %v1429
  %v3894 = vpop.f32.mrb[0].mxu0
  %v3895 = vadd.f32 %v3798, %v3894
  %v3896 = vpop.f32.mrb[0].mxu0
  %v3897 = vpop.f32.mrb[0].mxu0
  %v3898 = vadd.f32 %v3801, %v3897
  %v3899 = vpop.f32.mrb[0].mxu0
  %3900 = vdwg.mxu0
  %3901 = vmatprep.subr.bf16.mxu0 0
  %3902 = vmatpush1.bf16.msra.mxu0 %v2610
  %3903 = vmatprep.subr.bf16.mxu0 0
  %3904 = vmatpush1.bf16.msra.mxu0 %v2611
  %3905 = vmatprep.subr.bf16.mxu0 0
  %3906 = vmatpush1.bf16.msra.mxu0 %v2612
  %3907 = vmatprep.subr.bf16.mxu0 0
  %3908 = vmatpush1.bf16.msra.mxu0 %v2613
  %3909 = vmatprep.subr.bf16.mxu0 0
  %3910 = vmatpush1.bf16.msra.mxu0 %v2614
  %3911 = vmatprep.subr.bf16.mxu0 0
  %3912 = vmatpush1.bf16.msra.mxu0 %v2615
  %3913 = vmatprep.subr.bf16.mxu0 0
  %3914 = vmatpush1.bf16.msra.mxu0 %v2616
  %3915 = vmatprep.subr.bf16.mxu0 0
  %3916 = vmatpush1.bf16.msra.mxu0 %v2617
  %3917 = vmatprep.subr.bf16.mxu0 0
  %3918 = vmatpush1.bf16.msra.mxu0 %v2618
  %3919 = vmatprep.subr.bf16.mxu0 0
  %3920 = vmatpush1.bf16.msra.mxu0 %v2619
  %3921 = vmatprep.subr.bf16.mxu0 0
  %3922 = vmatpush1.bf16.msra.mxu0 %v2620
  %3923 = vmatprep.subr.bf16.mxu0 0
  %3924 = vmatpush1.bf16.msra.mxu0 %v2621
  %3925 = vmatprep.subr.bf16.mxu0 0
  %3926 = vmatpush1.bf16.msra.mxu0 %v2622
  %3927 = vmatprep.subr.bf16.mxu0 0
  %3928 = vmatpush1.bf16.msra.mxu0 %v2623
  %3929 = vmatprep.subr.bf16.mxu0 0
  %3930 = vmatpush1.bf16.msra.mxu0 %v2624
  %3931 = vmatprep.subr.bf16.mxu0 0
  %3932 = vmatpush1.bf16.msra.mxu0 %v2625
  %3933 = vmatprep.mubr.bf16.mxu0 %v1257
  %3934 = vmatmul.mubr.bf16.gmra.mrb[0].mxu0 %v1256
  %v3935 = vpop.f32.mrb[0].mxu0
  %v3936 = vadd.f32 %v3839, %v3935
  %v3937 = vpop.f32.mrb[0].mxu0
  %v3938 = vpop.f32.mrb[0].mxu0
  %v3939 = vadd.f32 %v3842, %v3938
  %v3940 = vpop.f32.mrb[0].mxu0
  %3941 = vmatprep.mubr.bf16.mxu0 %v1282
  %3942 = vmatmul.mubr.bf16.gmra.mrb[0].mxu0 %v1281
  %v3943 = vpop.f32.mrb[0].mxu0
  %v3944 = vadd.f32 %v3847, %v3943
  %v3945 = vpop.f32.mrb[0].mxu0
  %v3946 = vpop.f32.mrb[0].mxu0
  %v3947 = vadd.f32 %v3850, %v3946
  %v3948 = vpop.f32.mrb[0].mxu0
  %3949 = vmatprep.mubr.bf16.mxu0 %v1307
  %3950 = vmatmul.mubr.bf16.gmra.mrb[0].mxu0 %v1306
  %v3951 = vpop.f32.mrb[0].mxu0
  %v3952 = vadd.f32 %v3855, %v3951
  %v3953 = vpop.f32.mrb[0].mxu0
  %v3954 = vpop.f32.mrb[0].mxu0
  %v3955 = vadd.f32 %v3858, %v3954
  %v3956 = vpop.f32.mrb[0].mxu0
  %3957 = vmatprep.mubr.bf16.mxu0 %v1332
  %3958 = vmatmul.mubr.bf16.gmra.mrb[0].mxu0 %v1331
  %v3959 = vpop.f32.mrb[0].mxu0
  %v3960 = vadd.f32 %v3863, %v3959
  %v3961 = vpop.f32.mrb[0].mxu0
  %v3962 = vpop.f32.mrb[0].mxu0
  %v3963 = vadd.f32 %v3866, %v3962
  %v3964 = vpop.f32.mrb[0].mxu0
  %3965 = vmatprep.mubr.bf16.mxu0 %v1357
  %3966 = vmatmul.mubr.bf16.gmra.mrb[0].mxu0 %v1356
  %v3967 = vpop.f32.mrb[0].mxu0
  %v3968 = vadd.f32 %v3871, %v3967
  %v3969 = vpop.f32.mrb[0].mxu0
  %v3970 = vpop.f32.mrb[0].mxu0
  %v3971 = vadd.f32 %v3874, %v3970
  %v3972 = vpop.f32.mrb[0].mxu0
  %3973 = vmatprep.mubr.bf16.mxu0 %v1382
  %3974 = vmatmul.mubr.bf16.gmra.mrb[0].mxu0 %v1381
  %v3975 = vpop.f32.mrb[0].mxu0
  %v3976 = vadd.f32 %v3879, %v3975
  %v3977 = vpop.f32.mrb[0].mxu0
  %v3978 = vpop.f32.mrb[0].mxu0
  %v3979 = vadd.f32 %v3882, %v3978
  %v3980 = vpop.f32.mrb[0].mxu0
  %3981 = vmatprep.mubr.bf16.mxu0 %v1407
  %3982 = vmatmul.mubr.bf16.gmra.mrb[0].mxu0 %v1406
  %v3983 = vpop.f32.mrb[0].mxu0
  %v3984 = vadd.f32 %v3887, %v3983
  %v3985 = vpop.f32.mrb[0].mxu0
  %v3986 = vpop.f32.mrb[0].mxu0
  %v3987 = vadd.f32 %v3890, %v3986
  %v3988 = vpop.f32.mrb[0].mxu0
  %3989 = vmatprep.mubr.bf16.mxu0 %v1432
  %3990 = vmatmul.mubr.bf16.gmra.mrb[0].mxu0 %v1431
  %v3991 = vpop.f32.mrb[0].mxu0
  %v3992 = vadd.f32 %v3895, %v3991
  %v3993 = vpop.f32.mrb[0].mxu0
  %v3994 = vpop.f32.mrb[0].mxu0
  %v3995 = vadd.f32 %v3898, %v3994
  %v3996 = vpop.f32.mrb[0].mxu0
  %3997 = vdwg.mxu0
  %3998 = vmatprep.subr.bf16.mxu0 0
  %3999 = vmatpush1.bf16.msra.mxu0 %v2626
  %4000 = vmatprep.subr.bf16.mxu0 0
  %4001 = vmatpush1.bf16.msra.mxu0 %v2627
  %4002 = vmatprep.subr.bf16.mxu0 0
  %4003 = vmatpush1.bf16.msra.mxu0 %v2628
  %4004 = vmatprep.subr.bf16.mxu0 0
  %4005 = vmatpush1.bf16.msra.mxu0 %v2629
  %4006 = vmatprep.subr.bf16.mxu0 0
  %4007 = vmatpush1.bf16.msra.mxu0 %v2630
  %4008 = vmatprep.subr.bf16.mxu0 0
  %4009 = vmatpush1.bf16.msra.mxu0 %v2631
  %4010 = vmatprep.subr.bf16.mxu0 0
  %4011 = vmatpush1.bf16.msra.mxu0 %v2632
  %4012 = vmatprep.subr.bf16.mxu0 0
  %4013 = vmatpush1.bf16.msra.mxu0 %v2633
  %4014 = vmatprep.subr.bf16.mxu0 0
  %4015 = vmatpush1.bf16.msra.mxu0 0
  %4016 = vmatprep.subr.bf16.mxu0 0
  %4017 = vmatpush1.bf16.msra.mxu0 0
  %4018 = vmatprep.subr.bf16.mxu0 0
  %4019 = vmatpush1.bf16.msra.mxu0 0
  %4020 = vmatprep.subr.bf16.mxu0 0
  %4021 = vmatpush1.bf16.msra.mxu0 0
  %4022 = vmatprep.subr.bf16.mxu0 0
  %4023 = vmatpush1.bf16.msra.mxu0 0
  %4024 = vmatprep.subr.bf16.mxu0 0
  %4025 = vmatpush1.bf16.msra.mxu0 0
  %4026 = vmatprep.subr.bf16.mxu0 0
  %4027 = vmatpush1.bf16.msra.mxu0 0
  %4028 = vmatprep.subr.bf16.mxu0 0
  %4029 = vmatpush1.bf16.msra.mxu0 0
  %4030 = vmatprep.mubr.bf16.mxu0 0
  %4031 = vmatmul.mubr.bf16.gmra.mrb[0].mxu0 %v1258
  %v4032 = vpop.f32.mrb[0].mxu0
  %v4033 = vadd.f32 %v3936, %v4032
  %v4034 = vpop.f32.mrb[0].mxu0
  %v4035 = vpop.f32.mrb[0].mxu0
  %v4036 = vadd.f32 %v3939, %v4035
  %v4037 = vpop.f32.mrb[0].mxu0
  %4038 = vmatprep.mubr.bf16.mxu0 0
  %4039 = vmatmul.mubr.bf16.gmra.mrb[0].mxu0 %v1283
  %v4040 = vpop.f32.mrb[0].mxu0
  %v4041 = vadd.f32 %v3944, %v4040
  %v4042 = vpop.f32.mrb[0].mxu0
  %v4043 = vpop.f32.mrb[0].mxu0
  %v4044 = vadd.f32 %v3947, %v4043
  %v4045 = vpop.f32.mrb[0].mxu0
  %4046 = vmatprep.mubr.bf16.mxu0 0
  %4047 = vmatmul.mubr.bf16.gmra.mrb[0].mxu0 %v1308
  %v4048 = vpop.f32.mrb[0].mxu0
  %v4049 = vadd.f32 %v3952, %v4048
  %v4050 = vpop.f32.mrb[0].mxu0
  %v4051 = vpop.f32.mrb[0].mxu0
  %v4052 = vadd.f32 %v3955, %v4051
  %v4053 = vpop.f32.mrb[0].mxu0
  %4054 = vmatprep.mubr.bf16.mxu0 0
  %4055 = vmatmul.mubr.bf16.gmra.mrb[0].mxu0 %v1333
  %v4056 = vpop.f32.mrb[0].mxu0
  %v4057 = vadd.f32 %v3960, %v4056
  %v4058 = vpop.f32.mrb[0].mxu0
  %v4059 = vpop.f32.mrb[0].mxu0
  %v4060 = vadd.f32 %v3963, %v4059
  %v4061 = vpop.f32.mrb[0].mxu0
  %4062 = vmatprep.mubr.bf16.mxu0 0
  %4063 = vmatmul.mubr.bf16.gmra.mrb[0].mxu0 %v1358
  %v4064 = vpop.f32.mrb[0].mxu0
  %v4065 = vadd.f32 %v3968, %v4064
  %v4066 = vpop.f32.mrb[0].mxu0
  %v4067 = vpop.f32.mrb[0].mxu0
  %v4068 = vadd.f32 %v3971, %v4067
  %v4069 = vpop.f32.mrb[0].mxu0
  %4070 = vmatprep.mubr.bf16.mxu0 0
  %4071 = vmatmul.mubr.bf16.gmra.mrb[0].mxu0 %v1383
  %v4072 = vpop.f32.mrb[0].mxu0
  %v4073 = vadd.f32 %v3976, %v4072
  %v4074 = vpop.f32.mrb[0].mxu0
  %v4075 = vpop.f32.mrb[0].mxu0
  %v4076 = vadd.f32 %v3979, %v4075
  %v4077 = vpop.f32.mrb[0].mxu0
  %4078 = vmatprep.mubr.bf16.mxu0 0
  %4079 = vmatmul.mubr.bf16.gmra.mrb[0].mxu0 %v1408
  %v4080 = vpop.f32.mrb[0].mxu0
  %v4081 = vadd.f32 %v3984, %v4080
  %v4082 = vpop.f32.mrb[0].mxu0
  %v4083 = vpop.f32.mrb[0].mxu0
  %v4084 = vadd.f32 %v3987, %v4083
  %v4085 = vpop.f32.mrb[0].mxu0
  %4086 = vmatprep.mubr.bf16.mxu0 0
  %4087 = vmatmul.mubr.bf16.gmra.mrb[0].mxu0 %v1433
  %v4088 = vpop.f32.mrb[0].mxu0
  %v4089 = vadd.f32 %v3992, %v4088
  %v4090 = vpop.f32.mrb[0].mxu0
  %v4091 = vpop.f32.mrb[0].mxu0
  %v4092 = vadd.f32 %v3995, %v4091
  %v4093 = vpop.f32.mrb[0].mxu0
  %4094 = vdwg.mxu0
  %v4095 = vadd.f32 %v4033, %v4036
  %v4096 = vadd.f32 %v4095, %v4041
  %v4097 = vadd.f32 %v4096, %v4044
  %v4098 = vadd.f32 %v4097, %v4049
  %v4099 = vadd.f32 %v4098, %v4052
  %v4100 = vadd.f32 %v4099, %v4057
  %v4101 = vadd.f32 %v4100, %v4060
  %v4102 = vadd.f32 %v4101, %v4065
  %v4103 = vadd.f32 %v4102, %v4068
  %v4104 = vadd.f32 %v4103, %v4073
  %v4105 = vadd.f32 %v4104, %v4076
  %v4106 = vadd.f32 %v4105, %v4081
  %v4107 = vadd.f32 %v4106, %v4084
  %v4108 = vadd.f32 %v4107, %v4089
  %v4109 = vadd.f32 %v4108, %v4092
  %v4110 = vrot.slane %v4109, 4
  %v4111 = vadd.f32 %v4109, %v4110
  %v4112 = vrot.slane %v4111, 2
  %v4113 = vadd.f32 %v4111, %v4112
  %v4114 = vrot.slane %v4113, 1
  %v4115 = vadd.f32 %v4113, %v4114
  %v4116 = vrcp.pop 128.0
  %v4117 = vmul.f32 %v4115, %v4116
  %v4118 = vsub.f32 %v4033, %v4117
  %v4119 = vsub.f32 %v4036, %v4117
  %v4120 = vsub.f32 %v4041, %v4117
  %v4121 = vsub.f32 %v4044, %v4117
  %v4122 = vsub.f32 %v4049, %v4117
  %v4123 = vsub.f32 %v4052, %v4117
  %v4124 = vsub.f32 %v4057, %v4117
  %v4125 = vsub.f32 %v4060, %v4117
  %v4126 = vsub.f32 %v4065, %v4117
  %v4127 = vsub.f32 %v4068, %v4117
  %v4128 = vsub.f32 %v4073, %v4117
  %v4129 = vsub.f32 %v4076, %v4117
  %v4130 = vsub.f32 %v4081, %v4117
  %v4131 = vsub.f32 %v4084, %v4117
  %v4132 = vsub.f32 %v4089, %v4117
  %v4133 = vsub.f32 %v4092, %v4117
  %v4134 = vmul.f32 %v4118, %v4118
  %v4135 = vmul.f32 %v4119, %v4119
  %v4136 = vmul.f32 %v4120, %v4120
  %v4137 = vmul.f32 %v4121, %v4121
  %v4138 = vmul.f32 %v4122, %v4122
  %v4139 = vmul.f32 %v4123, %v4123
  %v4140 = vmul.f32 %v4124, %v4124
  %v4141 = vmul.f32 %v4125, %v4125
  %v4142 = vmul.f32 %v4126, %v4126
  %v4143 = vmul.f32 %v4127, %v4127
  %v4144 = vmul.f32 %v4128, %v4128
  %v4145 = vmul.f32 %v4129, %v4129
  %v4146 = vmul.f32 %v4130, %v4130
  %v4147 = vmul.f32 %v4131, %v4131
  %v4148 = vmul.f32 %v4132, %v4132
  %v4149 = vmul.f32 %v4133, %v4133
  %v4150 = vadd.f32 %v4134, %v4135
  %v4151 = vadd.f32 %v4150, %v4136
  %v4152 = vadd.f32 %v4151, %v4137
  %v4153 = vadd.f32 %v4152, %v4138
  %v4154 = vadd.f32 %v4153, %v4139
  %v4155 = vadd.f32 %v4154, %v4140
  %v4156 = vadd.f32 %v4155, %v4141
  %v4157 = vadd.f32 %v4156, %v4142
  %v4158 = vadd.f32 %v4157, %v4143
  %v4159 = vadd.f32 %v4158, %v4144
  %v4160 = vadd.f32 %v4159, %v4145
  %v4161 = vadd.f32 %v4160, %v4146
  %v4162 = vadd.f32 %v4161, %v4147
  %v4163 = vadd.f32 %v4162, %v4148
  %v4164 = vadd.f32 %v4163, %v4149
  %v4165 = vrot.slane %v4164, 4
  %v4166 = vadd.f32 %v4164, %v4165
  %v4167 = vrot.slane %v4166, 2
  %v4168 = vadd.f32 %v4166, %v4167
  %v4169 = vrot.slane %v4168, 1
  %v4170 = vadd.f32 %v4168, %v4169
  %v4171 = vmul.f32 %v4170, %v4116
  %v4172 = vadd.f32 %v4171, 1e-05
  %v4173 = vrsqrt.pop %v4172
  %v4174 = vmul.f32 %v4118, %v4173
  %v4175 = vmul.f32 %v4119, %v4173
  %v4176 = vmul.f32 %v4120, %v4173
  %v4177 = vmul.f32 %v4121, %v4173
  %v4178 = vmul.f32 %v4122, %v4173
  %v4179 = vmul.f32 %v4123, %v4173
  %v4180 = vmul.f32 %v4124, %v4173
  %v4181 = vmul.f32 %v4125, %v4173
  %v4182 = vmul.f32 %v4126, %v4173
  %v4183 = vmul.f32 %v4127, %v4173
  %v4184 = vmul.f32 %v4128, %v4173
  %v4185 = vmul.f32 %v4129, %v4173
  %v4186 = vmul.f32 %v4130, %v4173
  %v4187 = vmul.f32 %v4131, %v4173
  %v4188 = vmul.f32 %v4132, %v4173
  %v4189 = vmul.f32 %v4133, %v4173
  %v4190 = vld [vmem:[%s2] sm:$0x1]
  %v4192 = vlaneseq
  %v4193 = vshrl.u32 %v4192, 7
  %v4194 = vsub.s32 0, %v4193
  %v4195 = vrot.slane %v4190, %v4194
  %v4197 = vmul.f32 %v4174, %v4195
  %v4198 = vmul.f32 %v4175, %v4195
  %v4199 = vmul.f32 %v4176, %v4195
  %v4200 = vmul.f32 %v4177, %v4195
  %v4201 = vmul.f32 %v4178, %v4195
  %v4202 = vmul.f32 %v4179, %v4195
  %v4203 = vmul.f32 %v4180, %v4195
  %v4204 = vmul.f32 %v4181, %v4195
  %v4205 = vmul.f32 %v4182, %v4195
  %v4206 = vmul.f32 %v4183, %v4195
  %v4207 = vmul.f32 %v4184, %v4195
  %v4208 = vmul.f32 %v4185, %v4195
  %v4209 = vmul.f32 %v4186, %v4195
  %v4210 = vmul.f32 %v4187, %v4195
  %v4211 = vmul.f32 %v4188, %v4195
  %v4212 = vmul.f32 %v4189, %v4195
  %v4213 = vld [vmem:[%s3] sm:$0x1]
  %v4215 = vlaneseq
  %v4216 = vshrl.u32 %v4215, 7
  %v4217 = vsub.s32 0, %v4216
  %v4218 = vrot.slane %v4213, %v4217
  %v4220 = vadd.f32 %v4197, %v4218
  %v4221 = vadd.f32 %v4198, %v4218
  %v4222 = vadd.f32 %v4199, %v4218
  %v4223 = vadd.f32 %v4200, %v4218
  %v4224 = vadd.f32 %v4201, %v4218
  %v4225 = vadd.f32 %v4202, %v4218
  %v4226 = vadd.f32 %v4203, %v4218
  %v4227 = vadd.f32 %v4204, %v4218
  %v4228 = vadd.f32 %v4205, %v4218
  %v4229 = vadd.f32 %v4206, %v4218
  %v4230 = vadd.f32 %v4207, %v4218
  %v4231 = vadd.f32 %v4208, %v4218
  %v4232 = vadd.f32 %v4209, %v4218
  %v4233 = vadd.f32 %v4210, %v4218
  %v4234 = vadd.f32 %v4211, %v4218
  %v4235 = vadd.f32 %v4212, %v4218
  %v4236 = vmax.f32 %v4220, 0.0
  %v4237 = vmax.f32 %v4221, 0.0
  %v4238 = vmax.f32 %v4222, 0.0
  %v4239 = vmax.f32 %v4223, 0.0
  %v4240 = vmax.f32 %v4224, 0.0
  %v4241 = vmax.f32 %v4225, 0.0
  %v4242 = vmax.f32 %v4226, 0.0
  %v4243 = vmax.f32 %v4227, 0.0
  %v4244 = vmax.f32 %v4228, 0.0
  %v4245 = vmax.f32 %v4229, 0.0
  %v4246 = vmax.f32 %v4230, 0.0
  %v4247 = vmax.f32 %v4231, 0.0
  %v4248 = vmax.f32 %v4232, 0.0
  %v4249 = vmax.f32 %v4233, 0.0
  %v4250 = vmax.f32 %v4234, 0.0
  %v4251 = vmax.f32 %v4235, 0.0
  %v4252 = vpack.c.bf16 %v4237, %v4236
  %v4253 = vpack.c.bf16 %v4239, %v4238
  %v4254 = vpack.c.bf16 %v4241, %v4240
  %v4255 = vpack.c.bf16 %v4243, %v4242
  %v4256 = vpack.c.bf16 %v4245, %v4244
  %v4257 = vpack.c.bf16 %v4247, %v4246
  %v4258 = vpack.c.bf16 %v4249, %v4248
  %v4259 = vpack.c.bf16 %v4251, %v4250
  %v4268 = vunpack.c.l.b16 %v4252
  %v4269 = vunpack.c.h.b16 %v4252
  %v4270 = vunpack.c.l.b16 %v4253
  %v4271 = vunpack.c.h.b16 %v4253
  %v4272 = vunpack.c.l.b16 %v4254
  %v4273 = vunpack.c.h.b16 %v4254
  %v4274 = vunpack.c.l.b16 %v4255
  %v4275 = vunpack.c.h.b16 %v4255
  %v4276 = vunpack.c.l.b16 %v4256
  %v4277 = vunpack.c.h.b16 %v4256
  %v4278 = vunpack.c.l.b16 %v4257
  %v4279 = vunpack.c.h.b16 %v4257
  %v4280 = vunpack.c.l.b16 %v4258
  %v4281 = vunpack.c.h.b16 %v4258
  %v4282 = vunpack.c.l.b16 %v4259
  %v4283 = vunpack.c.h.b16 %v4259
  %v4284 = vpack.c.b16 %v4268, %v4268
  %v4285 = vpack.c.b16 %v4269, %v4269
  %v4286 = vpack.c.b16 %v4270, %v4270
  %v4287 = vpack.c.b16 %v4271, %v4271
  %v4288 = vpack.c.b16 %v4272, %v4272
  %v4289 = vpack.c.b16 %v4273, %v4273
  %v4290 = vpack.c.b16 %v4274, %v4274
  %v4291 = vpack.c.b16 %v4275, %v4275
  %v4292 = vpack.c.b16 %v4276, %v4276
  %v4293 = vpack.c.b16 %v4277, %v4277
  %v4294 = vpack.c.b16 %v4278, %v4278
  %v4295 = vpack.c.b16 %v4279, %v4279
  %v4296 = vpack.c.b16 %v4280, %v4280
  %v4297 = vpack.c.b16 %v4281, %v4281
  %v4298 = vpack.c.b16 %v4282, %v4282
  %v4299 = vpack.c.b16 %v4283, %v4283
  %4316 = vst [vmem:[%s4] sm:$0xf] %v4284
  %4317 = vst [vmem:[%s4 + $0x4] sm:$0xf] %v4285
  %4318 = vst [vmem:[%s4 + $0x8] sm:$0xf] %v4286
  %4319 = vst [vmem:[%s4 + $0xc] sm:$0xf] %v4287
  %4320 = vst [vmem:[%s4 + $0x10] sm:$0xf] %v4288
  %4321 = vst [vmem:[%s4 + $0x14] sm:$0xf] %v4289
  %4322 = vst [vmem:[%s4 + $0x18] sm:$0xf] %v4290
  %4323 = vst [vmem:[%s4 + $0x1c] sm:$0xf] %v4291
  %4324 = vst [vmem:[%s4 + $0x20] sm:$0xf] %v4292
  %4325 = vst [vmem:[%s4 + $0x24] sm:$0xf] %v4293
  %4326 = vst [vmem:[%s4 + $0x28] sm:$0xf] %v4294
  %4327 = vst [vmem:[%s4 + $0x2c] sm:$0xf] %v4295
  %4328 = vst [vmem:[%s4 + $0x30] sm:$0xf] %v4296
  %4329 = vst [vmem:[%s4 + $0x34] sm:$0xf] %v4297
  %4330 = vst [vmem:[%s4 + $0x38] sm:$0xf] %v4298
  %4331 = vst [vmem:[%s4 + $0x3c] sm:$0xf] %v4299
  // Predicated region
  $region18: #{encoder_forward.5} parent=0 // pred_check
    _
  $region19: #{encoder_forward.5} parent=0 // pred_check_branch
    %4333 = sbr.rel (0) target = $region21
  $region20: #{encoder_forward.5} parent=0 // pred_region
    _
  $region21: #{encoder_forward.5} parent=0 // pred_fallthru
    _
  // Predicated region
  $region22: #{encoder_forward.5} parent=0 // pred_check
    _
  $region23: #{encoder_forward.5} parent=0 // pred_check_branch
    %4335 = sbr.rel (0) target = $region25
  $region24: #{encoder_forward.5} parent=0 // pred_region
    _
  $region25: #{encoder_forward.5} parent=0 // pred_fallthru
    _

// kernel: encoder_forward.6
$region0: #{encoder_forward.6}
  #allocation0 [shape = 'u32[]', space=smem, size = 0x4, offset = 0x4, fixed_abs, tag = 'smem constant byte address 0x4 - core index']
  #allocation1 [shape = 'u32[144,128]{1,0:T(1,128)}', space=vmem, size = 0x12000, scoped, tag = 'internal scratch']
  %s0 = inlined_call_operand.vmem [shape: bf16[32,3200], index: 0, kind: input, shape index: {}]
  %s1 = inlined_call_operand.vmem [shape: bf16[3200,128], index: 1, kind: input, shape index: {}]
  %s2 = inlined_call_operand.vmem [shape: f32[1,128], index: 2, kind: input, shape index: {}]
  %s3 = inlined_call_operand.vmem [shape: f32[1,128], index: 3, kind: input, shape index: {}]
  %s4 = inlined_call_operand.vmem [shape: bf16[32,128], index: 4, kind: output, shape index: {}]
  %s5 = sld [smem:[#allocation0]]
  $region26: #{encoder_forward.6} parent=0
    _
  %s7 = ssub.s32 1, %s5
  %s8 = scalar_select 0, %s7, %s5
  // Predicated region
  $region2: #{encoder_forward.6} parent=0 // pred_check
    _
  $region3: #{encoder_forward.6} parent=0 // pred_check_branch
    %10 = sbr.rel (0) target = $region5
  $region4: #{encoder_forward.6} parent=0 // pred_region
    _
  $region5: #{encoder_forward.6} parent=0 // pred_fallthru
    _
  // Predicated region
  $region6: #{encoder_forward.6} parent=0 // pred_check
    _
  $region7: #{encoder_forward.6} parent=0 // pred_check_branch
    %12 = sbr.rel (0) target = $region9
  $region8: #{encoder_forward.6} parent=0 // pred_region
    _
  $region9: #{encoder_forward.6} parent=0 // pred_fallthru
    _
  // Predicated region
  $region10: #{encoder_forward.6} parent=0 // pred_check
    _
  $region11: #{encoder_forward.6} parent=0 // pred_check_branch
    %14 = sbr.rel (0) target = $region13
  $region12: #{encoder_forward.6} parent=0 // pred_region
    _
  $region13: #{encoder_forward.6} parent=0 // pred_fallthru
    _
  // Predicated region
  $region14: #{encoder_forward.6} parent=0 // pred_check
    _
  $region15: #{encoder_forward.6} parent=0 // pred_check_branch
    %16 = sbr.rel (0) target = $region17
  $region16: #{encoder_forward.6} parent=0 // pred_region
    _
  $region17: #{encoder_forward.6} parent=0 // pred_fallthru
    _
  %v18 = vld [vmem:[%s0] sm:$0xff]
  %v19 = vld [vmem:[%s0 + $0x8] sm:$0xff]
  %v20 = vld [vmem:[%s0 + $0x10] sm:$0xff]
  %v21 = vld [vmem:[%s0 + $0x18] sm:$0xff]
  %v22 = vld [vmem:[%s0 + $0x20] sm:$0xff]
  %v23 = vld [vmem:[%s0 + $0x28] sm:$0xff]
  %v24 = vld [vmem:[%s0 + $0x30] sm:$0xff]
  %v25 = vld [vmem:[%s0 + $0x38] sm:$0xff]
  %v26 = vld [vmem:[%s0 + $0x40] sm:$0xff]
  %v27 = vld [vmem:[%s0 + $0x48] sm:$0xff]
  %v28 = vld [vmem:[%s0 + $0x50] sm:$0xff]
  %v29 = vld [vmem:[%s0 + $0x58] sm:$0xff]
  %v30 = vld [vmem:[%s0 + $0x60] sm:$0xf]
  %v31 = vld [vmem:[%s0 + $0x64] sm:$0xff]
  %v32 = vld [vmem:[%s0 + $0x6c] sm:$0xff]
  %v33 = vld [vmem:[%s0 + $0x74] sm:$0xff]
  %v34 = vld [vmem:[%s0 + $0x7c] sm:$0xff]
  %v35 = vld [vmem:[%s0 + $0x84] sm:$0xff]
  %v36 = vld [vmem:[%s0 + $0x8c] sm:$0xff]
  %v37 = vld [vmem:[%s0 + $0x94] sm:$0xff]
  %v38 = vld [vmem:[%s0 + $0x9c] sm:$0xff]
  %v39 = vld [vmem:[%s0 + $0xa4] sm:$0xff]
  %v40 = vld [vmem:[%s0 + $0xac] sm:$0xff]
  %v41 = vld [vmem:[%s0 + $0xb4] sm:$0xff]
  %v42 = vld [vmem:[%s0 + $0xbc] sm:$0xff]
  %v43 = vld [vmem:[%s0 + $0xc4] sm:$0xf]
  %v44 = vld [vmem:[%s0 + $0xc8] sm:$0xff]
  %v45 = vld [vmem:[%s0 + $0xd0] sm:$0xff]
  %v46 = vld [vmem:[%s0 + $0xd8] sm:$0xff]
  %v47 = vld [vmem:[%s0 + $0xe0] sm:$0xff]
  %v48 = vld [vmem:[%s0 + $0xe8] sm:$0xff]
  %v49 = vld [vmem:[%s0 + $0xf0] sm:$0xff]
  %v50 = vld [vmem:[%s0 + $0xf8] sm:$0xff]
  %v51 = vld [vmem:[%s0 + $0x100] sm:$0xff]
  %v52 = vld [vmem:[%s0 + $0x108] sm:$0xff]
  %v53 = vld [vmem:[%s0 + $0x110] sm:$0xff]
  %v54 = vld [vmem:[%s0 + $0x118] sm:$0xff]
  %v55 = vld [vmem:[%s0 + $0x120] sm:$0xff]
  %v56 = vld [vmem:[%s0 + $0x128] sm:$0xf]
  %v57 = vld [vmem:[%s0 + $0x12c] sm:$0xff]
  %v58 = vld [vmem:[%s0 + $0x134] sm:$0xff]
  %v59 = vld [vmem:[%s0 + $0x13c] sm:$0xff]
  %v60 = vld [vmem:[%s0 + $0x144] sm:$0xff]
  %v61 = vld [vmem:[%s0 + $0x14c] sm:$0xff]
  %v62 = vld [vmem:[%s0 + $0x154] sm:$0xff]
  %v63 = vld [vmem:[%s0 + $0x15c] sm:$0xff]
  %v64 = vld [vmem:[%s0 + $0x164] sm:$0xff]
  %v65 = vld [vmem:[%s0 + $0x16c] sm:$0xff]
  %v66 = vld [vmem:[%s0 + $0x174] sm:$0xff]
  %v67 = vld [vmem:[%s0 + $0x17c] sm:$0xff]
  %v68 = vld [vmem:[%s0 + $0x184] sm:$0xff]
  %v69 = vld [vmem:[%s0 + $0x18c] sm:$0xf]
  %v70 = vld [vmem:[%s1] sm:$0xf]
  %v71 = vld [vmem:[%s1 + $0x4] sm:$0xf]
  %v72 = vld [vmem:[%s1 + $0x8] sm:$0xf]
  %v73 = vld [vmem:[%s1 + $0xc] sm:$0xf]
  %v74 = vld [vmem:[%s1 + $0x10] sm:$0xf]
  %v75 = vld [vmem:[%s1 + $0x14] sm:$0xf]
  %v76 = vld [vmem:[%s1 + $0x18] sm:$0xf]
  %v77 = vld [vmem:[%s1 + $0x1c] sm:$0xf]
  %v78 = vld [vmem:[%s1 + $0x20] sm:$0xf]
  %v79 = vld [vmem:[%s1 + $0x24] sm:$0xf]
  %v80 = vld [vmem:[%s1 + $0x28] sm:$0xf]
  %v81 = vld [vmem:[%s1 + $0x2c] sm:$0xf]
  %v82 = vld [vmem:[%s1 + $0x30] sm:$0xf]
  %v83 = vld [vmem:[%s1 + $0x34] sm:$0xf]
  %v84 = vld [vmem:[%s1 + $0x38] sm:$0xf]
  %v85 = vld [vmem:[%s1 + $0x3c] sm:$0xf]
  %v86 = vld [vmem:[%s1 + $0x40] sm:$0xf]
  %v87 = vld [vmem:[%s1 + $0x44] sm:$0xf]
  %v88 = vld [vmem:[%s1 + $0x48] sm:$0xf]
  %v89 = vld [vmem:[%s1 + $0x4c] sm:$0xf]
  %v90 = vld [vmem:[%s1 + $0x50] sm:$0xf]
  %v91 = vld [vmem:[%s1 + $0x54] sm:$0xf]
  %v92 = vld [vmem:[%s1 + $0x58] sm:$0xf]
  %v93 = vld [vmem:[%s1 + $0x5c] sm:$0xf]
  %v94 = vld [vmem:[%s1 + $0x60] sm:$0xf]
  %v95 = vld [vmem:[%s1 + $0x64] sm:$0xf]
  %v96 = vld [vmem:[%s1 + $0x68] sm:$0xf]
  %v97 = vld [vmem:[%s1 + $0x6c] sm:$0xf]
  %v98 = vld [vmem:[%s1 + $0x70] sm:$0xf]
  %v99 = vld [vmem:[%s1 + $0x74] sm:$0xf]
  %v100 = vld [vmem:[%s1 + $0x78] sm:$0xf]
  %v101 = vld [vmem:[%s1 + $0x7c] sm:$0xf]
  %v102 = vld [vmem:[%s1 + $0x80] sm:$0xf]
  %v103 = vld [vmem:[%s1 + $0x84] sm:$0xf]
  %v104 = vld [vmem:[%s1 + $0x88] sm:$0xf]
  %v105 = vld [vmem:[%s1 + $0x8c] sm:$0xf]
  %v106 = vld [vmem:[%s1 + $0x90] sm:$0xf]
  %v107 = vld [vmem:[%s1 + $0x94] sm:$0xf]
  %v108 = vld [vmem:[%s1 + $0x98] sm:$0xf]
  %v109 = vld [vmem:[%s1 + $0x9c] sm:$0xf]
  %v110 = vld [vmem:[%s1 + $0xa0] sm:$0xf]
  %v111 = vld [vmem:[%s1 + $0xa4] sm:$0xf]
  %v112 = vld [vmem:[%s1 + $0xa8] sm:$0xf]
  %v113 = vld [vmem:[%s1 + $0xac] sm:$0xf]
  %v114 = vld [vmem:[%s1 + $0xb0] sm:$0xf]
  %v115 = vld [vmem:[%s1 + $0xb4] sm:$0xf]
  %v116 = vld [vmem:[%s1 + $0xb8] sm:$0xf]
  %v117 = vld [vmem:[%s1 + $0xbc] sm:$0xf]
  %v118 = vld [vmem:[%s1 + $0xc0] sm:$0xf]
  %v119 = vld [vmem:[%s1 + $0xc4] sm:$0xf]
  %v120 = vld [vmem:[%s1 + $0xc8] sm:$0xf]
  %v121 = vld [vmem:[%s1 + $0xcc] sm:$0xf]
  %v122 = vld [vmem:[%s1 + $0xd0] sm:$0xf]
  %v123 = vld [vmem:[%s1 + $0xd4] sm:$0xf]
  %v124 = vld [vmem:[%s1 + $0xd8] sm:$0xf]
  %v125 = vld [vmem:[%s1 + $0xdc] sm:$0xf]
  %v126 = vld [vmem:[%s1 + $0xe0] sm:$0xf]
  %v127 = vld [vmem:[%s1 + $0xe4] sm:$0xf]
  %v128 = vld [vmem:[%s1 + $0xe8] sm:$0xf]
  %v129 = vld [vmem:[%s1 + $0xec] sm:$0xf]
  %v130 = vld [vmem:[%s1 + $0xf0] sm:$0xf]
  %v131 = vld [vmem:[%s1 + $0xf4] sm:$0xf]
  %v132 = vld [vmem:[%s1 + $0xf8] sm:$0xf]
  %v133 = vld [vmem:[%s1 + $0xfc] sm:$0xf]
  %v134 = vld [vmem:[%s1 + $0x100] sm:$0xf]
  %v135 = vld [vmem:[%s1 + $0x104] sm:$0xf]
  %v136 = vld [vmem:[%s1 + $0x108] sm:$0xf]
  %v137 = vld [vmem:[%s1 + $0x10c] sm:$0xf]
  %v138 = vld [vmem:[%s1 + $0x110] sm:$0xf]
  %v139 = vld [vmem:[%s1 + $0x114] sm:$0xf]
  %v140 = vld [vmem:[%s1 + $0x118] sm:$0xf]
  %v141 = vld [vmem:[%s1 + $0x11c] sm:$0xf]
  %v142 = vld [vmem:[%s1 + $0x120] sm:$0xf]
  %v143 = vld [vmem:[%s1 + $0x124] sm:$0xf]
  %v144 = vld [vmem:[%s1 + $0x128] sm:$0xf]
  %v145 = vld [vmem:[%s1 + $0x12c] sm:$0xf]
  %v146 = vld [vmem:[%s1 + $0x130] sm:$0xf]
  %v147 = vld [vmem:[%s1 + $0x134] sm:$0xf]
  %v148 = vld [vmem:[%s1 + $0x138] sm:$0xf]
  %v149 = vld [vmem:[%s1 + $0x13c] sm:$0xf]
  %v150 = vld [vmem:[%s1 + $0x140] sm:$0xf]
  %v151 = vld [vmem:[%s1 + $0x144] sm:$0xf]
  %v152 = vld [vmem:[%s1 + $0x148] sm:$0xf]
  %v153 = vld [vmem:[%s1 + $0x14c] sm:$0xf]
  %v154 = vld [vmem:[%s1 + $0x150] sm:$0xf]
  %v155 = vld [vmem:[%s1 + $0x154] sm:$0xf]
  %v156 = vld [vmem:[%s1 + $0x158] sm:$0xf]
  %v157 = vld [vmem:[%s1 + $0x15c] sm:$0xf]
  %v158 = vld [vmem:[%s1 + $0x160] sm:$0xf]
  %v159 = vld [vmem:[%s1 + $0x164] sm:$0xf]
  %v160 = vld [vmem:[%s1 + $0x168] sm:$0xf]
  %v161 = vld [vmem:[%s1 + $0x16c] sm:$0xf]
  %v162 = vld [vmem:[%s1 + $0x170] sm:$0xf]
  %v163 = vld [vmem:[%s1 + $0x174] sm:$0xf]
  %v164 = vld [vmem:[%s1 + $0x178] sm:$0xf]
  %v165 = vld [vmem:[%s1 + $0x17c] sm:$0xf]
  %v166 = vld [vmem:[%s1 + $0x180] sm:$0xf]
  %v167 = vld [vmem:[%s1 + $0x184] sm:$0xf]
  %v168 = vld [vmem:[%s1 + $0x188] sm:$0xf]
  %v169 = vld [vmem:[%s1 + $0x18c] sm:$0xf]
  %v170 = vld [vmem:[%s1 + $0x190] sm:$0xf]
  %v171 = vld [vmem:[%s1 + $0x194] sm:$0xf]
  %v172 = vld [vmem:[%s1 + $0x198] sm:$0xf]
  %v173 = vld [vmem:[%s1 + $0x19c] sm:$0xf]
  %v174 = vld [vmem:[%s1 + $0x1a0] sm:$0xf]
  %v175 = vld [vmem:[%s1 + $0x1a4] sm:$0xf]
  %v176 = vld [vmem:[%s1 + $0x1a8] sm:$0xf]
  %v177 = vld [vmem:[%s1 + $0x1ac] sm:$0xf]
  %v178 = vld [vmem:[%s1 + $0x1b0] sm:$0xf]
  %v179 = vld [vmem:[%s1 + $0x1b4] sm:$0xf]
  %v180 = vld [vmem:[%s1 + $0x1b8] sm:$0xf]
  %v181 = vld [vmem:[%s1 + $0x1bc] sm:$0xf]
  %v182 = vld [vmem:[%s1 + $0x1c0] sm:$0xf]
  %v183 = vld [vmem:[%s1 + $0x1c4] sm:$0xf]
  %v184 = vld [vmem:[%s1 + $0x1c8] sm:$0xf]
  %v185 = vld [vmem:[%s1 + $0x1cc] sm:$0xf]
  %v186 = vld [vmem:[%s1 + $0x1d0] sm:$0xf]
  %v187 = vld [vmem:[%s1 + $0x1d4] sm:$0xf]
  %v188 = vld [vmem:[%s1 + $0x1d8] sm:$0xf]
  %v189 = vld [vmem:[%s1 + $0x1dc] sm:$0xf]
  %v190 = vld [vmem:[%s1 + $0x1e0] sm:$0xf]
  %v191 = vld [vmem:[%s1 + $0x1e4] sm:$0xf]
  %v192 = vld [vmem:[%s1 + $0x1e8] sm:$0xf]
  %v193 = vld [vmem:[%s1 + $0x1ec] sm:$0xf]
  %v194 = vld [vmem:[%s1 + $0x1f0] sm:$0xf]
  %v195 = vld [vmem:[%s1 + $0x1f4] sm:$0xf]
  %v196 = vld [vmem:[%s1 + $0x1f8] sm:$0xf]
  %v197 = vld [vmem:[%s1 + $0x1fc] sm:$0xf]
  %v198 = vld [vmem:[%s1 + $0x200] sm:$0xf]
  %v199 = vld [vmem:[%s1 + $0x204] sm:$0xf]
  %v200 = vld [vmem:[%s1 + $0x208] sm:$0xf]
  %v201 = vld [vmem:[%s1 + $0x20c] sm:$0xf]
  %v202 = vld [vmem:[%s1 + $0x210] sm:$0xf]
  %v203 = vld [vmem:[%s1 + $0x214] sm:$0xf]
  %v204 = vld [vmem:[%s1 + $0x218] sm:$0xf]
  %v205 = vld [vmem:[%s1 + $0x21c] sm:$0xf]
  %v206 = vld [vmem:[%s1 + $0x220] sm:$0xf]
  %v207 = vld [vmem:[%s1 + $0x224] sm:$0xf]
  %v208 = vld [vmem:[%s1 + $0x228] sm:$0xf]
  %v209 = vld [vmem:[%s1 + $0x22c] sm:$0xf]
  %v210 = vld [vmem:[%s1 + $0x230] sm:$0xf]
  %v211 = vld [vmem:[%s1 + $0x234] sm:$0xf]
  %v212 = vld [vmem:[%s1 + $0x238] sm:$0xf]
  %v213 = vld [vmem:[%s1 + $0x23c] sm:$0xf]
  %v214 = vld [vmem:[%s1 + $0x240] sm:$0xf]
  %v215 = vld [vmem:[%s1 + $0x244] sm:$0xf]
  %v216 = vld [vmem:[%s1 + $0x248] sm:$0xf]
  %v217 = vld [vmem:[%s1 + $0x24c] sm:$0xf]
  %v218 = vld [vmem:[%s1 + $0x250] sm:$0xf]
  %v219 = vld [vmem:[%s1 + $0x254] sm:$0xf]
  %v220 = vld [vmem:[%s1 + $0x258] sm:$0xf]
  %v221 = vld [vmem:[%s1 + $0x25c] sm:$0xf]
  %v222 = vld [vmem:[%s1 + $0x260] sm:$0xf]
  %v223 = vld [vmem:[%s1 + $0x264] sm:$0xf]
  %v224 = vld [vmem:[%s1 + $0x268] sm:$0xf]
  %v225 = vld [vmem:[%s1 + $0x26c] sm:$0xf]
  %v226 = vld [vmem:[%s1 + $0x270] sm:$0xf]
  %v227 = vld [vmem:[%s1 + $0x274] sm:$0xf]
  %v228 = vld [vmem:[%s1 + $0x278] sm:$0xf]
  %v229 = vld [vmem:[%s1 + $0x27c] sm:$0xf]
  %v230 = vld [vmem:[%s1 + $0x280] sm:$0xf]
  %v231 = vld [vmem:[%s1 + $0x284] sm:$0xf]
  %v232 = vld [vmem:[%s1 + $0x288] sm:$0xf]
  %v233 = vld [vmem:[%s1 + $0x28c] sm:$0xf]
  %v234 = vld [vmem:[%s1 + $0x290] sm:$0xf]
  %v235 = vld [vmem:[%s1 + $0x294] sm:$0xf]
  %v236 = vld [vmem:[%s1 + $0x298] sm:$0xf]
  %v237 = vld [vmem:[%s1 + $0x29c] sm:$0xf]
  %v238 = vld [vmem:[%s1 + $0x2a0] sm:$0xf]
  %v239 = vld [vmem:[%s1 + $0x2a4] sm:$0xf]
  %v240 = vld [vmem:[%s1 + $0x2a8] sm:$0xf]
  %v241 = vld [vmem:[%s1 + $0x2ac] sm:$0xf]
  %v242 = vld [vmem:[%s1 + $0x2b0] sm:$0xf]
  %v243 = vld [vmem:[%s1 + $0x2b4] sm:$0xf]
  %v244 = vld [vmem:[%s1 + $0x2b8] sm:$0xf]
  %v245 = vld [vmem:[%s1 + $0x2bc] sm:$0xf]
  %v246 = vld [vmem:[%s1 + $0x2c0] sm:$0xf]
  %v247 = vld [vmem:[%s1 + $0x2c4] sm:$0xf]
  %v248 = vld [vmem:[%s1 + $0x2c8] sm:$0xf]
  %v249 = vld [vmem:[%s1 + $0x2cc] sm:$0xf]
  %v250 = vld [vmem:[%s1 + $0x2d0] sm:$0xf]
  %v251 = vld [vmem:[%s1 + $0x2d4] sm:$0xf]
  %v252 = vld [vmem:[%s1 + $0x2d8] sm:$0xf]
  %v253 = vld [vmem:[%s1 + $0x2dc] sm:$0xf]
  %v254 = vld [vmem:[%s1 + $0x2e0] sm:$0xf]
  %v255 = vld [vmem:[%s1 + $0x2e4] sm:$0xf]
  %v256 = vld [vmem:[%s1 + $0x2e8] sm:$0xf]
  %v257 = vld [vmem:[%s1 + $0x2ec] sm:$0xf]
  %v258 = vld [vmem:[%s1 + $0x2f0] sm:$0xf]
  %v259 = vld [vmem:[%s1 + $0x2f4] sm:$0xf]
  %v260 = vld [vmem:[%s1 + $0x2f8] sm:$0xf]
  %v261 = vld [vmem:[%s1 + $0x2fc] sm:$0xf]
  %v262 = vld [vmem:[%s1 + $0x300] sm:$0xf]
  %v263 = vld [vmem:[%s1 + $0x304] sm:$0xf]
  %v264 = vld [vmem:[%s1 + $0x308] sm:$0xf]
  %v265 = vld [vmem:[%s1 + $0x30c] sm:$0xf]
  %v266 = vld [vmem:[%s1 + $0x310] sm:$0xf]
  %v267 = vld [vmem:[%s1 + $0x314] sm:$0xf]
  %v268 = vld [vmem:[%s1 + $0x318] sm:$0xf]
  %v269 = vld [vmem:[%s1 + $0x31c] sm:$0xf]
  %v270 = vld [vmem:[%s1 + $0x320] sm:$0xf]
  %v271 = vld [vmem:[%s1 + $0x324] sm:$0xf]
  %v272 = vld [vmem:[%s1 + $0x328] sm:$0xf]
  %v273 = vld [vmem:[%s1 + $0x32c] sm:$0xf]
  %v274 = vld [vmem:[%s1 + $0x330] sm:$0xf]
  %v275 = vld [vmem:[%s1 + $0x334] sm:$0xf]
  %v276 = vld [vmem:[%s1 + $0x338] sm:$0xf]
  %v277 = vld [vmem:[%s1 + $0x33c] sm:$0xf]
  %v278 = vld [vmem:[%s1 + $0x340] sm:$0xf]
  %v279 = vld [vmem:[%s1 + $0x344] sm:$0xf]
  %v280 = vld [vmem:[%s1 + $0x348] sm:$0xf]
  %v281 = vld [vmem:[%s1 + $0x34c] sm:$0xf]
  %v282 = vld [vmem:[%s1 + $0x350] sm:$0xf]
  %v283 = vld [vmem:[%s1 + $0x354] sm:$0xf]
  %v284 = vld [vmem:[%s1 + $0x358] sm:$0xf]
  %v285 = vld [vmem:[%s1 + $0x35c] sm:$0xf]
  %v286 = vld [vmem:[%s1 + $0x360] sm:$0xf]
  %v287 = vld [vmem:[%s1 + $0x364] sm:$0xf]
  %v288 = vld [vmem:[%s1 + $0x368] sm:$0xf]
  %v289 = vld [vmem:[%s1 + $0x36c] sm:$0xf]
  %v290 = vld [vmem:[%s1 + $0x370] sm:$0xf]
  %v291 = vld [vmem:[%s1 + $0x374] sm:$0xf]
  %v292 = vld [vmem:[%s1 + $0x378] sm:$0xf]
  %v293 = vld [vmem:[%s1 + $0x37c] sm:$0xf]
  %v294 = vld [vmem:[%s1 + $0x380] sm:$0xf]
  %v295 = vld [vmem:[%s1 + $0x384] sm:$0xf]
  %v296 = vld [vmem:[%s1 + $0x388] sm:$0xf]
  %v297 = vld [vmem:[%s1 + $0x38c] sm:$0xf]
  %v298 = vld [vmem:[%s1 + $0x390] sm:$0xf]
  %v299 = vld [vmem:[%s1 + $0x394] sm:$0xf]
  %v300 = vld [vmem:[%s1 + $0x398] sm:$0xf]
  %v301 = vld [vmem:[%s1 + $0x39c] sm:$0xf]
  %v302 = vld [vmem:[%s1 + $0x3a0] sm:$0xf]
  %v303 = vld [vmem:[%s1 + $0x3a4] sm:$0xf]
  %v304 = vld [vmem:[%s1 + $0x3a8] sm:$0xf]
  %v305 = vld [vmem:[%s1 + $0x3ac] sm:$0xf]
  %v306 = vld [vmem:[%s1 + $0x3b0] sm:$0xf]
  %v307 = vld [vmem:[%s1 + $0x3b4] sm:$0xf]
  %v308 = vld [vmem:[%s1 + $0x3b8] sm:$0xf]
  %v309 = vld [vmem:[%s1 + $0x3bc] sm:$0xf]
  %v310 = vld [vmem:[%s1 + $0x3c0] sm:$0xf]
  %v311 = vld [vmem:[%s1 + $0x3c4] sm:$0xf]
  %v312 = vld [vmem:[%s1 + $0x3c8] sm:$0xf]
  %v313 = vld [vmem:[%s1 + $0x3cc] sm:$0xf]
  %v314 = vld [vmem:[%s1 + $0x3d0] sm:$0xf]
  %v315 = vld [vmem:[%s1 + $0x3d4] sm:$0xf]
  %v316 = vld [vmem:[%s1 + $0x3d8] sm:$0xf]
  %v317 = vld [vmem:[%s1 + $0x3dc] sm:$0xf]
  %v318 = vld [vmem:[%s1 + $0x3e0] sm:$0xf]
  %v319 = vld [vmem:[%s1 + $0x3e4] sm:$0xf]
  %v320 = vld [vmem:[%s1 + $0x3e8] sm:$0xf]
  %v321 = vld [vmem:[%s1 + $0x3ec] sm:$0xf]
  %v322 = vld [vmem:[%s1 + $0x3f0] sm:$0xf]
  %v323 = vld [vmem:[%s1 + $0x3f4] sm:$0xf]
  %v324 = vld [vmem:[%s1 + $0x3f8] sm:$0xf]
  %v325 = vld [vmem:[%s1 + $0x3fc] sm:$0xf]
  %v326 = vld [vmem:[%s1 + $0x400] sm:$0xf]
  %v327 = vld [vmem:[%s1 + $0x404] sm:$0xf]
  %v328 = vld [vmem:[%s1 + $0x408] sm:$0xf]
  %v329 = vld [vmem:[%s1 + $0x40c] sm:$0xf]
  %v330 = vld [vmem:[%s1 + $0x410] sm:$0xf]
  %v331 = vld [vmem:[%s1 + $0x414] sm:$0xf]
  %v332 = vld [vmem:[%s1 + $0x418] sm:$0xf]
  %v333 = vld [vmem:[%s1 + $0x41c] sm:$0xf]
  %v334 = vld [vmem:[%s1 + $0x420] sm:$0xf]
  %v335 = vld [vmem:[%s1 + $0x424] sm:$0xf]
  %v336 = vld [vmem:[%s1 + $0x428] sm:$0xf]
  %v337 = vld [vmem:[%s1 + $0x42c] sm:$0xf]
  %v338 = vld [vmem:[%s1 + $0x430] sm:$0xf]
  %v339 = vld [vmem:[%s1 + $0x434] sm:$0xf]
  %v340 = vld [vmem:[%s1 + $0x438] sm:$0xf]
  %v341 = vld [vmem:[%s1 + $0x43c] sm:$0xf]
  %v342 = vld [vmem:[%s1 + $0x440] sm:$0xf]
  %v343 = vld [vmem:[%s1 + $0x444] sm:$0xf]
  %v344 = vld [vmem:[%s1 + $0x448] sm:$0xf]
  %v345 = vld [vmem:[%s1 + $0x44c] sm:$0xf]
  %v346 = vld [vmem:[%s1 + $0x450] sm:$0xf]
  %v347 = vld [vmem:[%s1 + $0x454] sm:$0xf]
  %v348 = vld [vmem:[%s1 + $0x458] sm:$0xf]
  %v349 = vld [vmem:[%s1 + $0x45c] sm:$0xf]
  %v350 = vld [vmem:[%s1 + $0x460] sm:$0xf]
  %v351 = vld [vmem:[%s1 + $0x464] sm:$0xf]
  %v352 = vld [vmem:[%s1 + $0x468] sm:$0xf]
  %v353 = vld [vmem:[%s1 + $0x46c] sm:$0xf]
  %v354 = vld [vmem:[%s1 + $0x470] sm:$0xf]
  %v355 = vld [vmem:[%s1 + $0x474] sm:$0xf]
  %v356 = vld [vmem:[%s1 + $0x478] sm:$0xf]
  %v357 = vld [vmem:[%s1 + $0x47c] sm:$0xf]
  %v358 = vld [vmem:[%s1 + $0x480] sm:$0xf]
  %v359 = vld [vmem:[%s1 + $0x484] sm:$0xf]
  %v360 = vld [vmem:[%s1 + $0x488] sm:$0xf]
  %v361 = vld [vmem:[%s1 + $0x48c] sm:$0xf]
  %v362 = vld [vmem:[%s1 + $0x490] sm:$0xf]
  %v363 = vld [vmem:[%s1 + $0x494] sm:$0xf]
  %v364 = vld [vmem:[%s1 + $0x498] sm:$0xf]
  %v365 = vld [vmem:[%s1 + $0x49c] sm:$0xf]
  %v366 = vld [vmem:[%s1 + $0x4a0] sm:$0xf]
  %v367 = vld [vmem:[%s1 + $0x4a4] sm:$0xf]
  %v368 = vld [vmem:[%s1 + $0x4a8] sm:$0xf]
  %v369 = vld [vmem:[%s1 + $0x4ac] sm:$0xf]
  %v370 = vld [vmem:[%s1 + $0x4b0] sm:$0xf]
  %v371 = vld [vmem:[%s1 + $0x4b4] sm:$0xf]
  %v372 = vld [vmem:[%s1 + $0x4b8] sm:$0xf]
  %v373 = vld [vmem:[%s1 + $0x4bc] sm:$0xf]
  %v374 = vld [vmem:[%s1 + $0x4c0] sm:$0xf]
  %v375 = vld [vmem:[%s1 + $0x4c4] sm:$0xf]
  %v376 = vld [vmem:[%s1 + $0x4c8] sm:$0xf]
  %v377 = vld [vmem:[%s1 + $0x4cc] sm:$0xf]
  %v378 = vld [vmem:[%s1 + $0x4d0] sm:$0xf]
  %v379 = vld [vmem:[%s1 + $0x4d4] sm:$0xf]
  %v380 = vld [vmem:[%s1 + $0x4d8] sm:$0xf]
  %v381 = vld [vmem:[%s1 + $0x4dc] sm:$0xf]
  %v382 = vld [vmem:[%s1 + $0x4e0] sm:$0xf]
  %v383 = vld [vmem:[%s1 + $0x4e4] sm:$0xf]
  %v384 = vld [vmem:[%s1 + $0x4e8] sm:$0xf]
  %v385 = vld [vmem:[%s1 + $0x4ec] sm:$0xf]
  %v386 = vld [vmem:[%s1 + $0x4f0] sm:$0xf]
  %v387 = vld [vmem:[%s1 + $0x4f4] sm:$0xf]
  %v388 = vld [vmem:[%s1 + $0x4f8] sm:$0xf]
  %v389 = vld [vmem:[%s1 + $0x4fc] sm:$0xf]
  %v390 = vld [vmem:[%s1 + $0x500] sm:$0xf]
  %v391 = vld [vmem:[%s1 + $0x504] sm:$0xf]
  %v392 = vld [vmem:[%s1 + $0x508] sm:$0xf]
  %v393 = vld [vmem:[%s1 + $0x50c] sm:$0xf]
  %v394 = vld [vmem:[%s1 + $0x510] sm:$0xf]
  %v395 = vld [vmem:[%s1 + $0x514] sm:$0xf]
  %v396 = vld [vmem:[%s1 + $0x518] sm:$0xf]
  %v397 = vld [vmem:[%s1 + $0x51c] sm:$0xf]
  %v398 = vld [vmem:[%s1 + $0x520] sm:$0xf]
  %v399 = vld [vmem:[%s1 + $0x524] sm:$0xf]
  %v400 = vld [vmem:[%s1 + $0x528] sm:$0xf]
  %v401 = vld [vmem:[%s1 + $0x52c] sm:$0xf]
  %v402 = vld [vmem:[%s1 + $0x530] sm:$0xf]
  %v403 = vld [vmem:[%s1 + $0x534] sm:$0xf]
  %v404 = vld [vmem:[%s1 + $0x538] sm:$0xf]
  %v405 = vld [vmem:[%s1 + $0x53c] sm:$0xf]
  %v406 = vld [vmem:[%s1 + $0x540] sm:$0xf]
  %v407 = vld [vmem:[%s1 + $0x544] sm:$0xf]
  %v408 = vld [vmem:[%s1 + $0x548] sm:$0xf]
  %v409 = vld [vmem:[%s1 + $0x54c] sm:$0xf]
  %v410 = vld [vmem:[%s1 + $0x550] sm:$0xf]
  %v411 = vld [vmem:[%s1 + $0x554] sm:$0xf]
  %v412 = vld [vmem:[%s1 + $0x558] sm:$0xf]
  %v413 = vld [vmem:[%s1 + $0x55c] sm:$0xf]
  %v414 = vld [vmem:[%s1 + $0x560] sm:$0xf]
  %v415 = vld [vmem:[%s1 + $0x564] sm:$0xf]
  %v416 = vld [vmem:[%s1 + $0x568] sm:$0xf]
  %v417 = vld [vmem:[%s1 + $0x56c] sm:$0xf]
  %v418 = vld [vmem:[%s1 + $0x570] sm:$0xf]
  %v419 = vld [vmem:[%s1 + $0x574] sm:$0xf]
  %v420 = vld [vmem:[%s1 + $0x578] sm:$0xf]
  %v421 = vld [vmem:[%s1 + $0x57c] sm:$0xf]
  %v422 = vld [vmem:[%s1 + $0x580] sm:$0xf]
  %v423 = vld [vmem:[%s1 + $0x584] sm:$0xf]
  %v424 = vld [vmem:[%s1 + $0x588] sm:$0xf]
  %v425 = vld [vmem:[%s1 + $0x58c] sm:$0xf]
  %v426 = vld [vmem:[%s1 + $0x590] sm:$0xf]
  %v427 = vld [vmem:[%s1 + $0x594] sm:$0xf]
  %v428 = vld [vmem:[%s1 + $0x598] sm:$0xf]
  %v429 = vld [vmem:[%s1 + $0x59c] sm:$0xf]
  %v430 = vld [vmem:[%s1 + $0x5a0] sm:$0xf]
  %v431 = vld [vmem:[%s1 + $0x5a4] sm:$0xf]
  %v432 = vld [vmem:[%s1 + $0x5a8] sm:$0xf]
  %v433 = vld [vmem:[%s1 + $0x5ac] sm:$0xf]
  %v434 = vld [vmem:[%s1 + $0x5b0] sm:$0xf]
  %v435 = vld [vmem:[%s1 + $0x5b4] sm:$0xf]
  %v436 = vld [vmem:[%s1 + $0x5b8] sm:$0xf]
  %v437 = vld [vmem:[%s1 + $0x5bc] sm:$0xf]
  %v438 = vld [vmem:[%s1 + $0x5c0] sm:$0xf]
  %v439 = vld [vmem:[%s1 + $0x5c4] sm:$0xf]
  %v440 = vld [vmem:[%s1 + $0x5c8] sm:$0xf]
  %v441 = vld [vmem:[%s1 + $0x5cc] sm:$0xf]
  %v442 = vld [vmem:[%s1 + $0x5d0] sm:$0xf]
  %v443 = vld [vmem:[%s1 + $0x5d4] sm:$0xf]
  %v444 = vld [vmem:[%s1 + $0x5d8] sm:$0xf]
  %v445 = vld [vmem:[%s1 + $0x5dc] sm:$0xf]
  %v446 = vld [vmem:[%s1 + $0x5e0] sm:$0xf]
  %v447 = vld [vmem:[%s1 + $0x5e4] sm:$0xf]
  %v448 = vld [vmem:[%s1 + $0x5e8] sm:$0xf]
  %v449 = vld [vmem:[%s1 + $0x5ec] sm:$0xf]
  %v450 = vld [vmem:[%s1 + $0x5f0] sm:$0xf]
  %v451 = vld [vmem:[%s1 + $0x5f4] sm:$0xf]
  %v452 = vld [vmem:[%s1 + $0x5f8] sm:$0xf]
  %v453 = vld [vmem:[%s1 + $0x5fc] sm:$0xf]
  %v454 = vld [vmem:[%s1 + $0x600] sm:$0xf]
  %v455 = vld [vmem:[%s1 + $0x604] sm:$0xf]
  %v456 = vld [vmem:[%s1 + $0x608] sm:$0xf]
  %v457 = vld [vmem:[%s1 + $0x60c] sm:$0xf]
  %v458 = vld [vmem:[%s1 + $0x610] sm:$0xf]
  %v459 = vld [vmem:[%s1 + $0x614] sm:$0xf]
  %v460 = vld [vmem:[%s1 + $0x618] sm:$0xf]
  %v461 = vld [vmem:[%s1 + $0x61c] sm:$0xf]
  %v462 = vld [vmem:[%s1 + $0x620] sm:$0xf]
  %v463 = vld [vmem:[%s1 + $0x624] sm:$0xf]
  %v464 = vld [vmem:[%s1 + $0x628] sm:$0xf]
  %v465 = vld [vmem:[%s1 + $0x62c] sm:$0xf]
  %v466 = vld [vmem:[%s1 + $0x630] sm:$0xf]
  %v467 = vld [vmem:[%s1 + $0x634] sm:$0xf]
  %v468 = vld [vmem:[%s1 + $0x638] sm:$0xf]
  %v469 = vld [vmem:[%s1 + $0x63c] sm:$0xf]
  %v522 = vunpack.c.l.b16 %v18
  %v523 = vunpack.c.h.b16 %v18
  %v524 = vunpack.c.l.b16 %v19
  %v525 = vunpack.c.h.b16 %v19
  %v526 = vunpack.c.l.b16 %v20
  %v527 = vunpack.c.h.b16 %v20
  %v528 = vunpack.c.l.b16 %v21
  %v529 = vunpack.c.h.b16 %v21
  %v530 = vunpack.c.l.b16 %v22
  %v531 = vunpack.c.h.b16 %v22
  %v532 = vunpack.c.l.b16 %v23
  %v533 = vunpack.c.h.b16 %v23
  %v534 = vunpack.c.l.b16 %v24
  %v535 = vunpack.c.h.b16 %v24
  %v536 = vunpack.c.l.b16 %v25
  %v537 = vunpack.c.h.b16 %v25
  %v538 = vunpack.c.l.b16 %v26
  %v539 = vunpack.c.h.b16 %v26
  %v540 = vunpack.c.l.b16 %v27
  %v541 = vunpack.c.h.b16 %v27
  %v542 = vunpack.c.l.b16 %v28
  %v543 = vunpack.c.h.b16 %v28
  %v544 = vunpack.c.l.b16 %v29
  %v545 = vunpack.c.h.b16 %v29
  %v546 = vunpack.c.l.b16 %v30
  %v547 = vunpack.c.l.b16 %v31
  %v548 = vunpack.c.h.b16 %v31
  %v549 = vunpack.c.l.b16 %v32
  %v550 = vunpack.c.h.b16 %v32
  %v551 = vunpack.c.l.b16 %v33
  %v552 = vunpack.c.h.b16 %v33
  %v553 = vunpack.c.l.b16 %v34
  %v554 = vunpack.c.h.b16 %v34
  %v555 = vunpack.c.l.b16 %v35
  %v556 = vunpack.c.h.b16 %v35
  %v557 = vunpack.c.l.b16 %v36
  %v558 = vunpack.c.h.b16 %v36
  %v559 = vunpack.c.l.b16 %v37
  %v560 = vunpack.c.h.b16 %v37
  %v561 = vunpack.c.l.b16 %v38
  %v562 = vunpack.c.h.b16 %v38
  %v563 = vunpack.c.l.b16 %v39
  %v564 = vunpack.c.h.b16 %v39
  %v565 = vunpack.c.l.b16 %v40
  %v566 = vunpack.c.h.b16 %v40
  %v567 = vunpack.c.l.b16 %v41
  %v568 = vunpack.c.h.b16 %v41
  %v569 = vunpack.c.l.b16 %v42
  %v570 = vunpack.c.h.b16 %v42
  %v571 = vunpack.c.l.b16 %v43
  %v572 = vunpack.c.l.b16 %v44
  %v573 = vunpack.c.h.b16 %v44
  %v574 = vunpack.c.l.b16 %v45
  %v575 = vunpack.c.h.b16 %v45
  %v576 = vunpack.c.l.b16 %v46
  %v577 = vunpack.c.h.b16 %v46
  %v578 = vunpack.c.l.b16 %v47
  %v579 = vunpack.c.h.b16 %v47
  %v580 = vunpack.c.l.b16 %v48
  %v581 = vunpack.c.h.b16 %v48
  %v582 = vunpack.c.l.b16 %v49
  %v583 = vunpack.c.h.b16 %v49
  %v584 = vunpack.c.l.b16 %v50
  %v585 = vunpack.c.h.b16 %v50
  %v586 = vunpack.c.l.b16 %v51
  %v587 = vunpack.c.h.b16 %v51
  %v588 = vunpack.c.l.b16 %v52
  %v589 = vunpack.c.h.b16 %v52
  %v590 = vunpack.c.l.b16 %v53
  %v591 = vunpack.c.h.b16 %v53
  %v592 = vunpack.c.l.b16 %v54
  %v593 = vunpack.c.h.b16 %v54
  %v594 = vunpack.c.l.b16 %v55
  %v595 = vunpack.c.h.b16 %v55
  %v596 = vunpack.c.l.b16 %v56
  %v597 = vunpack.c.l.b16 %v57
  %v598 = vunpack.c.h.b16 %v57
  %v599 = vunpack.c.l.b16 %v58
  %v600 = vunpack.c.h.b16 %v58
  %v601 = vunpack.c.l.b16 %v59
  %v602 = vunpack.c.h.b16 %v59
  %v603 = vunpack.c.l.b16 %v60
  %v604 = vunpack.c.h.b16 %v60
  %v605 = vunpack.c.l.b16 %v61
  %v606 = vunpack.c.h.b16 %v61
  %v607 = vunpack.c.l.b16 %v62
  %v608 = vunpack.c.h.b16 %v62
  %v609 = vunpack.c.l.b16 %v63
  %v610 = vunpack.c.h.b16 %v63
  %v611 = vunpack.c.l.b16 %v64
  %v612 = vunpack.c.h.b16 %v64
  %v613 = vunpack.c.l.b16 %v65
  %v614 = vunpack.c.h.b16 %v65
  %v615 = vunpack.c.l.b16 %v66
  %v616 = vunpack.c.h.b16 %v66
  %v617 = vunpack.c.l.b16 %v67
  %v618 = vunpack.c.h.b16 %v67
  %v619 = vunpack.c.l.b16 %v68
  %v620 = vunpack.c.h.b16 %v68
  %v621 = vunpack.c.l.b16 %v69
  %v622 = vpack.c.b16 %v547, %v522
  %v623 = vpack.c.b16 %v548, %v523
  %v624 = vpack.c.b16 %v549, %v524
  %v625 = vpack.c.b16 %v550, %v525
  %v626 = vpack.c.b16 %v551, %v526
  %v627 = vpack.c.b16 %v552, %v527
  %v628 = vpack.c.b16 %v553, %v528
  %v629 = vpack.c.b16 %v554, %v529
  %v630 = vpack.c.b16 %v555, %v530
  %v631 = vpack.c.b16 %v556, %v531
  %v632 = vpack.c.b16 %v557, %v532
  %v633 = vpack.c.b16 %v558, %v533
  %v634 = vpack.c.b16 %v559, %v534
  %v635 = vpack.c.b16 %v560, %v535
  %v636 = vpack.c.b16 %v561, %v536
  %v637 = vpack.c.b16 %v562, %v537
  %v638 = vpack.c.b16 %v563, %v538
  %v639 = vpack.c.b16 %v564, %v539
  %v640 = vpack.c.b16 %v565, %v540
  %v641 = vpack.c.b16 %v566, %v541
  %v642 = vpack.c.b16 %v567, %v542
  %v643 = vpack.c.b16 %v568, %v543
  %v644 = vpack.c.b16 %v569, %v544
  %v645 = vpack.c.b16 %v570, %v545
  %v646 = vpack.c.b16 %v571, %v546
  %v647 = vpack.c.b16 %v597, %v572
  %v648 = vpack.c.b16 %v598, %v573
  %v649 = vpack.c.b16 %v599, %v574
  %v650 = vpack.c.b16 %v600, %v575
  %v651 = vpack.c.b16 %v601, %v576
  %v652 = vpack.c.b16 %v602, %v577
  %v653 = vpack.c.b16 %v603, %v578
  %v654 = vpack.c.b16 %v604, %v579
  %v655 = vpack.c.b16 %v605, %v580
  %v656 = vpack.c.b16 %v606, %v581
  %v657 = vpack.c.b16 %v607, %v582
  %v658 = vpack.c.b16 %v608, %v583
  %v659 = vpack.c.b16 %v609, %v584
  %v660 = vpack.c.b16 %v610, %v585
  %v661 = vpack.c.b16 %v611, %v586
  %v662 = vpack.c.b16 %v612, %v587
  %v663 = vpack.c.b16 %v613, %v588
  %v664 = vpack.c.b16 %v614, %v589
  %v665 = vpack.c.b16 %v615, %v590
  %v666 = vpack.c.b16 %v616, %v591
  %v667 = vpack.c.b16 %v617, %v592
  %v668 = vpack.c.b16 %v618, %v593
  %v669 = vpack.c.b16 %v619, %v594
  %v670 = vpack.c.b16 %v620, %v595
  %v671 = vpack.c.b16 %v621, %v596
  %v1122 = vunpack.c.l.b16 %v70
  %v1123 = vunpack.c.l.b16 %v71
  %v1124 = vunpack.c.l.b16 %v72
  %v1125 = vunpack.c.l.b16 %v73
  %v1126 = vunpack.c.l.b16 %v74
  %v1127 = vunpack.c.l.b16 %v75
  %v1128 = vunpack.c.l.b16 %v76
  %v1129 = vunpack.c.l.b16 %v77
  %v1130 = vunpack.c.l.b16 %v78
  %v1131 = vunpack.c.l.b16 %v79
  %v1132 = vunpack.c.l.b16 %v80
  %v1133 = vunpack.c.l.b16 %v81
  %v1134 = vunpack.c.l.b16 %v82
  %v1135 = vunpack.c.l.b16 %v83
  %v1136 = vunpack.c.l.b16 %v84
  %v1137 = vunpack.c.l.b16 %v85
  %v1138 = vunpack.c.l.b16 %v86
  %v1139 = vunpack.c.l.b16 %v87
  %v1140 = vunpack.c.l.b16 %v88
  %v1141 = vunpack.c.l.b16 %v89
  %v1142 = vunpack.c.l.b16 %v90
  %v1143 = vunpack.c.l.b16 %v91
  %v1144 = vunpack.c.l.b16 %v92
  %v1145 = vunpack.c.l.b16 %v93
  %v1146 = vunpack.c.l.b16 %v94
  %v1147 = vunpack.c.l.b16 %v95
  %v1148 = vunpack.c.l.b16 %v96
  %v1149 = vunpack.c.l.b16 %v97
  %v1150 = vunpack.c.l.b16 %v98
  %v1151 = vunpack.c.l.b16 %v99
  %v1152 = vunpack.c.l.b16 %v100
  %v1153 = vunpack.c.l.b16 %v101
  %v1154 = vunpack.c.l.b16 %v102
  %v1155 = vunpack.c.l.b16 %v103
  %v1156 = vunpack.c.l.b16 %v104
  %v1157 = vunpack.c.l.b16 %v105
  %v1158 = vunpack.c.l.b16 %v106
  %v1159 = vunpack.c.l.b16 %v107
  %v1160 = vunpack.c.l.b16 %v108
  %v1161 = vunpack.c.l.b16 %v109
  %v1162 = vunpack.c.l.b16 %v110
  %v1163 = vunpack.c.l.b16 %v111
  %v1164 = vunpack.c.l.b16 %v112
  %v1165 = vunpack.c.l.b16 %v113
  %v1166 = vunpack.c.l.b16 %v114
  %v1167 = vunpack.c.l.b16 %v115
  %v1168 = vunpack.c.l.b16 %v116
  %v1169 = vunpack.c.l.b16 %v117
  %v1170 = vunpack.c.l.b16 %v118
  %v1171 = vunpack.c.l.b16 %v119
  %v1172 = vunpack.c.l.b16 %v120
  %v1173 = vunpack.c.l.b16 %v121
  %v1174 = vunpack.c.l.b16 %v122
  %v1175 = vunpack.c.l.b16 %v123
  %v1176 = vunpack.c.l.b16 %v124
  %v1177 = vunpack.c.l.b16 %v125
  %v1178 = vunpack.c.l.b16 %v126
  %v1179 = vunpack.c.l.b16 %v127
  %v1180 = vunpack.c.l.b16 %v128
  %v1181 = vunpack.c.l.b16 %v129
  %v1182 = vunpack.c.l.b16 %v130
  %v1183 = vunpack.c.l.b16 %v131
  %v1184 = vunpack.c.l.b16 %v132
  %v1185 = vunpack.c.l.b16 %v133
  %v1186 = vunpack.c.l.b16 %v134
  %v1187 = vunpack.c.l.b16 %v135
  %v1188 = vunpack.c.l.b16 %v136
  %v1189 = vunpack.c.l.b16 %v137
  %v1190 = vunpack.c.l.b16 %v138
  %v1191 = vunpack.c.l.b16 %v139
  %v1192 = vunpack.c.l.b16 %v140
  %v1193 = vunpack.c.l.b16 %v141
  %v1194 = vunpack.c.l.b16 %v142
  %v1195 = vunpack.c.l.b16 %v143
  %v1196 = vunpack.c.l.b16 %v144
  %v1197 = vunpack.c.l.b16 %v145
  %v1198 = vunpack.c.l.b16 %v146
  %v1199 = vunpack.c.l.b16 %v147
  %v1200 = vunpack.c.l.b16 %v148
  %v1201 = vunpack.c.l.b16 %v149
  %v1202 = vunpack.c.l.b16 %v150
  %v1203 = vunpack.c.l.b16 %v151
  %v1204 = vunpack.c.l.b16 %v152
  %v1205 = vunpack.c.l.b16 %v153
  %v1206 = vunpack.c.l.b16 %v154
  %v1207 = vunpack.c.l.b16 %v155
  %v1208 = vunpack.c.l.b16 %v156
  %v1209 = vunpack.c.l.b16 %v157
  %v1210 = vunpack.c.l.b16 %v158
  %v1211 = vunpack.c.l.b16 %v159
  %v1212 = vunpack.c.l.b16 %v160
  %v1213 = vunpack.c.l.b16 %v161
  %v1214 = vunpack.c.l.b16 %v162
  %v1215 = vunpack.c.l.b16 %v163
  %v1216 = vunpack.c.l.b16 %v164
  %v1217 = vunpack.c.l.b16 %v165
  %v1218 = vunpack.c.l.b16 %v166
  %v1219 = vunpack.c.l.b16 %v167
  %v1220 = vunpack.c.l.b16 %v168
  %v1221 = vunpack.c.l.b16 %v169
  %v1222 = vunpack.c.l.b16 %v170
  %v1223 = vunpack.c.l.b16 %v171
  %v1224 = vunpack.c.l.b16 %v172
  %v1225 = vunpack.c.l.b16 %v173
  %v1226 = vunpack.c.l.b16 %v174
  %v1227 = vunpack.c.l.b16 %v175
  %v1228 = vunpack.c.l.b16 %v176
  %v1229 = vunpack.c.l.b16 %v177
  %v1230 = vunpack.c.l.b16 %v178
  %v1231 = vunpack.c.l.b16 %v179
  %v1232 = vunpack.c.l.b16 %v180
  %v1233 = vunpack.c.l.b16 %v181
  %v1234 = vunpack.c.l.b16 %v182
  %v1235 = vunpack.c.l.b16 %v183
  %v1236 = vunpack.c.l.b16 %v184
  %v1237 = vunpack.c.l.b16 %v185
  %v1238 = vunpack.c.l.b16 %v186
  %v1239 = vunpack.c.l.b16 %v187
  %v1240 = vunpack.c.l.b16 %v188
  %v1241 = vunpack.c.l.b16 %v189
  %v1242 = vunpack.c.l.b16 %v190
  %v1243 = vunpack.c.l.b16 %v191
  %v1244 = vunpack.c.l.b16 %v192
  %v1245 = vunpack.c.l.b16 %v193
  %v1246 = vunpack.c.l.b16 %v194
  %v1247 = vunpack.c.l.b16 %v195
  %v1248 = vunpack.c.l.b16 %v196
  %v1249 = vunpack.c.l.b16 %v197
  %v1250 = vunpack.c.l.b16 %v198
  %v1251 = vunpack.c.l.b16 %v199
  %v1252 = vunpack.c.l.b16 %v200
  %v1253 = vunpack.c.l.b16 %v201
  %v1254 = vunpack.c.l.b16 %v202
  %v1255 = vunpack.c.l.b16 %v203
  %v1256 = vunpack.c.l.b16 %v204
  %v1257 = vunpack.c.l.b16 %v205
  %v1258 = vunpack.c.l.b16 %v206
  %v1259 = vunpack.c.l.b16 %v207
  %v1260 = vunpack.c.l.b16 %v208
  %v1261 = vunpack.c.l.b16 %v209
  %v1262 = vunpack.c.l.b16 %v210
  %v1263 = vunpack.c.l.b16 %v211
  %v1264 = vunpack.c.l.b16 %v212
  %v1265 = vunpack.c.l.b16 %v213
  %v1266 = vunpack.c.l.b16 %v214
  %v1267 = vunpack.c.l.b16 %v215
  %v1268 = vunpack.c.l.b16 %v216
  %v1269 = vunpack.c.l.b16 %v217
  %v1270 = vunpack.c.l.b16 %v218
  %v1271 = vunpack.c.l.b16 %v219
  %v1272 = vunpack.c.l.b16 %v220
  %v1273 = vunpack.c.l.b16 %v221
  %v1274 = vunpack.c.l.b16 %v222
  %v1275 = vunpack.c.l.b16 %v223
  %v1276 = vunpack.c.l.b16 %v224
  %v1277 = vunpack.c.l.b16 %v225
  %v1278 = vunpack.c.l.b16 %v226
  %v1279 = vunpack.c.l.b16 %v227
  %v1280 = vunpack.c.l.b16 %v228
  %v1281 = vunpack.c.l.b16 %v229
  %v1282 = vunpack.c.l.b16 %v230
  %v1283 = vunpack.c.l.b16 %v231
  %v1284 = vunpack.c.l.b16 %v232
  %v1285 = vunpack.c.l.b16 %v233
  %v1286 = vunpack.c.l.b16 %v234
  %v1287 = vunpack.c.l.b16 %v235
  %v1288 = vunpack.c.l.b16 %v236
  %v1289 = vunpack.c.l.b16 %v237
  %v1290 = vunpack.c.l.b16 %v238
  %v1291 = vunpack.c.l.b16 %v239
  %v1292 = vunpack.c.l.b16 %v240
  %v1293 = vunpack.c.l.b16 %v241
  %v1294 = vunpack.c.l.b16 %v242
  %v1295 = vunpack.c.l.b16 %v243
  %v1296 = vunpack.c.l.b16 %v244
  %v1297 = vunpack.c.l.b16 %v245
  %v1298 = vunpack.c.l.b16 %v246
  %v1299 = vunpack.c.l.b16 %v247
  %v1300 = vunpack.c.l.b16 %v248
  %v1301 = vunpack.c.l.b16 %v249
  %v1302 = vunpack.c.l.b16 %v250
  %v1303 = vunpack.c.l.b16 %v251
  %v1304 = vunpack.c.l.b16 %v252
  %v1305 = vunpack.c.l.b16 %v253
  %v1306 = vunpack.c.l.b16 %v254
  %v1307 = vunpack.c.l.b16 %v255
  %v1308 = vunpack.c.l.b16 %v256
  %v1309 = vunpack.c.l.b16 %v257
  %v1310 = vunpack.c.l.b16 %v258
  %v1311 = vunpack.c.l.b16 %v259
  %v1312 = vunpack.c.l.b16 %v260
  %v1313 = vunpack.c.l.b16 %v261
  %v1314 = vunpack.c.l.b16 %v262
  %v1315 = vunpack.c.l.b16 %v263
  %v1316 = vunpack.c.l.b16 %v264
  %v1317 = vunpack.c.l.b16 %v265
  %v1318 = vunpack.c.l.b16 %v266
  %v1319 = vunpack.c.l.b16 %v267
  %v1320 = vunpack.c.l.b16 %v268
  %v1321 = vunpack.c.l.b16 %v269
  %v1322 = vunpack.c.l.b16 %v270
  %v1323 = vunpack.c.l.b16 %v271
  %v1324 = vunpack.c.l.b16 %v272
  %v1325 = vunpack.c.l.b16 %v273
  %v1326 = vunpack.c.l.b16 %v274
  %v1327 = vunpack.c.l.b16 %v275
  %v1328 = vunpack.c.l.b16 %v276
  %v1329 = vunpack.c.l.b16 %v277
  %v1330 = vunpack.c.l.b16 %v278
  %v1331 = vunpack.c.l.b16 %v279
  %v1332 = vunpack.c.l.b16 %v280
  %v1333 = vunpack.c.l.b16 %v281
  %v1334 = vunpack.c.l.b16 %v282
  %v1335 = vunpack.c.l.b16 %v283
  %v1336 = vunpack.c.l.b16 %v284
  %v1337 = vunpack.c.l.b16 %v285
  %v1338 = vunpack.c.l.b16 %v286
  %v1339 = vunpack.c.l.b16 %v287
  %v1340 = vunpack.c.l.b16 %v288
  %v1341 = vunpack.c.l.b16 %v289
  %v1342 = vunpack.c.l.b16 %v290
  %v1343 = vunpack.c.l.b16 %v291
  %v1344 = vunpack.c.l.b16 %v292
  %v1345 = vunpack.c.l.b16 %v293
  %v1346 = vunpack.c.l.b16 %v294
  %v1347 = vunpack.c.l.b16 %v295
  %v1348 = vunpack.c.l.b16 %v296
  %v1349 = vunpack.c.l.b16 %v297
  %v1350 = vunpack.c.l.b16 %v298
  %v1351 = vunpack.c.l.b16 %v299
  %v1352 = vunpack.c.l.b16 %v300
  %v1353 = vunpack.c.l.b16 %v301
  %v1354 = vunpack.c.l.b16 %v302
  %v1355 = vunpack.c.l.b16 %v303
  %v1356 = vunpack.c.l.b16 %v304
  %v1357 = vunpack.c.l.b16 %v305
  %v1358 = vunpack.c.l.b16 %v306
  %v1359 = vunpack.c.l.b16 %v307
  %v1360 = vunpack.c.l.b16 %v308
  %v1361 = vunpack.c.l.b16 %v309
  %v1362 = vunpack.c.l.b16 %v310
  %v1363 = vunpack.c.l.b16 %v311
  %v1364 = vunpack.c.l.b16 %v312
  %v1365 = vunpack.c.l.b16 %v313
  %v1366 = vunpack.c.l.b16 %v314
  %v1367 = vunpack.c.l.b16 %v315
  %v1368 = vunpack.c.l.b16 %v316
  %v1369 = vunpack.c.l.b16 %v317
  %v1370 = vunpack.c.l.b16 %v318
  %v1371 = vunpack.c.l.b16 %v319
  %v1372 = vunpack.c.l.b16 %v320
  %v1373 = vunpack.c.l.b16 %v321
  %v1374 = vunpack.c.l.b16 %v322
  %v1375 = vunpack.c.l.b16 %v323
  %v1376 = vunpack.c.l.b16 %v324
  %v1377 = vunpack.c.l.b16 %v325
  %v1378 = vunpack.c.l.b16 %v326
  %v1379 = vunpack.c.l.b16 %v327
  %v1380 = vunpack.c.l.b16 %v328
  %v1381 = vunpack.c.l.b16 %v329
  %v1382 = vunpack.c.l.b16 %v330
  %v1383 = vunpack.c.l.b16 %v331
  %v1384 = vunpack.c.l.b16 %v332
  %v1385 = vunpack.c.l.b16 %v333
  %v1386 = vunpack.c.l.b16 %v334
  %v1387 = vunpack.c.l.b16 %v335
  %v1388 = vunpack.c.l.b16 %v336
  %v1389 = vunpack.c.l.b16 %v337
  %v1390 = vunpack.c.l.b16 %v338
  %v1391 = vunpack.c.l.b16 %v339
  %v1392 = vunpack.c.l.b16 %v340
  %v1393 = vunpack.c.l.b16 %v341
  %v1394 = vunpack.c.l.b16 %v342
  %v1395 = vunpack.c.l.b16 %v343
  %v1396 = vunpack.c.l.b16 %v344
  %v1397 = vunpack.c.l.b16 %v345
  %v1398 = vunpack.c.l.b16 %v346
  %v1399 = vunpack.c.l.b16 %v347
  %v1400 = vunpack.c.l.b16 %v348
  %v1401 = vunpack.c.l.b16 %v349
  %v1402 = vunpack.c.l.b16 %v350
  %v1403 = vunpack.c.l.b16 %v351
  %v1404 = vunpack.c.l.b16 %v352
  %v1405 = vunpack.c.l.b16 %v353
  %v1406 = vunpack.c.l.b16 %v354
  %v1407 = vunpack.c.l.b16 %v355
  %v1408 = vunpack.c.l.b16 %v356
  %v1409 = vunpack.c.l.b16 %v357
  %v1410 = vunpack.c.l.b16 %v358
  %v1411 = vunpack.c.l.b16 %v359
  %v1412 = vunpack.c.l.b16 %v360
  %v1413 = vunpack.c.l.b16 %v361
  %v1414 = vunpack.c.l.b16 %v362
  %v1415 = vunpack.c.l.b16 %v363
  %v1416 = vunpack.c.l.b16 %v364
  %v1417 = vunpack.c.l.b16 %v365
  %v1418 = vunpack.c.l.b16 %v366
  %v1419 = vunpack.c.l.b16 %v367
  %v1420 = vunpack.c.l.b16 %v368
  %v1421 = vunpack.c.l.b16 %v369
  %v1422 = vunpack.c.l.b16 %v370
  %v1423 = vunpack.c.l.b16 %v371
  %v1424 = vunpack.c.l.b16 %v372
  %v1425 = vunpack.c.l.b16 %v373
  %v1426 = vunpack.c.l.b16 %v374
  %v1427 = vunpack.c.l.b16 %v375
  %v1428 = vunpack.c.l.b16 %v376
  %v1429 = vunpack.c.l.b16 %v377
  %v1430 = vunpack.c.l.b16 %v378
  %v1431 = vunpack.c.l.b16 %v379
  %v1432 = vunpack.c.l.b16 %v380
  %v1433 = vunpack.c.l.b16 %v381
  %v1434 = vunpack.c.l.b16 %v382
  %v1435 = vunpack.c.l.b16 %v383
  %v1436 = vunpack.c.l.b16 %v384
  %v1437 = vunpack.c.l.b16 %v385
  %v1438 = vunpack.c.l.b16 %v386
  %v1439 = vunpack.c.l.b16 %v387
  %v1440 = vunpack.c.l.b16 %v388
  %v1441 = vunpack.c.l.b16 %v389
  %v1442 = vunpack.c.l.b16 %v390
  %v1443 = vunpack.c.l.b16 %v391
  %v1444 = vunpack.c.l.b16 %v392
  %v1445 = vunpack.c.l.b16 %v393
  %v1446 = vunpack.c.l.b16 %v394
  %v1447 = vunpack.c.l.b16 %v395
  %v1448 = vunpack.c.l.b16 %v396
  %v1449 = vunpack.c.l.b16 %v397
  %v1450 = vunpack.c.l.b16 %v398
  %v1451 = vunpack.c.l.b16 %v399
  %v1452 = vunpack.c.l.b16 %v400
  %v1453 = vunpack.c.l.b16 %v401
  %v1454 = vunpack.c.l.b16 %v402
  %v1455 = vunpack.c.l.b16 %v403
  %v1456 = vunpack.c.l.b16 %v404
  %v1457 = vunpack.c.l.b16 %v405
  %v1458 = vunpack.c.l.b16 %v406
  %v1459 = vunpack.c.l.b16 %v407
  %v1460 = vunpack.c.l.b16 %v408
  %v1461 = vunpack.c.l.b16 %v409
  %v1462 = vunpack.c.l.b16 %v410
  %v1463 = vunpack.c.l.b16 %v411
  %v1464 = vunpack.c.l.b16 %v412
  %v1465 = vunpack.c.l.b16 %v413
  %v1466 = vunpack.c.l.b16 %v414
  %v1467 = vunpack.c.l.b16 %v415
  %v1468 = vunpack.c.l.b16 %v416
  %v1469 = vunpack.c.l.b16 %v417
  %v1470 = vunpack.c.l.b16 %v418
  %v1471 = vunpack.c.l.b16 %v419
  %v1472 = vunpack.c.l.b16 %v420
  %v1473 = vunpack.c.l.b16 %v421
  %v1474 = vunpack.c.l.b16 %v422
  %v1475 = vunpack.c.l.b16 %v423
  %v1476 = vunpack.c.l.b16 %v424
  %v1477 = vunpack.c.l.b16 %v425
  %v1478 = vunpack.c.l.b16 %v426
  %v1479 = vunpack.c.l.b16 %v427
  %v1480 = vunpack.c.l.b16 %v428
  %v1481 = vunpack.c.l.b16 %v429
  %v1482 = vunpack.c.l.b16 %v430
  %v1483 = vunpack.c.l.b16 %v431
  %v1484 = vunpack.c.l.b16 %v432
  %v1485 = vunpack.c.l.b16 %v433
  %v1486 = vunpack.c.l.b16 %v434
  %v1487 = vunpack.c.l.b16 %v435
  %v1488 = vunpack.c.l.b16 %v436
  %v1489 = vunpack.c.l.b16 %v437
  %v1490 = vunpack.c.l.b16 %v438
  %v1491 = vunpack.c.l.b16 %v439
  %v1492 = vunpack.c.l.b16 %v440
  %v1493 = vunpack.c.l.b16 %v441
  %v1494 = vunpack.c.l.b16 %v442
  %v1495 = vunpack.c.l.b16 %v443
  %v1496 = vunpack.c.l.b16 %v444
  %v1497 = vunpack.c.l.b16 %v445
  %v1498 = vunpack.c.l.b16 %v446
  %v1499 = vunpack.c.l.b16 %v447
  %v1500 = vunpack.c.l.b16 %v448
  %v1501 = vunpack.c.l.b16 %v449
  %v1502 = vunpack.c.l.b16 %v450
  %v1503 = vunpack.c.l.b16 %v451
  %v1504 = vunpack.c.l.b16 %v452
  %v1505 = vunpack.c.l.b16 %v453
  %v1506 = vunpack.c.l.b16 %v454
  %v1507 = vunpack.c.l.b16 %v455
  %v1508 = vunpack.c.l.b16 %v456
  %v1509 = vunpack.c.l.b16 %v457
  %v1510 = vunpack.c.l.b16 %v458
  %v1511 = vunpack.c.l.b16 %v459
  %v1512 = vunpack.c.l.b16 %v460
  %v1513 = vunpack.c.l.b16 %v461
  %v1514 = vunpack.c.l.b16 %v462
  %v1515 = vunpack.c.l.b16 %v463
  %v1516 = vunpack.c.l.b16 %v464
  %v1517 = vunpack.c.l.b16 %v465
  %v1518 = vunpack.c.l.b16 %v466
  %v1519 = vunpack.c.l.b16 %v467
  %v1520 = vunpack.c.l.b16 %v468
  %v1521 = vunpack.c.l.b16 %v469
  %v1522 = vpack.c.b16 %v1123, %v1122
  %v1523 = vpack.c.b16 %v1125, %v1124
  %v1524 = vpack.c.b16 %v1127, %v1126
  %v1525 = vpack.c.b16 %v1129, %v1128
  %v1526 = vpack.c.b16 %v1131, %v1130
  %v1527 = vpack.c.b16 %v1133, %v1132
  %v1528 = vpack.c.b16 %v1135, %v1134
  %v1529 = vpack.c.b16 %v1137, %v1136
  %v1530 = vpack.c.b16 %v1139, %v1138
  %v1531 = vpack.c.b16 %v1141, %v1140
  %v1532 = vpack.c.b16 %v1143, %v1142
  %v1533 = vpack.c.b16 %v1145, %v1144
  %v1534 = vpack.c.b16 %v1147, %v1146
  %v1535 = vpack.c.b16 %v1149, %v1148
  %v1536 = vpack.c.b16 %v1151, %v1150
  %v1537 = vpack.c.b16 %v1153, %v1152
  %v1538 = vpack.c.b16 %v1155, %v1154
  %v1539 = vpack.c.b16 %v1157, %v1156
  %v1540 = vpack.c.b16 %v1159, %v1158
  %v1541 = vpack.c.b16 %v1161, %v1160
  %v1542 = vpack.c.b16 %v1163, %v1162
  %v1543 = vpack.c.b16 %v1165, %v1164
  %v1544 = vpack.c.b16 %v1167, %v1166
  %v1545 = vpack.c.b16 %v1169, %v1168
  %v1546 = vpack.c.b16 %v1171, %v1170
  %v1547 = vpack.c.b16 %v1173, %v1172
  %v1548 = vpack.c.b16 %v1175, %v1174
  %v1549 = vpack.c.b16 %v1177, %v1176
  %v1550 = vpack.c.b16 %v1179, %v1178
  %v1551 = vpack.c.b16 %v1181, %v1180
  %v1552 = vpack.c.b16 %v1183, %v1182
  %v1553 = vpack.c.b16 %v1185, %v1184
  %v1554 = vpack.c.b16 %v1187, %v1186
  %v1555 = vpack.c.b16 %v1189, %v1188
  %v1556 = vpack.c.b16 %v1191, %v1190
  %v1557 = vpack.c.b16 %v1193, %v1192
  %v1558 = vpack.c.b16 %v1195, %v1194
  %v1559 = vpack.c.b16 %v1197, %v1196
  %v1560 = vpack.c.b16 %v1199, %v1198
  %v1561 = vpack.c.b16 %v1201, %v1200
  %v1562 = vpack.c.b16 %v1203, %v1202
  %v1563 = vpack.c.b16 %v1205, %v1204
  %v1564 = vpack.c.b16 %v1207, %v1206
  %v1565 = vpack.c.b16 %v1209, %v1208
  %v1566 = vpack.c.b16 %v1211, %v1210
  %v1567 = vpack.c.b16 %v1213, %v1212
  %v1568 = vpack.c.b16 %v1215, %v1214
  %v1569 = vpack.c.b16 %v1217, %v1216
  %v1570 = vpack.c.b16 %v1219, %v1218
  %v1571 = vpack.c.b16 %v1221, %v1220
  %v1572 = vpack.c.b16 %v1223, %v1222
  %v1573 = vpack.c.b16 %v1225, %v1224
  %v1574 = vpack.c.b16 %v1227, %v1226
  %v1575 = vpack.c.b16 %v1229, %v1228
  %v1576 = vpack.c.b16 %v1231, %v1230
  %v1577 = vpack.c.b16 %v1233, %v1232
  %v1578 = vpack.c.b16 %v1235, %v1234
  %v1579 = vpack.c.b16 %v1237, %v1236
  %v1580 = vpack.c.b16 %v1239, %v1238
  %v1581 = vpack.c.b16 %v1241, %v1240
  %v1582 = vpack.c.b16 %v1243, %v1242
  %v1583 = vpack.c.b16 %v1245, %v1244
  %v1584 = vpack.c.b16 %v1247, %v1246
  %v1585 = vpack.c.b16 %v1249, %v1248
  %v1586 = vpack.c.b16 %v1251, %v1250
  %v1587 = vpack.c.b16 %v1253, %v1252
  %v1588 = vpack.c.b16 %v1255, %v1254
  %v1589 = vpack.c.b16 %v1257, %v1256
  %v1590 = vpack.c.b16 %v1259, %v1258
  %v1591 = vpack.c.b16 %v1261, %v1260
  %v1592 = vpack.c.b16 %v1263, %v1262
  %v1593 = vpack.c.b16 %v1265, %v1264
  %v1594 = vpack.c.b16 %v1267, %v1266
  %v1595 = vpack.c.b16 %v1269, %v1268
  %v1596 = vpack.c.b16 %v1271, %v1270
  %v1597 = vpack.c.b16 %v1273, %v1272
  %v1598 = vpack.c.b16 %v1275, %v1274
  %v1599 = vpack.c.b16 %v1277, %v1276
  %v1600 = vpack.c.b16 %v1279, %v1278
  %v1601 = vpack.c.b16 %v1281, %v1280
  %v1602 = vpack.c.b16 %v1283, %v1282
  %v1603 = vpack.c.b16 %v1285, %v1284
  %v1604 = vpack.c.b16 %v1287, %v1286
  %v1605 = vpack.c.b16 %v1289, %v1288
  %v1606 = vpack.c.b16 %v1291, %v1290
  %v1607 = vpack.c.b16 %v1293, %v1292
  %v1608 = vpack.c.b16 %v1295, %v1294
  %v1609 = vpack.c.b16 %v1297, %v1296
  %v1610 = vpack.c.b16 %v1299, %v1298
  %v1611 = vpack.c.b16 %v1301, %v1300
  %v1612 = vpack.c.b16 %v1303, %v1302
  %v1613 = vpack.c.b16 %v1305, %v1304
  %v1614 = vpack.c.b16 %v1307, %v1306
  %v1615 = vpack.c.b16 %v1309, %v1308
  %v1616 = vpack.c.b16 %v1311, %v1310
  %v1617 = vpack.c.b16 %v1313, %v1312
  %v1618 = vpack.c.b16 %v1315, %v1314
  %v1619 = vpack.c.b16 %v1317, %v1316
  %v1620 = vpack.c.b16 %v1319, %v1318
  %v1621 = vpack.c.b16 %v1321, %v1320
  %v1622 = vpack.c.b16 %v1323, %v1322
  %v1623 = vpack.c.b16 %v1325, %v1324
  %v1624 = vpack.c.b16 %v1327, %v1326
  %v1625 = vpack.c.b16 %v1329, %v1328
  %v1626 = vpack.c.b16 %v1331, %v1330
  %v1627 = vpack.c.b16 %v1333, %v1332
  %v1628 = vpack.c.b16 %v1335, %v1334
  %v1629 = vpack.c.b16 %v1337, %v1336
  %v1630 = vpack.c.b16 %v1339, %v1338
  %v1631 = vpack.c.b16 %v1341, %v1340
  %v1632 = vpack.c.b16 %v1343, %v1342
  %v1633 = vpack.c.b16 %v1345, %v1344
  %v1634 = vpack.c.b16 %v1347, %v1346
  %v1635 = vpack.c.b16 %v1349, %v1348
  %v1636 = vpack.c.b16 %v1351, %v1350
  %v1637 = vpack.c.b16 %v1353, %v1352
  %v1638 = vpack.c.b16 %v1355, %v1354
  %v1639 = vpack.c.b16 %v1357, %v1356
  %v1640 = vpack.c.b16 %v1359, %v1358
  %v1641 = vpack.c.b16 %v1361, %v1360
  %v1642 = vpack.c.b16 %v1363, %v1362
  %v1643 = vpack.c.b16 %v1365, %v1364
  %v1644 = vpack.c.b16 %v1367, %v1366
  %v1645 = vpack.c.b16 %v1369, %v1368
  %v1646 = vpack.c.b16 %v1371, %v1370
  %v1647 = vpack.c.b16 %v1373, %v1372
  %v1648 = vpack.c.b16 %v1375, %v1374
  %v1649 = vpack.c.b16 %v1377, %v1376
  %v1650 = vpack.c.b16 %v1379, %v1378
  %v1651 = vpack.c.b16 %v1381, %v1380
  %v1652 = vpack.c.b16 %v1383, %v1382
  %v1653 = vpack.c.b16 %v1385, %v1384
  %v1654 = vpack.c.b16 %v1387, %v1386
  %v1655 = vpack.c.b16 %v1389, %v1388
  %v1656 = vpack.c.b16 %v1391, %v1390
  %v1657 = vpack.c.b16 %v1393, %v1392
  %v1658 = vpack.c.b16 %v1395, %v1394
  %v1659 = vpack.c.b16 %v1397, %v1396
  %v1660 = vpack.c.b16 %v1399, %v1398
  %v1661 = vpack.c.b16 %v1401, %v1400
  %v1662 = vpack.c.b16 %v1403, %v1402
  %v1663 = vpack.c.b16 %v1405, %v1404
  %v1664 = vpack.c.b16 %v1407, %v1406
  %v1665 = vpack.c.b16 %v1409, %v1408
  %v1666 = vpack.c.b16 %v1411, %v1410
  %v1667 = vpack.c.b16 %v1413, %v1412
  %v1668 = vpack.c.b16 %v1415, %v1414
  %v1669 = vpack.c.b16 %v1417, %v1416
  %v1670 = vpack.c.b16 %v1419, %v1418
  %v1671 = vpack.c.b16 %v1421, %v1420
  %v1672 = vpack.c.b16 %v1423, %v1422
  %v1673 = vpack.c.b16 %v1425, %v1424
  %v1674 = vpack.c.b16 %v1427, %v1426
  %v1675 = vpack.c.b16 %v1429, %v1428
  %v1676 = vpack.c.b16 %v1431, %v1430
  %v1677 = vpack.c.b16 %v1433, %v1432
  %v1678 = vpack.c.b16 %v1435, %v1434
  %v1679 = vpack.c.b16 %v1437, %v1436
  %v1680 = vpack.c.b16 %v1439, %v1438
  %v1681 = vpack.c.b16 %v1441, %v1440
  %v1682 = vpack.c.b16 %v1443, %v1442
  %v1683 = vpack.c.b16 %v1445, %v1444
  %v1684 = vpack.c.b16 %v1447, %v1446
  %v1685 = vpack.c.b16 %v1449, %v1448
  %v1686 = vpack.c.b16 %v1451, %v1450
  %v1687 = vpack.c.b16 %v1453, %v1452
  %v1688 = vpack.c.b16 %v1455, %v1454
  %v1689 = vpack.c.b16 %v1457, %v1456
  %v1690 = vpack.c.b16 %v1459, %v1458
  %v1691 = vpack.c.b16 %v1461, %v1460
  %v1692 = vpack.c.b16 %v1463, %v1462
  %v1693 = vpack.c.b16 %v1465, %v1464
  %v1694 = vpack.c.b16 %v1467, %v1466
  %v1695 = vpack.c.b16 %v1469, %v1468
  %v1696 = vpack.c.b16 %v1471, %v1470
  %v1697 = vpack.c.b16 %v1473, %v1472
  %v1698 = vpack.c.b16 %v1475, %v1474
  %v1699 = vpack.c.b16 %v1477, %v1476
  %v1700 = vpack.c.b16 %v1479, %v1478
  %v1701 = vpack.c.b16 %v1481, %v1480
  %v1702 = vpack.c.b16 %v1483, %v1482
  %v1703 = vpack.c.b16 %v1485, %v1484
  %v1704 = vpack.c.b16 %v1487, %v1486
  %v1705 = vpack.c.b16 %v1489, %v1488
  %v1706 = vpack.c.b16 %v1491, %v1490
  %v1707 = vpack.c.b16 %v1493, %v1492
  %v1708 = vpack.c.b16 %v1495, %v1494
  %v1709 = vpack.c.b16 %v1497, %v1496
  %v1710 = vpack.c.b16 %v1499, %v1498
  %v1711 = vpack.c.b16 %v1501, %v1500
  %v1712 = vpack.c.b16 %v1503, %v1502
  %v1713 = vpack.c.b16 %v1505, %v1504
  %v1714 = vpack.c.b16 %v1507, %v1506
  %v1715 = vpack.c.b16 %v1509, %v1508
  %v1716 = vpack.c.b16 %v1511, %v1510
  %v1717 = vpack.c.b16 %v1513, %v1512
  %v1718 = vpack.c.b16 %v1515, %v1514
  %v1719 = vpack.c.b16 %v1517, %v1516
  %v1720 = vpack.c.b16 %v1519, %v1518
  %v1721 = vpack.c.b16 %v1521, %v1520
  %1922 = vmatprep.subr.bf16.mxu0 0
  %1923 = vmatpush1.bf16.msra.mxu0 %v1522
  %1924 = vmatprep.subr.bf16.mxu0 0
  %1925 = vmatpush1.bf16.msra.mxu0 %v1523
  %1926 = vmatprep.subr.bf16.mxu0 0
  %1927 = vmatpush1.bf16.msra.mxu0 %v1524
  %1928 = vmatprep.subr.bf16.mxu0 0
  %1929 = vmatpush1.bf16.msra.mxu0 %v1525
  %1930 = vmatprep.subr.bf16.mxu0 0
  %1931 = vmatpush1.bf16.msra.mxu0 %v1526
  %1932 = vmatprep.subr.bf16.mxu0 0
  %1933 = vmatpush1.bf16.msra.mxu0 %v1527
  %1934 = vmatprep.subr.bf16.mxu0 0
  %1935 = vmatpush1.bf16.msra.mxu0 %v1528
  %1936 = vmatprep.subr.bf16.mxu0 0
  %1937 = vmatpush1.bf16.msra.mxu0 %v1529
  %1938 = vmatprep.subr.bf16.mxu0 0
  %1939 = vmatpush1.bf16.msra.mxu0 %v1530
  %1940 = vmatprep.subr.bf16.mxu0 0
  %1941 = vmatpush1.bf16.msra.mxu0 %v1531
  %1942 = vmatprep.subr.bf16.mxu0 0
  %1943 = vmatpush1.bf16.msra.mxu0 %v1532
  %1944 = vmatprep.subr.bf16.mxu0 0
  %1945 = vmatpush1.bf16.msra.mxu0 %v1533
  %1946 = vmatprep.subr.bf16.mxu0 0
  %1947 = vmatpush1.bf16.msra.mxu0 %v1534
  %1948 = vmatprep.subr.bf16.mxu0 0
  %1949 = vmatpush1.bf16.msra.mxu0 %v1535
  %1950 = vmatprep.subr.bf16.mxu0 0
  %1951 = vmatpush1.bf16.msra.mxu0 %v1536
  %1952 = vmatprep.subr.bf16.mxu0 0
  %1953 = vmatpush1.bf16.msra.mxu0 %v1537
  %1954 = vmatprep.mubr.bf16.mxu0 %v623
  %1955 = vmatmul.mubr.bf16.gmra.mrb[0].mxu0 %v622
  %v1956 = vpop.f32.mrb[0].mxu0
  %v1957 = vadd.f32 0.0, %v1956
  %v1958 = vpop.f32.mrb[0].mxu0
  %v1959 = vpop.f32.mrb[0].mxu0
  %v1960 = vadd.f32 0.0, %v1959
  %v1961 = vpop.f32.mrb[0].mxu0
  %1962 = vmatprep.mubr.bf16.mxu0 %v648
  %1963 = vmatmul.mubr.bf16.gmra.mrb[0].mxu0 %v647
  %v1964 = vpop.f32.mrb[0].mxu0
  %v1965 = vadd.f32 0.0, %v1964
  %v1966 = vpop.f32.mrb[0].mxu0
  %v1967 = vpop.f32.mrb[0].mxu0
  %v1968 = vadd.f32 0.0, %v1967
  %v1969 = vpop.f32.mrb[0].mxu0
  %1970 = vdwg.mxu0
  %1971 = vmatprep.subr.bf16.mxu0 0
  %1972 = vmatpush1.bf16.msra.mxu0 %v1538
  %1973 = vmatprep.subr.bf16.mxu0 0
  %1974 = vmatpush1.bf16.msra.mxu0 %v1539
  %1975 = vmatprep.subr.bf16.mxu0 0
  %1976 = vmatpush1.bf16.msra.mxu0 %v1540
  %1977 = vmatprep.subr.bf16.mxu0 0
  %1978 = vmatpush1.bf16.msra.mxu0 %v1541
  %1979 = vmatprep.subr.bf16.mxu0 0
  %1980 = vmatpush1.bf16.msra.mxu0 %v1542
  %1981 = vmatprep.subr.bf16.mxu0 0
  %1982 = vmatpush1.bf16.msra.mxu0 %v1543
  %1983 = vmatprep.subr.bf16.mxu0 0
  %1984 = vmatpush1.bf16.msra.mxu0 %v1544
  %1985 = vmatprep.subr.bf16.mxu0 0
  %1986 = vmatpush1.bf16.msra.mxu0 %v1545
  %1987 = vmatprep.subr.bf16.mxu0 0
  %1988 = vmatpush1.bf16.msra.mxu0 %v1546
  %1989 = vmatprep.subr.bf16.mxu0 0
  %1990 = vmatpush1.bf16.msra.mxu0 %v1547
  %1991 = vmatprep.subr.bf16.mxu0 0
  %1992 = vmatpush1.bf16.msra.mxu0 %v1548
  %1993 = vmatprep.subr.bf16.mxu0 0
  %1994 = vmatpush1.bf16.msra.mxu0 %v1549
  %1995 = vmatprep.subr.bf16.mxu0 0
  %1996 = vmatpush1.bf16.msra.mxu0 %v1550
  %1997 = vmatprep.subr.bf16.mxu0 0
  %1998 = vmatpush1.bf16.msra.mxu0 %v1551
  %1999 = vmatprep.subr.bf16.mxu0 0
  %2000 = vmatpush1.bf16.msra.mxu0 %v1552
  %2001 = vmatprep.subr.bf16.mxu0 0
  %2002 = vmatpush1.bf16.msra.mxu0 %v1553
  %2003 = vmatprep.mubr.bf16.mxu0 %v625
  %2004 = vmatmul.mubr.bf16.gmra.mrb[0].mxu0 %v624
  %v2005 = vpop.f32.mrb[0].mxu0
  %v2006 = vadd.f32 %v1957, %v2005
  %v2007 = vpop.f32.mrb[0].mxu0
  %v2008 = vpop.f32.mrb[0].mxu0
  %v2009 = vadd.f32 %v1960, %v2008
  %v2010 = vpop.f32.mrb[0].mxu0
  %2011 = vmatprep.mubr.bf16.mxu0 %v650
  %2012 = vmatmul.mubr.bf16.gmra.mrb[0].mxu0 %v649
  %v2013 = vpop.f32.mrb[0].mxu0
  %v2014 = vadd.f32 %v1965, %v2013
  %v2015 = vpop.f32.mrb[0].mxu0
  %v2016 = vpop.f32.mrb[0].mxu0
  %v2017 = vadd.f32 %v1968, %v2016
  %v2018 = vpop.f32.mrb[0].mxu0
  %2019 = vdwg.mxu0
  %2020 = vmatprep.subr.bf16.mxu0 0
  %2021 = vmatpush1.bf16.msra.mxu0 %v1554
  %2022 = vmatprep.subr.bf16.mxu0 0
  %2023 = vmatpush1.bf16.msra.mxu0 %v1555
  %2024 = vmatprep.subr.bf16.mxu0 0
  %2025 = vmatpush1.bf16.msra.mxu0 %v1556
  %2026 = vmatprep.subr.bf16.mxu0 0
  %2027 = vmatpush1.bf16.msra.mxu0 %v1557
  %2028 = vmatprep.subr.bf16.mxu0 0
  %2029 = vmatpush1.bf16.msra.mxu0 %v1558
  %2030 = vmatprep.subr.bf16.mxu0 0
  %2031 = vmatpush1.bf16.msra.mxu0 %v1559
  %2032 = vmatprep.subr.bf16.mxu0 0
  %2033 = vmatpush1.bf16.msra.mxu0 %v1560
  %2034 = vmatprep.subr.bf16.mxu0 0
  %2035 = vmatpush1.bf16.msra.mxu0 %v1561
  %2036 = vmatprep.subr.bf16.mxu0 0
  %2037 = vmatpush1.bf16.msra.mxu0 %v1562
  %2038 = vmatprep.subr.bf16.mxu0 0
  %2039 = vmatpush1.bf16.msra.mxu0 %v1563
  %2040 = vmatprep.subr.bf16.mxu0 0
  %2041 = vmatpush1.bf16.msra.mxu0 %v1564
  %2042 = vmatprep.subr.bf16.mxu0 0
  %2043 = vmatpush1.bf16.msra.mxu0 %v1565
  %2044 = vmatprep.subr.bf16.mxu0 0
  %2045 = vmatpush1.bf16.msra.mxu0 %v1566
  %2046 = vmatprep.subr.bf16.mxu0 0
  %2047 = vmatpush1.bf16.msra.mxu0 %v1567
  %2048 = vmatprep.subr.bf16.mxu0 0
  %2049 = vmatpush1.bf16.msra.mxu0 %v1568
  %2050 = vmatprep.subr.bf16.mxu0 0
  %2051 = vmatpush1.bf16.msra.mxu0 %v1569
  %2052 = vmatprep.mubr.bf16.mxu0 %v627
  %2053 = vmatmul.mubr.bf16.gmra.mrb[0].mxu0 %v626
  %v2054 = vpop.f32.mrb[0].mxu0
  %v2055 = vadd.f32 %v2006, %v2054
  %v2056 = vpop.f32.mrb[0].mxu0
  %v2057 = vpop.f32.mrb[0].mxu0
  %v2058 = vadd.f32 %v2009, %v2057
  %v2059 = vpop.f32.mrb[0].mxu0
  %2060 = vmatprep.mubr.bf16.mxu0 %v652
  %2061 = vmatmul.mubr.bf16.gmra.mrb[0].mxu0 %v651
  %v2062 = vpop.f32.mrb[0].mxu0
  %v2063 = vadd.f32 %v2014, %v2062
  %v2064 = vpop.f32.mrb[0].mxu0
  %v2065 = vpop.f32.mrb[0].mxu0
  %v2066 = vadd.f32 %v2017, %v2065
  %v2067 = vpop.f32.mrb[0].mxu0
  %2068 = vdwg.mxu0
  %2069 = vmatprep.subr.bf16.mxu0 0
  %2070 = vmatpush1.bf16.msra.mxu0 %v1570
  %2071 = vmatprep.subr.bf16.mxu0 0
  %2072 = vmatpush1.bf16.msra.mxu0 %v1571
  %2073 = vmatprep.subr.bf16.mxu0 0
  %2074 = vmatpush1.bf16.msra.mxu0 %v1572
  %2075 = vmatprep.subr.bf16.mxu0 0
  %2076 = vmatpush1.bf16.msra.mxu0 %v1573
  %2077 = vmatprep.subr.bf16.mxu0 0
  %2078 = vmatpush1.bf16.msra.mxu0 %v1574
  %2079 = vmatprep.subr.bf16.mxu0 0
  %2080 = vmatpush1.bf16.msra.mxu0 %v1575
  %2081 = vmatprep.subr.bf16.mxu0 0
  %2082 = vmatpush1.bf16.msra.mxu0 %v1576
  %2083 = vmatprep.subr.bf16.mxu0 0
  %2084 = vmatpush1.bf16.msra.mxu0 %v1577
  %2085 = vmatprep.subr.bf16.mxu0 0
  %2086 = vmatpush1.bf16.msra.mxu0 %v1578
  %2087 = vmatprep.subr.bf16.mxu0 0
  %2088 = vmatpush1.bf16.msra.mxu0 %v1579
  %2089 = vmatprep.subr.bf16.mxu0 0
  %2090 = vmatpush1.bf16.msra.mxu0 %v1580
  %2091 = vmatprep.subr.bf16.mxu0 0
  %2092 = vmatpush1.bf16.msra.mxu0 %v1581
  %2093 = vmatprep.subr.bf16.mxu0 0
  %2094 = vmatpush1.bf16.msra.mxu0 %v1582
  %2095 = vmatprep.subr.bf16.mxu0 0
  %2096 = vmatpush1.bf16.msra.mxu0 %v1583
  %2097 = vmatprep.subr.bf16.mxu0 0
  %2098 = vmatpush1.bf16.msra.mxu0 %v1584
  %2099 = vmatprep.subr.bf16.mxu0 0
  %2100 = vmatpush1.bf16.msra.mxu0 %v1585
  %2101 = vmatprep.mubr.bf16.mxu0 %v629
  %2102 = vmatmul.mubr.bf16.gmra.mrb[0].mxu0 %v628
  %v2103 = vpop.f32.mrb[0].mxu0
  %v2104 = vadd.f32 %v2055, %v2103
  %v2105 = vpop.f32.mrb[0].mxu0
  %v2106 = vpop.f32.mrb[0].mxu0
  %v2107 = vadd.f32 %v2058, %v2106
  %v2108 = vpop.f32.mrb[0].mxu0
  %2109 = vmatprep.mubr.bf16.mxu0 %v654
  %2110 = vmatmul.mubr.bf16.gmra.mrb[0].mxu0 %v653
  %v2111 = vpop.f32.mrb[0].mxu0
  %v2112 = vadd.f32 %v2063, %v2111
  %v2113 = vpop.f32.mrb[0].mxu0
  %v2114 = vpop.f32.mrb[0].mxu0
  %v2115 = vadd.f32 %v2066, %v2114
  %v2116 = vpop.f32.mrb[0].mxu0
  %2117 = vdwg.mxu0
  %2118 = vmatprep.subr.bf16.mxu0 0
  %2119 = vmatpush1.bf16.msra.mxu0 %v1586
  %2120 = vmatprep.subr.bf16.mxu0 0
  %2121 = vmatpush1.bf16.msra.mxu0 %v1587
  %2122 = vmatprep.subr.bf16.mxu0 0
  %2123 = vmatpush1.bf16.msra.mxu0 %v1588
  %2124 = vmatprep.subr.bf16.mxu0 0
  %2125 = vmatpush1.bf16.msra.mxu0 %v1589
  %2126 = vmatprep.subr.bf16.mxu0 0
  %2127 = vmatpush1.bf16.msra.mxu0 %v1590
  %2128 = vmatprep.subr.bf16.mxu0 0
  %2129 = vmatpush1.bf16.msra.mxu0 %v1591
  %2130 = vmatprep.subr.bf16.mxu0 0
  %2131 = vmatpush1.bf16.msra.mxu0 %v1592
  %2132 = vmatprep.subr.bf16.mxu0 0
  %2133 = vmatpush1.bf16.msra.mxu0 %v1593
  %2134 = vmatprep.subr.bf16.mxu0 0
  %2135 = vmatpush1.bf16.msra.mxu0 %v1594
  %2136 = vmatprep.subr.bf16.mxu0 0
  %2137 = vmatpush1.bf16.msra.mxu0 %v1595
  %2138 = vmatprep.subr.bf16.mxu0 0
  %2139 = vmatpush1.bf16.msra.mxu0 %v1596
  %2140 = vmatprep.subr.bf16.mxu0 0
  %2141 = vmatpush1.bf16.msra.mxu0 %v1597
  %2142 = vmatprep.subr.bf16.mxu0 0
  %2143 = vmatpush1.bf16.msra.mxu0 %v1598
  %2144 = vmatprep.subr.bf16.mxu0 0
  %2145 = vmatpush1.bf16.msra.mxu0 %v1599
  %2146 = vmatprep.subr.bf16.mxu0 0
  %2147 = vmatpush1.bf16.msra.mxu0 %v1600
  %2148 = vmatprep.subr.bf16.mxu0 0
  %2149 = vmatpush1.bf16.msra.mxu0 %v1601
  %2150 = vmatprep.mubr.bf16.mxu0 %v631
  %2151 = vmatmul.mubr.bf16.gmra.mrb[0].mxu0 %v630
  %v2152 = vpop.f32.mrb[0].mxu0
  %v2153 = vadd.f32 %v2104, %v2152
  %v2154 = vpop.f32.mrb[0].mxu0
  %v2155 = vpop.f32.mrb[0].mxu0
  %v2156 = vadd.f32 %v2107, %v2155
  %v2157 = vpop.f32.mrb[0].mxu0
  %2158 = vmatprep.mubr.bf16.mxu0 %v656
  %2159 = vmatmul.mubr.bf16.gmra.mrb[0].mxu0 %v655
  %v2160 = vpop.f32.mrb[0].mxu0
  %v2161 = vadd.f32 %v2112, %v2160
  %v2162 = vpop.f32.mrb[0].mxu0
  %v2163 = vpop.f32.mrb[0].mxu0
  %v2164 = vadd.f32 %v2115, %v2163
  %v2165 = vpop.f32.mrb[0].mxu0
  %2166 = vdwg.mxu0
  %2167 = vmatprep.subr.bf16.mxu0 0
  %2168 = vmatpush1.bf16.msra.mxu0 %v1602
  %2169 = vmatprep.subr.bf16.mxu0 0
  %2170 = vmatpush1.bf16.msra.mxu0 %v1603
  %2171 = vmatprep.subr.bf16.mxu0 0
  %2172 = vmatpush1.bf16.msra.mxu0 %v1604
  %2173 = vmatprep.subr.bf16.mxu0 0
  %2174 = vmatpush1.bf16.msra.mxu0 %v1605
  %2175 = vmatprep.subr.bf16.mxu0 0
  %2176 = vmatpush1.bf16.msra.mxu0 %v1606
  %2177 = vmatprep.subr.bf16.mxu0 0
  %2178 = vmatpush1.bf16.msra.mxu0 %v1607
  %2179 = vmatprep.subr.bf16.mxu0 0
  %2180 = vmatpush1.bf16.msra.mxu0 %v1608
  %2181 = vmatprep.subr.bf16.mxu0 0
  %2182 = vmatpush1.bf16.msra.mxu0 %v1609
  %2183 = vmatprep.subr.bf16.mxu0 0
  %2184 = vmatpush1.bf16.msra.mxu0 %v1610
  %2185 = vmatprep.subr.bf16.mxu0 0
  %2186 = vmatpush1.bf16.msra.mxu0 %v1611
  %2187 = vmatprep.subr.bf16.mxu0 0
  %2188 = vmatpush1.bf16.msra.mxu0 %v1612
  %2189 = vmatprep.subr.bf16.mxu0 0
  %2190 = vmatpush1.bf16.msra.mxu0 %v1613
  %2191 = vmatprep.subr.bf16.mxu0 0
  %2192 = vmatpush1.bf16.msra.mxu0 %v1614
  %2193 = vmatprep.subr.bf16.mxu0 0
  %2194 = vmatpush1.bf16.msra.mxu0 %v1615
  %2195 = vmatprep.subr.bf16.mxu0 0
  %2196 = vmatpush1.bf16.msra.mxu0 %v1616
  %2197 = vmatprep.subr.bf16.mxu0 0
  %2198 = vmatpush1.bf16.msra.mxu0 %v1617
  %2199 = vmatprep.mubr.bf16.mxu0 %v633
  %2200 = vmatmul.mubr.bf16.gmra.mrb[0].mxu0 %v632
  %v2201 = vpop.f32.mrb[0].mxu0
  %v2202 = vadd.f32 %v2153, %v2201
  %v2203 = vpop.f32.mrb[0].mxu0
  %v2204 = vpop.f32.mrb[0].mxu0
  %v2205 = vadd.f32 %v2156, %v2204
  %v2206 = vpop.f32.mrb[0].mxu0
  %2207 = vmatprep.mubr.bf16.mxu0 %v658
  %2208 = vmatmul.mubr.bf16.gmra.mrb[0].mxu0 %v657
  %v2209 = vpop.f32.mrb[0].mxu0
  %v2210 = vadd.f32 %v2161, %v2209
  %v2211 = vpop.f32.mrb[0].mxu0
  %v2212 = vpop.f32.mrb[0].mxu0
  %v2213 = vadd.f32 %v2164, %v2212
  %v2214 = vpop.f32.mrb[0].mxu0
  %2215 = vdwg.mxu0
  %2216 = vmatprep.subr.bf16.mxu0 0
  %2217 = vmatpush1.bf16.msra.mxu0 %v1618
  %2218 = vmatprep.subr.bf16.mxu0 0
  %2219 = vmatpush1.bf16.msra.mxu0 %v1619
  %2220 = vmatprep.subr.bf16.mxu0 0
  %2221 = vmatpush1.bf16.msra.mxu0 %v1620
  %2222 = vmatprep.subr.bf16.mxu0 0
  %2223 = vmatpush1.bf16.msra.mxu0 %v1621
  %2224 = vmatprep.subr.bf16.mxu0 0
  %2225 = vmatpush1.bf16.msra.mxu0 %v1622
  %2226 = vmatprep.subr.bf16.mxu0 0
  %2227 = vmatpush1.bf16.msra.mxu0 %v1623
  %2228 = vmatprep.subr.bf16.mxu0 0
  %2229 = vmatpush1.bf16.msra.mxu0 %v1624
  %2230 = vmatprep.subr.bf16.mxu0 0
  %2231 = vmatpush1.bf16.msra.mxu0 %v1625
  %2232 = vmatprep.subr.bf16.mxu0 0
  %2233 = vmatpush1.bf16.msra.mxu0 %v1626
  %2234 = vmatprep.subr.bf16.mxu0 0
  %2235 = vmatpush1.bf16.msra.mxu0 %v1627
  %2236 = vmatprep.subr.bf16.mxu0 0
  %2237 = vmatpush1.bf16.msra.mxu0 %v1628
  %2238 = vmatprep.subr.bf16.mxu0 0
  %2239 = vmatpush1.bf16.msra.mxu0 %v1629
  %2240 = vmatprep.subr.bf16.mxu0 0
  %2241 = vmatpush1.bf16.msra.mxu0 %v1630
  %2242 = vmatprep.subr.bf16.mxu0 0
  %2243 = vmatpush1.bf16.msra.mxu0 %v1631
  %2244 = vmatprep.subr.bf16.mxu0 0
  %2245 = vmatpush1.bf16.msra.mxu0 %v1632
  %2246 = vmatprep.subr.bf16.mxu0 0
  %2247 = vmatpush1.bf16.msra.mxu0 %v1633
  %2248 = vmatprep.mubr.bf16.mxu0 %v635
  %2249 = vmatmul.mubr.bf16.gmra.mrb[0].mxu0 %v634
  %v2250 = vpop.f32.mrb[0].mxu0
  %v2251 = vadd.f32 %v2202, %v2250
  %v2252 = vpop.f32.mrb[0].mxu0
  %v2253 = vpop.f32.mrb[0].mxu0
  %v2254 = vadd.f32 %v2205, %v2253
  %v2255 = vpop.f32.mrb[0].mxu0
  %2256 = vmatprep.mubr.bf16.mxu0 %v660
  %2257 = vmatmul.mubr.bf16.gmra.mrb[0].mxu0 %v659
  %v2258 = vpop.f32.mrb[0].mxu0
  %v2259 = vadd.f32 %v2210, %v2258
  %v2260 = vpop.f32.mrb[0].mxu0
  %v2261 = vpop.f32.mrb[0].mxu0
  %v2262 = vadd.f32 %v2213, %v2261
  %v2263 = vpop.f32.mrb[0].mxu0
  %2264 = vdwg.mxu0
  %2265 = vmatprep.subr.bf16.mxu0 0
  %2266 = vmatpush1.bf16.msra.mxu0 %v1634
  %2267 = vmatprep.subr.bf16.mxu0 0
  %2268 = vmatpush1.bf16.msra.mxu0 %v1635
  %2269 = vmatprep.subr.bf16.mxu0 0
  %2270 = vmatpush1.bf16.msra.mxu0 %v1636
  %2271 = vmatprep.subr.bf16.mxu0 0
  %2272 = vmatpush1.bf16.msra.mxu0 %v1637
  %2273 = vmatprep.subr.bf16.mxu0 0
  %2274 = vmatpush1.bf16.msra.mxu0 %v1638
  %2275 = vmatprep.subr.bf16.mxu0 0
  %2276 = vmatpush1.bf16.msra.mxu0 %v1639
  %2277 = vmatprep.subr.bf16.mxu0 0
  %2278 = vmatpush1.bf16.msra.mxu0 %v1640
  %2279 = vmatprep.subr.bf16.mxu0 0
  %2280 = vmatpush1.bf16.msra.mxu0 %v1641
  %2281 = vmatprep.subr.bf16.mxu0 0
  %2282 = vmatpush1.bf16.msra.mxu0 %v1642
  %2283 = vmatprep.subr.bf16.mxu0 0
  %2284 = vmatpush1.bf16.msra.mxu0 %v1643
  %2285 = vmatprep.subr.bf16.mxu0 0
  %2286 = vmatpush1.bf16.msra.mxu0 %v1644
  %2287 = vmatprep.subr.bf16.mxu0 0
  %2288 = vmatpush1.bf16.msra.mxu0 %v1645
  %2289 = vmatprep.subr.bf16.mxu0 0
  %2290 = vmatpush1.bf16.msra.mxu0 %v1646
  %2291 = vmatprep.subr.bf16.mxu0 0
  %2292 = vmatpush1.bf16.msra.mxu0 %v1647
  %2293 = vmatprep.subr.bf16.mxu0 0
  %2294 = vmatpush1.bf16.msra.mxu0 %v1648
  %2295 = vmatprep.subr.bf16.mxu0 0
  %2296 = vmatpush1.bf16.msra.mxu0 %v1649
  %2297 = vmatprep.mubr.bf16.mxu0 %v637
  %2298 = vmatmul.mubr.bf16.gmra.mrb[0].mxu0 %v636
  %v2299 = vpop.f32.mrb[0].mxu0
  %v2300 = vadd.f32 %v2251, %v2299
  %v2301 = vpop.f32.mrb[0].mxu0
  %v2302 = vpop.f32.mrb[0].mxu0
  %v2303 = vadd.f32 %v2254, %v2302
  %v2304 = vpop.f32.mrb[0].mxu0
  %2305 = vmatprep.mubr.bf16.mxu0 %v662
  %2306 = vmatmul.mubr.bf16.gmra.mrb[0].mxu0 %v661
  %v2307 = vpop.f32.mrb[0].mxu0
  %v2308 = vadd.f32 %v2259, %v2307
  %v2309 = vpop.f32.mrb[0].mxu0
  %v2310 = vpop.f32.mrb[0].mxu0
  %v2311 = vadd.f32 %v2262, %v2310
  %v2312 = vpop.f32.mrb[0].mxu0
  %2313 = vdwg.mxu0
  %2314 = vmatprep.subr.bf16.mxu0 0
  %2315 = vmatpush1.bf16.msra.mxu0 %v1650
  %2316 = vmatprep.subr.bf16.mxu0 0
  %2317 = vmatpush1.bf16.msra.mxu0 %v1651
  %2318 = vmatprep.subr.bf16.mxu0 0
  %2319 = vmatpush1.bf16.msra.mxu0 %v1652
  %2320 = vmatprep.subr.bf16.mxu0 0
  %2321 = vmatpush1.bf16.msra.mxu0 %v1653
  %2322 = vmatprep.subr.bf16.mxu0 0
  %2323 = vmatpush1.bf16.msra.mxu0 %v1654
  %2324 = vmatprep.subr.bf16.mxu0 0
  %2325 = vmatpush1.bf16.msra.mxu0 %v1655
  %2326 = vmatprep.subr.bf16.mxu0 0
  %2327 = vmatpush1.bf16.msra.mxu0 %v1656
  %2328 = vmatprep.subr.bf16.mxu0 0
  %2329 = vmatpush1.bf16.msra.mxu0 %v1657
  %2330 = vmatprep.subr.bf16.mxu0 0
  %2331 = vmatpush1.bf16.msra.mxu0 %v1658
  %2332 = vmatprep.subr.bf16.mxu0 0
  %2333 = vmatpush1.bf16.msra.mxu0 %v1659
  %2334 = vmatprep.subr.bf16.mxu0 0
  %2335 = vmatpush1.bf16.msra.mxu0 %v1660
  %2336 = vmatprep.subr.bf16.mxu0 0
  %2337 = vmatpush1.bf16.msra.mxu0 %v1661
  %2338 = vmatprep.subr.bf16.mxu0 0
  %2339 = vmatpush1.bf16.msra.mxu0 %v1662
  %2340 = vmatprep.subr.bf16.mxu0 0
  %2341 = vmatpush1.bf16.msra.mxu0 %v1663
  %2342 = vmatprep.subr.bf16.mxu0 0
  %2343 = vmatpush1.bf16.msra.mxu0 %v1664
  %2344 = vmatprep.subr.bf16.mxu0 0
  %2345 = vmatpush1.bf16.msra.mxu0 %v1665
  %2346 = vmatprep.mubr.bf16.mxu0 %v639
  %2347 = vmatmul.mubr.bf16.gmra.mrb[0].mxu0 %v638
  %v2348 = vpop.f32.mrb[0].mxu0
  %v2349 = vadd.f32 %v2300, %v2348
  %v2350 = vpop.f32.mrb[0].mxu0
  %v2351 = vpop.f32.mrb[0].mxu0
  %v2352 = vadd.f32 %v2303, %v2351
  %v2353 = vpop.f32.mrb[0].mxu0
  %2354 = vmatprep.mubr.bf16.mxu0 %v664
  %2355 = vmatmul.mubr.bf16.gmra.mrb[0].mxu0 %v663
  %v2356 = vpop.f32.mrb[0].mxu0
  %v2357 = vadd.f32 %v2308, %v2356
  %v2358 = vpop.f32.mrb[0].mxu0
  %v2359 = vpop.f32.mrb[0].mxu0
  %v2360 = vadd.f32 %v2311, %v2359
  %v2361 = vpop.f32.mrb[0].mxu0
  %2362 = vdwg.mxu0
  %2363 = vmatprep.subr.bf16.mxu0 0
  %2364 = vmatpush1.bf16.msra.mxu0 %v1666
  %2365 = vmatprep.subr.bf16.mxu0 0
  %2366 = vmatpush1.bf16.msra.mxu0 %v1667
  %2367 = vmatprep.subr.bf16.mxu0 0
  %2368 = vmatpush1.bf16.msra.mxu0 %v1668
  %2369 = vmatprep.subr.bf16.mxu0 0
  %2370 = vmatpush1.bf16.msra.mxu0 %v1669
  %2371 = vmatprep.subr.bf16.mxu0 0
  %2372 = vmatpush1.bf16.msra.mxu0 %v1670
  %2373 = vmatprep.subr.bf16.mxu0 0
  %2374 = vmatpush1.bf16.msra.mxu0 %v1671
  %2375 = vmatprep.subr.bf16.mxu0 0
  %2376 = vmatpush1.bf16.msra.mxu0 %v1672
  %2377 = vmatprep.subr.bf16.mxu0 0
  %2378 = vmatpush1.bf16.msra.mxu0 %v1673
  %2379 = vmatprep.subr.bf16.mxu0 0
  %2380 = vmatpush1.bf16.msra.mxu0 %v1674
  %2381 = vmatprep.subr.bf16.mxu0 0
  %2382 = vmatpush1.bf16.msra.mxu0 %v1675
  %2383 = vmatprep.subr.bf16.mxu0 0
  %2384 = vmatpush1.bf16.msra.mxu0 %v1676
  %2385 = vmatprep.subr.bf16.mxu0 0
  %2386 = vmatpush1.bf16.msra.mxu0 %v1677
  %2387 = vmatprep.subr.bf16.mxu0 0
  %2388 = vmatpush1.bf16.msra.mxu0 %v1678
  %2389 = vmatprep.subr.bf16.mxu0 0
  %2390 = vmatpush1.bf16.msra.mxu0 %v1679
  %2391 = vmatprep.subr.bf16.mxu0 0
  %2392 = vmatpush1.bf16.msra.mxu0 %v1680
  %2393 = vmatprep.subr.bf16.mxu0 0
  %2394 = vmatpush1.bf16.msra.mxu0 %v1681
  %2395 = vmatprep.mubr.bf16.mxu0 %v641
  %2396 = vmatmul.mubr.bf16.gmra.mrb[0].mxu0 %v640
  %v2397 = vpop.f32.mrb[0].mxu0
  %v2398 = vadd.f32 %v2349, %v2397
  %v2399 = vpop.f32.mrb[0].mxu0
  %v2400 = vpop.f32.mrb[0].mxu0
  %v2401 = vadd.f32 %v2352, %v2400
  %v2402 = vpop.f32.mrb[0].mxu0
  %2403 = vmatprep.mubr.bf16.mxu0 %v666
  %2404 = vmatmul.mubr.bf16.gmra.mrb[0].mxu0 %v665
  %v2405 = vpop.f32.mrb[0].mxu0
  %v2406 = vadd.f32 %v2357, %v2405
  %v2407 = vpop.f32.mrb[0].mxu0
  %v2408 = vpop.f32.mrb[0].mxu0
  %v2409 = vadd.f32 %v2360, %v2408
  %v2410 = vpop.f32.mrb[0].mxu0
  %2411 = vdwg.mxu0
  %2412 = vmatprep.subr.bf16.mxu0 0
  %2413 = vmatpush1.bf16.msra.mxu0 %v1682
  %2414 = vmatprep.subr.bf16.mxu0 0
  %2415 = vmatpush1.bf16.msra.mxu0 %v1683
  %2416 = vmatprep.subr.bf16.mxu0 0
  %2417 = vmatpush1.bf16.msra.mxu0 %v1684
  %2418 = vmatprep.subr.bf16.mxu0 0
  %2419 = vmatpush1.bf16.msra.mxu0 %v1685
  %2420 = vmatprep.subr.bf16.mxu0 0
  %2421 = vmatpush1.bf16.msra.mxu0 %v1686
  %2422 = vmatprep.subr.bf16.mxu0 0
  %2423 = vmatpush1.bf16.msra.mxu0 %v1687
  %2424 = vmatprep.subr.bf16.mxu0 0
  %2425 = vmatpush1.bf16.msra.mxu0 %v1688
  %2426 = vmatprep.subr.bf16.mxu0 0
  %2427 = vmatpush1.bf16.msra.mxu0 %v1689
  %2428 = vmatprep.subr.bf16.mxu0 0
  %2429 = vmatpush1.bf16.msra.mxu0 %v1690
  %2430 = vmatprep.subr.bf16.mxu0 0
  %2431 = vmatpush1.bf16.msra.mxu0 %v1691
  %2432 = vmatprep.subr.bf16.mxu0 0
  %2433 = vmatpush1.bf16.msra.mxu0 %v1692
  %2434 = vmatprep.subr.bf16.mxu0 0
  %2435 = vmatpush1.bf16.msra.mxu0 %v1693
  %2436 = vmatprep.subr.bf16.mxu0 0
  %2437 = vmatpush1.bf16.msra.mxu0 %v1694
  %2438 = vmatprep.subr.bf16.mxu0 0
  %2439 = vmatpush1.bf16.msra.mxu0 %v1695
  %2440 = vmatprep.subr.bf16.mxu0 0
  %2441 = vmatpush1.bf16.msra.mxu0 %v1696
  %2442 = vmatprep.subr.bf16.mxu0 0
  %2443 = vmatpush1.bf16.msra.mxu0 %v1697
  %2444 = vmatprep.mubr.bf16.mxu0 %v643
  %2445 = vmatmul.mubr.bf16.gmra.mrb[0].mxu0 %v642
  %v2446 = vpop.f32.mrb[0].mxu0
  %v2447 = vadd.f32 %v2398, %v2446
  %v2448 = vpop.f32.mrb[0].mxu0
  %v2449 = vpop.f32.mrb[0].mxu0
  %v2450 = vadd.f32 %v2401, %v2449
  %v2451 = vpop.f32.mrb[0].mxu0
  %2452 = vmatprep.mubr.bf16.mxu0 %v668
  %2453 = vmatmul.mubr.bf16.gmra.mrb[0].mxu0 %v667
  %v2454 = vpop.f32.mrb[0].mxu0
  %v2455 = vadd.f32 %v2406, %v2454
  %v2456 = vpop.f32.mrb[0].mxu0
  %v2457 = vpop.f32.mrb[0].mxu0
  %v2458 = vadd.f32 %v2409, %v2457
  %v2459 = vpop.f32.mrb[0].mxu0
  %2460 = vdwg.mxu0
  %2461 = vmatprep.subr.bf16.mxu0 0
  %2462 = vmatpush1.bf16.msra.mxu0 %v1698
  %2463 = vmatprep.subr.bf16.mxu0 0
  %2464 = vmatpush1.bf16.msra.mxu0 %v1699
  %2465 = vmatprep.subr.bf16.mxu0 0
  %2466 = vmatpush1.bf16.msra.mxu0 %v1700
  %2467 = vmatprep.subr.bf16.mxu0 0
  %2468 = vmatpush1.bf16.msra.mxu0 %v1701
  %2469 = vmatprep.subr.bf16.mxu0 0
  %2470 = vmatpush1.bf16.msra.mxu0 %v1702
  %2471 = vmatprep.subr.bf16.mxu0 0
  %2472 = vmatpush1.bf16.msra.mxu0 %v1703
  %2473 = vmatprep.subr.bf16.mxu0 0
  %2474 = vmatpush1.bf16.msra.mxu0 %v1704
  %2475 = vmatprep.subr.bf16.mxu0 0
  %2476 = vmatpush1.bf16.msra.mxu0 %v1705
  %2477 = vmatprep.subr.bf16.mxu0 0
  %2478 = vmatpush1.bf16.msra.mxu0 %v1706
  %2479 = vmatprep.subr.bf16.mxu0 0
  %2480 = vmatpush1.bf16.msra.mxu0 %v1707
  %2481 = vmatprep.subr.bf16.mxu0 0
  %2482 = vmatpush1.bf16.msra.mxu0 %v1708
  %2483 = vmatprep.subr.bf16.mxu0 0
  %2484 = vmatpush1.bf16.msra.mxu0 %v1709
  %2485 = vmatprep.subr.bf16.mxu0 0
  %2486 = vmatpush1.bf16.msra.mxu0 %v1710
  %2487 = vmatprep.subr.bf16.mxu0 0
  %2488 = vmatpush1.bf16.msra.mxu0 %v1711
  %2489 = vmatprep.subr.bf16.mxu0 0
  %2490 = vmatpush1.bf16.msra.mxu0 %v1712
  %2491 = vmatprep.subr.bf16.mxu0 0
  %2492 = vmatpush1.bf16.msra.mxu0 %v1713
  %2493 = vmatprep.mubr.bf16.mxu0 %v645
  %2494 = vmatmul.mubr.bf16.gmra.mrb[0].mxu0 %v644
  %v2495 = vpop.f32.mrb[0].mxu0
  %v2496 = vadd.f32 %v2447, %v2495
  %v2497 = vpop.f32.mrb[0].mxu0
  %v2498 = vpop.f32.mrb[0].mxu0
  %v2499 = vadd.f32 %v2450, %v2498
  %v2500 = vpop.f32.mrb[0].mxu0
  %2501 = vmatprep.mubr.bf16.mxu0 %v670
  %2502 = vmatmul.mubr.bf16.gmra.mrb[0].mxu0 %v669
  %v2503 = vpop.f32.mrb[0].mxu0
  %v2504 = vadd.f32 %v2455, %v2503
  %v2505 = vpop.f32.mrb[0].mxu0
  %v2506 = vpop.f32.mrb[0].mxu0
  %v2507 = vadd.f32 %v2458, %v2506
  %v2508 = vpop.f32.mrb[0].mxu0
  %2509 = vdwg.mxu0
  %2510 = vmatprep.subr.bf16.mxu0 0
  %2511 = vmatpush1.bf16.msra.mxu0 %v1714
  %2512 = vmatprep.subr.bf16.mxu0 0
  %2513 = vmatpush1.bf16.msra.mxu0 %v1715
  %2514 = vmatprep.subr.bf16.mxu0 0
  %2515 = vmatpush1.bf16.msra.mxu0 %v1716
  %2516 = vmatprep.subr.bf16.mxu0 0
  %2517 = vmatpush1.bf16.msra.mxu0 %v1717
  %2518 = vmatprep.subr.bf16.mxu0 0
  %2519 = vmatpush1.bf16.msra.mxu0 %v1718
  %2520 = vmatprep.subr.bf16.mxu0 0
  %2521 = vmatpush1.bf16.msra.mxu0 %v1719
  %2522 = vmatprep.subr.bf16.mxu0 0
  %2523 = vmatpush1.bf16.msra.mxu0 %v1720
  %2524 = vmatprep.subr.bf16.mxu0 0
  %2525 = vmatpush1.bf16.msra.mxu0 %v1721
  %2526 = vmatprep.subr.bf16.mxu0 0
  %2527 = vmatpush1.bf16.msra.mxu0 0
  %2528 = vmatprep.subr.bf16.mxu0 0
  %2529 = vmatpush1.bf16.msra.mxu0 0
  %2530 = vmatprep.subr.bf16.mxu0 0
  %2531 = vmatpush1.bf16.msra.mxu0 0
  %2532 = vmatprep.subr.bf16.mxu0 0
  %2533 = vmatpush1.bf16.msra.mxu0 0
  %2534 = vmatprep.subr.bf16.mxu0 0
  %2535 = vmatpush1.bf16.msra.mxu0 0
  %2536 = vmatprep.subr.bf16.mxu0 0
  %2537 = vmatpush1.bf16.msra.mxu0 0
  %2538 = vmatprep.subr.bf16.mxu0 0
  %2539 = vmatpush1.bf16.msra.mxu0 0
  %2540 = vmatprep.subr.bf16.mxu0 0
  %2541 = vmatpush1.bf16.msra.mxu0 0
  %2542 = vmatprep.mubr.bf16.mxu0 0
  %2543 = vmatmul.mubr.bf16.gmra.mrb[0].mxu0 %v646
  %v2544 = vpop.f32.mrb[0].mxu0
  %v2545 = vadd.f32 %v2496, %v2544
  %v2546 = vpop.f32.mrb[0].mxu0
  %v2547 = vpop.f32.mrb[0].mxu0
  %v2548 = vadd.f32 %v2499, %v2547
  %v2549 = vpop.f32.mrb[0].mxu0
  %2550 = vmatprep.mubr.bf16.mxu0 0
  %2551 = vmatmul.mubr.bf16.gmra.mrb[0].mxu0 %v671
  %v2552 = vpop.f32.mrb[0].mxu0
  %v2553 = vadd.f32 %v2504, %v2552
  %v2554 = vpop.f32.mrb[0].mxu0
  %v2555 = vpop.f32.mrb[0].mxu0
  %v2556 = vadd.f32 %v2507, %v2555
  %v2557 = vpop.f32.mrb[0].mxu0
  %2558 = vdwg.mxu0
  %v2559 = vadd.f32 %v2545, %v2548
  %v2560 = vadd.f32 %v2559, %v2553
  %v2561 = vadd.f32 %v2560, %v2556
  %v2562 = vrot.slane %v2561, 4
  %v2563 = vadd.f32 %v2561, %v2562
  %v2564 = vrot.slane %v2563, 2
  %v2565 = vadd.f32 %v2563, %v2564
  %v2566 = vrot.slane %v2565, 1
  %v2567 = vadd.f32 %v2565, %v2566
  %v2568 = vrcp.pop 32.0
  %v2569 = vmul.f32 %v2567, %v2568
  %v2570 = vsub.f32 %v2545, %v2569
  %v2571 = vsub.f32 %v2548, %v2569
  %v2572 = vsub.f32 %v2553, %v2569
  %v2573 = vsub.f32 %v2556, %v2569
  %v2574 = vmul.f32 %v2570, %v2570
  %v2575 = vmul.f32 %v2571, %v2571
  %v2576 = vmul.f32 %v2572, %v2572
  %v2577 = vmul.f32 %v2573, %v2573
  %v2578 = vadd.f32 %v2574, %v2575
  %v2579 = vadd.f32 %v2578, %v2576
  %v2580 = vadd.f32 %v2579, %v2577
  %v2581 = vrot.slane %v2580, 4
  %v2582 = vadd.f32 %v2580, %v2581
  %v2583 = vrot.slane %v2582, 2
  %v2584 = vadd.f32 %v2582, %v2583
  %v2585 = vrot.slane %v2584, 1
  %v2586 = vadd.f32 %v2584, %v2585
  %v2587 = vmul.f32 %v2586, %v2568
  %v2588 = vadd.f32 %v2587, 1e-05
  %v2589 = vrsqrt.pop %v2588
  %v2590 = vmul.f32 %v2570, %v2589
  %v2591 = vmul.f32 %v2571, %v2589
  %v2592 = vmul.f32 %v2572, %v2589
  %v2593 = vmul.f32 %v2573, %v2589
  %v2594 = vld [vmem:[%s2] sm:$0x1]
  %v2596 = vlaneseq
  %v2597 = vshrl.u32 %v2596, 7
  %v2598 = vsub.s32 0, %v2597
  %v2599 = vrot.slane %v2594, %v2598
  %v2601 = vmul.f32 %v2590, %v2599
  %v2602 = vmul.f32 %v2591, %v2599
  %v2603 = vmul.f32 %v2592, %v2599
  %v2604 = vmul.f32 %v2593, %v2599
  %v2605 = vld [vmem:[%s3] sm:$0x1]
  %v2607 = vlaneseq
  %v2608 = vshrl.u32 %v2607, 7
  %v2609 = vsub.s32 0, %v2608
  %v2610 = vrot.slane %v2605, %v2609
  %v2612 = vadd.f32 %v2601, %v2610
  %v2613 = vadd.f32 %v2602, %v2610
  %v2614 = vadd.f32 %v2603, %v2610
  %v2615 = vadd.f32 %v2604, %v2610
  %v2616 = vmax.f32 %v2612, 0.0
  %v2617 = vmax.f32 %v2613, 0.0
  %v2618 = vmax.f32 %v2614, 0.0
  %v2619 = vmax.f32 %v2615, 0.0
  %v2620 = vpack.c.bf16 %v2617, %v2616
  %v2621 = vpack.c.bf16 %v2619, %v2618
  %v2624 = vunpack.c.l.b16 %v2620
  %v2625 = vunpack.c.h.b16 %v2620
  %v2626 = vunpack.c.l.b16 %v2621
  %v2627 = vunpack.c.h.b16 %v2621
  %v2628 = vpack.c.b16 %v2624, %v2624
  %v2629 = vpack.c.b16 %v2625, %v2625
  %v2630 = vpack.c.b16 %v2626, %v2626
  %v2631 = vpack.c.b16 %v2627, %v2627
  %2636 = vst [vmem:[%s4] sm:$0xf] %v2628
  %2637 = vst [vmem:[%s4 + $0x4] sm:$0xf] %v2629
  %2638 = vst [vmem:[%s4 + $0x8] sm:$0xf] %v2630
  %2639 = vst [vmem:[%s4 + $0xc] sm:$0xf] %v2631
  // Predicated region
  $region18: #{encoder_forward.6} parent=0 // pred_check
    _
  $region19: #{encoder_forward.6} parent=0 // pred_check_branch
    %2641 = sbr.rel (0) target = $region21
  $region20: #{encoder_forward.6} parent=0 // pred_region
    _
  $region21: #{encoder_forward.6} parent=0 // pred_fallthru
    _
  // Predicated region
  $region22: #{encoder_forward.6} parent=0 // pred_check
    _
  $region23: #{encoder_forward.6} parent=0 // pred_check_branch
    %2643 = sbr.rel (0) target = $region25
  $region24: #{encoder_forward.6} parent=0 // pred_region
    _
  $region25: #{encoder_forward.6} parent=0 // pred_fallthru
    _

// kernel: encoder_forward.7
$region0: #{encoder_forward.7}
  #allocation0 [shape = 'u32[]', space=smem, size = 0x4, offset = 0x4, fixed_abs, tag = 'smem constant byte address 0x4 - core index']
  #allocation1 [shape = 'u32[144,128]{1,0:T(1,128)}', space=vmem, size = 0x12000, scoped, tag = 'internal scratch']
  %s0 = inlined_call_operand.vmem [shape: bf16[8,512], index: 0, kind: input, shape index: {}]
  %s1 = inlined_call_operand.vmem [shape: bf16[512,128], index: 1, kind: input, shape index: {}]
  %s2 = inlined_call_operand.vmem [shape: f32[1,128], index: 2, kind: input, shape index: {}]
  %s3 = inlined_call_operand.vmem [shape: bf16[128,128], index: 3, kind: input, shape index: {}]
  %s4 = inlined_call_operand.vmem [shape: f32[1,128], index: 4, kind: input, shape index: {}]
  %s5 = inlined_call_operand.vmem [shape: bf16[128,128], index: 5, kind: input, shape index: {}]
  %s6 = inlined_call_operand.vmem [shape: f32[1,128], index: 6, kind: input, shape index: {}]
  %s7 = inlined_call_operand.vmem [shape: f32[128,128], index: 7, kind: input, shape index: {}]
  %s8 = inlined_call_operand.vmem [shape: f32[32,128], index: 8, kind: input, shape index: {}]
  %s9 = inlined_call_operand.vmem [shape: f32[1,128], index: 9, kind: input, shape index: {}]
  %s10 = inlined_call_operand.vmem [shape: f32[32,128], index: 10, kind: input, shape index: {}]
  %s11 = inlined_call_operand.vmem [shape: f32[32,128], index: 11, kind: input, shape index: {}]
  %s12 = inlined_call_operand.vmem [shape: f32[1,128], index: 12, kind: input, shape index: {}]
  %s13 = inlined_call_operand.vmem [shape: f32[32,128], index: 13, kind: input, shape index: {}]
  %s14 = inlined_call_operand.vmem [shape: f32[32,128], index: 14, kind: input, shape index: {}]
  %s15 = inlined_call_operand.vmem [shape: f32[1,128], index: 15, kind: input, shape index: {}]
  %s16 = inlined_call_operand.hbm [shape: f32[2,32], index: 16, kind: output, shape index: {}]
  %s17 = sld [smem:[#allocation0]]
  $region74: #{encoder_forward.7} parent=0
    _
  %s19 = ssub.s32 1, %s17
  %s20 = scalar_select 0, %s19, %s17
  $region1: #{encoder_forward.7} parent=0
    #allocation2 [shape = 'u8[1024]{0}', space=vmem, size = 0x400, scoped, tag = 'output window, operand 0, single buffered']
    #allocation3 [shape = 's32[1]{0}', space=sflag, size = 0x4, scoped, tag = 'scoped memory for encoder_forward.7']
    %21 = vsyncpa [#allocation3], 0
    // Predicated region
    $region2: #{encoder_forward.7} parent=1 // pred_check
      _
    $region3: #{encoder_forward.7} parent=1 // pred_check_branch
      %23 = sbr.rel (0) target = $region5
    $region4: #{encoder_forward.7} parent=1 // pred_region
      _
    $region5: #{encoder_forward.7} parent=1 // pred_fallthru
      _
    // Predicated region
    $region6: #{encoder_forward.7} parent=1 // pred_check
      _
    $region7: #{encoder_forward.7} parent=1 // pred_check_branch
      %25 = sbr.rel (0) target = $region9
    $region8: #{encoder_forward.7} parent=1 // pred_region
      _
    $region9: #{encoder_forward.7} parent=1 // pred_fallthru
      _
    // Predicated region
    $region10: #{encoder_forward.7} parent=1 // pred_check
      _
    $region11: #{encoder_forward.7} parent=1 // pred_check_branch
      %27 = sbr.rel (0) target = $region13
    $region12: #{encoder_forward.7} parent=1 // pred_region
      _
    $region13: #{encoder_forward.7} parent=1 // pred_fallthru
      _
    // Predicated region
    $region14: #{encoder_forward.7} parent=1 // pred_check
      _
    $region15: #{encoder_forward.7} parent=1 // pred_check_branch
      %29 = sbr.rel (0) target = $region17
    $region16: #{encoder_forward.7} parent=1 // pred_region
      _
    $region17: #{encoder_forward.7} parent=1 // pred_fallthru
      _
    // Predicated region
    $region18: #{encoder_forward.7} parent=1 // pred_check
      _
    $region19: #{encoder_forward.7} parent=1 // pred_check_branch
      %31 = sbr.rel (0) target = $region21
    $region20: #{encoder_forward.7} parent=1 // pred_region
      _
    $region21: #{encoder_forward.7} parent=1 // pred_fallthru
      _
    // Predicated region
    $region22: #{encoder_forward.7} parent=1 // pred_check
      _
    $region23: #{encoder_forward.7} parent=1 // pred_check_branch
      %33 = sbr.rel (0) target = $region25
    $region24: #{encoder_forward.7} parent=1 // pred_region
      _
    $region25: #{encoder_forward.7} parent=1 // pred_fallthru
      _
    // Predicated region
    $region26: #{encoder_forward.7} parent=1 // pred_check
      _
    $region27: #{encoder_forward.7} parent=1 // pred_check_branch
      %35 = sbr.rel (0) target = $region29
    $region28: #{encoder_forward.7} parent=1 // pred_region
      _
    $region29: #{encoder_forward.7} parent=1 // pred_fallthru
      _
    // Predicated region
    $region30: #{encoder_forward.7} parent=1 // pred_check
      _
    $region31: #{encoder_forward.7} parent=1 // pred_check_branch
      %37 = sbr.rel (0) target = $region33
    $region32: #{encoder_forward.7} parent=1 // pred_region
      _
    $region33: #{encoder_forward.7} parent=1 // pred_fallthru
      _
    // Predicated region
    $region34: #{encoder_forward.7} parent=1 // pred_check
      _
    $region35: #{encoder_forward.7} parent=1 // pred_check_branch
      %39 = sbr.rel (0) target = $region37
    $region36: #{encoder_forward.7} parent=1 // pred_region
      _
    $region37: #{encoder_forward.7} parent=1 // pred_fallthru
      _
    // Predicated region
    $region38: #{encoder_forward.7} parent=1 // pred_check
      _
    $region39: #{encoder_forward.7} parent=1 // pred_check_branch
      %41 = sbr.rel (0) target = $region41
    $region40: #{encoder_forward.7} parent=1 // pred_region
      _
    $region41: #{encoder_forward.7} parent=1 // pred_fallthru
      _
    // Predicated region
    $region42: #{encoder_forward.7} parent=1 // pred_check
      _
    $region43: #{encoder_forward.7} parent=1 // pred_check_branch
      %43 = sbr.rel (0) target = $region45
    $region44: #{encoder_forward.7} parent=1 // pred_region
      _
    $region45: #{encoder_forward.7} parent=1 // pred_fallthru
      _
    // Predicated region
    $region46: #{encoder_forward.7} parent=1 // pred_check
      _
    $region47: #{encoder_forward.7} parent=1 // pred_check_branch
      %45 = sbr.rel (0) target = $region49
    $region48: #{encoder_forward.7} parent=1 // pred_region
      _
    $region49: #{encoder_forward.7} parent=1 // pred_fallthru
      _
    // Predicated region
    $region50: #{encoder_forward.7} parent=1 // pred_check
      _
    $region51: #{encoder_forward.7} parent=1 // pred_check_branch
      %47 = sbr.rel (0) target = $region53
    $region52: #{encoder_forward.7} parent=1 // pred_region
      _
    $region53: #{encoder_forward.7} parent=1 // pred_fallthru
      _
    // Predicated region
    $region54: #{encoder_forward.7} parent=1 // pred_check
      _
    $region55: #{encoder_forward.7} parent=1 // pred_check_branch
      %49 = sbr.rel (0) target = $region57
    $region56: #{encoder_forward.7} parent=1 // pred_region
      _
    $region57: #{encoder_forward.7} parent=1 // pred_fallthru
      _
    // Predicated region
    $region58: #{encoder_forward.7} parent=1 // pred_check
      _
    $region59: #{encoder_forward.7} parent=1 // pred_check_branch
      %51 = sbr.rel (0) target = $region61
    $region60: #{encoder_forward.7} parent=1 // pred_region
      _
    $region61: #{encoder_forward.7} parent=1 // pred_fallthru
      _
    // Predicated region
    $region62: #{encoder_forward.7} parent=1 // pred_check
      _
    $region63: #{encoder_forward.7} parent=1 // pred_check_branch
      %53 = sbr.rel (0) target = $region65
    $region64: #{encoder_forward.7} parent=1 // pred_region
      _
    $region65: #{encoder_forward.7} parent=1 // pred_fallthru
      _
    %v55 = vld [vmem:[%s0] sm:$0xff]
    %v56 = vld [vmem:[%s0 + $0x8] sm:$0xff]
    %v57 = vld [vmem:[%s1] sm:$0xf]
    %v58 = vld [vmem:[%s1 + $0x4] sm:$0xf]
    %v59 = vld [vmem:[%s1 + $0x8] sm:$0xf]
    %v60 = vld [vmem:[%s1 + $0xc] sm:$0xf]
    %v61 = vld [vmem:[%s1 + $0x10] sm:$0xf]
    %v62 = vld [vmem:[%s1 + $0x14] sm:$0xf]
    %v63 = vld [vmem:[%s1 + $0x18] sm:$0xf]
    %v64 = vld [vmem:[%s1 + $0x1c] sm:$0xf]
    %v65 = vld [vmem:[%s1 + $0x20] sm:$0xf]
    %v66 = vld [vmem:[%s1 + $0x24] sm:$0xf]
    %v67 = vld [vmem:[%s1 + $0x28] sm:$0xf]
    %v68 = vld [vmem:[%s1 + $0x2c] sm:$0xf]
    %v69 = vld [vmem:[%s1 + $0x30] sm:$0xf]
    %v70 = vld [vmem:[%s1 + $0x34] sm:$0xf]
    %v71 = vld [vmem:[%s1 + $0x38] sm:$0xf]
    %v72 = vld [vmem:[%s1 + $0x3c] sm:$0xf]
    %v73 = vld [vmem:[%s1 + $0x40] sm:$0xf]
    %v74 = vld [vmem:[%s1 + $0x44] sm:$0xf]
    %v75 = vld [vmem:[%s1 + $0x48] sm:$0xf]
    %v76 = vld [vmem:[%s1 + $0x4c] sm:$0xf]
    %v77 = vld [vmem:[%s1 + $0x50] sm:$0xf]
    %v78 = vld [vmem:[%s1 + $0x54] sm:$0xf]
    %v79 = vld [vmem:[%s1 + $0x58] sm:$0xf]
    %v80 = vld [vmem:[%s1 + $0x5c] sm:$0xf]
    %v81 = vld [vmem:[%s1 + $0x60] sm:$0xf]
    %v82 = vld [vmem:[%s1 + $0x64] sm:$0xf]
    %v83 = vld [vmem:[%s1 + $0x68] sm:$0xf]
    %v84 = vld [vmem:[%s1 + $0x6c] sm:$0xf]
    %v85 = vld [vmem:[%s1 + $0x70] sm:$0xf]
    %v86 = vld [vmem:[%s1 + $0x74] sm:$0xf]
    %v87 = vld [vmem:[%s1 + $0x78] sm:$0xf]
    %v88 = vld [vmem:[%s1 + $0x7c] sm:$0xf]
    %v89 = vld [vmem:[%s1 + $0x80] sm:$0xf]
    %v90 = vld [vmem:[%s1 + $0x84] sm:$0xf]
    %v91 = vld [vmem:[%s1 + $0x88] sm:$0xf]
    %v92 = vld [vmem:[%s1 + $0x8c] sm:$0xf]
    %v93 = vld [vmem:[%s1 + $0x90] sm:$0xf]
    %v94 = vld [vmem:[%s1 + $0x94] sm:$0xf]
    %v95 = vld [vmem:[%s1 + $0x98] sm:$0xf]
    %v96 = vld [vmem:[%s1 + $0x9c] sm:$0xf]
    %v97 = vld [vmem:[%s1 + $0xa0] sm:$0xf]
    %v98 = vld [vmem:[%s1 + $0xa4] sm:$0xf]
    %v99 = vld [vmem:[%s1 + $0xa8] sm:$0xf]
    %v100 = vld [vmem:[%s1 + $0xac] sm:$0xf]
    %v101 = vld [vmem:[%s1 + $0xb0] sm:$0xf]
    %v102 = vld [vmem:[%s1 + $0xb4] sm:$0xf]
    %v103 = vld [vmem:[%s1 + $0xb8] sm:$0xf]
    %v104 = vld [vmem:[%s1 + $0xbc] sm:$0xf]
    %v105 = vld [vmem:[%s1 + $0xc0] sm:$0xf]
    %v106 = vld [vmem:[%s1 + $0xc4] sm:$0xf]
    %v107 = vld [vmem:[%s1 + $0xc8] sm:$0xf]
    %v108 = vld [vmem:[%s1 + $0xcc] sm:$0xf]
    %v109 = vld [vmem:[%s1 + $0xd0] sm:$0xf]
    %v110 = vld [vmem:[%s1 + $0xd4] sm:$0xf]
    %v111 = vld [vmem:[%s1 + $0xd8] sm:$0xf]
    %v112 = vld [vmem:[%s1 + $0xdc] sm:$0xf]
    %v113 = vld [vmem:[%s1 + $0xe0] sm:$0xf]
    %v114 = vld [vmem:[%s1 + $0xe4] sm:$0xf]
    %v115 = vld [vmem:[%s1 + $0xe8] sm:$0xf]
    %v116 = vld [vmem:[%s1 + $0xec] sm:$0xf]
    %v117 = vld [vmem:[%s1 + $0xf0] sm:$0xf]
    %v118 = vld [vmem:[%s1 + $0xf4] sm:$0xf]
    %v119 = vld [vmem:[%s1 + $0xf8] sm:$0xf]
    %v120 = vld [vmem:[%s1 + $0xfc] sm:$0xf]
    %v121 = vld [vmem:[%s2] sm:$0x1]
    %v123 = vlaneseq
    %v124 = vshrl.u32 %v123, 7
    %v125 = vsub.s32 0, %v124
    %v126 = vrot.slane %v121, %v125
    %v130 = vunpack.c.l.b16 %v55
    %v131 = vunpack.c.h.b16 %v55
    %v132 = vunpack.c.l.b16 %v56
    %v133 = vunpack.c.h.b16 %v56
    %v134 = vpack.c.b16 %v130, %v130
    %v135 = vpack.c.b16 %v131, %v131
    %v136 = vpack.c.b16 %v132, %v132
    %v137 = vpack.c.b16 %v133, %v133
    %v206 = vunpack.c.l.b16 %v57
    %v207 = vunpack.c.l.b16 %v58
    %v208 = vunpack.c.l.b16 %v59
    %v209 = vunpack.c.l.b16 %v60
    %v210 = vunpack.c.l.b16 %v61
    %v211 = vunpack.c.l.b16 %v62
    %v212 = vunpack.c.l.b16 %v63
    %v213 = vunpack.c.l.b16 %v64
    %v214 = vunpack.c.l.b16 %v65
    %v215 = vunpack.c.l.b16 %v66
    %v216 = vunpack.c.l.b16 %v67
    %v217 = vunpack.c.l.b16 %v68
    %v218 = vunpack.c.l.b16 %v69
    %v219 = vunpack.c.l.b16 %v70
    %v220 = vunpack.c.l.b16 %v71
    %v221 = vunpack.c.l.b16 %v72
    %v222 = vunpack.c.l.b16 %v73
    %v223 = vunpack.c.l.b16 %v74
    %v224 = vunpack.c.l.b16 %v75
    %v225 = vunpack.c.l.b16 %v76
    %v226 = vunpack.c.l.b16 %v77
    %v227 = vunpack.c.l.b16 %v78
    %v228 = vunpack.c.l.b16 %v79
    %v229 = vunpack.c.l.b16 %v80
    %v230 = vunpack.c.l.b16 %v81
    %v231 = vunpack.c.l.b16 %v82
    %v232 = vunpack.c.l.b16 %v83
    %v233 = vunpack.c.l.b16 %v84
    %v234 = vunpack.c.l.b16 %v85
    %v235 = vunpack.c.l.b16 %v86
    %v236 = vunpack.c.l.b16 %v87
    %v237 = vunpack.c.l.b16 %v88
    %v238 = vunpack.c.l.b16 %v89
    %v239 = vunpack.c.l.b16 %v90
    %v240 = vunpack.c.l.b16 %v91
    %v241 = vunpack.c.l.b16 %v92
    %v242 = vunpack.c.l.b16 %v93
    %v243 = vunpack.c.l.b16 %v94
    %v244 = vunpack.c.l.b16 %v95
    %v245 = vunpack.c.l.b16 %v96
    %v246 = vunpack.c.l.b16 %v97
    %v247 = vunpack.c.l.b16 %v98
    %v248 = vunpack.c.l.b16 %v99
    %v249 = vunpack.c.l.b16 %v100
    %v250 = vunpack.c.l.b16 %v101
    %v251 = vunpack.c.l.b16 %v102
    %v252 = vunpack.c.l.b16 %v103
    %v253 = vunpack.c.l.b16 %v104
    %v254 = vunpack.c.l.b16 %v105
    %v255 = vunpack.c.l.b16 %v106
    %v256 = vunpack.c.l.b16 %v107
    %v257 = vunpack.c.l.b16 %v108
    %v258 = vunpack.c.l.b16 %v109
    %v259 = vunpack.c.l.b16 %v110
    %v260 = vunpack.c.l.b16 %v111
    %v261 = vunpack.c.l.b16 %v112
    %v262 = vunpack.c.l.b16 %v113
    %v263 = vunpack.c.l.b16 %v114
    %v264 = vunpack.c.l.b16 %v115
    %v265 = vunpack.c.l.b16 %v116
    %v266 = vunpack.c.l.b16 %v117
    %v267 = vunpack.c.l.b16 %v118
    %v268 = vunpack.c.l.b16 %v119
    %v269 = vunpack.c.l.b16 %v120
    %v270 = vpack.c.b16 %v207, %v206
    %v271 = vpack.c.b16 %v209, %v208
    %v272 = vpack.c.b16 %v211, %v210
    %v273 = vpack.c.b16 %v213, %v212
    %v274 = vpack.c.b16 %v215, %v214
    %v275 = vpack.c.b16 %v217, %v216
    %v276 = vpack.c.b16 %v219, %v218
    %v277 = vpack.c.b16 %v221, %v220
    %v278 = vpack.c.b16 %v223, %v222
    %v279 = vpack.c.b16 %v225, %v224
    %v280 = vpack.c.b16 %v227, %v226
    %v281 = vpack.c.b16 %v229, %v228
    %v282 = vpack.c.b16 %v231, %v230
    %v283 = vpack.c.b16 %v233, %v232
    %v284 = vpack.c.b16 %v235, %v234
    %v285 = vpack.c.b16 %v237, %v236
    %v286 = vpack.c.b16 %v239, %v238
    %v287 = vpack.c.b16 %v241, %v240
    %v288 = vpack.c.b16 %v243, %v242
    %v289 = vpack.c.b16 %v245, %v244
    %v290 = vpack.c.b16 %v247, %v246
    %v291 = vpack.c.b16 %v249, %v248
    %v292 = vpack.c.b16 %v251, %v250
    %v293 = vpack.c.b16 %v253, %v252
    %v294 = vpack.c.b16 %v255, %v254
    %v295 = vpack.c.b16 %v257, %v256
    %v296 = vpack.c.b16 %v259, %v258
    %v297 = vpack.c.b16 %v261, %v260
    %v298 = vpack.c.b16 %v263, %v262
    %v299 = vpack.c.b16 %v265, %v264
    %v300 = vpack.c.b16 %v267, %v266
    %v301 = vpack.c.b16 %v269, %v268
    %334 = vmatprep.subr.bf16.mxu0 0
    %335 = vmatpush1.bf16.msra.mxu0 %v270
    %336 = vmatprep.subr.bf16.mxu0 0
    %337 = vmatpush1.bf16.msra.mxu0 %v271
    %338 = vmatprep.subr.bf16.mxu0 0
    %339 = vmatpush1.bf16.msra.mxu0 %v272
    %340 = vmatprep.subr.bf16.mxu0 0
    %341 = vmatpush1.bf16.msra.mxu0 %v273
    %342 = vmatprep.subr.bf16.mxu0 0
    %343 = vmatpush1.bf16.msra.mxu0 %v274
    %344 = vmatprep.subr.bf16.mxu0 0
    %345 = vmatpush1.bf16.msra.mxu0 %v275
    %346 = vmatprep.subr.bf16.mxu0 0
    %347 = vmatpush1.bf16.msra.mxu0 %v276
    %348 = vmatprep.subr.bf16.mxu0 0
    %349 = vmatpush1.bf16.msra.mxu0 %v277
    %350 = vmatprep.subr.bf16.mxu0 0
    %351 = vmatpush1.bf16.msra.mxu0 %v278
    %352 = vmatprep.subr.bf16.mxu0 0
    %353 = vmatpush1.bf16.msra.mxu0 %v279
    %354 = vmatprep.subr.bf16.mxu0 0
    %355 = vmatpush1.bf16.msra.mxu0 %v280
    %356 = vmatprep.subr.bf16.mxu0 0
    %357 = vmatpush1.bf16.msra.mxu0 %v281
    %358 = vmatprep.subr.bf16.mxu0 0
    %359 = vmatpush1.bf16.msra.mxu0 %v282
    %360 = vmatprep.subr.bf16.mxu0 0
    %361 = vmatpush1.bf16.msra.mxu0 %v283
    %362 = vmatprep.subr.bf16.mxu0 0
    %363 = vmatpush1.bf16.msra.mxu0 %v284
    %364 = vmatprep.subr.bf16.mxu0 0
    %365 = vmatpush1.bf16.msra.mxu0 %v285
    %366 = vmatprep.mubr.bf16.mxu0 %v135
    %367 = vmatmul.mubr.bf16.gmra.mrb[0].mxu0 %v134
    %v368 = vpop.f32.mrb[0].mxu0
    %v369 = vadd.f32 %v126, %v368
    %v370 = vpop.f32.mrb[0].mxu0
    %v371 = vpop.f32.mrb[0].mxu0
    %v372 = vpop.f32.mrb[0].mxu0
    %373 = vdwg.mxu0
    %374 = vmatprep.subr.bf16.mxu0 0
    %375 = vmatpush1.bf16.msra.mxu0 %v286
    %376 = vmatprep.subr.bf16.mxu0 0
    %377 = vmatpush1.bf16.msra.mxu0 %v287
    %378 = vmatprep.subr.bf16.mxu0 0
    %379 = vmatpush1.bf16.msra.mxu0 %v288
    %380 = vmatprep.subr.bf16.mxu0 0
    %381 = vmatpush1.bf16.msra.mxu0 %v289
    %382 = vmatprep.subr.bf16.mxu0 0
    %383 = vmatpush1.bf16.msra.mxu0 %v290
    %384 = vmatprep.subr.bf16.mxu0 0
    %385 = vmatpush1.bf16.msra.mxu0 %v291
    %386 = vmatprep.subr.bf16.mxu0 0
    %387 = vmatpush1.bf16.msra.mxu0 %v292
    %388 = vmatprep.subr.bf16.mxu0 0
    %389 = vmatpush1.bf16.msra.mxu0 %v293
    %390 = vmatprep.subr.bf16.mxu0 0
    %391 = vmatpush1.bf16.msra.mxu0 %v294
    %392 = vmatprep.subr.bf16.mxu0 0
    %393 = vmatpush1.bf16.msra.mxu0 %v295
    %394 = vmatprep.subr.bf16.mxu0 0
    %395 = vmatpush1.bf16.msra.mxu0 %v296
    %396 = vmatprep.subr.bf16.mxu0 0
    %397 = vmatpush1.bf16.msra.mxu0 %v297
    %398 = vmatprep.subr.bf16.mxu0 0
    %399 = vmatpush1.bf16.msra.mxu0 %v298
    %400 = vmatprep.subr.bf16.mxu0 0
    %401 = vmatpush1.bf16.msra.mxu0 %v299
    %402 = vmatprep.subr.bf16.mxu0 0
    %403 = vmatpush1.bf16.msra.mxu0 %v300
    %404 = vmatprep.subr.bf16.mxu0 0
    %405 = vmatpush1.bf16.msra.mxu0 %v301
    %406 = vmatprep.mubr.bf16.mxu0 %v137
    %407 = vmatmul.mubr.bf16.gmra.mrb[0].mxu0 %v136
    %v408 = vpop.f32.mrb[0].mxu0
    %v409 = vadd.f32 %v369, %v408
    %v410 = vpop.f32.mrb[0].mxu0
    %v411 = vpop.f32.mrb[0].mxu0
    %v412 = vpop.f32.mrb[0].mxu0
    %413 = vdwg.mxu0
    %v414 = vmax.f32 %v409, 0.0
    %v415 = vpack.c.bf16 %v414, %v414
    %v416 = vld [vmem:[%s3] sm:$0xf]
    %v417 = vld [vmem:[%s3 + $0x4] sm:$0xf]
    %v418 = vld [vmem:[%s3 + $0x8] sm:$0xf]
    %v419 = vld [vmem:[%s3 + $0xc] sm:$0xf]
    %v420 = vld [vmem:[%s3 + $0x10] sm:$0xf]
    %v421 = vld [vmem:[%s3 + $0x14] sm:$0xf]
    %v422 = vld [vmem:[%s3 + $0x18] sm:$0xf]
    %v423 = vld [vmem:[%s3 + $0x1c] sm:$0xf]
    %v424 = vld [vmem:[%s3 + $0x20] sm:$0xf]
    %v425 = vld [vmem:[%s3 + $0x24] sm:$0xf]
    %v426 = vld [vmem:[%s3 + $0x28] sm:$0xf]
    %v427 = vld [vmem:[%s3 + $0x2c] sm:$0xf]
    %v428 = vld [vmem:[%s3 + $0x30] sm:$0xf]
    %v429 = vld [vmem:[%s3 + $0x34] sm:$0xf]
    %v430 = vld [vmem:[%s3 + $0x38] sm:$0xf]
    %v431 = vld [vmem:[%s3 + $0x3c] sm:$0xf]
    %v432 = vld [vmem:[%s4] sm:$0x1]
    %v434 = vlaneseq
    %v435 = vshrl.u32 %v434, 7
    %v436 = vsub.s32 0, %v435
    %v437 = vrot.slane %v432, %v436
    %v455 = vunpack.c.l.b16 %v416
    %v456 = vunpack.c.l.b16 %v417
    %v457 = vunpack.c.l.b16 %v418
    %v458 = vunpack.c.l.b16 %v419
    %v459 = vunpack.c.l.b16 %v420
    %v460 = vunpack.c.l.b16 %v421
    %v461 = vunpack.c.l.b16 %v422
    %v462 = vunpack.c.l.b16 %v423
    %v463 = vunpack.c.l.b16 %v424
    %v464 = vunpack.c.l.b16 %v425
    %v465 = vunpack.c.l.b16 %v426
    %v466 = vunpack.c.l.b16 %v427
    %v467 = vunpack.c.l.b16 %v428
    %v468 = vunpack.c.l.b16 %v429
    %v469 = vunpack.c.l.b16 %v430
    %v470 = vunpack.c.l.b16 %v431
    %v471 = vpack.c.b16 %v456, %v455
    %v472 = vpack.c.b16 %v458, %v457
    %v473 = vpack.c.b16 %v460, %v459
    %v474 = vpack.c.b16 %v462, %v461
    %v475 = vpack.c.b16 %v464, %v463
    %v476 = vpack.c.b16 %v466, %v465
    %v477 = vpack.c.b16 %v468, %v467
    %v478 = vpack.c.b16 %v470, %v469
    %487 = vmatprep.subr.bf16.mxu0 0
    %488 = vmatpush1.bf16.msra.mxu0 %v471
    %489 = vmatprep.subr.bf16.mxu0 0
    %490 = vmatpush1.bf16.msra.mxu0 %v472
    %491 = vmatprep.subr.bf16.mxu0 0
    %492 = vmatpush1.bf16.msra.mxu0 %v473
    %493 = vmatprep.subr.bf16.mxu0 0
    %494 = vmatpush1.bf16.msra.mxu0 %v474
    %495 = vmatprep.subr.bf16.mxu0 0
    %496 = vmatpush1.bf16.msra.mxu0 %v475
    %497 = vmatprep.subr.bf16.mxu0 0
    %498 = vmatpush1.bf16.msra.mxu0 %v476
    %499 = vmatprep.subr.bf16.mxu0 0
    %500 = vmatpush1.bf16.msra.mxu0 %v477
    %501 = vmatprep.subr.bf16.mxu0 0
    %502 = vmatpush1.bf16.msra.mxu0 %v478
    %503 = vmatprep.subr.bf16.mxu0 0
    %504 = vmatpush1.bf16.msra.mxu0 0
    %505 = vmatprep.subr.bf16.mxu0 0
    %506 = vmatpush1.bf16.msra.mxu0 0
    %507 = vmatprep.subr.bf16.mxu0 0
    %508 = vmatpush1.bf16.msra.mxu0 0
    %509 = vmatprep.subr.bf16.mxu0 0
    %510 = vmatpush1.bf16.msra.mxu0 0
    %511 = vmatprep.subr.bf16.mxu0 0
    %512 = vmatpush1.bf16.msra.mxu0 0
    %513 = vmatprep.subr.bf16.mxu0 0
    %514 = vmatpush1.bf16.msra.mxu0 0
    %515 = vmatprep.subr.bf16.mxu0 0
    %516 = vmatpush1.bf16.msra.mxu0 0
    %517 = vmatprep.subr.bf16.mxu0 0
    %518 = vmatpush1.bf16.msra.mxu0 0
    %519 = vmatprep.mubr.bf16.mxu0 0
    %520 = vmatmul.mubr.bf16.gmra.mrb[0].mxu0 %v415
    %v521 = vpop.f32.mrb[0].mxu0
    %v522 = vadd.f32 %v437, %v521
    %v523 = vpop.f32.mrb[0].mxu0
    %v524 = vpop.f32.mrb[0].mxu0
    %v525 = vpop.f32.mrb[0].mxu0
    %526 = vdwg.mxu0
    %v527 = vmax.f32 %v522, 0.0
    %v528 = vpack.c.bf16 %v527, %v527
    %v529 = vld [vmem:[%s5] sm:$0xf]
    %v530 = vld [vmem:[%s5 + $0x4] sm:$0xf]
    %v531 = vld [vmem:[%s5 + $0x8] sm:$0xf]
    %v532 = vld [vmem:[%s5 + $0xc] sm:$0xf]
    %v533 = vld [vmem:[%s5 + $0x10] sm:$0xf]
    %v534 = vld [vmem:[%s5 + $0x14] sm:$0xf]
    %v535 = vld [vmem:[%s5 + $0x18] sm:$0xf]
    %v536 = vld [vmem:[%s5 + $0x1c] sm:$0xf]
    %v537 = vld [vmem:[%s5 + $0x20] sm:$0xf]
    %v538 = vld [vmem:[%s5 + $0x24] sm:$0xf]
    %v539 = vld [vmem:[%s5 + $0x28] sm:$0xf]
    %v540 = vld [vmem:[%s5 + $0x2c] sm:$0xf]
    %v541 = vld [vmem:[%s5 + $0x30] sm:$0xf]
    %v542 = vld [vmem:[%s5 + $0x34] sm:$0xf]
    %v543 = vld [vmem:[%s5 + $0x38] sm:$0xf]
    %v544 = vld [vmem:[%s5 + $0x3c] sm:$0xf]
    %v545 = vld [vmem:[%s6] sm:$0x1]
    %v547 = vlaneseq
    %v548 = vshrl.u32 %v547, 7
    %v549 = vsub.s32 0, %v548
    %v550 = vrot.slane %v545, %v549
    %v568 = vunpack.c.l.b16 %v529
    %v569 = vunpack.c.l.b16 %v530
    %v570 = vunpack.c.l.b16 %v531
    %v571 = vunpack.c.l.b16 %v532
    %v572 = vunpack.c.l.b16 %v533
    %v573 = vunpack.c.l.b16 %v534
    %v574 = vunpack.c.l.b16 %v535
    %v575 = vunpack.c.l.b16 %v536
    %v576 = vunpack.c.l.b16 %v537
    %v577 = vunpack.c.l.b16 %v538
    %v578 = vunpack.c.l.b16 %v539
    %v579 = vunpack.c.l.b16 %v540
    %v580 = vunpack.c.l.b16 %v541
    %v581 = vunpack.c.l.b16 %v542
    %v582 = vunpack.c.l.b16 %v543
    %v583 = vunpack.c.l.b16 %v544
    %v584 = vpack.c.b16 %v569, %v568
    %v585 = vpack.c.b16 %v571, %v570
    %v586 = vpack.c.b16 %v573, %v572
    %v587 = vpack.c.b16 %v575, %v574
    %v588 = vpack.c.b16 %v577, %v576
    %v589 = vpack.c.b16 %v579, %v578
    %v590 = vpack.c.b16 %v581, %v580
    %v591 = vpack.c.b16 %v583, %v582
    %600 = vmatprep.subr.bf16.mxu0 0
    %601 = vmatpush1.bf16.msra.mxu0 %v584
    %602 = vmatprep.subr.bf16.mxu0 0
    %603 = vmatpush1.bf16.msra.mxu0 %v585
    %604 = vmatprep.subr.bf16.mxu0 0
    %605 = vmatpush1.bf16.msra.mxu0 %v586
    %606 = vmatprep.subr.bf16.mxu0 0
    %607 = vmatpush1.bf16.msra.mxu0 %v587
    %608 = vmatprep.subr.bf16.mxu0 0
    %609 = vmatpush1.bf16.msra.mxu0 %v588
    %610 = vmatprep.subr.bf16.mxu0 0
    %611 = vmatpush1.bf16.msra.mxu0 %v589
    %612 = vmatprep.subr.bf16.mxu0 0
    %613 = vmatpush1.bf16.msra.mxu0 %v590
    %614 = vmatprep.subr.bf16.mxu0 0
    %615 = vmatpush1.bf16.msra.mxu0 %v591
    %616 = vmatprep.subr.bf16.mxu0 0
    %617 = vmatpush1.bf16.msra.mxu0 0
    %618 = vmatprep.subr.bf16.mxu0 0
    %619 = vmatpush1.bf16.msra.mxu0 0
    %620 = vmatprep.subr.bf16.mxu0 0
    %621 = vmatpush1.bf16.msra.mxu0 0
    %622 = vmatprep.subr.bf16.mxu0 0
    %623 = vmatpush1.bf16.msra.mxu0 0
    %624 = vmatprep.subr.bf16.mxu0 0
    %625 = vmatpush1.bf16.msra.mxu0 0
    %626 = vmatprep.subr.bf16.mxu0 0
    %627 = vmatpush1.bf16.msra.mxu0 0
    %628 = vmatprep.subr.bf16.mxu0 0
    %629 = vmatpush1.bf16.msra.mxu0 0
    %630 = vmatprep.subr.bf16.mxu0 0
    %631 = vmatpush1.bf16.msra.mxu0 0
    %632 = vmatprep.mubr.bf16.mxu0 0
    %633 = vmatmul.mubr.bf16.gmra.mrb[0].mxu0 %v528
    %v634 = vpop.f32.mrb[0].mxu0
    %v635 = vadd.f32 %v550, %v634
    %v636 = vpop.f32.mrb[0].mxu0
    %v637 = vpop.f32.mrb[0].mxu0
    %v638 = vpop.f32.mrb[0].mxu0
    %639 = vdwg.mxu0
    %v640 = vmax.f32 %v635, 0.0
    %v641 = vld [vmem:[%s7] sm:$0xff]
    %v642 = vld [vmem:[%s7 + $0x8] sm:$0xff]
    %v643 = vld [vmem:[%s7 + $0x10] sm:$0xff]
    %v644 = vld [vmem:[%s7 + $0x18] sm:$0xff]
    %v645 = vld [vmem:[%s7 + $0x20] sm:$0xff]
    %v646 = vld [vmem:[%s7 + $0x28] sm:$0xff]
    %v647 = vld [vmem:[%s7 + $0x30] sm:$0xff]
    %v648 = vld [vmem:[%s7 + $0x38] sm:$0xff]
    %v649 = vld [vmem:[%s7 + $0x40] sm:$0xff]
    %v650 = vld [vmem:[%s7 + $0x48] sm:$0xff]
    %v651 = vld [vmem:[%s7 + $0x50] sm:$0xff]
    %v652 = vld [vmem:[%s7 + $0x58] sm:$0xff]
    %v653 = vld [vmem:[%s7 + $0x60] sm:$0xff]
    %v654 = vld [vmem:[%s7 + $0x68] sm:$0xff]
    %v655 = vld [vmem:[%s7 + $0x70] sm:$0xff]
    %v656 = vld [vmem:[%s7 + $0x78] sm:$0xff]
    %v657 = vld [vmem:[%s9] sm:$0x1]
    %v659 = vlaneseq
    %v660 = vshrl.u32 %v659, 7
    %v661 = vsub.s32 0, %v660
    %v662 = vrot.slane %v657, %v661
    %664 = vmatprep.subr.mxu0 0.0
    %665 = vmatpush1.msra.mxu0 %v641
    %666 = vmatprep.subr.mxu0 0.0
    %667 = vmatpush1.msra.mxu0 %v642
    %668 = vmatprep.subr.mxu0 0.0
    %669 = vmatpush1.msra.mxu0 %v643
    %670 = vmatprep.subr.mxu0 0.0
    %671 = vmatpush1.msra.mxu0 %v644
    %672 = vmatprep.subr.mxu0 0.0
    %673 = vmatpush1.msra.mxu0 %v645
    %674 = vmatprep.subr.mxu0 0.0
    %675 = vmatpush1.msra.mxu0 %v646
    %676 = vmatprep.subr.mxu0 0.0
    %677 = vmatpush1.msra.mxu0 %v647
    %678 = vmatprep.subr.mxu0 0.0
    %679 = vmatpush1.msra.mxu0 %v648
    %680 = vmatprep.subr.mxu0 0.0
    %681 = vmatpush1.msra.mxu0 %v649
    %682 = vmatprep.subr.mxu0 0.0
    %683 = vmatpush1.msra.mxu0 %v650
    %684 = vmatprep.subr.mxu0 0.0
    %685 = vmatpush1.msra.mxu0 %v651
    %686 = vmatprep.subr.mxu0 0.0
    %687 = vmatpush1.msra.mxu0 %v652
    %688 = vmatprep.subr.mxu0 0.0
    %689 = vmatpush1.msra.mxu0 %v653
    %690 = vmatprep.subr.mxu0 0.0
    %691 = vmatpush1.msra.mxu0 %v654
    %692 = vmatprep.subr.mxu0 0.0
    %693 = vmatpush1.msra.mxu0 %v655
    %694 = vmatprep.subr.mxu0 0.0
    %695 = vmatpush1.msra.mxu0 %v656
    %696 = vmatprep.subr.mxu0 0.0
    %697 = vmatpush1.msra.mxu0 0.0
    %698 = vmatprep.subr.mxu0 0.0
    %699 = vmatpush1.msra.mxu0 0.0
    %700 = vmatprep.subr.mxu0 0.0
    %701 = vmatpush1.msra.mxu0 0.0
    %702 = vmatprep.subr.mxu0 0.0
    %703 = vmatpush1.msra.mxu0 0.0
    %704 = vmatprep.subr.mxu0 0.0
    %705 = vmatpush1.msra.mxu0 0.0
    %706 = vmatprep.subr.mxu0 0.0
    %707 = vmatpush1.msra.mxu0 0.0
    %708 = vmatprep.subr.mxu0 0.0
    %709 = vmatpush1.msra.mxu0 0.0
    %710 = vmatprep.subr.mxu0 0.0
    %711 = vmatpush1.msra.mxu0 0.0
    %712 = vmatprep.subr.mxu0 0.0
    %713 = vmatpush1.msra.mxu0 0.0
    %714 = vmatprep.subr.mxu0 0.0
    %715 = vmatpush1.msra.mxu0 0.0
    %716 = vmatprep.subr.mxu0 0.0
    %717 = vmatpush1.msra.mxu0 0.0
    %718 = vmatprep.subr.mxu0 0.0
    %719 = vmatpush1.msra.mxu0 0.0
    %720 = vmatprep.subr.mxu0 0.0
    %721 = vmatpush1.msra.mxu0 0.0
    %722 = vmatprep.subr.mxu0 0.0
    %723 = vmatpush1.msra.mxu0 0.0
    %724 = vmatprep.subr.mxu0 0.0
    %725 = vmatpush1.msra.mxu0 0.0
    %726 = vmatprep.subr.mxu0 0.0
    %727 = vmatpush1.msra.mxu0 0.0
    %728 = vmatprep.mubr.f32.mxu0 0.0
    %729 = vmatmul.mubr.f32.gmra.mrb[0].mxu0 %v640
    %v730 = vpop.f32.mrb[0].mxu0
    %v731 = vadd.f32 %v662, %v730
    %v732 = vpop.f32.mrb[0].mxu0
    %733 = vdwg.mxu0
    %v735 = vrot.slane %v731, 3
    %vm737 = vcmask 1040384
    %v738 = vsel %vm737, %v731, %v735
    %v739 = vld [vmem:[%s8] sm:$0xff]
    %v740 = vld [vmem:[%s8 + $0x8] sm:$0xff]
    %v741 = vld [vmem:[%s8 + $0x10] sm:$0xff]
    %v742 = vld [vmem:[%s8 + $0x18] sm:$0xff]
    %vm743 = vcmask 261120
    %v745 = vsel %vm743, 0.0, 0
    %747 = vmatprep.subr.mxu0 0.0
    %748 = vmatpush1.msra.mxu0 %v739
    %749 = vmatprep.subr.mxu0 0.0
    %750 = vmatpush1.msra.mxu0 %v740
    %751 = vmatprep.subr.mxu0 0.0
    %752 = vmatpush1.msra.mxu0 %v741
    %753 = vmatprep.subr.mxu0 0.0
    %754 = vmatpush1.msra.mxu0 %v742
    %755 = vmatprep.subr.mxu0 0.0
    %756 = vmatpush1.msra.mxu0 0.0
    %757 = vmatprep.subr.mxu0 0.0
    %758 = vmatpush1.msra.mxu0 0.0
    %759 = vmatprep.subr.mxu0 0.0
    %760 = vmatpush1.msra.mxu0 0.0
    %761 = vmatprep.subr.mxu0 0.0
    %762 = vmatpush1.msra.mxu0 0.0
    %763 = vmatprep.subr.mxu0 0.0
    %764 = vmatpush1.msra.mxu0 0.0
    %765 = vmatprep.subr.mxu0 0.0
    %766 = vmatpush1.msra.mxu0 0.0
    %767 = vmatprep.subr.mxu0 0.0
    %768 = vmatpush1.msra.mxu0 0.0
    %769 = vmatprep.subr.mxu0 0.0
    %770 = vmatpush1.msra.mxu0 0.0
    %771 = vmatprep.subr.mxu0 0.0
    %772 = vmatpush1.msra.mxu0 0.0
    %773 = vmatprep.subr.mxu0 0.0
    %774 = vmatpush1.msra.mxu0 0.0
    %775 = vmatprep.subr.mxu0 0.0
    %776 = vmatpush1.msra.mxu0 0.0
    %777 = vmatprep.subr.mxu0 0.0
    %778 = vmatpush1.msra.mxu0 0.0
    %779 = vmatprep.subr.mxu0 0.0
    %780 = vmatpush1.msra.mxu0 0.0
    %781 = vmatprep.subr.mxu0 0.0
    %782 = vmatpush1.msra.mxu0 0.0
    %783 = vmatprep.subr.mxu0 0.0
    %784 = vmatpush1.msra.mxu0 0.0
    %785 = vmatprep.subr.mxu0 0.0
    %786 = vmatpush1.msra.mxu0 0.0
    %787 = vmatprep.subr.mxu0 0.0
    %788 = vmatpush1.msra.mxu0 0.0
    %789 = vmatprep.subr.mxu0 0.0
    %790 = vmatpush1.msra.mxu0 0.0
    %791 = vmatprep.subr.mxu0 0.0
    %792 = vmatpush1.msra.mxu0 0.0
    %793 = vmatprep.subr.mxu0 0.0
    %794 = vmatpush1.msra.mxu0 0.0
    %795 = vmatprep.subr.mxu0 0.0
    %796 = vmatpush1.msra.mxu0 0.0
    %797 = vmatprep.subr.mxu0 0.0
    %798 = vmatpush1.msra.mxu0 0.0
    %799 = vmatprep.subr.mxu0 0.0
    %800 = vmatpush1.msra.mxu0 0.0
    %801 = vmatprep.subr.mxu0 0.0
    %802 = vmatpush1.msra.mxu0 0.0
    %803 = vmatprep.subr.mxu0 0.0
    %804 = vmatpush1.msra.mxu0 0.0
    %805 = vmatprep.subr.mxu0 0.0
    %806 = vmatpush1.msra.mxu0 0.0
    %807 = vmatprep.subr.mxu0 0.0
    %808 = vmatpush1.msra.mxu0 0.0
    %809 = vmatprep.subr.mxu0 0.0
    %810 = vmatpush1.msra.mxu0 0.0
    %811 = vmatprep.mubr.f32.mxu0 0.0
    %812 = vmatmul.mubr.f32.gmra.mrb[0].mxu0 %v745
    %v813 = vpop.f32.mrb[0].mxu0
    %v814 = vadd.f32 0.0, %v813
    %v815 = vpop.f32.mrb[0].mxu0
    %816 = vdwg.mxu0
    %v817 = vadd.f32 %v738, %v814
    %v818 = vxor.u32 %v817, 2147483648
    %v819 = vmul.f32 %v818, 1.442695
    %v820 = vpow.pop %v819
    %v821 = vadd.f32 %v820, 1.0
    %v822 = vrcp.pop %v821
    %v823 = vmul.f32 1.0, %v822
    %v824 = vtanh.pop %v817
    %v825 = vmul.f32 %v823, 0.0
    %827 = vrot.lane.b32.xlu0 %v824, 64
    %v828 = vpop.permute.xlu0 %827
    %v830 = vmul.f32 %v823, %v828
    %832 = vrot.lane.b32.xlu0 %v830, 32
    %v833 = vpop.permute.xlu0 %832
    %v835 = vadd.f32 %v825, %v833
    %v836 = vtanh.pop %v835
    %838 = vrot.lane.b32.xlu0 %v836, 64
    %v839 = vpop.permute.xlu0 %838
    %v841 = vmul.f32 %v823, %v839
    %v842 = vrot.slane %v731, 1
    %v844 = vrot.slane %v731, 4
    %v846 = vsel %vm737, %v842, %v844
    %848 = vrot.lane.b32.xlu0 %v841, 32
    %v849 = vpop.permute.xlu0 %848
    %v850 = vsel %vm743, %v849, 0
    %852 = vmatprep.subr.mxu0 0.0
    %853 = vmatpush1.msra.mxu0 %v739
    %854 = vmatprep.subr.mxu0 0.0
    %855 = vmatpush1.msra.mxu0 %v740
    %856 = vmatprep.subr.mxu0 0.0
    %857 = vmatpush1.msra.mxu0 %v741
    %858 = vmatprep.subr.mxu0 0.0
    %859 = vmatpush1.msra.mxu0 %v742
    %860 = vmatprep.subr.mxu0 0.0
    %861 = vmatpush1.msra.mxu0 0.0
    %862 = vmatprep.subr.mxu0 0.0
    %863 = vmatpush1.msra.mxu0 0.0
    %864 = vmatprep.subr.mxu0 0.0
    %865 = vmatpush1.msra.mxu0 0.0
    %866 = vmatprep.subr.mxu0 0.0
    %867 = vmatpush1.msra.mxu0 0.0
    %868 = vmatprep.subr.mxu0 0.0
    %869 = vmatpush1.msra.mxu0 0.0
    %870 = vmatprep.subr.mxu0 0.0
    %871 = vmatpush1.msra.mxu0 0.0
    %872 = vmatprep.subr.mxu0 0.0
    %873 = vmatpush1.msra.mxu0 0.0
    %874 = vmatprep.subr.mxu0 0.0
    %875 = vmatpush1.msra.mxu0 0.0
    %876 = vmatprep.subr.mxu0 0.0
    %877 = vmatpush1.msra.mxu0 0.0
    %878 = vmatprep.subr.mxu0 0.0
    %879 = vmatpush1.msra.mxu0 0.0
    %880 = vmatprep.subr.mxu0 0.0
    %881 = vmatpush1.msra.mxu0 0.0
    %882 = vmatprep.subr.mxu0 0.0
    %883 = vmatpush1.msra.mxu0 0.0
    %884 = vmatprep.subr.mxu0 0.0
    %885 = vmatpush1.msra.mxu0 0.0
    %886 = vmatprep.subr.mxu0 0.0
    %887 = vmatpush1.msra.mxu0 0.0
    %888 = vmatprep.subr.mxu0 0.0
    %889 = vmatpush1.msra.mxu0 0.0
    %890 = vmatprep.subr.mxu0 0.0
    %891 = vmatpush1.msra.mxu0 0.0
    %892 = vmatprep.subr.mxu0 0.0
    %893 = vmatpush1.msra.mxu0 0.0
    %894 = vmatprep.subr.mxu0 0.0
    %895 = vmatpush1.msra.mxu0 0.0
    %896 = vmatprep.subr.mxu0 0.0
    %897 = vmatpush1.msra.mxu0 0.0
    %898 = vmatprep.subr.mxu0 0.0
    %899 = vmatpush1.msra.mxu0 0.0
    %900 = vmatprep.subr.mxu0 0.0
    %901 = vmatpush1.msra.mxu0 0.0
    %902 = vmatprep.subr.mxu0 0.0
    %903 = vmatpush1.msra.mxu0 0.0
    %904 = vmatprep.subr.mxu0 0.0
    %905 = vmatpush1.msra.mxu0 0.0
    %906 = vmatprep.subr.mxu0 0.0
    %907 = vmatpush1.msra.mxu0 0.0
    %908 = vmatprep.subr.mxu0 0.0
    %909 = vmatpush1.msra.mxu0 0.0
    %910 = vmatprep.subr.mxu0 0.0
    %911 = vmatpush1.msra.mxu0 0.0
    %912 = vmatprep.subr.mxu0 0.0
    %913 = vmatpush1.msra.mxu0 0.0
    %914 = vmatprep.subr.mxu0 0.0
    %915 = vmatpush1.msra.mxu0 0.0
    %916 = vmatprep.mubr.f32.mxu0 0.0
    %917 = vmatmul.mubr.f32.gmra.mrb[0].mxu0 %v850
    %v918 = vpop.f32.mrb[0].mxu0
    %v919 = vadd.f32 0.0, %v918
    %v920 = vpop.f32.mrb[0].mxu0
    %921 = vdwg.mxu0
    %v922 = vadd.f32 %v846, %v919
    %v923 = vxor.u32 %v922, 2147483648
    %v924 = vmul.f32 %v923, 1.442695
    %v925 = vpow.pop %v924
    %v926 = vadd.f32 %v925, 1.0
    %v927 = vrcp.pop %v926
    %v928 = vmul.f32 1.0, %v927
    %v929 = vtanh.pop %v922
    %v930 = vmul.f32 %v928, %v835
    %932 = vrot.lane.b32.xlu0 %v929, 64
    %v933 = vpop.permute.xlu0 %932
    %v935 = vmul.f32 %v928, %v933
    %937 = vrot.lane.b32.xlu0 %v935, 32
    %v938 = vpop.permute.xlu0 %937
    %v940 = vadd.f32 %v930, %v938
    %v941 = vtanh.pop %v940
    %943 = vrot.lane.b32.xlu0 %v941, 64
    %v944 = vpop.permute.xlu0 %943
    %v946 = vmul.f32 %v928, %v944
    %v947 = vrot.slane %v731, 2
    %v949 = vrot.slane %v731, 5
    %v951 = vsel %vm737, %v947, %v949
    %953 = vrot.lane.b32.xlu0 %v946, 32
    %v954 = vpop.permute.xlu0 %953
    %v955 = vsel %vm743, %v954, 0
    %957 = vmatprep.subr.mxu0 0.0
    %958 = vmatpush1.msra.mxu0 %v739
    %959 = vmatprep.subr.mxu0 0.0
    %960 = vmatpush1.msra.mxu0 %v740
    %961 = vmatprep.subr.mxu0 0.0
    %962 = vmatpush1.msra.mxu0 %v741
    %963 = vmatprep.subr.mxu0 0.0
    %964 = vmatpush1.msra.mxu0 %v742
    %965 = vmatprep.subr.mxu0 0.0
    %966 = vmatpush1.msra.mxu0 0.0
    %967 = vmatprep.subr.mxu0 0.0
    %968 = vmatpush1.msra.mxu0 0.0
    %969 = vmatprep.subr.mxu0 0.0
    %970 = vmatpush1.msra.mxu0 0.0
    %971 = vmatprep.subr.mxu0 0.0
    %972 = vmatpush1.msra.mxu0 0.0
    %973 = vmatprep.subr.mxu0 0.0
    %974 = vmatpush1.msra.mxu0 0.0
    %975 = vmatprep.subr.mxu0 0.0
    %976 = vmatpush1.msra.mxu0 0.0
    %977 = vmatprep.subr.mxu0 0.0
    %978 = vmatpush1.msra.mxu0 0.0
    %979 = vmatprep.subr.mxu0 0.0
    %980 = vmatpush1.msra.mxu0 0.0
    %981 = vmatprep.subr.mxu0 0.0
    %982 = vmatpush1.msra.mxu0 0.0
    %983 = vmatprep.subr.mxu0 0.0
    %984 = vmatpush1.msra.mxu0 0.0
    %985 = vmatprep.subr.mxu0 0.0
    %986 = vmatpush1.msra.mxu0 0.0
    %987 = vmatprep.subr.mxu0 0.0
    %988 = vmatpush1.msra.mxu0 0.0
    %989 = vmatprep.subr.mxu0 0.0
    %990 = vmatpush1.msra.mxu0 0.0
    %991 = vmatprep.subr.mxu0 0.0
    %992 = vmatpush1.msra.mxu0 0.0
    %993 = vmatprep.subr.mxu0 0.0
    %994 = vmatpush1.msra.mxu0 0.0
    %995 = vmatprep.subr.mxu0 0.0
    %996 = vmatpush1.msra.mxu0 0.0
    %997 = vmatprep.subr.mxu0 0.0
    %998 = vmatpush1.msra.mxu0 0.0
    %999 = vmatprep.subr.mxu0 0.0
    %1000 = vmatpush1.msra.mxu0 0.0
    %1001 = vmatprep.subr.mxu0 0.0
    %1002 = vmatpush1.msra.mxu0 0.0
    %1003 = vmatprep.subr.mxu0 0.0
    %1004 = vmatpush1.msra.mxu0 0.0
    %1005 = vmatprep.subr.mxu0 0.0
    %1006 = vmatpush1.msra.mxu0 0.0
    %1007 = vmatprep.subr.mxu0 0.0
    %1008 = vmatpush1.msra.mxu0 0.0
    %1009 = vmatprep.subr.mxu0 0.0
    %1010 = vmatpush1.msra.mxu0 0.0
    %1011 = vmatprep.subr.mxu0 0.0
    %1012 = vmatpush1.msra.mxu0 0.0
    %1013 = vmatprep.subr.mxu0 0.0
    %1014 = vmatpush1.msra.mxu0 0.0
    %1015 = vmatprep.subr.mxu0 0.0
    %1016 = vmatpush1.msra.mxu0 0.0
    %1017 = vmatprep.subr.mxu0 0.0
    %1018 = vmatpush1.msra.mxu0 0.0
    %1019 = vmatprep.subr.mxu0 0.0
    %1020 = vmatpush1.msra.mxu0 0.0
    %1021 = vmatprep.mubr.f32.mxu0 0.0
    %1022 = vmatmul.mubr.f32.gmra.mrb[0].mxu0 %v955
    %v1023 = vpop.f32.mrb[0].mxu0
    %v1024 = vadd.f32 0.0, %v1023
    %v1025 = vpop.f32.mrb[0].mxu0
    %1026 = vdwg.mxu0
    %v1027 = vadd.f32 %v951, %v1024
    %v1028 = vxor.u32 %v1027, 2147483648
    %v1029 = vmul.f32 %v1028, 1.442695
    %v1030 = vpow.pop %v1029
    %v1031 = vadd.f32 %v1030, 1.0
    %v1032 = vrcp.pop %v1031
    %v1033 = vmul.f32 1.0, %v1032
    %v1034 = vtanh.pop %v1027
    %v1035 = vmul.f32 %v1033, %v940
    %1037 = vrot.lane.b32.xlu0 %v1034, 64
    %v1038 = vpop.permute.xlu0 %1037
    %v1040 = vmul.f32 %v1033, %v1038
    %1042 = vrot.lane.b32.xlu0 %v1040, 32
    %v1043 = vpop.permute.xlu0 %1042
    %v1045 = vadd.f32 %v1035, %v1043
    %v1046 = vtanh.pop %v1045
    %1048 = vrot.lane.b32.xlu0 %v1046, 64
    %v1049 = vpop.permute.xlu0 %1048
    %v1051 = vmul.f32 %v1033, %v1049
    %v1052 = vrot.slane %v731, 6
    %v1054 = vsel %vm737, %v735, %v1052
    %1056 = vrot.lane.b32.xlu0 %v1051, 32
    %v1057 = vpop.permute.xlu0 %1056
    %v1058 = vsel %vm743, %v1057, 0
    %1060 = vmatprep.subr.mxu0 0.0
    %1061 = vmatpush1.msra.mxu0 %v739
    %1062 = vmatprep.subr.mxu0 0.0
    %1063 = vmatpush1.msra.mxu0 %v740
    %1064 = vmatprep.subr.mxu0 0.0
    %1065 = vmatpush1.msra.mxu0 %v741
    %1066 = vmatprep.subr.mxu0 0.0
    %1067 = vmatpush1.msra.mxu0 %v742
    %1068 = vmatprep.subr.mxu0 0.0
    %1069 = vmatpush1.msra.mxu0 0.0
    %1070 = vmatprep.subr.mxu0 0.0
    %1071 = vmatpush1.msra.mxu0 0.0
    %1072 = vmatprep.subr.mxu0 0.0
    %1073 = vmatpush1.msra.mxu0 0.0
    %1074 = vmatprep.subr.mxu0 0.0
    %1075 = vmatpush1.msra.mxu0 0.0
    %1076 = vmatprep.subr.mxu0 0.0
    %1077 = vmatpush1.msra.mxu0 0.0
    %1078 = vmatprep.subr.mxu0 0.0
    %1079 = vmatpush1.msra.mxu0 0.0
    %1080 = vmatprep.subr.mxu0 0.0
    %1081 = vmatpush1.msra.mxu0 0.0
    %1082 = vmatprep.subr.mxu0 0.0
    %1083 = vmatpush1.msra.mxu0 0.0
    %1084 = vmatprep.subr.mxu0 0.0
    %1085 = vmatpush1.msra.mxu0 0.0
    %1086 = vmatprep.subr.mxu0 0.0
    %1087 = vmatpush1.msra.mxu0 0.0
    %1088 = vmatprep.subr.mxu0 0.0
    %1089 = vmatpush1.msra.mxu0 0.0
    %1090 = vmatprep.subr.mxu0 0.0
    %1091 = vmatpush1.msra.mxu0 0.0
    %1092 = vmatprep.subr.mxu0 0.0
    %1093 = vmatpush1.msra.mxu0 0.0
    %1094 = vmatprep.subr.mxu0 0.0
    %1095 = vmatpush1.msra.mxu0 0.0
    %1096 = vmatprep.subr.mxu0 0.0
    %1097 = vmatpush1.msra.mxu0 0.0
    %1098 = vmatprep.subr.mxu0 0.0
    %1099 = vmatpush1.msra.mxu0 0.0
    %1100 = vmatprep.subr.mxu0 0.0
    %1101 = vmatpush1.msra.mxu0 0.0
    %1102 = vmatprep.subr.mxu0 0.0
    %1103 = vmatpush1.msra.mxu0 0.0
    %1104 = vmatprep.subr.mxu0 0.0
    %1105 = vmatpush1.msra.mxu0 0.0
    %1106 = vmatprep.subr.mxu0 0.0
    %1107 = vmatpush1.msra.mxu0 0.0
    %1108 = vmatprep.subr.mxu0 0.0
    %1109 = vmatpush1.msra.mxu0 0.0
    %1110 = vmatprep.subr.mxu0 0.0
    %1111 = vmatpush1.msra.mxu0 0.0
    %1112 = vmatprep.subr.mxu0 0.0
    %1113 = vmatpush1.msra.mxu0 0.0
    %1114 = vmatprep.subr.mxu0 0.0
    %1115 = vmatpush1.msra.mxu0 0.0
    %1116 = vmatprep.subr.mxu0 0.0
    %1117 = vmatpush1.msra.mxu0 0.0
    %1118 = vmatprep.subr.mxu0 0.0
    %1119 = vmatpush1.msra.mxu0 0.0
    %1120 = vmatprep.subr.mxu0 0.0
    %1121 = vmatpush1.msra.mxu0 0.0
    %1122 = vmatprep.subr.mxu0 0.0
    %1123 = vmatpush1.msra.mxu0 0.0
    %1124 = vmatprep.mubr.f32.mxu0 0.0
    %1125 = vmatmul.mubr.f32.gmra.mrb[0].mxu0 %v1058
    %v1126 = vpop.f32.mrb[0].mxu0
    %v1127 = vadd.f32 0.0, %v1126
    %v1128 = vpop.f32.mrb[0].mxu0
    %1129 = vdwg.mxu0
    %v1130 = vadd.f32 %v1054, %v1127
    %v1131 = vxor.u32 %v1130, 2147483648
    %v1132 = vmul.f32 %v1131, 1.442695
    %v1133 = vpow.pop %v1132
    %v1134 = vadd.f32 %v1133, 1.0
    %v1135 = vrcp.pop %v1134
    %v1136 = vmul.f32 1.0, %v1135
    %v1137 = vtanh.pop %v1130
    %v1138 = vmul.f32 %v1136, %v1045
    %1140 = vrot.lane.b32.xlu0 %v1137, 64
    %v1141 = vpop.permute.xlu0 %1140
    %v1143 = vmul.f32 %v1136, %v1141
    %1145 = vrot.lane.b32.xlu0 %v1143, 32
    %v1146 = vpop.permute.xlu0 %1145
    %v1148 = vadd.f32 %v1138, %v1146
    %v1149 = vtanh.pop %v1148
    %1151 = vrot.lane.b32.xlu0 %v1149, 64
    %v1152 = vpop.permute.xlu0 %1151
    %v1154 = vmul.f32 %v1136, %v1152
    %v1155 = vrot.slane %v946, 6
    %v1157 = vrot.slane %v1051, 4
    %v1160 = vrot.slane %v1154, 2
    %vm1162 = vcmask 1041408
    %v1163 = vsel %vm1162, %v841, %v1155
    %vm1164 = vcmask 1043456
    %v1165 = vsel %vm1164, %v1163, %v1157
    %vm1166 = vcmask 1045504
    %v1167 = vsel %vm1166, %v1165, %v1160
    %v1168 = vld [vmem:[%s10] sm:$0xff]
    %v1169 = vld [vmem:[%s10 + $0x8] sm:$0xff]
    %v1170 = vld [vmem:[%s10 + $0x10] sm:$0xff]
    %v1171 = vld [vmem:[%s10 + $0x18] sm:$0xff]
    %v1172 = vld [vmem:[%s12] sm:$0x1]
    %v1174 = vlaneseq
    %v1175 = vshrl.u32 %v1174, 7
    %v1176 = vsub.s32 0, %v1175
    %v1177 = vrot.slane %v1172, %v1176
    %1180 = vrot.lane.b32.xlu0 %v1167, 32
    %v1181 = vpop.permute.xlu0 %1180
    %v1182 = vsel %vm743, %v1181, 0
    %1184 = vmatprep.subr.mxu0 0.0
    %1185 = vmatpush1.msra.mxu0 %v1168
    %1186 = vmatprep.subr.mxu0 0.0
    %1187 = vmatpush1.msra.mxu0 %v1169
    %1188 = vmatprep.subr.mxu0 0.0
    %1189 = vmatpush1.msra.mxu0 %v1170
    %1190 = vmatprep.subr.mxu0 0.0
    %1191 = vmatpush1.msra.mxu0 %v1171
    %1192 = vmatprep.subr.mxu0 0.0
    %1193 = vmatpush1.msra.mxu0 0.0
    %1194 = vmatprep.subr.mxu0 0.0
    %1195 = vmatpush1.msra.mxu0 0.0
    %1196 = vmatprep.subr.mxu0 0.0
    %1197 = vmatpush1.msra.mxu0 0.0
    %1198 = vmatprep.subr.mxu0 0.0
    %1199 = vmatpush1.msra.mxu0 0.0
    %1200 = vmatprep.subr.mxu0 0.0
    %1201 = vmatpush1.msra.mxu0 0.0
    %1202 = vmatprep.subr.mxu0 0.0
    %1203 = vmatpush1.msra.mxu0 0.0
    %1204 = vmatprep.subr.mxu0 0.0
    %1205 = vmatpush1.msra.mxu0 0.0
    %1206 = vmatprep.subr.mxu0 0.0
    %1207 = vmatpush1.msra.mxu0 0.0
    %1208 = vmatprep.subr.mxu0 0.0
    %1209 = vmatpush1.msra.mxu0 0.0
    %1210 = vmatprep.subr.mxu0 0.0
    %1211 = vmatpush1.msra.mxu0 0.0
    %1212 = vmatprep.subr.mxu0 0.0
    %1213 = vmatpush1.msra.mxu0 0.0
    %1214 = vmatprep.subr.mxu0 0.0
    %1215 = vmatpush1.msra.mxu0 0.0
    %1216 = vmatprep.subr.mxu0 0.0
    %1217 = vmatpush1.msra.mxu0 0.0
    %1218 = vmatprep.subr.mxu0 0.0
    %1219 = vmatpush1.msra.mxu0 0.0
    %1220 = vmatprep.subr.mxu0 0.0
    %1221 = vmatpush1.msra.mxu0 0.0
    %1222 = vmatprep.subr.mxu0 0.0
    %1223 = vmatpush1.msra.mxu0 0.0
    %1224 = vmatprep.subr.mxu0 0.0
    %1225 = vmatpush1.msra.mxu0 0.0
    %1226 = vmatprep.subr.mxu0 0.0
    %1227 = vmatpush1.msra.mxu0 0.0
    %1228 = vmatprep.subr.mxu0 0.0
    %1229 = vmatpush1.msra.mxu0 0.0
    %1230 = vmatprep.subr.mxu0 0.0
    %1231 = vmatpush1.msra.mxu0 0.0
    %1232 = vmatprep.subr.mxu0 0.0
    %1233 = vmatpush1.msra.mxu0 0.0
    %1234 = vmatprep.subr.mxu0 0.0
    %1235 = vmatpush1.msra.mxu0 0.0
    %1236 = vmatprep.subr.mxu0 0.0
    %1237 = vmatpush1.msra.mxu0 0.0
    %1238 = vmatprep.subr.mxu0 0.0
    %1239 = vmatpush1.msra.mxu0 0.0
    %1240 = vmatprep.subr.mxu0 0.0
    %1241 = vmatpush1.msra.mxu0 0.0
    %1242 = vmatprep.subr.mxu0 0.0
    %1243 = vmatpush1.msra.mxu0 0.0
    %1244 = vmatprep.subr.mxu0 0.0
    %1245 = vmatpush1.msra.mxu0 0.0
    %1246 = vmatprep.subr.mxu0 0.0
    %1247 = vmatpush1.msra.mxu0 0.0
    %1248 = vmatprep.mubr.f32.mxu0 0.0
    %1249 = vmatmul.mubr.f32.gmra.mrb[0].mxu0 %v1182
    %v1250 = vpop.f32.mrb[0].mxu0
    %v1251 = vadd.f32 %v1177, %v1250
    %v1252 = vpop.f32.mrb[0].mxu0
    %1253 = vdwg.mxu0
    %v1254 = vld [vmem:[%s11] sm:$0xff]
    %v1255 = vld [vmem:[%s11 + $0x8] sm:$0xff]
    %v1256 = vld [vmem:[%s11 + $0x10] sm:$0xff]
    %v1257 = vld [vmem:[%s11 + $0x18] sm:$0xff]
    %1258 = vmatprep.subr.mxu0 0.0
    %1259 = vmatpush1.msra.mxu0 %v1254
    %1260 = vmatprep.subr.mxu0 0.0
    %1261 = vmatpush1.msra.mxu0 %v1255
    %1262 = vmatprep.subr.mxu0 0.0
    %1263 = vmatpush1.msra.mxu0 %v1256
    %1264 = vmatprep.subr.mxu0 0.0
    %1265 = vmatpush1.msra.mxu0 %v1257
    %1266 = vmatprep.subr.mxu0 0.0
    %1267 = vmatpush1.msra.mxu0 0.0
    %1268 = vmatprep.subr.mxu0 0.0
    %1269 = vmatpush1.msra.mxu0 0.0
    %1270 = vmatprep.subr.mxu0 0.0
    %1271 = vmatpush1.msra.mxu0 0.0
    %1272 = vmatprep.subr.mxu0 0.0
    %1273 = vmatpush1.msra.mxu0 0.0
    %1274 = vmatprep.subr.mxu0 0.0
    %1275 = vmatpush1.msra.mxu0 0.0
    %1276 = vmatprep.subr.mxu0 0.0
    %1277 = vmatpush1.msra.mxu0 0.0
    %1278 = vmatprep.subr.mxu0 0.0
    %1279 = vmatpush1.msra.mxu0 0.0
    %1280 = vmatprep.subr.mxu0 0.0
    %1281 = vmatpush1.msra.mxu0 0.0
    %1282 = vmatprep.subr.mxu0 0.0
    %1283 = vmatpush1.msra.mxu0 0.0
    %1284 = vmatprep.subr.mxu0 0.0
    %1285 = vmatpush1.msra.mxu0 0.0
    %1286 = vmatprep.subr.mxu0 0.0
    %1287 = vmatpush1.msra.mxu0 0.0
    %1288 = vmatprep.subr.mxu0 0.0
    %1289 = vmatpush1.msra.mxu0 0.0
    %1290 = vmatprep.subr.mxu0 0.0
    %1291 = vmatpush1.msra.mxu0 0.0
    %1292 = vmatprep.subr.mxu0 0.0
    %1293 = vmatpush1.msra.mxu0 0.0
    %1294 = vmatprep.subr.mxu0 0.0
    %1295 = vmatpush1.msra.mxu0 0.0
    %1296 = vmatprep.subr.mxu0 0.0
    %1297 = vmatpush1.msra.mxu0 0.0
    %1298 = vmatprep.subr.mxu0 0.0
    %1299 = vmatpush1.msra.mxu0 0.0
    %1300 = vmatprep.subr.mxu0 0.0
    %1301 = vmatpush1.msra.mxu0 0.0
    %1302 = vmatprep.subr.mxu0 0.0
    %1303 = vmatpush1.msra.mxu0 0.0
    %1304 = vmatprep.subr.mxu0 0.0
    %1305 = vmatpush1.msra.mxu0 0.0
    %1306 = vmatprep.subr.mxu0 0.0
    %1307 = vmatpush1.msra.mxu0 0.0
    %1308 = vmatprep.subr.mxu0 0.0
    %1309 = vmatpush1.msra.mxu0 0.0
    %1310 = vmatprep.subr.mxu0 0.0
    %1311 = vmatpush1.msra.mxu0 0.0
    %1312 = vmatprep.subr.mxu0 0.0
    %1313 = vmatpush1.msra.mxu0 0.0
    %1314 = vmatprep.subr.mxu0 0.0
    %1315 = vmatpush1.msra.mxu0 0.0
    %1316 = vmatprep.subr.mxu0 0.0
    %1317 = vmatpush1.msra.mxu0 0.0
    %1318 = vmatprep.subr.mxu0 0.0
    %1319 = vmatpush1.msra.mxu0 0.0
    %1320 = vmatprep.subr.mxu0 0.0
    %1321 = vmatpush1.msra.mxu0 0.0
    %1322 = vmatprep.mubr.f32.mxu0 0.0
    %1323 = vmatmul.mubr.f32.gmra.mrb[0].mxu0 %v745
    %v1324 = vpop.f32.mrb[0].mxu0
    %v1325 = vadd.f32 0.0, %v1324
    %v1326 = vpop.f32.mrb[0].mxu0
    %1327 = vdwg.mxu0
    %v1328 = vadd.f32 %v1251, %v1325
    %v1329 = vxor.u32 %v1328, 2147483648
    %v1330 = vmul.f32 %v1329, 1.442695
    %v1331 = vpow.pop %v1330
    %v1332 = vadd.f32 %v1331, 1.0
    %v1333 = vrcp.pop %v1332
    %v1334 = vmul.f32 1.0, %v1333
    %v1335 = vtanh.pop %v1328
    %v1336 = vmul.f32 %v1334, 0.0
    %1338 = vrot.lane.b32.xlu0 %v1335, 64
    %v1339 = vpop.permute.xlu0 %1338
    %v1341 = vmul.f32 %v1334, %v1339
    %1343 = vrot.lane.b32.xlu0 %v1341, 32
    %v1344 = vpop.permute.xlu0 %1343
    %v1346 = vadd.f32 %v1336, %v1344
    %v1347 = vtanh.pop %v1346
    %1349 = vrot.lane.b32.xlu0 %v1347, 64
    %v1350 = vpop.permute.xlu0 %1349
    %v1352 = vmul.f32 %v1334, %v1350
    %1354 = vrot.lane.b32.xlu0 %v1352, 32
    %v1355 = vpop.permute.xlu0 %1354
    %v1356 = vsel %vm743, %v1355, 0
    %1358 = vmatprep.subr.mxu0 0.0
    %1359 = vmatpush1.msra.mxu0 %v1254
    %1360 = vmatprep.subr.mxu0 0.0
    %1361 = vmatpush1.msra.mxu0 %v1255
    %1362 = vmatprep.subr.mxu0 0.0
    %1363 = vmatpush1.msra.mxu0 %v1256
    %1364 = vmatprep.subr.mxu0 0.0
    %1365 = vmatpush1.msra.mxu0 %v1257
    %1366 = vmatprep.subr.mxu0 0.0
    %1367 = vmatpush1.msra.mxu0 0.0
    %1368 = vmatprep.subr.mxu0 0.0
    %1369 = vmatpush1.msra.mxu0 0.0
    %1370 = vmatprep.subr.mxu0 0.0
    %1371 = vmatpush1.msra.mxu0 0.0
    %1372 = vmatprep.subr.mxu0 0.0
    %1373 = vmatpush1.msra.mxu0 0.0
    %1374 = vmatprep.subr.mxu0 0.0
    %1375 = vmatpush1.msra.mxu0 0.0
    %1376 = vmatprep.subr.mxu0 0.0
    %1377 = vmatpush1.msra.mxu0 0.0
    %1378 = vmatprep.subr.mxu0 0.0
    %1379 = vmatpush1.msra.mxu0 0.0
    %1380 = vmatprep.subr.mxu0 0.0
    %1381 = vmatpush1.msra.mxu0 0.0
    %1382 = vmatprep.subr.mxu0 0.0
    %1383 = vmatpush1.msra.mxu0 0.0
    %1384 = vmatprep.subr.mxu0 0.0
    %1385 = vmatpush1.msra.mxu0 0.0
    %1386 = vmatprep.subr.mxu0 0.0
    %1387 = vmatpush1.msra.mxu0 0.0
    %1388 = vmatprep.subr.mxu0 0.0
    %1389 = vmatpush1.msra.mxu0 0.0
    %1390 = vmatprep.subr.mxu0 0.0
    %1391 = vmatpush1.msra.mxu0 0.0
    %1392 = vmatprep.subr.mxu0 0.0
    %1393 = vmatpush1.msra.mxu0 0.0
    %1394 = vmatprep.subr.mxu0 0.0
    %1395 = vmatpush1.msra.mxu0 0.0
    %1396 = vmatprep.subr.mxu0 0.0
    %1397 = vmatpush1.msra.mxu0 0.0
    %1398 = vmatprep.subr.mxu0 0.0
    %1399 = vmatpush1.msra.mxu0 0.0
    %1400 = vmatprep.subr.mxu0 0.0
    %1401 = vmatpush1.msra.mxu0 0.0
    %1402 = vmatprep.subr.mxu0 0.0
    %1403 = vmatpush1.msra.mxu0 0.0
    %1404 = vmatprep.subr.mxu0 0.0
    %1405 = vmatpush1.msra.mxu0 0.0
    %1406 = vmatprep.subr.mxu0 0.0
    %1407 = vmatpush1.msra.mxu0 0.0
    %1408 = vmatprep.subr.mxu0 0.0
    %1409 = vmatpush1.msra.mxu0 0.0
    %1410 = vmatprep.subr.mxu0 0.0
    %1411 = vmatpush1.msra.mxu0 0.0
    %1412 = vmatprep.subr.mxu0 0.0
    %1413 = vmatpush1.msra.mxu0 0.0
    %1414 = vmatprep.subr.mxu0 0.0
    %1415 = vmatpush1.msra.mxu0 0.0
    %1416 = vmatprep.subr.mxu0 0.0
    %1417 = vmatpush1.msra.mxu0 0.0
    %1418 = vmatprep.subr.mxu0 0.0
    %1419 = vmatpush1.msra.mxu0 0.0
    %1420 = vmatprep.subr.mxu0 0.0
    %1421 = vmatpush1.msra.mxu0 0.0
    %1422 = vmatprep.mubr.f32.mxu0 0.0
    %1423 = vmatmul.mubr.f32.gmra.mrb[0].mxu0 %v1356
    %v1424 = vpop.f32.mrb[0].mxu0
    %v1425 = vadd.f32 0.0, %v1424
    %v1426 = vpop.f32.mrb[0].mxu0
    %1427 = vdwg.mxu0
    %v1429 = vrot.slane %v1425, 6
    %v1431 = vadd.f32 %v1251, %v1429
    %v1432 = vxor.u32 %v1431, 2147483648
    %v1433 = vmul.f32 %v1432, 1.442695
    %v1434 = vpow.pop %v1433
    %v1435 = vadd.f32 %v1434, 1.0
    %v1436 = vrcp.pop %v1435
    %v1437 = vmul.f32 1.0, %v1436
    %v1438 = vtanh.pop %v1431
    %v1440 = vrot.slane %v1346, 6
    %v1442 = vmul.f32 %v1437, %v1440
    %1444 = vrot.lane.b32.xlu0 %v1438, 64
    %v1445 = vpop.permute.xlu0 %1444
    %v1447 = vmul.f32 %v1437, %v1445
    %1449 = vrot.lane.b32.xlu0 %v1447, 32
    %v1450 = vpop.permute.xlu0 %1449
    %v1452 = vadd.f32 %v1442, %v1450
    %v1453 = vtanh.pop %v1452
    %1455 = vrot.lane.b32.xlu0 %v1453, 64
    %v1456 = vpop.permute.xlu0 %1455
    %v1458 = vmul.f32 %v1437, %v1456
    %v1460 = vrot.slane %v1458, 2
    %1461 = vrot.lane.b32.xlu0 %v1460, 32
    %v1462 = vpop.permute.xlu0 %1461
    %v1463 = vsel %vm743, %v1462, 0
    %1465 = vmatprep.subr.mxu0 0.0
    %1466 = vmatpush1.msra.mxu0 %v1254
    %1467 = vmatprep.subr.mxu0 0.0
    %1468 = vmatpush1.msra.mxu0 %v1255
    %1469 = vmatprep.subr.mxu0 0.0
    %1470 = vmatpush1.msra.mxu0 %v1256
    %1471 = vmatprep.subr.mxu0 0.0
    %1472 = vmatpush1.msra.mxu0 %v1257
    %1473 = vmatprep.subr.mxu0 0.0
    %1474 = vmatpush1.msra.mxu0 0.0
    %1475 = vmatprep.subr.mxu0 0.0
    %1476 = vmatpush1.msra.mxu0 0.0
    %1477 = vmatprep.subr.mxu0 0.0
    %1478 = vmatpush1.msra.mxu0 0.0
    %1479 = vmatprep.subr.mxu0 0.0
    %1480 = vmatpush1.msra.mxu0 0.0
    %1481 = vmatprep.subr.mxu0 0.0
    %1482 = vmatpush1.msra.mxu0 0.0
    %1483 = vmatprep.subr.mxu0 0.0
    %1484 = vmatpush1.msra.mxu0 0.0
    %1485 = vmatprep.subr.mxu0 0.0
    %1486 = vmatpush1.msra.mxu0 0.0
    %1487 = vmatprep.subr.mxu0 0.0
    %1488 = vmatpush1.msra.mxu0 0.0
    %1489 = vmatprep.subr.mxu0 0.0
    %1490 = vmatpush1.msra.mxu0 0.0
    %1491 = vmatprep.subr.mxu0 0.0
    %1492 = vmatpush1.msra.mxu0 0.0
    %1493 = vmatprep.subr.mxu0 0.0
    %1494 = vmatpush1.msra.mxu0 0.0
    %1495 = vmatprep.subr.mxu0 0.0
    %1496 = vmatpush1.msra.mxu0 0.0
    %1497 = vmatprep.subr.mxu0 0.0
    %1498 = vmatpush1.msra.mxu0 0.0
    %1499 = vmatprep.subr.mxu0 0.0
    %1500 = vmatpush1.msra.mxu0 0.0
    %1501 = vmatprep.subr.mxu0 0.0
    %1502 = vmatpush1.msra.mxu0 0.0
    %1503 = vmatprep.subr.mxu0 0.0
    %1504 = vmatpush1.msra.mxu0 0.0
    %1505 = vmatprep.subr.mxu0 0.0
    %1506 = vmatpush1.msra.mxu0 0.0
    %1507 = vmatprep.subr.mxu0 0.0
    %1508 = vmatpush1.msra.mxu0 0.0
    %1509 = vmatprep.subr.mxu0 0.0
    %1510 = vmatpush1.msra.mxu0 0.0
    %1511 = vmatprep.subr.mxu0 0.0
    %1512 = vmatpush1.msra.mxu0 0.0
    %1513 = vmatprep.subr.mxu0 0.0
    %1514 = vmatpush1.msra.mxu0 0.0
    %1515 = vmatprep.subr.mxu0 0.0
    %1516 = vmatpush1.msra.mxu0 0.0
    %1517 = vmatprep.subr.mxu0 0.0
    %1518 = vmatpush1.msra.mxu0 0.0
    %1519 = vmatprep.subr.mxu0 0.0
    %1520 = vmatpush1.msra.mxu0 0.0
    %1521 = vmatprep.subr.mxu0 0.0
    %1522 = vmatpush1.msra.mxu0 0.0
    %1523 = vmatprep.subr.mxu0 0.0
    %1524 = vmatpush1.msra.mxu0 0.0
    %1525 = vmatprep.subr.mxu0 0.0
    %1526 = vmatpush1.msra.mxu0 0.0
    %1527 = vmatprep.subr.mxu0 0.0
    %1528 = vmatpush1.msra.mxu0 0.0
    %1529 = vmatprep.mubr.f32.mxu0 0.0
    %1530 = vmatmul.mubr.f32.gmra.mrb[0].mxu0 %v1463
    %v1531 = vpop.f32.mrb[0].mxu0
    %v1532 = vadd.f32 0.0, %v1531
    %v1533 = vpop.f32.mrb[0].mxu0
    %1534 = vdwg.mxu0
    %v1536 = vrot.slane %v1532, 4
    %v1538 = vadd.f32 %v1251, %v1536
    %v1539 = vxor.u32 %v1538, 2147483648
    %v1540 = vmul.f32 %v1539, 1.442695
    %v1541 = vpow.pop %v1540
    %v1542 = vadd.f32 %v1541, 1.0
    %v1543 = vrcp.pop %v1542
    %v1544 = vmul.f32 1.0, %v1543
    %v1545 = vtanh.pop %v1538
    %v1547 = vrot.slane %v1452, 6
    %v1549 = vmul.f32 %v1544, %v1547
    %1551 = vrot.lane.b32.xlu0 %v1545, 64
    %v1552 = vpop.permute.xlu0 %1551
    %v1554 = vmul.f32 %v1544, %v1552
    %1556 = vrot.lane.b32.xlu0 %v1554, 32
    %v1557 = vpop.permute.xlu0 %1556
    %v1559 = vadd.f32 %v1549, %v1557
    %v1560 = vtanh.pop %v1559
    %1562 = vrot.lane.b32.xlu0 %v1560, 64
    %v1563 = vpop.permute.xlu0 %1562
    %v1565 = vmul.f32 %v1544, %v1563
    %v1567 = vrot.slane %v1565, 4
    %1568 = vrot.lane.b32.xlu0 %v1567, 32
    %v1569 = vpop.permute.xlu0 %1568
    %v1570 = vsel %vm743, %v1569, 0
    %1572 = vmatprep.subr.mxu0 0.0
    %1573 = vmatpush1.msra.mxu0 %v1254
    %1574 = vmatprep.subr.mxu0 0.0
    %1575 = vmatpush1.msra.mxu0 %v1255
    %1576 = vmatprep.subr.mxu0 0.0
    %1577 = vmatpush1.msra.mxu0 %v1256
    %1578 = vmatprep.subr.mxu0 0.0
    %1579 = vmatpush1.msra.mxu0 %v1257
    %1580 = vmatprep.subr.mxu0 0.0
    %1581 = vmatpush1.msra.mxu0 0.0
    %1582 = vmatprep.subr.mxu0 0.0
    %1583 = vmatpush1.msra.mxu0 0.0
    %1584 = vmatprep.subr.mxu0 0.0
    %1585 = vmatpush1.msra.mxu0 0.0
    %1586 = vmatprep.subr.mxu0 0.0
    %1587 = vmatpush1.msra.mxu0 0.0
    %1588 = vmatprep.subr.mxu0 0.0
    %1589 = vmatpush1.msra.mxu0 0.0
    %1590 = vmatprep.subr.mxu0 0.0
    %1591 = vmatpush1.msra.mxu0 0.0
    %1592 = vmatprep.subr.mxu0 0.0
    %1593 = vmatpush1.msra.mxu0 0.0
    %1594 = vmatprep.subr.mxu0 0.0
    %1595 = vmatpush1.msra.mxu0 0.0
    %1596 = vmatprep.subr.mxu0 0.0
    %1597 = vmatpush1.msra.mxu0 0.0
    %1598 = vmatprep.subr.mxu0 0.0
    %1599 = vmatpush1.msra.mxu0 0.0
    %1600 = vmatprep.subr.mxu0 0.0
    %1601 = vmatpush1.msra.mxu0 0.0
    %1602 = vmatprep.subr.mxu0 0.0
    %1603 = vmatpush1.msra.mxu0 0.0
    %1604 = vmatprep.subr.mxu0 0.0
    %1605 = vmatpush1.msra.mxu0 0.0
    %1606 = vmatprep.subr.mxu0 0.0
    %1607 = vmatpush1.msra.mxu0 0.0
    %1608 = vmatprep.subr.mxu0 0.0
    %1609 = vmatpush1.msra.mxu0 0.0
    %1610 = vmatprep.subr.mxu0 0.0
    %1611 = vmatpush1.msra.mxu0 0.0
    %1612 = vmatprep.subr.mxu0 0.0
    %1613 = vmatpush1.msra.mxu0 0.0
    %1614 = vmatprep.subr.mxu0 0.0
    %1615 = vmatpush1.msra.mxu0 0.0
    %1616 = vmatprep.subr.mxu0 0.0
    %1617 = vmatpush1.msra.mxu0 0.0
    %1618 = vmatprep.subr.mxu0 0.0
    %1619 = vmatpush1.msra.mxu0 0.0
    %1620 = vmatprep.subr.mxu0 0.0
    %1621 = vmatpush1.msra.mxu0 0.0
    %1622 = vmatprep.subr.mxu0 0.0
    %1623 = vmatpush1.msra.mxu0 0.0
    %1624 = vmatprep.subr.mxu0 0.0
    %1625 = vmatpush1.msra.mxu0 0.0
    %1626 = vmatprep.subr.mxu0 0.0
    %1627 = vmatpush1.msra.mxu0 0.0
    %1628 = vmatprep.subr.mxu0 0.0
    %1629 = vmatpush1.msra.mxu0 0.0
    %1630 = vmatprep.subr.mxu0 0.0
    %1631 = vmatpush1.msra.mxu0 0.0
    %1632 = vmatprep.subr.mxu0 0.0
    %1633 = vmatpush1.msra.mxu0 0.0
    %1634 = vmatprep.subr.mxu0 0.0
    %1635 = vmatpush1.msra.mxu0 0.0
    %1636 = vmatprep.mubr.f32.mxu0 0.0
    %1637 = vmatmul.mubr.f32.gmra.mrb[0].mxu0 %v1570
    %v1638 = vpop.f32.mrb[0].mxu0
    %v1639 = vadd.f32 0.0, %v1638
    %v1640 = vpop.f32.mrb[0].mxu0
    %1641 = vdwg.mxu0
    %v1643 = vrot.slane %v1639, 2
    %v1645 = vadd.f32 %v1251, %v1643
    %v1646 = vxor.u32 %v1645, 2147483648
    %v1647 = vmul.f32 %v1646, 1.442695
    %v1648 = vpow.pop %v1647
    %v1649 = vadd.f32 %v1648, 1.0
    %v1650 = vrcp.pop %v1649
    %v1651 = vmul.f32 1.0, %v1650
    %v1652 = vtanh.pop %v1645
    %v1654 = vrot.slane %v1559, 6
    %v1656 = vmul.f32 %v1651, %v1654
    %1658 = vrot.lane.b32.xlu0 %v1652, 64
    %v1659 = vpop.permute.xlu0 %1658
    %v1661 = vmul.f32 %v1651, %v1659
    %1663 = vrot.lane.b32.xlu0 %v1661, 32
    %v1664 = vpop.permute.xlu0 %1663
    %v1666 = vadd.f32 %v1656, %v1664
    %v1667 = vtanh.pop %v1666
    %1669 = vrot.lane.b32.xlu0 %v1667, 64
    %v1670 = vpop.permute.xlu0 %1669
    %v1672 = vmul.f32 %v1651, %v1670
    %v1673 = vsel %vm1162, %v1352, %v1458
    %v1674 = vsel %vm1164, %v1673, %v1565
    %v1675 = vsel %vm1166, %v1674, %v1672
    %v1676 = vld [vmem:[%s13] sm:$0xff]
    %v1677 = vld [vmem:[%s13 + $0x8] sm:$0xff]
    %v1678 = vld [vmem:[%s13 + $0x10] sm:$0xff]
    %v1679 = vld [vmem:[%s13 + $0x18] sm:$0xff]
    %v1680 = vld [vmem:[%s15] sm:$0x1]
    %v1682 = vlaneseq
    %v1683 = vshrl.u32 %v1682, 7
    %v1684 = vsub.s32 0, %v1683
    %v1685 = vrot.slane %v1680, %v1684
    %1688 = vrot.lane.b32.xlu0 %v1675, 32
    %v1689 = vpop.permute.xlu0 %1688
    %v1690 = vsel %vm743, %v1689, 0
    %1692 = vmatprep.subr.mxu0 0.0
    %1693 = vmatpush1.msra.mxu0 %v1676
    %1694 = vmatprep.subr.mxu0 0.0
    %1695 = vmatpush1.msra.mxu0 %v1677
    %1696 = vmatprep.subr.mxu0 0.0
    %1697 = vmatpush1.msra.mxu0 %v1678
    %1698 = vmatprep.subr.mxu0 0.0
    %1699 = vmatpush1.msra.mxu0 %v1679
    %1700 = vmatprep.subr.mxu0 0.0
    %1701 = vmatpush1.msra.mxu0 0.0
    %1702 = vmatprep.subr.mxu0 0.0
    %1703 = vmatpush1.msra.mxu0 0.0
    %1704 = vmatprep.subr.mxu0 0.0
    %1705 = vmatpush1.msra.mxu0 0.0
    %1706 = vmatprep.subr.mxu0 0.0
    %1707 = vmatpush1.msra.mxu0 0.0
    %1708 = vmatprep.subr.mxu0 0.0
    %1709 = vmatpush1.msra.mxu0 0.0
    %1710 = vmatprep.subr.mxu0 0.0
    %1711 = vmatpush1.msra.mxu0 0.0
    %1712 = vmatprep.subr.mxu0 0.0
    %1713 = vmatpush1.msra.mxu0 0.0
    %1714 = vmatprep.subr.mxu0 0.0
    %1715 = vmatpush1.msra.mxu0 0.0
    %1716 = vmatprep.subr.mxu0 0.0
    %1717 = vmatpush1.msra.mxu0 0.0
    %1718 = vmatprep.subr.mxu0 0.0
    %1719 = vmatpush1.msra.mxu0 0.0
    %1720 = vmatprep.subr.mxu0 0.0
    %1721 = vmatpush1.msra.mxu0 0.0
    %1722 = vmatprep.subr.mxu0 0.0
    %1723 = vmatpush1.msra.mxu0 0.0
    %1724 = vmatprep.subr.mxu0 0.0
    %1725 = vmatpush1.msra.mxu0 0.0
    %1726 = vmatprep.subr.mxu0 0.0
    %1727 = vmatpush1.msra.mxu0 0.0
    %1728 = vmatprep.subr.mxu0 0.0
    %1729 = vmatpush1.msra.mxu0 0.0
    %1730 = vmatprep.subr.mxu0 0.0
    %1731 = vmatpush1.msra.mxu0 0.0
    %1732 = vmatprep.subr.mxu0 0.0
    %1733 = vmatpush1.msra.mxu0 0.0
    %1734 = vmatprep.subr.mxu0 0.0
    %1735 = vmatpush1.msra.mxu0 0.0
    %1736 = vmatprep.subr.mxu0 0.0
    %1737 = vmatpush1.msra.mxu0 0.0
    %1738 = vmatprep.subr.mxu0 0.0
    %1739 = vmatpush1.msra.mxu0 0.0
    %1740 = vmatprep.subr.mxu0 0.0
    %1741 = vmatpush1.msra.mxu0 0.0
    %1742 = vmatprep.subr.mxu0 0.0
    %1743 = vmatpush1.msra.mxu0 0.0
    %1744 = vmatprep.subr.mxu0 0.0
    %1745 = vmatpush1.msra.mxu0 0.0
    %1746 = vmatprep.subr.mxu0 0.0
    %1747 = vmatpush1.msra.mxu0 0.0
    %1748 = vmatprep.subr.mxu0 0.0
    %1749 = vmatpush1.msra.mxu0 0.0
    %1750 = vmatprep.subr.mxu0 0.0
    %1751 = vmatpush1.msra.mxu0 0.0
    %1752 = vmatprep.subr.mxu0 0.0
    %1753 = vmatpush1.msra.mxu0 0.0
    %1754 = vmatprep.subr.mxu0 0.0
    %1755 = vmatpush1.msra.mxu0 0.0
    %1756 = vmatprep.mubr.f32.mxu0 0.0
    %1757 = vmatmul.mubr.f32.gmra.mrb[0].mxu0 %v1690
    %v1758 = vpop.f32.mrb[0].mxu0
    %v1759 = vadd.f32 %v1685, %v1758
    %v1760 = vpop.f32.mrb[0].mxu0
    %1761 = vdwg.mxu0
    %v1762 = vld [vmem:[%s14] sm:$0xff]
    %v1763 = vld [vmem:[%s14 + $0x8] sm:$0xff]
    %v1764 = vld [vmem:[%s14 + $0x10] sm:$0xff]
    %v1765 = vld [vmem:[%s14 + $0x18] sm:$0xff]
    %1766 = vmatprep.subr.mxu0 0.0
    %1767 = vmatpush1.msra.mxu0 %v1762
    %1768 = vmatprep.subr.mxu0 0.0
    %1769 = vmatpush1.msra.mxu0 %v1763
    %1770 = vmatprep.subr.mxu0 0.0
    %1771 = vmatpush1.msra.mxu0 %v1764
    %1772 = vmatprep.subr.mxu0 0.0
    %1773 = vmatpush1.msra.mxu0 %v1765
    %1774 = vmatprep.subr.mxu0 0.0
    %1775 = vmatpush1.msra.mxu0 0.0
    %1776 = vmatprep.subr.mxu0 0.0
    %1777 = vmatpush1.msra.mxu0 0.0
    %1778 = vmatprep.subr.mxu0 0.0
    %1779 = vmatpush1.msra.mxu0 0.0
    %1780 = vmatprep.subr.mxu0 0.0
    %1781 = vmatpush1.msra.mxu0 0.0
    %1782 = vmatprep.subr.mxu0 0.0
    %1783 = vmatpush1.msra.mxu0 0.0
    %1784 = vmatprep.subr.mxu0 0.0
    %1785 = vmatpush1.msra.mxu0 0.0
    %1786 = vmatprep.subr.mxu0 0.0
    %1787 = vmatpush1.msra.mxu0 0.0
    %1788 = vmatprep.subr.mxu0 0.0
    %1789 = vmatpush1.msra.mxu0 0.0
    %1790 = vmatprep.subr.mxu0 0.0
    %1791 = vmatpush1.msra.mxu0 0.0
    %1792 = vmatprep.subr.mxu0 0.0
    %1793 = vmatpush1.msra.mxu0 0.0
    %1794 = vmatprep.subr.mxu0 0.0
    %1795 = vmatpush1.msra.mxu0 0.0
    %1796 = vmatprep.subr.mxu0 0.0
    %1797 = vmatpush1.msra.mxu0 0.0
    %1798 = vmatprep.subr.mxu0 0.0
    %1799 = vmatpush1.msra.mxu0 0.0
    %1800 = vmatprep.subr.mxu0 0.0
    %1801 = vmatpush1.msra.mxu0 0.0
    %1802 = vmatprep.subr.mxu0 0.0
    %1803 = vmatpush1.msra.mxu0 0.0
    %1804 = vmatprep.subr.mxu0 0.0
    %1805 = vmatpush1.msra.mxu0 0.0
    %1806 = vmatprep.subr.mxu0 0.0
    %1807 = vmatpush1.msra.mxu0 0.0
    %1808 = vmatprep.subr.mxu0 0.0
    %1809 = vmatpush1.msra.mxu0 0.0
    %1810 = vmatprep.subr.mxu0 0.0
    %1811 = vmatpush1.msra.mxu0 0.0
    %1812 = vmatprep.subr.mxu0 0.0
    %1813 = vmatpush1.msra.mxu0 0.0
    %1814 = vmatprep.subr.mxu0 0.0
    %1815 = vmatpush1.msra.mxu0 0.0
    %1816 = vmatprep.subr.mxu0 0.0
    %1817 = vmatpush1.msra.mxu0 0.0
    %1818 = vmatprep.subr.mxu0 0.0
    %1819 = vmatpush1.msra.mxu0 0.0
    %1820 = vmatprep.subr.mxu0 0.0
    %1821 = vmatpush1.msra.mxu0 0.0
    %1822 = vmatprep.subr.mxu0 0.0
    %1823 = vmatpush1.msra.mxu0 0.0
    %1824 = vmatprep.subr.mxu0 0.0
    %1825 = vmatpush1.msra.mxu0 0.0
    %1826 = vmatprep.subr.mxu0 0.0
    %1827 = vmatpush1.msra.mxu0 0.0
    %1828 = vmatprep.subr.mxu0 0.0
    %1829 = vmatpush1.msra.mxu0 0.0
    %1830 = vmatprep.mubr.f32.mxu0 0.0
    %1831 = vmatmul.mubr.f32.gmra.mrb[0].mxu0 %v745
    %v1832 = vpop.f32.mrb[0].mxu0
    %v1833 = vadd.f32 0.0, %v1832
    %v1834 = vpop.f32.mrb[0].mxu0
    %1835 = vdwg.mxu0
    %v1836 = vadd.f32 %v1759, %v1833
    %v1837 = vxor.u32 %v1836, 2147483648
    %v1838 = vmul.f32 %v1837, 1.442695
    %v1839 = vpow.pop %v1838
    %v1840 = vadd.f32 %v1839, 1.0
    %v1841 = vrcp.pop %v1840
    %v1842 = vmul.f32 1.0, %v1841
    %v1843 = vtanh.pop %v1836
    %v1844 = vmul.f32 %v1842, 0.0
    %1846 = vrot.lane.b32.xlu0 %v1843, 64
    %v1847 = vpop.permute.xlu0 %1846
    %v1849 = vmul.f32 %v1842, %v1847
    %1851 = vrot.lane.b32.xlu0 %v1849, 32
    %v1852 = vpop.permute.xlu0 %1851
    %v1854 = vadd.f32 %v1844, %v1852
    %v1855 = vtanh.pop %v1854
    %1857 = vrot.lane.b32.xlu0 %v1855, 64
    %v1858 = vpop.permute.xlu0 %1857
    %v1860 = vmul.f32 %v1842, %v1858
    %1862 = vrot.lane.b32.xlu0 %v1860, 32
    %v1863 = vpop.permute.xlu0 %1862
    %v1864 = vsel %vm743, %v1863, 0
    %1866 = vmatprep.subr.mxu0 0.0
    %1867 = vmatpush1.msra.mxu0 %v1762
    %1868 = vmatprep.subr.mxu0 0.0
    %1869 = vmatpush1.msra.mxu0 %v1763
    %1870 = vmatprep.subr.mxu0 0.0
    %1871 = vmatpush1.msra.mxu0 %v1764
    %1872 = vmatprep.subr.mxu0 0.0
    %1873 = vmatpush1.msra.mxu0 %v1765
    %1874 = vmatprep.subr.mxu0 0.0
    %1875 = vmatpush1.msra.mxu0 0.0
    %1876 = vmatprep.subr.mxu0 0.0
    %1877 = vmatpush1.msra.mxu0 0.0
    %1878 = vmatprep.subr.mxu0 0.0
    %1879 = vmatpush1.msra.mxu0 0.0
    %1880 = vmatprep.subr.mxu0 0.0
    %1881 = vmatpush1.msra.mxu0 0.0
    %1882 = vmatprep.subr.mxu0 0.0
    %1883 = vmatpush1.msra.mxu0 0.0
    %1884 = vmatprep.subr.mxu0 0.0
    %1885 = vmatpush1.msra.mxu0 0.0
    %1886 = vmatprep.subr.mxu0 0.0
    %1887 = vmatpush1.msra.mxu0 0.0
    %1888 = vmatprep.subr.mxu0 0.0
    %1889 = vmatpush1.msra.mxu0 0.0
    %1890 = vmatprep.subr.mxu0 0.0
    %1891 = vmatpush1.msra.mxu0 0.0
    %1892 = vmatprep.subr.mxu0 0.0
    %1893 = vmatpush1.msra.mxu0 0.0
    %1894 = vmatprep.subr.mxu0 0.0
    %1895 = vmatpush1.msra.mxu0 0.0
    %1896 = vmatprep.subr.mxu0 0.0
    %1897 = vmatpush1.msra.mxu0 0.0
    %1898 = vmatprep.subr.mxu0 0.0
    %1899 = vmatpush1.msra.mxu0 0.0
    %1900 = vmatprep.subr.mxu0 0.0
    %1901 = vmatpush1.msra.mxu0 0.0
    %1902 = vmatprep.subr.mxu0 0.0
    %1903 = vmatpush1.msra.mxu0 0.0
    %1904 = vmatprep.subr.mxu0 0.0
    %1905 = vmatpush1.msra.mxu0 0.0
    %1906 = vmatprep.subr.mxu0 0.0
    %1907 = vmatpush1.msra.mxu0 0.0
    %1908 = vmatprep.subr.mxu0 0.0
    %1909 = vmatpush1.msra.mxu0 0.0
    %1910 = vmatprep.subr.mxu0 0.0
    %1911 = vmatpush1.msra.mxu0 0.0
    %1912 = vmatprep.subr.mxu0 0.0
    %1913 = vmatpush1.msra.mxu0 0.0
    %1914 = vmatprep.subr.mxu0 0.0
    %1915 = vmatpush1.msra.mxu0 0.0
    %1916 = vmatprep.subr.mxu0 0.0
    %1917 = vmatpush1.msra.mxu0 0.0
    %1918 = vmatprep.subr.mxu0 0.0
    %1919 = vmatpush1.msra.mxu0 0.0
    %1920 = vmatprep.subr.mxu0 0.0
    %1921 = vmatpush1.msra.mxu0 0.0
    %1922 = vmatprep.subr.mxu0 0.0
    %1923 = vmatpush1.msra.mxu0 0.0
    %1924 = vmatprep.subr.mxu0 0.0
    %1925 = vmatpush1.msra.mxu0 0.0
    %1926 = vmatprep.subr.mxu0 0.0
    %1927 = vmatpush1.msra.mxu0 0.0
    %1928 = vmatprep.subr.mxu0 0.0
    %1929 = vmatpush1.msra.mxu0 0.0
    %1930 = vmatprep.mubr.f32.mxu0 0.0
    %1931 = vmatmul.mubr.f32.gmra.mrb[0].mxu0 %v1864
    %v1932 = vpop.f32.mrb[0].mxu0
    %v1933 = vadd.f32 0.0, %v1932
    %v1934 = vpop.f32.mrb[0].mxu0
    %1935 = vdwg.mxu0
    %v1937 = vrot.slane %v1933, 6
    %v1939 = vadd.f32 %v1759, %v1937
    %v1940 = vxor.u32 %v1939, 2147483648
    %v1941 = vmul.f32 %v1940, 1.442695
    %v1942 = vpow.pop %v1941
    %v1943 = vadd.f32 %v1942, 1.0
    %v1944 = vrcp.pop %v1943
    %v1945 = vmul.f32 1.0, %v1944
    %v1946 = vtanh.pop %v1939
    %v1948 = vrot.slane %v1854, 6
    %v1950 = vmul.f32 %v1945, %v1948
    %1952 = vrot.lane.b32.xlu0 %v1946, 64
    %v1953 = vpop.permute.xlu0 %1952
    %v1955 = vmul.f32 %v1945, %v1953
    %1957 = vrot.lane.b32.xlu0 %v1955, 32
    %v1958 = vpop.permute.xlu0 %1957
    %v1960 = vadd.f32 %v1950, %v1958
    %v1961 = vtanh.pop %v1960
    %1963 = vrot.lane.b32.xlu0 %v1961, 64
    %v1964 = vpop.permute.xlu0 %1963
    %v1966 = vmul.f32 %v1945, %v1964
    %v1968 = vrot.slane %v1966, 2
    %1969 = vrot.lane.b32.xlu0 %v1968, 32
    %v1970 = vpop.permute.xlu0 %1969
    %v1971 = vsel %vm743, %v1970, 0
    %1973 = vmatprep.subr.mxu0 0.0
    %1974 = vmatpush1.msra.mxu0 %v1762
    %1975 = vmatprep.subr.mxu0 0.0
    %1976 = vmatpush1.msra.mxu0 %v1763
    %1977 = vmatprep.subr.mxu0 0.0
    %1978 = vmatpush1.msra.mxu0 %v1764
    %1979 = vmatprep.subr.mxu0 0.0
    %1980 = vmatpush1.msra.mxu0 %v1765
    %1981 = vmatprep.subr.mxu0 0.0
    %1982 = vmatpush1.msra.mxu0 0.0
    %1983 = vmatprep.subr.mxu0 0.0
    %1984 = vmatpush1.msra.mxu0 0.0
    %1985 = vmatprep.subr.mxu0 0.0
    %1986 = vmatpush1.msra.mxu0 0.0
    %1987 = vmatprep.subr.mxu0 0.0
    %1988 = vmatpush1.msra.mxu0 0.0
    %1989 = vmatprep.subr.mxu0 0.0
    %1990 = vmatpush1.msra.mxu0 0.0
    %1991 = vmatprep.subr.mxu0 0.0
    %1992 = vmatpush1.msra.mxu0 0.0
    %1993 = vmatprep.subr.mxu0 0.0
    %1994 = vmatpush1.msra.mxu0 0.0
    %1995 = vmatprep.subr.mxu0 0.0
    %1996 = vmatpush1.msra.mxu0 0.0
    %1997 = vmatprep.subr.mxu0 0.0
    %1998 = vmatpush1.msra.mxu0 0.0
    %1999 = vmatprep.subr.mxu0 0.0
    %2000 = vmatpush1.msra.mxu0 0.0
    %2001 = vmatprep.subr.mxu0 0.0
    %2002 = vmatpush1.msra.mxu0 0.0
    %2003 = vmatprep.subr.mxu0 0.0
    %2004 = vmatpush1.msra.mxu0 0.0
    %2005 = vmatprep.subr.mxu0 0.0
    %2006 = vmatpush1.msra.mxu0 0.0
    %2007 = vmatprep.subr.mxu0 0.0
    %2008 = vmatpush1.msra.mxu0 0.0
    %2009 = vmatprep.subr.mxu0 0.0
    %2010 = vmatpush1.msra.mxu0 0.0
    %2011 = vmatprep.subr.mxu0 0.0
    %2012 = vmatpush1.msra.mxu0 0.0
    %2013 = vmatprep.subr.mxu0 0.0
    %2014 = vmatpush1.msra.mxu0 0.0
    %2015 = vmatprep.subr.mxu0 0.0
    %2016 = vmatpush1.msra.mxu0 0.0
    %2017 = vmatprep.subr.mxu0 0.0
    %2018 = vmatpush1.msra.mxu0 0.0
    %2019 = vmatprep.subr.mxu0 0.0
    %2020 = vmatpush1.msra.mxu0 0.0
    %2021 = vmatprep.subr.mxu0 0.0
    %2022 = vmatpush1.msra.mxu0 0.0
    %2023 = vmatprep.subr.mxu0 0.0
    %2024 = vmatpush1.msra.mxu0 0.0
    %2025 = vmatprep.subr.mxu0 0.0
    %2026 = vmatpush1.msra.mxu0 0.0
    %2027 = vmatprep.subr.mxu0 0.0
    %2028 = vmatpush1.msra.mxu0 0.0
    %2029 = vmatprep.subr.mxu0 0.0
    %2030 = vmatpush1.msra.mxu0 0.0
    %2031 = vmatprep.subr.mxu0 0.0
    %2032 = vmatpush1.msra.mxu0 0.0
    %2033 = vmatprep.subr.mxu0 0.0
    %2034 = vmatpush1.msra.mxu0 0.0
    %2035 = vmatprep.subr.mxu0 0.0
    %2036 = vmatpush1.msra.mxu0 0.0
    %2037 = vmatprep.mubr.f32.mxu0 0.0
    %2038 = vmatmul.mubr.f32.gmra.mrb[0].mxu0 %v1971
    %v2039 = vpop.f32.mrb[0].mxu0
    %v2040 = vadd.f32 0.0, %v2039
    %v2041 = vpop.f32.mrb[0].mxu0
    %2042 = vdwg.mxu0
    %v2044 = vrot.slane %v2040, 4
    %v2046 = vadd.f32 %v1759, %v2044
    %v2047 = vxor.u32 %v2046, 2147483648
    %v2048 = vmul.f32 %v2047, 1.442695
    %v2049 = vpow.pop %v2048
    %v2050 = vadd.f32 %v2049, 1.0
    %v2051 = vrcp.pop %v2050
    %v2052 = vmul.f32 1.0, %v2051
    %v2053 = vtanh.pop %v2046
    %v2055 = vrot.slane %v1960, 6
    %v2057 = vmul.f32 %v2052, %v2055
    %2059 = vrot.lane.b32.xlu0 %v2053, 64
    %v2060 = vpop.permute.xlu0 %2059
    %v2062 = vmul.f32 %v2052, %v2060
    %2064 = vrot.lane.b32.xlu0 %v2062, 32
    %v2065 = vpop.permute.xlu0 %2064
    %v2067 = vadd.f32 %v2057, %v2065
    %v2068 = vtanh.pop %v2067
    %2070 = vrot.lane.b32.xlu0 %v2068, 64
    %v2071 = vpop.permute.xlu0 %2070
    %v2073 = vmul.f32 %v2052, %v2071
    %v2075 = vrot.slane %v2073, 4
    %2076 = vrot.lane.b32.xlu0 %v2075, 32
    %v2077 = vpop.permute.xlu0 %2076
    %v2078 = vsel %vm743, %v2077, 0
    %2080 = vmatprep.subr.mxu0 0.0
    %2081 = vmatpush1.msra.mxu0 %v1762
    %2082 = vmatprep.subr.mxu0 0.0
    %2083 = vmatpush1.msra.mxu0 %v1763
    %2084 = vmatprep.subr.mxu0 0.0
    %2085 = vmatpush1.msra.mxu0 %v1764
    %2086 = vmatprep.subr.mxu0 0.0
    %2087 = vmatpush1.msra.mxu0 %v1765
    %2088 = vmatprep.subr.mxu0 0.0
    %2089 = vmatpush1.msra.mxu0 0.0
    %2090 = vmatprep.subr.mxu0 0.0
    %2091 = vmatpush1.msra.mxu0 0.0
    %2092 = vmatprep.subr.mxu0 0.0
    %2093 = vmatpush1.msra.mxu0 0.0
    %2094 = vmatprep.subr.mxu0 0.0
    %2095 = vmatpush1.msra.mxu0 0.0
    %2096 = vmatprep.subr.mxu0 0.0
    %2097 = vmatpush1.msra.mxu0 0.0
    %2098 = vmatprep.subr.mxu0 0.0
    %2099 = vmatpush1.msra.mxu0 0.0
    %2100 = vmatprep.subr.mxu0 0.0
    %2101 = vmatpush1.msra.mxu0 0.0
    %2102 = vmatprep.subr.mxu0 0.0
    %2103 = vmatpush1.msra.mxu0 0.0
    %2104 = vmatprep.subr.mxu0 0.0
    %2105 = vmatpush1.msra.mxu0 0.0
    %2106 = vmatprep.subr.mxu0 0.0
    %2107 = vmatpush1.msra.mxu0 0.0
    %2108 = vmatprep.subr.mxu0 0.0
    %2109 = vmatpush1.msra.mxu0 0.0
    %2110 = vmatprep.subr.mxu0 0.0
    %2111 = vmatpush1.msra.mxu0 0.0
    %2112 = vmatprep.subr.mxu0 0.0
    %2113 = vmatpush1.msra.mxu0 0.0
    %2114 = vmatprep.subr.mxu0 0.0
    %2115 = vmatpush1.msra.mxu0 0.0
    %2116 = vmatprep.subr.mxu0 0.0
    %2117 = vmatpush1.msra.mxu0 0.0
    %2118 = vmatprep.subr.mxu0 0.0
    %2119 = vmatpush1.msra.mxu0 0.0
    %2120 = vmatprep.subr.mxu0 0.0
    %2121 = vmatpush1.msra.mxu0 0.0
    %2122 = vmatprep.subr.mxu0 0.0
    %2123 = vmatpush1.msra.mxu0 0.0
    %2124 = vmatprep.subr.mxu0 0.0
    %2125 = vmatpush1.msra.mxu0 0.0
    %2126 = vmatprep.subr.mxu0 0.0
    %2127 = vmatpush1.msra.mxu0 0.0
    %2128 = vmatprep.subr.mxu0 0.0
    %2129 = vmatpush1.msra.mxu0 0.0
    %2130 = vmatprep.subr.mxu0 0.0
    %2131 = vmatpush1.msra.mxu0 0.0
    %2132 = vmatprep.subr.mxu0 0.0
    %2133 = vmatpush1.msra.mxu0 0.0
    %2134 = vmatprep.subr.mxu0 0.0
    %2135 = vmatpush1.msra.mxu0 0.0
    %2136 = vmatprep.subr.mxu0 0.0
    %2137 = vmatpush1.msra.mxu0 0.0
    %2138 = vmatprep.subr.mxu0 0.0
    %2139 = vmatpush1.msra.mxu0 0.0
    %2140 = vmatprep.subr.mxu0 0.0
    %2141 = vmatpush1.msra.mxu0 0.0
    %2142 = vmatprep.subr.mxu0 0.0
    %2143 = vmatpush1.msra.mxu0 0.0
    %2144 = vmatprep.mubr.f32.mxu0 0.0
    %2145 = vmatmul.mubr.f32.gmra.mrb[0].mxu0 %v2078
    %v2146 = vpop.f32.mrb[0].mxu0
    %v2147 = vadd.f32 0.0, %v2146
    %v2148 = vpop.f32.mrb[0].mxu0
    %2149 = vdwg.mxu0
    %v2151 = vrot.slane %v2147, 2
    %v2153 = vadd.f32 %v1759, %v2151
    %v2154 = vxor.u32 %v2153, 2147483648
    %v2155 = vmul.f32 %v2154, 1.442695
    %v2156 = vpow.pop %v2155
    %v2157 = vadd.f32 %v2156, 1.0
    %v2158 = vrcp.pop %v2157
    %v2159 = vmul.f32 1.0, %v2158
    %v2160 = vtanh.pop %v2153
    %v2162 = vrot.slane %v2067, 6
    %v2164 = vmul.f32 %v2159, %v2162
    %2166 = vrot.lane.b32.xlu0 %v2160, 64
    %v2167 = vpop.permute.xlu0 %2166
    %v2169 = vmul.f32 %v2159, %v2167
    %2171 = vrot.lane.b32.xlu0 %v2169, 32
    %v2172 = vpop.permute.xlu0 %2171
    %v2174 = vadd.f32 %v2164, %v2172
    %v2175 = vtanh.pop %v2174
    %2177 = vrot.lane.b32.xlu0 %v2175, 64
    %v2178 = vpop.permute.xlu0 %2177
    %v2180 = vmul.f32 %v2159, %v2178
    %2182 = vrot.lane.b32.xlu0 %v2180, 32
    %v2183 = vpop.permute.xlu0 %2182
    %vm2185 = vcmask 261126
    %2186 = vst.msk [vmem:[#allocation2 - $0x6] sm:$0xc0] %vm2185, %v2183
    // Predicated region
    $region66: #{encoder_forward.7} parent=1 // pred_check
      _
    $region67: #{encoder_forward.7} parent=1 // pred_check_branch
      %2188 = sbr.rel (0) target = $region69
    $region68: #{encoder_forward.7} parent=1 // pred_region
      %s2190 = ssub.s32 32, 32
      %2191 = vsyncadd [#allocation3], %s2190
      %s2193 = sshll.u32 [#allocation2], 4
      %s2194 = int_to_ptr.vmem [resolvable:$true] %s2193
      %2196 = dma.vmem_to_hbm [thread:$0]  %s2194, 32, %s16, [#allocation3]
    $region69: #{encoder_forward.7} parent=1 // pred_fallthru
      _
    // Predicated region
    $region70: #{encoder_forward.7} parent=1 // pred_check
      _
    $region71: #{encoder_forward.7} parent=1 // pred_check_branch
      %2198 = sbr.rel (0) target = $region73
    $region72: #{encoder_forward.7} parent=1 // pred_region
      %2199 = dma.done [#allocation3], 32
    $region73: #{encoder_forward.7} parent=1 // pred_fallthru
      _
    %2200 = vsyncpa [#allocation3], 1

</llo_original>
